<compile_context>
chip_gen: v5e
topology: v5e:2x2
jax: 0.10.0
libtpu: 0.0.40
codegen_flags: <defaults>
</compile_context>

<pallas_src>
import jax
import jax.numpy as jnp
import numpy as np
from jax.experimental import pallas as pl
from jax.experimental.pallas import tpu as pltpu


def _round_up(v, m):
    return (v + m - 1) // m * m


# ------------------------------ fused kernel -------------------------------

def _upblock_kernel(x_ref, br_ref, ua_ref, ub_ref, wadj_ref, badj_ref,
                    w1a_ref, w1b_ref, b1_ref, w2_ref, b2_ref, w3_ref, b3_ref,
                    o_ref, sa, sb, sc):
    """UpBlock forward for one image (grid iterates over the batch).

    x_ref   : (1, H*W, Cin)      input feature map (rows = spatial index)
    br_ref  : (1, 2H, 2W, Cbr)   bridge feature map, NHWC
    ua_ref  : (2H*W, H*W)        H-axis bilinear interp operator, kron(Lh, I_W)
    ub_ref  : (2H*2W, 2H*W)      W-axis bilinear interp operator, kron(I_2H, Lw)
    wadj_ref: (Cin, Cout)        1x1 channel-adjustment weights
    w1a_ref : (9*Cout, Cout)     conv1 weights, 'adjusted' half of the concat
    w1b_ref : (9*Cbr,  Cout)     conv1 weights, 'bridge' half of the concat
    w2_ref  : (9*Cout, Cout)     conv2 weights (im2col-flattened HWIO)
    w3_ref  : (9*Cout, Cout)     conv3 weights
    b*_ref  : (1, Cout)          biases (kept in f32)
    o_ref   : (1, 2H, 2W, Cout)  output, NHWC
    sa,sb,sc: (3, 2H+2, Wp, C)   zero-halo VMEM scratch holding the three
                                 dx-shifted copies of an activation
                                 (sa: adjusted & conv2, sb: bridge, sc: conv1)
    """
    _, Ho, Wo, _ = br_ref.shape
    Cout = o_ref.shape[3]
    cdt = sa.dtype                                   # compute / carry dtype
    f32 = jnp.float32

    # Zero the halo buffers; the zero border implements 'SAME' padding.  The
    # interiors are fully overwritten below, so ping-pong reuse is safe.
    sa[...] = jnp.zeros_like(sa)
    sb[...] = jnp.zeros_like(sb)
    sc[...] = jnp.zeros_like(sc)

    def store_shifted(s_ref, y):
        # Stage the three dx-shifted zero-halo copies once per activation so
        # every 3x3 tap read below is a sublane-aligned slice:
        #   s_ref[dx, r, w, :] == padded_activation[r, w + dx, :]
        y = y.astype(s_ref.dtype)
        s_ref[0, 1:Ho + 1, 1:Wo + 1, :] = y
        s_ref[1, 1:Ho + 1, 0:Wo, :] = y
        s_ref[2, 1:Ho + 1, 0:Wo - 1, :] = y[:, 1:Wo, :]

    def im2col(s_ref):
        # (3, Ho+2, Wp, C) staged shifts -> (Ho*Wo, 9*C) patch matrix, so each
        # 3x3 conv is ONE MXU matmul with K = 9*C instead of nine tiny ones.
        c = s_ref.shape[3]
        cols = [s_ref[dx, dy:dy + Ho, 0:Wo, :].reshape(Ho * Wo, c)
                for dy in range(3) for dx in range(3)]
        return jnp.concatenate(cols, axis=-1)

    def mm(a, w_ref):
        return jnp.dot(a.astype(cdt), w_ref[...], preferred_element_type=f32)

    # -- bilinear 2x upsample (align_corners=True): two spatial-operator matmuls
    up_h = jnp.dot(ua_ref[...], x_ref[0], preferred_element_type=f32)        # (2H*W, Cin)
    up = jnp.dot(ub_ref[...], up_h.astype(cdt), preferred_element_type=f32)  # (Ho*Wo, Cin)

    # -- 1x1 channel adjustment
    adj = mm(up, wadj_ref) + badj_ref[...]                                   # (Ho*Wo, Cout)
    store_shifted(sa, adj.reshape(Ho, Wo, Cout))
    store_shifted(sb, br_ref[0])

    # -- conv1 + ReLU: torch.cat([adjusted, bridge], 1) as a split matmul
    y = mm(im2col(sa), w1a_ref) + mm(im2col(sb), w1b_ref)
    y = jnp.maximum(y + b1_ref[...], 0.0)
    store_shifted(sc, y.reshape(Ho, Wo, Cout))
    # TODO(synk): Dropout2d(p=0.2) training-mode channel masking not
    #             implemented; eval-mode dropout is the identity (reproduced).

    # -- conv2 + ReLU (ping-pong back into sa, whose contents are now dead)
    y = jnp.maximum(mm(im2col(sc), w2_ref) + b2_ref[...], 0.0)
    store_shifted(sa, y.reshape(Ho, Wo, Cout))

    # -- conv3 + ReLU -> output
    y = jnp.maximum(mm(im2col(sa), w3_ref) + b3_ref[...], 0.0)
    o_ref[0] = y.reshape(Ho, Wo, Cout).astype(o_ref.dtype)


# ------------------------------ public wrapper ------------------------------

def _interp_matrix(n_in, n_out):
    """(n_out, n_in) f32 matrix for 1-D linear interpolation, align_corners=True."""
    if n_in == 1:
        return jnp.ones((n_out, 1), jnp.float32)
    i = jnp.arange(n_out, dtype=jnp.float32)
    src = i * (n_in - 1) / (n_out - 1)
    lo = jnp.clip(jnp.floor(src).astype(jnp.int32), 0, n_in - 2)
    frac = src - lo.astype(jnp.float32)
    return (jax.nn.one_hot(lo, n_in) * (1.0 - frac)[:, None]
            + jax.nn.one_hot(lo + 1, n_in) * frac[:, None]).astype(jnp.float32)


def up_block_forward(params, x_nchw, bridge_nchw, isdropout=False,
                     compute_dtype=jnp.float32):
    """Matches UpBlock.forward (activation=F.relu, eval-mode dropout). NCHW in/out.

    compute_dtype: dtype of the MXU matmul operands and the VMEM-resident
    intermediates (jnp.float32 or jnp.bfloat16); accumulation is always f32.
    """
    N, Cin, H, W = x_nchw.shape
    Nb, Cbr, Ho, Wo = bridge_nchw.shape
    assert Nb == N and Ho == 2 * H and Wo == 2 * W
    Cout = params['w_adj'].shape[1]
    assert params['w1'].shape[2] == Cout + Cbr          # concat feeds conv1

    cdt = compute_dtype
    out_dtype = x_nchw.dtype

    # NCHW -> NHWC once at the block boundary (channels land on TPU lanes);
    # x is additionally flattened to (spatial, channel) rows for the upsample.
    x2 = jnp.transpose(x_nchw, (0, 2, 3, 1)).reshape(N, H * W, Cin).astype(cdt)
    bridge = jnp.transpose(bridge_nchw, (0, 2, 3, 1)).astype(cdt)

    # Bilinear (align_corners=True) upsample as two spatial operators acting on
    # the (spatial, channel) layout -> plain 2-D MXU matmuls, no transposes.
    # TODO(synk): these kron-expanded operators scale as O((H*W)^2); for large
    #             images switch to separable per-axis matmuls with spatial tiling.
    lh = _interp_matrix(H, Ho)                                    # (2H, H)
    lw = _interp_matrix(W, Wo)                                    # (2W, W)
    ua = jnp.kron(lh, jnp.eye(W, dtype=jnp.float32))              # (2H*W, H*W)
    ub = jnp.kron(jnp.eye(Ho, dtype=jnp.float32), lw)             # (2H*2W, 2H*W)

    # Conv weights HWIO -> im2col-flattened (9*Cin, Cout); conv1 is split so
    # torch.cat becomes a sum of two matmuls.
    w1 = params['w1']
    w1a = w1[:, :, :Cout, :].reshape(9 * Cout, Cout)
    w1b = w1[:, :, Cout:, :].reshape(9 * Cbr, Cout)
    w2f = params['w2'].reshape(9 * Cout, Cout)
    w3f = params['w3'].reshape(9 * Cout, Cout)

    to_c = lambda a: a.astype(cdt)
    to_b = lambda a: a.astype(jnp.float32).reshape(1, Cout)

    Wp = _round_up(Wo + 2, 8)            # sublane-aligned halo-buffer width

    def const_spec(shape):
        return pl.BlockSpec(shape, lambda n: (0,) * len(shape))

    out = pl.pallas_call(
        _upblock_kernel,
        out_shape=jax.ShapeDtypeStruct((N, Ho, Wo, Cout), out_dtype),
        grid_spec=pltpu.PrefetchScalarGridSpec(
            num_scalar_prefetch=0,
            grid=(N,),
            in_specs=[
                pl.BlockSpec((1, H * W, Cin), lambda n: (n, 0, 0)),
                pl.BlockSpec((1, Ho, Wo, Cbr), lambda n: (n, 0, 0, 0)),
                const_spec((Ho * W, H * W)),
                const_spec((Ho * Wo, Ho * W)),
                const_spec((Cin, Cout)),
                const_spec((1, Cout)),
                const_spec((9 * Cout, Cout)),
                const_spec((9 * Cbr, Cout)),
                const_spec((1, Cout)),
                const_spec((9 * Cout, Cout)),
                const_spec((1, Cout)),
                const_spec((9 * Cout, Cout)),
                const_spec((1, Cout)),
            ],
            out_specs=pl.BlockSpec((1, Ho, Wo, Cout), lambda n: (n, 0, 0, 0)),
            scratch_shapes=[
                pltpu.VMEM((3, Ho + 2, Wp, Cout), cdt),   # sa: adjusted / conv2
                pltpu.VMEM((3, Ho + 2, Wp, Cbr), cdt),    # sb: bridge
                pltpu.VMEM((3, Ho + 2, Wp, Cout), cdt),   # sc: conv1
            ],
        ),
        compiler_params=pltpu.CompilerParams(
            # Batch axis shards across TensorCores (megacore / v7x dual-TC).
            # TODO(synk): for production sizes add a spatial row-band 'parallel'
            #             axis (1-row halo) so N=1 inference still fills both
            #             TCs and VMEM stays inside v7x's 64 MiB.
            dimension_semantics=("parallel",),
            vmem_limit_bytes=64 * 1024 * 1024,
        ),
    )(x2, bridge, to_c(ua), to_c(ub), to_c(params['w_adj']), to_b(params['b_adj']),
      to_c(w1a), to_c(w1b), to_b(params['b1']), to_c(w2f), to_b(params['b2']),
      to_c(w3f), to_b(params['b3']))

    return jnp.transpose(out, (0, 3, 1, 2))               # NHWC -> NCHW


def init_params(key, in_ch, out_ch, dtype=jnp.float32):
    ks = jax.random.split(key, 8)
    def w(k, shape, fan_in):
        return (jax.random.normal(k, shape, dtype) / np.sqrt(fan_in)).astype(dtype)
    return {
        'w_adj': w(ks[0], (in_ch, out_ch), in_ch),                 # 1x1 conv (Cin,Cout)
        'b_adj': w(ks[1], (out_ch,), in_ch),
        'w1': w(ks[2], (3, 3, in_ch, out_ch), 9 * in_ch),          # HWIO
        'b1': w(ks[3], (out_ch,), 9 * in_ch),
        'w2': w(ks[4], (3, 3, out_ch, out_ch), 9 * out_ch),
        'b2': w(ks[5], (out_ch,), 9 * out_ch),
        'w3': w(ks[6], (3, 3, out_ch, out_ch), 9 * out_ch),
        'b3': w(ks[7], (out_ch,), 9 * out_ch),
    }


# ---------------------------- pure-JAX reference ----------------------------

def bilinear_up2x_align_corners(x):
    """F.interpolate(scale_factor=2, mode='bilinear', align_corners=True) in NHWC."""
    N, H, W, C = x.shape
    Lh = _interp_matrix(H, 2 * H).astype(x.dtype)
    Lw = _interp_matrix(W, 2 * W).astype(x.dtype)
    y = jnp.einsum('oh,nhwc->nowc', Lh, x)
    y = jnp.einsum('pw,nowc->nopc', Lw, y)
    return y


def _ref_forward(params, x_nchw, bridge_nchw):
    dn = ('NHWC', 'HWIO', 'NHWC')
    x = jnp.transpose(x_nchw, (0, 2, 3, 1))
    bridge = jnp.transpose(bridge_nchw, (0, 2, 3, 1))
    x = bilinear_up2x_align_corners(x)
    x = jnp.einsum('nhwc,cd->nhwd', x, params['w_adj']) + params['b_adj']
    x = jnp.concatenate([x, bridge], axis=-1)
    for wk, bk in (('w1', 'b1'), ('w2', 'b2'), ('w3', 'b3')):
        x = jax.lax.conv_general_dilated(x, params[wk], (1, 1), 'SAME',
                                         dimension_numbers=dn) + params[bk]
        x = jnp.maximum(x, 0.0)
    return jnp.transpose(x, (0, 3, 1, 2))


# ---------------------------------- main ------------------------------------

if __name__ == "__main__":
    key = jax.random.PRNGKey(0)
    k_p, k_x, k_b = jax.random.split(key, 3)

    N, in_ch, out_ch, H, W = 2, 8, 4, 8, 8
    bridge_ch = in_ch - out_ch                        # so that cat -> in_ch channels
    x = jax.random.normal(k_x, (N, in_ch, H, W), jnp.float32)             # NCHW
    bridge = jax.random.normal(k_b, (N, bridge_ch, 2 * H, 2 * W), jnp.float32)
    params = init_params(k_p, in_ch, out_ch)

    ref = jax.block_until_ready(_ref_forward(params, x, bridge))

    # f32 compute path (typically matches the reference to ~1e-5; tolerance
    # leaves slack for MXU default-precision differences across TPU generations).
    fwd_f32 = jax.jit(lambda p, xi, bi: up_block_forward(p, xi, bi,
                                                         compute_dtype=jnp.float32))
    out_f32 = jax.block_until_ready(fwd_f32(params, x, bridge))
    assert out_f32.shape == (N, out_ch, 2 * H, 2 * W), out_f32.shape
    np.testing.assert_allclose(np.asarray(out_f32), np.asarray(ref),
                               rtol=1e-2, atol=1e-2)

    # bf16 compute path (fast path: bf16 MXU operands / bf16 intermediates,
    # f32 accumulation) -- looser tolerance for bf16 operand rounding.
    fwd_bf16 = jax.jit(lambda p, xi, bi: up_block_forward(p, xi, bi,
                                                          compute_dtype=jnp.bfloat16))
    out_bf16 = jax.block_until_ready(fwd_bf16(params, x, bridge))
    np.testing.assert_allclose(np.asarray(out_bf16), np.asarray(ref),
                               rtol=1e-1, atol=1e-1)

    print("KERNEL_OK")
</pallas_src>

<mosaic_0001>
module attributes {stable_mosaic.version = 11 : i64} {
  func.func @_upblock_kernel(%arg0: i32, %arg1: memref<1x64x8xf32, #tpu.memory_space<vmem>>, %arg2: memref<1x16x16x4xf32, #tpu.memory_space<vmem>>, %arg3: memref<128x64xf32, #tpu.memory_space<vmem>>, %arg4: memref<256x128xf32, #tpu.memory_space<vmem>>, %arg5: memref<8x4xf32, #tpu.memory_space<vmem>>, %arg6: memref<1x4xf32, #tpu.memory_space<vmem>>, %arg7: memref<36x4xf32, #tpu.memory_space<vmem>>, %arg8: memref<36x4xf32, #tpu.memory_space<vmem>>, %arg9: memref<1x4xf32, #tpu.memory_space<vmem>>, %arg10: memref<36x4xf32, #tpu.memory_space<vmem>>, %arg11: memref<1x4xf32, #tpu.memory_space<vmem>>, %arg12: memref<36x4xf32, #tpu.memory_space<vmem>>, %arg13: memref<1x4xf32, #tpu.memory_space<vmem>>, %arg14: memref<1x16x16x4xf32, #tpu.memory_space<vmem>>, %arg15: memref<3x18x24x4xf32, #tpu.memory_space<vmem>>, %arg16: memref<3x18x24x4xf32, #tpu.memory_space<vmem>>, %arg17: memref<3x18x24x4xf32, #tpu.memory_space<vmem>>) attributes {dimension_semantics = [#tpu.dimension_semantics<parallel>], iteration_bounds = array<i64: 2>, scalar_prefetch = 0 : i64, scratch_operands = 3 : i64, tpu.core_type = #tpu.core_type<tc>, window_params = [{transform_indices = @transform_0, window_bounds = array<i64: 1, 64, 8>}, {transform_indices = @transform_1, window_bounds = array<i64: 1, 16, 16, 4>}, {pipeline_mode = #tpu.pipeline_mode<synchronous>, transform_indices = @transform_2, window_bounds = array<i64: 128, 64>}, {pipeline_mode = #tpu.pipeline_mode<synchronous>, transform_indices = @transform_3, window_bounds = array<i64: 256, 128>}, {pipeline_mode = #tpu.pipeline_mode<synchronous>, transform_indices = @transform_4, window_bounds = array<i64: 8, 4>}, {pipeline_mode = #tpu.pipeline_mode<synchronous>, transform_indices = @transform_5, window_bounds = array<i64: 1, 4>}, {pipeline_mode = #tpu.pipeline_mode<synchronous>, transform_indices = @transform_6, window_bounds = array<i64: 36, 4>}, {pipeline_mode = #tpu.pipeline_mode<synchronous>, transform_indices = @transform_7, window_bounds = array<i64: 36, 4>}, {pipeline_mode = #tpu.pipeline_mode<synchronous>, transform_indices = @transform_8, window_bounds = array<i64: 1, 4>}, {pipeline_mode = #tpu.pipeline_mode<synchronous>, transform_indices = @transform_9, window_bounds = array<i64: 36, 4>}, {pipeline_mode = #tpu.pipeline_mode<synchronous>, transform_indices = @transform_10, window_bounds = array<i64: 1, 4>}, {pipeline_mode = #tpu.pipeline_mode<synchronous>, transform_indices = @transform_11, window_bounds = array<i64: 36, 4>}, {pipeline_mode = #tpu.pipeline_mode<synchronous>, transform_indices = @transform_12, window_bounds = array<i64: 1, 4>}, {transform_indices = @transform_13, window_bounds = array<i64: 1, 16, 16, 4>}]} {
    %cst = arith.constant 0.000000e+00 : f32
    %0 = vector.broadcast %cst : f32 to vector<3x18x24x4xf32>
    %c0 = arith.constant 0 : index
    %c0_0 = arith.constant 0 : index
    %c0_1 = arith.constant 0 : index
    %c0_2 = arith.constant 0 : index
    %1 = vector.load %arg15[%c0, %c0_0, %c0_1, %c0_2] : memref<3x18x24x4xf32, #tpu.memory_space<vmem>>, vector<3x18x24x4xf32>
    tpu.vector_store %arg15[%c0, %c0_0, %c0_1, %c0_2], %0 {strides = array<i32>} : memref<3x18x24x4xf32, #tpu.memory_space<vmem>>, vector<3x18x24x4xf32>,
    %cst_3 = arith.constant 0.000000e+00 : f32
    %2 = vector.broadcast %cst_3 : f32 to vector<3x18x24x4xf32>
    %c0_4 = arith.constant 0 : index
    %c0_5 = arith.constant 0 : index
    %c0_6 = arith.constant 0 : index
    %c0_7 = arith.constant 0 : index
    %3 = vector.load %arg16[%c0_4, %c0_5, %c0_6, %c0_7] : memref<3x18x24x4xf32, #tpu.memory_space<vmem>>, vector<3x18x24x4xf32>
    tpu.vector_store %arg16[%c0_4, %c0_5, %c0_6, %c0_7], %2 {strides = array<i32>} : memref<3x18x24x4xf32, #tpu.memory_space<vmem>>, vector<3x18x24x4xf32>,
    %cst_8 = arith.constant 0.000000e+00 : f32
    %4 = vector.broadcast %cst_8 : f32 to vector<3x18x24x4xf32>
    %c0_9 = arith.constant 0 : index
    %c0_10 = arith.constant 0 : index
    %c0_11 = arith.constant 0 : index
    %c0_12 = arith.constant 0 : index
    %5 = vector.load %arg17[%c0_9, %c0_10, %c0_11, %c0_12] : memref<3x18x24x4xf32, #tpu.memory_space<vmem>>, vector<3x18x24x4xf32>
    tpu.vector_store %arg17[%c0_9, %c0_10, %c0_11, %c0_12], %4 {strides = array<i32>} : memref<3x18x24x4xf32, #tpu.memory_space<vmem>>, vector<3x18x24x4xf32>,
    %c0_13 = arith.constant 0 : index
    %c0_14 = arith.constant 0 : index
    %6 = vector.load %arg3[%c0_13, %c0_14] : memref<128x64xf32, #tpu.memory_space<vmem>>, vector<128x64xf32>
    %c0_15 = arith.constant 0 : index
    %c0_16 = arith.constant 0 : index
    %c0_17 = arith.constant 0 : index
    %7 = vector.load %arg1[%c0_15, %c0_16, %c0_17] : memref<1x64x8xf32, #tpu.memory_space<vmem>>, vector<1x64x8xf32>
    %8 = vector.shape_cast %7 : vector<1x64x8xf32> to vector<64x8xf32>
    %cst_18 = arith.constant dense<0.000000e+00> : vector<128x8xf32>
    %9 = tpu.matmul %6, %8, %cst_18 {dimension_numbers = #tpu.dot_dimension_numbers<[1], [0], [0], [1], [0, 0, 1, 1], [], []>} : vector<128x64xf32>, vector<64x8xf32>, vector<128x8xf32> -> vector<128x8xf32>
    %c0_19 = arith.constant 0 : index
    %c0_20 = arith.constant 0 : index
    %10 = vector.load %arg4[%c0_19, %c0_20] : memref<256x128xf32, #tpu.memory_space<vmem>>, vector<256x128xf32>
    %cst_21 = arith.constant dense<0.000000e+00> : vector<256x8xf32>
    %11 = tpu.matmul %10, %9, %cst_21 {dimension_numbers = #tpu.dot_dimension_numbers<[1], [0], [0], [1], [0, 0, 1, 1], [], []>} : vector<256x128xf32>, vector<128x8xf32>, vector<256x8xf32> -> vector<256x8xf32>
    %c0_22 = arith.constant 0 : index
    %c0_23 = arith.constant 0 : index
    %12 = vector.load %arg5[%c0_22, %c0_23] : memref<8x4xf32, #tpu.memory_space<vmem>>, vector<8x4xf32>
    %cst_24 = arith.constant dense<0.000000e+00> : vector<256x4xf32>
    %13 = tpu.matmul %11, %12, %cst_24 {dimension_numbers = #tpu.dot_dimension_numbers<[1], [0], [0], [1], [0, 0, 1, 1], [], []>} : vector<256x8xf32>, vector<8x4xf32>, vector<256x4xf32> -> vector<256x4xf32>
    %c0_25 = arith.constant 0 : index
    %c0_26 = arith.constant 0 : index
    %14 = vector.load %arg6[%c0_25, %c0_26] : memref<1x4xf32, #tpu.memory_space<vmem>>, vector<1x4xf32>
    %15 = vector.broadcast %14 : vector<1x4xf32> to vector<256x4xf32>
    %16 = arith.addf %13, %15 : vector<256x4xf32>
    %17 = vector.shape_cast %16 : vector<256x4xf32> to vector<16x16x4xf32>
    %c0_27 = arith.constant 0 : index
    %c1 = arith.constant 1 : index
    %c1_28 = arith.constant 1 : index
    %c0_29 = arith.constant 0 : index
    %18 = vector.load %arg15[%c0_27, %c1, %c1_28, %c0_29] : memref<3x18x24x4xf32, #tpu.memory_space<vmem>>, vector<1x16x16x4xf32>
    %19 = vector.shape_cast %18 : vector<1x16x16x4xf32> to vector<16x16x4xf32>
    %20 = vector.shape_cast %17 : vector<16x16x4xf32> to vector<1x16x16x4xf32>
    tpu.vector_store %arg15[%c0_27, %c1, %c1_28, %c0_29], %20 {strides = array<i32>} : memref<3x18x24x4xf32, #tpu.memory_space<vmem>>, vector<1x16x16x4xf32>,
    %c1_30 = arith.constant 1 : index
    %c1_31 = arith.constant 1 : index
    %c0_32 = arith.constant 0 : index
    %c0_33 = arith.constant 0 : index
    %21 = vector.load %arg15[%c1_30, %c1_31, %c0_32, %c0_33] : memref<3x18x24x4xf32, #tpu.memory_space<vmem>>, vector<1x16x16x4xf32>
    %22 = vector.shape_cast %21 : vector<1x16x16x4xf32> to vector<16x16x4xf32>
    %23 = vector.shape_cast %17 : vector<16x16x4xf32> to vector<1x16x16x4xf32>
    tpu.vector_store %arg15[%c1_30, %c1_31, %c0_32, %c0_33], %23 {strides = array<i32>} : memref<3x18x24x4xf32, #tpu.memory_space<vmem>>, vector<1x16x16x4xf32>,
    %24 = vector.extract_strided_slice %17 {offsets = [0, 1, 0], sizes = [16, 15, 4], strides = [1, 1, 1]} : vector<16x16x4xf32> to vector<16x15x4xf32>
    %c2 = arith.constant 2 : index
    %c1_34 = arith.constant 1 : index
    %c0_35 = arith.constant 0 : index
    %c0_36 = arith.constant 0 : index
    %25 = vector.load %arg15[%c2, %c1_34, %c0_35, %c0_36] : memref<3x18x24x4xf32, #tpu.memory_space<vmem>>, vector<1x16x15x4xf32>
    %26 = vector.shape_cast %25 : vector<1x16x15x4xf32> to vector<16x15x4xf32>
    %27 = vector.shape_cast %24 : vector<16x15x4xf32> to vector<1x16x15x4xf32>
    tpu.vector_store %arg15[%c2, %c1_34, %c0_35, %c0_36], %27 {strides = array<i32>} : memref<3x18x24x4xf32, #tpu.memory_space<vmem>>, vector<1x16x15x4xf32>,
    %c0_37 = arith.constant 0 : index
    %c0_38 = arith.constant 0 : index
    %c0_39 = arith.constant 0 : index
    %c0_40 = arith.constant 0 : index
    %28 = vector.load %arg2[%c0_37, %c0_38, %c0_39, %c0_40] : memref<1x16x16x4xf32, #tpu.memory_space<vmem>>, vector<1x16x16x4xf32>
    %29 = vector.shape_cast %28 : vector<1x16x16x4xf32> to vector<16x16x4xf32>
    %c0_41 = arith.constant 0 : index
    %c1_42 = arith.constant 1 : index
    %c1_43 = arith.constant 1 : index
    %c0_44 = arith.constant 0 : index
    %30 = vector.load %arg16[%c0_41, %c1_42, %c1_43, %c0_44] : memref<3x18x24x4xf32, #tpu.memory_space<vmem>>, vector<1x16x16x4xf32>
    %31 = vector.shape_cast %30 : vector<1x16x16x4xf32> to vector<16x16x4xf32>
    %32 = vector.shape_cast %29 : vector<16x16x4xf32> to vector<1x16x16x4xf32>
    tpu.vector_store %arg16[%c0_41, %c1_42, %c1_43, %c0_44], %32 {strides = array<i32>} : memref<3x18x24x4xf32, #tpu.memory_space<vmem>>, vector<1x16x16x4xf32>,
    %c1_45 = arith.constant 1 : index
    %c1_46 = arith.constant 1 : index
    %c0_47 = arith.constant 0 : index
    %c0_48 = arith.constant 0 : index
    %33 = vector.load %arg16[%c1_45, %c1_46, %c0_47, %c0_48] : memref<3x18x24x4xf32, #tpu.memory_space<vmem>>, vector<1x16x16x4xf32>
    %34 = vector.shape_cast %33 : vector<1x16x16x4xf32> to vector<16x16x4xf32>
    %35 = vector.shape_cast %29 : vector<16x16x4xf32> to vector<1x16x16x4xf32>
    tpu.vector_store %arg16[%c1_45, %c1_46, %c0_47, %c0_48], %35 {strides = array<i32>} : memref<3x18x24x4xf32, #tpu.memory_space<vmem>>, vector<1x16x16x4xf32>,
    %36 = vector.extract_strided_slice %29 {offsets = [0, 1, 0], sizes = [16, 15, 4], strides = [1, 1, 1]} : vector<16x16x4xf32> to vector<16x15x4xf32>
    %c2_49 = arith.constant 2 : index
    %c1_50 = arith.constant 1 : index
    %c0_51 = arith.constant 0 : index
    %c0_52 = arith.constant 0 : index
    %37 = vector.load %arg16[%c2_49, %c1_50, %c0_51, %c0_52] : memref<3x18x24x4xf32, #tpu.memory_space<vmem>>, vector<1x16x15x4xf32>
    %38 = vector.shape_cast %37 : vector<1x16x15x4xf32> to vector<16x15x4xf32>
    %39 = vector.shape_cast %36 : vector<16x15x4xf32> to vector<1x16x15x4xf32>
    tpu.vector_store %arg16[%c2_49, %c1_50, %c0_51, %c0_52], %39 {strides = array<i32>} : memref<3x18x24x4xf32, #tpu.memory_space<vmem>>, vector<1x16x15x4xf32>,
    %c0_53 = arith.constant 0 : index
    %c0_54 = arith.constant 0 : index
    %c0_55 = arith.constant 0 : index
    %c0_56 = arith.constant 0 : index
    %40 = vector.load %arg15[%c0_53, %c0_54, %c0_55, %c0_56] : memref<3x18x24x4xf32, #tpu.memory_space<vmem>>, vector<1x16x16x4xf32>
    %41 = vector.shape_cast %40 : vector<1x16x16x4xf32> to vector<16x16x4xf32>
    %42 = vector.shape_cast %41 : vector<16x16x4xf32> to vector<256x4xf32>
    %c1_57 = arith.constant 1 : index
    %c0_58 = arith.constant 0 : index
    %c0_59 = arith.constant 0 : index
    %c0_60 = arith.constant 0 : index
    %43 = vector.load %arg15[%c1_57, %c0_58, %c0_59, %c0_60] : memref<3x18x24x4xf32, #tpu.memory_space<vmem>>, vector<1x16x16x4xf32>
    %44 = vector.shape_cast %43 : vector<1x16x16x4xf32> to vector<16x16x4xf32>
    %45 = vector.shape_cast %44 : vector<16x16x4xf32> to vector<256x4xf32>
    %c2_61 = arith.constant 2 : index
    %c0_62 = arith.constant 0 : index
    %c0_63 = arith.constant 0 : index
    %c0_64 = arith.constant 0 : index
    %46 = vector.load %arg15[%c2_61, %c0_62, %c0_63, %c0_64] : memref<3x18x24x4xf32, #tpu.memory_space<vmem>>, vector<1x16x16x4xf32>
    %47 = vector.shape_cast %46 : vector<1x16x16x4xf32> to vector<16x16x4xf32>
    %48 = vector.shape_cast %47 : vector<16x16x4xf32> to vector<256x4xf32>
    %c0_65 = arith.constant 0 : index
    %c1_66 = arith.constant 1 : index
    %c0_67 = arith.constant 0 : index
    %c0_68 = arith.constant 0 : index
    %49 = vector.load %arg15[%c0_65, %c1_66, %c0_67, %c0_68] : memref<3x18x24x4xf32, #tpu.memory_space<vmem>>, vector<1x16x16x4xf32>
    %50 = vector.shape_cast %49 : vector<1x16x16x4xf32> to vector<16x16x4xf32>
    %51 = vector.shape_cast %50 : vector<16x16x4xf32> to vector<256x4xf32>
    %c1_69 = arith.constant 1 : index
    %c1_70 = arith.constant 1 : index
    %c0_71 = arith.constant 0 : index
    %c0_72 = arith.constant 0 : index
    %52 = vector.load %arg15[%c1_69, %c1_70, %c0_71, %c0_72] : memref<3x18x24x4xf32, #tpu.memory_space<vmem>>, vector<1x16x16x4xf32>
    %53 = vector.shape_cast %52 : vector<1x16x16x4xf32> to vector<16x16x4xf32>
    %54 = vector.shape_cast %53 : vector<16x16x4xf32> to vector<256x4xf32>
    %c2_73 = arith.constant 2 : index
    %c1_74 = arith.constant 1 : index
    %c0_75 = arith.constant 0 : index
    %c0_76 = arith.constant 0 : index
    %55 = vector.load %arg15[%c2_73, %c1_74, %c0_75, %c0_76] : memref<3x18x24x4xf32, #tpu.memory_space<vmem>>, vector<1x16x16x4xf32>
    %56 = vector.shape_cast %55 : vector<1x16x16x4xf32> to vector<16x16x4xf32>
    %57 = vector.shape_cast %56 : vector<16x16x4xf32> to vector<256x4xf32>
    %c0_77 = arith.constant 0 : index
    %c2_78 = arith.constant 2 : index
    %c0_79 = arith.constant 0 : index
    %c0_80 = arith.constant 0 : index
    %58 = vector.load %arg15[%c0_77, %c2_78, %c0_79, %c0_80] : memref<3x18x24x4xf32, #tpu.memory_space<vmem>>, vector<1x16x16x4xf32>
    %59 = vector.shape_cast %58 : vector<1x16x16x4xf32> to vector<16x16x4xf32>
    %60 = vector.shape_cast %59 : vector<16x16x4xf32> to vector<256x4xf32>
    %c1_81 = arith.constant 1 : index
    %c2_82 = arith.constant 2 : index
    %c0_83 = arith.constant 0 : index
    %c0_84 = arith.constant 0 : index
    %61 = vector.load %arg15[%c1_81, %c2_82, %c0_83, %c0_84] : memref<3x18x24x4xf32, #tpu.memory_space<vmem>>, vector<1x16x16x4xf32>
    %62 = vector.shape_cast %61 : vector<1x16x16x4xf32> to vector<16x16x4xf32>
    %63 = vector.shape_cast %62 : vector<16x16x4xf32> to vector<256x4xf32>
    %c2_85 = arith.constant 2 : index
    %c2_86 = arith.constant 2 : index
    %c0_87 = arith.constant 0 : index
    %c0_88 = arith.constant 0 : index
    %64 = vector.load %arg15[%c2_85, %c2_86, %c0_87, %c0_88] : memref<3x18x24x4xf32, #tpu.memory_space<vmem>>, vector<1x16x16x4xf32>
    %65 = vector.shape_cast %64 : vector<1x16x16x4xf32> to vector<16x16x4xf32>
    %66 = vector.shape_cast %65 : vector<16x16x4xf32> to vector<256x4xf32>
    %67 = tpu.concatenate %42, %45, %48, %51, %54, %57, %60, %63, %66 in 1 : vector<256x4xf32>, vector<256x4xf32>, vector<256x4xf32>, vector<256x4xf32>, vector<256x4xf32>, vector<256x4xf32>, vector<256x4xf32>, vector<256x4xf32>, vector<256x4xf32> -> vector<256x36xf32>
    %c0_89 = arith.constant 0 : index
    %c0_90 = arith.constant 0 : index
    %68 = vector.load %arg7[%c0_89, %c0_90] : memref<36x4xf32, #tpu.memory_space<vmem>>, vector<36x4xf32>
    %cst_91 = arith.constant dense<0.000000e+00> : vector<256x4xf32>
    %69 = tpu.matmul %67, %68, %cst_91 {dimension_numbers = #tpu.dot_dimension_numbers<[1], [0], [0], [1], [0, 0, 1, 1], [], []>} : vector<256x36xf32>, vector<36x4xf32>, vector<256x4xf32> -> vector<256x4xf32>
    %c0_92 = arith.constant 0 : index
    %c0_93 = arith.constant 0 : index
    %c0_94 = arith.constant 0 : index
    %c0_95 = arith.constant 0 : index
    %70 = vector.load %arg16[%c0_92, %c0_93, %c0_94, %c0_95] : memref<3x18x24x4xf32, #tpu.memory_space<vmem>>, vector<1x16x16x4xf32>
    %71 = vector.shape_cast %70 : vector<1x16x16x4xf32> to vector<16x16x4xf32>
    %72 = vector.shape_cast %71 : vector<16x16x4xf32> to vector<256x4xf32>
    %c1_96 = arith.constant 1 : index
    %c0_97 = arith.constant 0 : index
    %c0_98 = arith.constant 0 : index
    %c0_99 = arith.constant 0 : index
    %73 = vector.load %arg16[%c1_96, %c0_97, %c0_98, %c0_99] : memref<3x18x24x4xf32, #tpu.memory_space<vmem>>, vector<1x16x16x4xf32>
    %74 = vector.shape_cast %73 : vector<1x16x16x4xf32> to vector<16x16x4xf32>
    %75 = vector.shape_cast %74 : vector<16x16x4xf32> to vector<256x4xf32>
    %c2_100 = arith.constant 2 : index
    %c0_101 = arith.constant 0 : index
    %c0_102 = arith.constant 0 : index
    %c0_103 = arith.constant 0 : index
    %76 = vector.load %arg16[%c2_100, %c0_101, %c0_102, %c0_103] : memref<3x18x24x4xf32, #tpu.memory_space<vmem>>, vector<1x16x16x4xf32>
    %77 = vector.shape_cast %76 : vector<1x16x16x4xf32> to vector<16x16x4xf32>
    %78 = vector.shape_cast %77 : vector<16x16x4xf32> to vector<256x4xf32>
    %c0_104 = arith.constant 0 : index
    %c1_105 = arith.constant 1 : index
    %c0_106 = arith.constant 0 : index
    %c0_107 = arith.constant 0 : index
    %79 = vector.load %arg16[%c0_104, %c1_105, %c0_106, %c0_107] : memref<3x18x24x4xf32, #tpu.memory_space<vmem>>, vector<1x16x16x4xf32>
    %80 = vector.shape_cast %79 : vector<1x16x16x4xf32> to vector<16x16x4xf32>
    %81 = vector.shape_cast %80 : vector<16x16x4xf32> to vector<256x4xf32>
    %c1_108 = arith.constant 1 : index
    %c1_109 = arith.constant 1 : index
    %c0_110 = arith.constant 0 : index
    %c0_111 = arith.constant 0 : index
    %82 = vector.load %arg16[%c1_108, %c1_109, %c0_110, %c0_111] : memref<3x18x24x4xf32, #tpu.memory_space<vmem>>, vector<1x16x16x4xf32>
    %83 = vector.shape_cast %82 : vector<1x16x16x4xf32> to vector<16x16x4xf32>
    %84 = vector.shape_cast %83 : vector<16x16x4xf32> to vector<256x4xf32>
    %c2_112 = arith.constant 2 : index
    %c1_113 = arith.constant 1 : index
    %c0_114 = arith.constant 0 : index
    %c0_115 = arith.constant 0 : index
    %85 = vector.load %arg16[%c2_112, %c1_113, %c0_114, %c0_115] : memref<3x18x24x4xf32, #tpu.memory_space<vmem>>, vector<1x16x16x4xf32>
    %86 = vector.shape_cast %85 : vector<1x16x16x4xf32> to vector<16x16x4xf32>
    %87 = vector.shape_cast %86 : vector<16x16x4xf32> to vector<256x4xf32>
    %c0_116 = arith.constant 0 : index
    %c2_117 = arith.constant 2 : index
    %c0_118 = arith.constant 0 : index
    %c0_119 = arith.constant 0 : index
    %88 = vector.load %arg16[%c0_116, %c2_117, %c0_118, %c0_119] : memref<3x18x24x4xf32, #tpu.memory_space<vmem>>, vector<1x16x16x4xf32>
    %89 = vector.shape_cast %88 : vector<1x16x16x4xf32> to vector<16x16x4xf32>
    %90 = vector.shape_cast %89 : vector<16x16x4xf32> to vector<256x4xf32>
    %c1_120 = arith.constant 1 : index
    %c2_121 = arith.constant 2 : index
    %c0_122 = arith.constant 0 : index
    %c0_123 = arith.constant 0 : index
    %91 = vector.load %arg16[%c1_120, %c2_121, %c0_122, %c0_123] : memref<3x18x24x4xf32, #tpu.memory_space<vmem>>, vector<1x16x16x4xf32>
    %92 = vector.shape_cast %91 : vector<1x16x16x4xf32> to vector<16x16x4xf32>
    %93 = vector.shape_cast %92 : vector<16x16x4xf32> to vector<256x4xf32>
    %c2_124 = arith.constant 2 : index
    %c2_125 = arith.constant 2 : index
    %c0_126 = arith.constant 0 : index
    %c0_127 = arith.constant 0 : index
    %94 = vector.load %arg16[%c2_124, %c2_125, %c0_126, %c0_127] : memref<3x18x24x4xf32, #tpu.memory_space<vmem>>, vector<1x16x16x4xf32>
    %95 = vector.shape_cast %94 : vector<1x16x16x4xf32> to vector<16x16x4xf32>
    %96 = vector.shape_cast %95 : vector<16x16x4xf32> to vector<256x4xf32>
    %97 = tpu.concatenate %72, %75, %78, %81, %84, %87, %90, %93, %96 in 1 : vector<256x4xf32>, vector<256x4xf32>, vector<256x4xf32>, vector<256x4xf32>, vector<256x4xf32>, vector<256x4xf32>, vector<256x4xf32>, vector<256x4xf32>, vector<256x4xf32> -> vector<256x36xf32>
    %c0_128 = arith.constant 0 : index
    %c0_129 = arith.constant 0 : index
    %98 = vector.load %arg8[%c0_128, %c0_129] : memref<36x4xf32, #tpu.memory_space<vmem>>, vector<36x4xf32>
    %cst_130 = arith.constant dense<0.000000e+00> : vector<256x4xf32>
    %99 = tpu.matmul %97, %98, %cst_130 {dimension_numbers = #tpu.dot_dimension_numbers<[1], [0], [0], [1], [0, 0, 1, 1], [], []>} : vector<256x36xf32>, vector<36x4xf32>, vector<256x4xf32> -> vector<256x4xf32>
    %100 = arith.addf %69, %99 : vector<256x4xf32>
    %c0_131 = arith.constant 0 : index
    %c0_132 = arith.constant 0 : index
    %101 = vector.load %arg9[%c0_131, %c0_132] : memref<1x4xf32, #tpu.memory_space<vmem>>, vector<1x4xf32>
    %102 = vector.broadcast %101 : vector<1x4xf32> to vector<256x4xf32>
    %103 = arith.addf %100, %102 : vector<256x4xf32>
    %cst_133 = arith.constant 0.000000e+00 : f32
    %104 = vector.broadcast %cst_133 : f32 to vector<256x4xf32>
    %105 = arith.maximumf %103, %104 : vector<256x4xf32>
    %106 = vector.shape_cast %105 : vector<256x4xf32> to vector<16x16x4xf32>
    %c0_134 = arith.constant 0 : index
    %c1_135 = arith.constant 1 : index
    %c1_136 = arith.constant 1 : index
    %c0_137 = arith.constant 0 : index
    %107 = vector.load %arg17[%c0_134, %c1_135, %c1_136, %c0_137] : memref<3x18x24x4xf32, #tpu.memory_space<vmem>>, vector<1x16x16x4xf32>
    %108 = vector.shape_cast %107 : vector<1x16x16x4xf32> to vector<16x16x4xf32>
    %109 = vector.shape_cast %106 : vector<16x16x4xf32> to vector<1x16x16x4xf32>
    tpu.vector_store %arg17[%c0_134, %c1_135, %c1_136, %c0_137], %109 {strides = array<i32>} : memref<3x18x24x4xf32, #tpu.memory_space<vmem>>, vector<1x16x16x4xf32>,
    %c1_138 = arith.constant 1 : index
    %c1_139 = arith.constant 1 : index
    %c0_140 = arith.constant 0 : index
    %c0_141 = arith.constant 0 : index
    %110 = vector.load %arg17[%c1_138, %c1_139, %c0_140, %c0_141] : memref<3x18x24x4xf32, #tpu.memory_space<vmem>>, vector<1x16x16x4xf32>
    %111 = vector.shape_cast %110 : vector<1x16x16x4xf32> to vector<16x16x4xf32>
    %112 = vector.shape_cast %106 : vector<16x16x4xf32> to vector<1x16x16x4xf32>
    tpu.vector_store %arg17[%c1_138, %c1_139, %c0_140, %c0_141], %112 {strides = array<i32>} : memref<3x18x24x4xf32, #tpu.memory_space<vmem>>, vector<1x16x16x4xf32>,
    %113 = vector.extract_strided_slice %106 {offsets = [0, 1, 0], sizes = [16, 15, 4], strides = [1, 1, 1]} : vector<16x16x4xf32> to vector<16x15x4xf32>
    %c2_142 = arith.constant 2 : index
    %c1_143 = arith.constant 1 : index
    %c0_144 = arith.constant 0 : index
    %c0_145 = arith.constant 0 : index
    %114 = vector.load %arg17[%c2_142, %c1_143, %c0_144, %c0_145] : memref<3x18x24x4xf32, #tpu.memory_space<vmem>>, vector<1x16x15x4xf32>
    %115 = vector.shape_cast %114 : vector<1x16x15x4xf32> to vector<16x15x4xf32>
    %116 = vector.shape_cast %113 : vector<16x15x4xf32> to vector<1x16x15x4xf32>
    tpu.vector_store %arg17[%c2_142, %c1_143, %c0_144, %c0_145], %116 {strides = array<i32>} : memref<3x18x24x4xf32, #tpu.memory_space<vmem>>, vector<1x16x15x4xf32>,
    %c0_146 = arith.constant 0 : index
    %c0_147 = arith.constant 0 : index
    %c0_148 = arith.constant 0 : index
    %c0_149 = arith.constant 0 : index
    %117 = vector.load %arg17[%c0_146, %c0_147, %c0_148, %c0_149] : memref<3x18x24x4xf32, #tpu.memory_space<vmem>>, vector<1x16x16x4xf32>
    %118 = vector.shape_cast %117 : vector<1x16x16x4xf32> to vector<16x16x4xf32>
    %119 = vector.shape_cast %118 : vector<16x16x4xf32> to vector<256x4xf32>
    %c1_150 = arith.constant 1 : index
    %c0_151 = arith.constant 0 : index
    %c0_152 = arith.constant 0 : index
    %c0_153 = arith.constant 0 : index
    %120 = vector.load %arg17[%c1_150, %c0_151, %c0_152, %c0_153] : memref<3x18x24x4xf32, #tpu.memory_space<vmem>>, vector<1x16x16x4xf32>
    %121 = vector.shape_cast %120 : vector<1x16x16x4xf32> to vector<16x16x4xf32>
    %122 = vector.shape_cast %121 : vector<16x16x4xf32> to vector<256x4xf32>
    %c2_154 = arith.constant 2 : index
    %c0_155 = arith.constant 0 : index
    %c0_156 = arith.constant 0 : index
    %c0_157 = arith.constant 0 : index
    %123 = vector.load %arg17[%c2_154, %c0_155, %c0_156, %c0_157] : memref<3x18x24x4xf32, #tpu.memory_space<vmem>>, vector<1x16x16x4xf32>
    %124 = vector.shape_cast %123 : vector<1x16x16x4xf32> to vector<16x16x4xf32>
    %125 = vector.shape_cast %124 : vector<16x16x4xf32> to vector<256x4xf32>
    %c0_158 = arith.constant 0 : index
    %c1_159 = arith.constant 1 : index
    %c0_160 = arith.constant 0 : index
    %c0_161 = arith.constant 0 : index
    %126 = vector.load %arg17[%c0_158, %c1_159, %c0_160, %c0_161] : memref<3x18x24x4xf32, #tpu.memory_space<vmem>>, vector<1x16x16x4xf32>
    %127 = vector.shape_cast %126 : vector<1x16x16x4xf32> to vector<16x16x4xf32>
    %128 = vector.shape_cast %127 : vector<16x16x4xf32> to vector<256x4xf32>
    %c1_162 = arith.constant 1 : index
    %c1_163 = arith.constant 1 : index
    %c0_164 = arith.constant 0 : index
    %c0_165 = arith.constant 0 : index
    %129 = vector.load %arg17[%c1_162, %c1_163, %c0_164, %c0_165] : memref<3x18x24x4xf32, #tpu.memory_space<vmem>>, vector<1x16x16x4xf32>
    %130 = vector.shape_cast %129 : vector<1x16x16x4xf32> to vector<16x16x4xf32>
    %131 = vector.shape_cast %130 : vector<16x16x4xf32> to vector<256x4xf32>
    %c2_166 = arith.constant 2 : index
    %c1_167 = arith.constant 1 : index
    %c0_168 = arith.constant 0 : index
    %c0_169 = arith.constant 0 : index
    %132 = vector.load %arg17[%c2_166, %c1_167, %c0_168, %c0_169] : memref<3x18x24x4xf32, #tpu.memory_space<vmem>>, vector<1x16x16x4xf32>
    %133 = vector.shape_cast %132 : vector<1x16x16x4xf32> to vector<16x16x4xf32>
    %134 = vector.shape_cast %133 : vector<16x16x4xf32> to vector<256x4xf32>
    %c0_170 = arith.constant 0 : index
    %c2_171 = arith.constant 2 : index
    %c0_172 = arith.constant 0 : index
    %c0_173 = arith.constant 0 : index
    %135 = vector.load %arg17[%c0_170, %c2_171, %c0_172, %c0_173] : memref<3x18x24x4xf32, #tpu.memory_space<vmem>>, vector<1x16x16x4xf32>
    %136 = vector.shape_cast %135 : vector<1x16x16x4xf32> to vector<16x16x4xf32>
    %137 = vector.shape_cast %136 : vector<16x16x4xf32> to vector<256x4xf32>
    %c1_174 = arith.constant 1 : index
    %c2_175 = arith.constant 2 : index
    %c0_176 = arith.constant 0 : index
    %c0_177 = arith.constant 0 : index
    %138 = vector.load %arg17[%c1_174, %c2_175, %c0_176, %c0_177] : memref<3x18x24x4xf32, #tpu.memory_space<vmem>>, vector<1x16x16x4xf32>
    %139 = vector.shape_cast %138 : vector<1x16x16x4xf32> to vector<16x16x4xf32>
    %140 = vector.shape_cast %139 : vector<16x16x4xf32> to vector<256x4xf32>
    %c2_178 = arith.constant 2 : index
    %c2_179 = arith.constant 2 : index
    %c0_180 = arith.constant 0 : index
    %c0_181 = arith.constant 0 : index
    %141 = vector.load %arg17[%c2_178, %c2_179, %c0_180, %c0_181] : memref<3x18x24x4xf32, #tpu.memory_space<vmem>>, vector<1x16x16x4xf32>
    %142 = vector.shape_cast %141 : vector<1x16x16x4xf32> to vector<16x16x4xf32>
    %143 = vector.shape_cast %142 : vector<16x16x4xf32> to vector<256x4xf32>
    %144 = tpu.concatenate %119, %122, %125, %128, %131, %134, %137, %140, %143 in 1 : vector<256x4xf32>, vector<256x4xf32>, vector<256x4xf32>, vector<256x4xf32>, vector<256x4xf32>, vector<256x4xf32>, vector<256x4xf32>, vector<256x4xf32>, vector<256x4xf32> -> vector<256x36xf32>
    %c0_182 = arith.constant 0 : index
    %c0_183 = arith.constant 0 : index
    %145 = vector.load %arg10[%c0_182, %c0_183] : memref<36x4xf32, #tpu.memory_space<vmem>>, vector<36x4xf32>
    %cst_184 = arith.constant dense<0.000000e+00> : vector<256x4xf32>
    %146 = tpu.matmul %144, %145, %cst_184 {dimension_numbers = #tpu.dot_dimension_numbers<[1], [0], [0], [1], [0, 0, 1, 1], [], []>} : vector<256x36xf32>, vector<36x4xf32>, vector<256x4xf32> -> vector<256x4xf32>
    %c0_185 = arith.constant 0 : index
    %c0_186 = arith.constant 0 : index
    %147 = vector.load %arg11[%c0_185, %c0_186] : memref<1x4xf32, #tpu.memory_space<vmem>>, vector<1x4xf32>
    %148 = vector.broadcast %147 : vector<1x4xf32> to vector<256x4xf32>
    %149 = arith.addf %146, %148 : vector<256x4xf32>
    %cst_187 = arith.constant 0.000000e+00 : f32
    %150 = vector.broadcast %cst_187 : f32 to vector<256x4xf32>
    %151 = arith.maximumf %149, %150 : vector<256x4xf32>
    %152 = vector.shape_cast %151 : vector<256x4xf32> to vector<16x16x4xf32>
    %c0_188 = arith.constant 0 : index
    %c1_189 = arith.constant 1 : index
    %c1_190 = arith.constant 1 : index
    %c0_191 = arith.constant 0 : index
    %153 = vector.load %arg15[%c0_188, %c1_189, %c1_190, %c0_191] : memref<3x18x24x4xf32, #tpu.memory_space<vmem>>, vector<1x16x16x4xf32>
    %154 = vector.shape_cast %153 : vector<1x16x16x4xf32> to vector<16x16x4xf32>
    %155 = vector.shape_cast %152 : vector<16x16x4xf32> to vector<1x16x16x4xf32>
    tpu.vector_store %arg15[%c0_188, %c1_189, %c1_190, %c0_191], %155 {strides = array<i32>} : memref<3x18x24x4xf32, #tpu.memory_space<vmem>>, vector<1x16x16x4xf32>,
    %c1_192 = arith.constant 1 : index
    %c1_193 = arith.constant 1 : index
    %c0_194 = arith.constant 0 : index
    %c0_195 = arith.constant 0 : index
    %156 = vector.load %arg15[%c1_192, %c1_193, %c0_194, %c0_195] : memref<3x18x24x4xf32, #tpu.memory_space<vmem>>, vector<1x16x16x4xf32>
    %157 = vector.shape_cast %156 : vector<1x16x16x4xf32> to vector<16x16x4xf32>
    %158 = vector.shape_cast %152 : vector<16x16x4xf32> to vector<1x16x16x4xf32>
    tpu.vector_store %arg15[%c1_192, %c1_193, %c0_194, %c0_195], %158 {strides = array<i32>} : memref<3x18x24x4xf32, #tpu.memory_space<vmem>>, vector<1x16x16x4xf32>,
    %159 = vector.extract_strided_slice %152 {offsets = [0, 1, 0], sizes = [16, 15, 4], strides = [1, 1, 1]} : vector<16x16x4xf32> to vector<16x15x4xf32>
    %c2_196 = arith.constant 2 : index
    %c1_197 = arith.constant 1 : index
    %c0_198 = arith.constant 0 : index
    %c0_199 = arith.constant 0 : index
    %160 = vector.load %arg15[%c2_196, %c1_197, %c0_198, %c0_199] : memref<3x18x24x4xf32, #tpu.memory_space<vmem>>, vector<1x16x15x4xf32>
    %161 = vector.shape_cast %160 : vector<1x16x15x4xf32> to vector<16x15x4xf32>
    %162 = vector.shape_cast %159 : vector<16x15x4xf32> to vector<1x16x15x4xf32>
    tpu.vector_store %arg15[%c2_196, %c1_197, %c0_198, %c0_199], %162 {strides = array<i32>} : memref<3x18x24x4xf32, #tpu.memory_space<vmem>>, vector<1x16x15x4xf32>,
    %c0_200 = arith.constant 0 : index
    %c0_201 = arith.constant 0 : index
    %c0_202 = arith.constant 0 : index
    %c0_203 = arith.constant 0 : index
    %163 = vector.load %arg15[%c0_200, %c0_201, %c0_202, %c0_203] : memref<3x18x24x4xf32, #tpu.memory_space<vmem>>, vector<1x16x16x4xf32>
    %164 = vector.shape_cast %163 : vector<1x16x16x4xf32> to vector<16x16x4xf32>
    %165 = vector.shape_cast %164 : vector<16x16x4xf32> to vector<256x4xf32>
    %c1_204 = arith.constant 1 : index
    %c0_205 = arith.constant 0 : index
    %c0_206 = arith.constant 0 : index
    %c0_207 = arith.constant 0 : index
    %166 = vector.load %arg15[%c1_204, %c0_205, %c0_206, %c0_207] : memref<3x18x24x4xf32, #tpu.memory_space<vmem>>, vector<1x16x16x4xf32>
    %167 = vector.shape_cast %166 : vector<1x16x16x4xf32> to vector<16x16x4xf32>
    %168 = vector.shape_cast %167 : vector<16x16x4xf32> to vector<256x4xf32>
    %c2_208 = arith.constant 2 : index
    %c0_209 = arith.constant 0 : index
    %c0_210 = arith.constant 0 : index
    %c0_211 = arith.constant 0 : index
    %169 = vector.load %arg15[%c2_208, %c0_209, %c0_210, %c0_211] : memref<3x18x24x4xf32, #tpu.memory_space<vmem>>, vector<1x16x16x4xf32>
    %170 = vector.shape_cast %169 : vector<1x16x16x4xf32> to vector<16x16x4xf32>
    %171 = vector.shape_cast %170 : vector<16x16x4xf32> to vector<256x4xf32>
    %c0_212 = arith.constant 0 : index
    %c1_213 = arith.constant 1 : index
    %c0_214 = arith.constant 0 : index
    %c0_215 = arith.constant 0 : index
    %172 = vector.load %arg15[%c0_212, %c1_213, %c0_214, %c0_215] : memref<3x18x24x4xf32, #tpu.memory_space<vmem>>, vector<1x16x16x4xf32>
    %173 = vector.shape_cast %172 : vector<1x16x16x4xf32> to vector<16x16x4xf32>
    %174 = vector.shape_cast %173 : vector<16x16x4xf32> to vector<256x4xf32>
    %c1_216 = arith.constant 1 : index
    %c1_217 = arith.constant 1 : index
    %c0_218 = arith.constant 0 : index
    %c0_219 = arith.constant 0 : index
    %175 = vector.load %arg15[%c1_216, %c1_217, %c0_218, %c0_219] : memref<3x18x24x4xf32, #tpu.memory_space<vmem>>, vector<1x16x16x4xf32>
    %176 = vector.shape_cast %175 : vector<1x16x16x4xf32> to vector<16x16x4xf32>
    %177 = vector.shape_cast %176 : vector<16x16x4xf32> to vector<256x4xf32>
    %c2_220 = arith.constant 2 : index
    %c1_221 = arith.constant 1 : index
    %c0_222 = arith.constant 0 : index
    %c0_223 = arith.constant 0 : index
    %178 = vector.load %arg15[%c2_220, %c1_221, %c0_222, %c0_223] : memref<3x18x24x4xf32, #tpu.memory_space<vmem>>, vector<1x16x16x4xf32>
    %179 = vector.shape_cast %178 : vector<1x16x16x4xf32> to vector<16x16x4xf32>
    %180 = vector.shape_cast %179 : vector<16x16x4xf32> to vector<256x4xf32>
    %c0_224 = arith.constant 0 : index
    %c2_225 = arith.constant 2 : index
    %c0_226 = arith.constant 0 : index
    %c0_227 = arith.constant 0 : index
    %181 = vector.load %arg15[%c0_224, %c2_225, %c0_226, %c0_227] : memref<3x18x24x4xf32, #tpu.memory_space<vmem>>, vector<1x16x16x4xf32>
    %182 = vector.shape_cast %181 : vector<1x16x16x4xf32> to vector<16x16x4xf32>
    %183 = vector.shape_cast %182 : vector<16x16x4xf32> to vector<256x4xf32>
    %c1_228 = arith.constant 1 : index
    %c2_229 = arith.constant 2 : index
    %c0_230 = arith.constant 0 : index
    %c0_231 = arith.constant 0 : index
    %184 = vector.load %arg15[%c1_228, %c2_229, %c0_230, %c0_231] : memref<3x18x24x4xf32, #tpu.memory_space<vmem>>, vector<1x16x16x4xf32>
    %185 = vector.shape_cast %184 : vector<1x16x16x4xf32> to vector<16x16x4xf32>
    %186 = vector.shape_cast %185 : vector<16x16x4xf32> to vector<256x4xf32>
    %c2_232 = arith.constant 2 : index
    %c2_233 = arith.constant 2 : index
    %c0_234 = arith.constant 0 : index
    %c0_235 = arith.constant 0 : index
    %187 = vector.load %arg15[%c2_232, %c2_233, %c0_234, %c0_235] : memref<3x18x24x4xf32, #tpu.memory_space<vmem>>, vector<1x16x16x4xf32>
    %188 = vector.shape_cast %187 : vector<1x16x16x4xf32> to vector<16x16x4xf32>
    %189 = vector.shape_cast %188 : vector<16x16x4xf32> to vector<256x4xf32>
    %190 = tpu.concatenate %165, %168, %171, %174, %177, %180, %183, %186, %189 in 1 : vector<256x4xf32>, vector<256x4xf32>, vector<256x4xf32>, vector<256x4xf32>, vector<256x4xf32>, vector<256x4xf32>, vector<256x4xf32>, vector<256x4xf32>, vector<256x4xf32> -> vector<256x36xf32>
    %c0_236 = arith.constant 0 : index
    %c0_237 = arith.constant 0 : index
    %191 = vector.load %arg12[%c0_236, %c0_237] : memref<36x4xf32, #tpu.memory_space<vmem>>, vector<36x4xf32>
    %cst_238 = arith.constant dense<0.000000e+00> : vector<256x4xf32>
    %192 = tpu.matmul %190, %191, %cst_238 {dimension_numbers = #tpu.dot_dimension_numbers<[1], [0], [0], [1], [0, 0, 1, 1], [], []>} : vector<256x36xf32>, vector<36x4xf32>, vector<256x4xf32> -> vector<256x4xf32>
    %c0_239 = arith.constant 0 : index
    %c0_240 = arith.constant 0 : index
    %193 = vector.load %arg13[%c0_239, %c0_240] : memref<1x4xf32, #tpu.memory_space<vmem>>, vector<1x4xf32>
    %194 = vector.broadcast %193 : vector<1x4xf32> to vector<256x4xf32>
    %195 = arith.addf %192, %194 : vector<256x4xf32>
    %cst_241 = arith.constant 0.000000e+00 : f32
    %196 = vector.broadcast %cst_241 : f32 to vector<256x4xf32>
    %197 = arith.maximumf %195, %196 : vector<256x4xf32>
    %198 = vector.shape_cast %197 : vector<256x4xf32> to vector<16x16x4xf32>
    %c0_242 = arith.constant 0 : index
    %c0_243 = arith.constant 0 : index
    %c0_244 = arith.constant 0 : index
    %c0_245 = arith.constant 0 : index
    %199 = vector.load %arg14[%c0_242, %c0_243, %c0_244, %c0_245] : memref<1x16x16x4xf32, #tpu.memory_space<vmem>>, vector<1x16x16x4xf32>
    %200 = vector.shape_cast %199 : vector<1x16x16x4xf32> to vector<16x16x4xf32>
    %201 = vector.shape_cast %198 : vector<16x16x4xf32> to vector<1x16x16x4xf32>
    tpu.vector_store %arg14[%c0_242, %c0_243, %c0_244, %c0_245], %201 {strides = array<i32>} : memref<1x16x16x4xf32, #tpu.memory_space<vmem>>, vector<1x16x16x4xf32>,
    return
  }
  func.func @transform_0(%arg0: i32) -> (i32, i32, i32) {
    %c0_i32 = arith.constant 0 : i32
    %c0_i32_0 = arith.constant 0 : i32
    %c0_i32_1 = arith.constant 0 : i32
    return %arg0, %c0_i32, %c0_i32_0 : i32, i32, i32
  }
  func.func @transform_1(%arg0: i32) -> (i32, i32, i32, i32) {
    %c0_i32 = arith.constant 0 : i32
    %c0_i32_0 = arith.constant 0 : i32
    %c0_i32_1 = arith.constant 0 : i32
    %c0_i32_2 = arith.constant 0 : i32
    return %arg0, %c0_i32, %c0_i32_0, %c0_i32_1 : i32, i32, i32, i32
  }
  func.func @transform_2(%arg0: i32) -> (i32, i32) {
    %c0_i32 = arith.constant 0 : i32
    %c0_i32_0 = arith.constant 0 : i32
    %c0_i32_1 = arith.constant 0 : i32
    return %c0_i32, %c0_i32_0 : i32, i32
  }
  func.func @transform_3(%arg0: i32) -> (i32, i32) {
    %c0_i32 = arith.constant 0 : i32
    %c0_i32_0 = arith.constant 0 : i32
    %c0_i32_1 = arith.constant 0 : i32
    return %c0_i32, %c0_i32_0 : i32, i32
  }
  func.func @transform_4(%arg0: i32) -> (i32, i32) {
    %c0_i32 = arith.constant 0 : i32
    %c0_i32_0 = arith.constant 0 : i32
    %c0_i32_1 = arith.constant 0 : i32
    return %c0_i32, %c0_i32_0 : i32, i32
  }
  func.func @transform_5(%arg0: i32) -> (i32, i32) {
    %c0_i32 = arith.constant 0 : i32
    %c0_i32_0 = arith.constant 0 : i32
    %c0_i32_1 = arith.constant 0 : i32
    return %c0_i32, %c0_i32_0 : i32, i32
  }
  func.func @transform_6(%arg0: i32) -> (i32, i32) {
    %c0_i32 = arith.constant 0 : i32
    %c0_i32_0 = arith.constant 0 : i32
    %c0_i32_1 = arith.constant 0 : i32
    return %c0_i32, %c0_i32_0 : i32, i32
  }
  func.func @transform_7(%arg0: i32) -> (i32, i32) {
    %c0_i32 = arith.constant 0 : i32
    %c0_i32_0 = arith.constant 0 : i32
    %c0_i32_1 = arith.constant 0 : i32
    return %c0_i32, %c0_i32_0 : i32, i32
  }
  func.func @transform_8(%arg0: i32) -> (i32, i32) {
    %c0_i32 = arith.constant 0 : i32
    %c0_i32_0 = arith.constant 0 : i32
    %c0_i32_1 = arith.constant 0 : i32
    return %c0_i32, %c0_i32_0 : i32, i32
  }
  func.func @transform_9(%arg0: i32) -> (i32, i32) {
    %c0_i32 = arith.constant 0 : i32
    %c0_i32_0 = arith.constant 0 : i32
    %c0_i32_1 = arith.constant 0 : i32
    return %c0_i32, %c0_i32_0 : i32, i32
  }
  func.func @transform_10(%arg0: i32) -> (i32, i32) {
    %c0_i32 = arith.constant 0 : i32
    %c0_i32_0 = arith.constant 0 : i32
    %c0_i32_1 = arith.constant 0 : i32
    return %c0_i32, %c0_i32_0 : i32, i32
  }
  func.func @transform_11(%arg0: i32) -> (i32, i32) {
    %c0_i32 = arith.constant 0 : i32
    %c0_i32_0 = arith.constant 0 : i32
    %c0_i32_1 = arith.constant 0 : i32
    return %c0_i32, %c0_i32_0 : i32, i32
  }
  func.func @transform_12(%arg0: i32) -> (i32, i32) {
    %c0_i32 = arith.constant 0 : i32
    %c0_i32_0 = arith.constant 0 : i32
    %c0_i32_1 = arith.constant 0 : i32
    return %c0_i32, %c0_i32_0 : i32, i32
  }
  func.func @transform_13(%arg0: i32) -> (i32, i32, i32, i32) {
    %c0_i32 = arith.constant 0 : i32
    %c0_i32_0 = arith.constant 0 : i32
    %c0_i32_1 = arith.constant 0 : i32
    %c0_i32_2 = arith.constant 0 : i32
    return %arg0, %c0_i32, %c0_i32_0, %c0_i32_1 : i32, i32, i32, i32
  }
}

</mosaic_0001>

<llo_original>
// kernel: _lambda_.1
$region0: #{_lambda_.1}
  #allocation0 [shape = 'u32[]', space=smem, size = 0x4, offset = 0x4, fixed_abs, tag = 'smem constant byte address 0x4 - core index']
  #allocation1 [shape = 'u32[72,128]{1,0:T(1,128)}', space=vmem, size = 0x9000, scoped, tag = 'internal scratch']
  #allocation2 [shape = 'f32[3,18,24,4]{3,2,1,0:T(8,128)}', space=vmem, size = 0xa2000, scoped, tag = 'scratch operand']
  #allocation3 [shape = 'f32[3,18,24,4]{3,2,1,0:T(8,128)}', space=vmem, size = 0xa2000, scoped, tag = 'scratch operand']
  #allocation4 [shape = 'f32[3,18,24,4]{3,2,1,0:T(8,128)}', space=vmem, size = 0xa2000, scoped, tag = 'scratch operand']
  %s0 = inlined_call_operand.vmem [shape: f32[2,64,8], index: 0, kind: input, shape index: {}]
  %s1 = inlined_call_operand.vmem [shape: f32[2,16,16,4], index: 1, kind: input, shape index: {}]
  %s2 = inlined_call_operand.vmem [shape: f32[128,64], index: 2, kind: input, shape index: {}]
  %s3 = inlined_call_operand.vmem [shape: f32[256,128], index: 3, kind: input, shape index: {}]
  %s4 = inlined_call_operand.vmem [shape: f32[8,4], index: 4, kind: input, shape index: {}]
  %s5 = inlined_call_operand.vmem [shape: f32[1,4], index: 5, kind: input, shape index: {}]
  %s6 = inlined_call_operand.vmem [shape: f32[36,4], index: 6, kind: input, shape index: {}]
  %s7 = inlined_call_operand.vmem [shape: f32[36,4], index: 7, kind: input, shape index: {}]
  %s8 = inlined_call_operand.vmem [shape: f32[1,4], index: 8, kind: input, shape index: {}]
  %s9 = inlined_call_operand.vmem [shape: f32[36,4], index: 9, kind: input, shape index: {}]
  %s10 = inlined_call_operand.vmem [shape: f32[1,4], index: 10, kind: input, shape index: {}]
  %s11 = inlined_call_operand.vmem [shape: f32[36,4], index: 11, kind: input, shape index: {}]
  %s12 = inlined_call_operand.vmem [shape: f32[1,4], index: 12, kind: input, shape index: {}]
  %s13 = inlined_call_operand.vmem [shape: f32[2,16,16,4], index: 13, kind: output, shape index: {}]
  %s14 = sld [smem:[#allocation0]]
  $region85: #{_lambda_.1} parent=0
    _
  %s16 = ssub.s32 1, %s14
  %s17 = scalar_select 0, %s16, %s14
  loop: start=0, step=1, limit=4
  $region2: #{_lambda_.1} parent=0 // loop_pre_header
    _
  $region3: #{_lambda_.1} parent=0 // loop_header
    %s19 = sphi 0, %s23
    %p20 = scmp.ge.s32.totalorder %s19, 4
    %s29 = sphi 0, %s31
    %s32 = sphi 0, %s29
    %s33 = sphi 0, %s32
    %s49 = sphi 0, %s33
    %s55 = sphi 0, %s57
    %s58 = sphi 0, %s55
    %s59 = sphi 0, %s58
    %s75 = sphi 0, %s59
    %s79 = sphi 0, %s79
    %s81 = sphi 0, %s79
    %s82 = sphi 0, %s81
    %s96 = sphi 0, %s82
    %s100 = sphi 0, %s100
    %s102 = sphi 0, %s100
    %s103 = sphi 0, %s102
    %s117 = sphi 0, %s103
    %s121 = sphi 0, %s121
    %s123 = sphi 0, %s121
    %s124 = sphi 0, %s123
    %s138 = sphi 0, %s124
    %s142 = sphi 0, %s142
    %s144 = sphi 0, %s142
    %s145 = sphi 0, %s144
    %s159 = sphi 0, %s145
    %s163 = sphi 0, %s163
    %s165 = sphi 0, %s163
    %s166 = sphi 0, %s165
    %s180 = sphi 0, %s166
    %s184 = sphi 0, %s184
    %s186 = sphi 0, %s184
    %s187 = sphi 0, %s186
    %s201 = sphi 0, %s187
    %s205 = sphi 0, %s205
    %s207 = sphi 0, %s205
    %s208 = sphi 0, %s207
    %s222 = sphi 0, %s208
    %s226 = sphi 0, %s226
    %s228 = sphi 0, %s226
    %s229 = sphi 0, %s228
    %s243 = sphi 0, %s229
    %s247 = sphi 0, %s247
    %s249 = sphi 0, %s247
    %s250 = sphi 0, %s249
    %s264 = sphi 0, %s250
    %s268 = sphi 0, %s268
    %s270 = sphi 0, %s268
    %s271 = sphi 0, %s270
    %s285 = sphi 0, %s271
    %s289 = sphi 0, %s289
    %s291 = sphi 0, %s289
    %s292 = sphi 0, %s291
    %s306 = sphi 0, %s292
    %s312 = sphi 0, %s314
    %s315 = sphi 0, %s312
    %s316 = sphi 0, %s315
    %s332 = sphi 0, %s316
  $region4: #{_lambda_.1} parent=0 // loop_header_branch
    %22 = sbr.rel (%p20) target = $region8
  $region5: #{_lambda_.1} parent=0 // loop_body
    %s24 = ssub.s32 %s19, 1
    %s25 = ssub.s32 %s19, 2
    %s26 = sadd.s32 %s19, 1
    %s27 = ssub.s32 %s19, %s26
    %p28 = scmp.eq.s32.totalorder %s27, 0
    %s30 = sadd.s32 %s29, 1
    %s31 = scalar_select %p28, %s29, %s30
    %p34 = pneg %p28
    %p35 = scmp.eq.s32.totalorder %s19, 1
    %p36 = por %p34, %p35
    %p37 = scmp.ne.s32.totalorder %s29, %s32
    %p38 = scmp.eq.s32.totalorder %s19, 0
    %p39 = por %p37, %p38
    %p40 = scmp.ne.s32.totalorder %s29, %s32
    %p41 = scmp.eq.s32.totalorder %s24, 1
    %p42 = por %p40, %p41
    %p43 = scmp.ne.s32.totalorder %s32, %s33
    %p44 = scmp.eq.s32.totalorder %s24, 0
    %p45 = por %p43, %p44
    %p46 = scmp.ne.s32.totalorder %s32, %s33
    %p47 = scmp.eq.s32.totalorder %s25, 1
    %p48 = por %p46, %p47
    %p50 = scmp.ne.s32.totalorder %s33, %s49
    %p51 = scmp.eq.s32.totalorder %s25, 0
    %p52 = por %p50, %p51
    %s53 = ssub.s32 %s19, %s26
    %p54 = scmp.eq.s32.totalorder %s53, 0
    %s56 = sadd.s32 %s55, 1
    %s57 = scalar_select %p54, %s55, %s56
    %p60 = pneg %p54
    %p61 = scmp.eq.s32.totalorder %s19, 1
    %p62 = por %p60, %p61
    %p63 = scmp.ne.s32.totalorder %s55, %s58
    %p64 = scmp.eq.s32.totalorder %s19, 0
    %p65 = por %p63, %p64
    %p66 = scmp.ne.s32.totalorder %s55, %s58
    %p67 = scmp.eq.s32.totalorder %s24, 1
    %p68 = por %p66, %p67
    %p69 = scmp.ne.s32.totalorder %s58, %s59
    %p70 = scmp.eq.s32.totalorder %s24, 0
    %p71 = por %p69, %p70
    %p72 = scmp.ne.s32.totalorder %s58, %s59
    %p73 = scmp.eq.s32.totalorder %s25, 1
    %p74 = por %p72, %p73
    %p76 = scmp.ne.s32.totalorder %s59, %s75
    %p77 = scmp.eq.s32.totalorder %s25, 0
    %p78 = por %p76, %p77
    %s80 = sadd.s32 %s79, 1
    %p83 = scmp.eq.s32.totalorder %s19, 1
    %p84 = scmp.ne.s32.totalorder %s79, %s81
    %p85 = scmp.eq.s32.totalorder %s19, 0
    %p86 = por %p84, %p85
    %p87 = scmp.ne.s32.totalorder %s79, %s81
    %p88 = scmp.eq.s32.totalorder %s24, 1
    %p89 = por %p87, %p88
    %p90 = scmp.ne.s32.totalorder %s81, %s82
    %p91 = scmp.eq.s32.totalorder %s24, 0
    %p92 = por %p90, %p91
    %p93 = scmp.ne.s32.totalorder %s81, %s82
    %p94 = scmp.eq.s32.totalorder %s25, 1
    %p95 = por %p93, %p94
    %p97 = scmp.ne.s32.totalorder %s82, %s96
    %p98 = scmp.eq.s32.totalorder %s25, 0
    %p99 = por %p97, %p98
    %s101 = sadd.s32 %s100, 1
    %p104 = scmp.eq.s32.totalorder %s19, 1
    %p105 = scmp.ne.s32.totalorder %s100, %s102
    %p106 = scmp.eq.s32.totalorder %s19, 0
    %p107 = por %p105, %p106
    %p108 = scmp.ne.s32.totalorder %s100, %s102
    %p109 = scmp.eq.s32.totalorder %s24, 1
    %p110 = por %p108, %p109
    %p111 = scmp.ne.s32.totalorder %s102, %s103
    %p112 = scmp.eq.s32.totalorder %s24, 0
    %p113 = por %p111, %p112
    %p114 = scmp.ne.s32.totalorder %s102, %s103
    %p115 = scmp.eq.s32.totalorder %s25, 1
    %p116 = por %p114, %p115
    %p118 = scmp.ne.s32.totalorder %s103, %s117
    %p119 = scmp.eq.s32.totalorder %s25, 0
    %p120 = por %p118, %p119
    %s122 = sadd.s32 %s121, 1
    %p125 = scmp.eq.s32.totalorder %s19, 1
    %p126 = scmp.ne.s32.totalorder %s121, %s123
    %p127 = scmp.eq.s32.totalorder %s19, 0
    %p128 = por %p126, %p127
    %p129 = scmp.ne.s32.totalorder %s121, %s123
    %p130 = scmp.eq.s32.totalorder %s24, 1
    %p131 = por %p129, %p130
    %p132 = scmp.ne.s32.totalorder %s123, %s124
    %p133 = scmp.eq.s32.totalorder %s24, 0
    %p134 = por %p132, %p133
    %p135 = scmp.ne.s32.totalorder %s123, %s124
    %p136 = scmp.eq.s32.totalorder %s25, 1
    %p137 = por %p135, %p136
    %p139 = scmp.ne.s32.totalorder %s124, %s138
    %p140 = scmp.eq.s32.totalorder %s25, 0
    %p141 = por %p139, %p140
    %s143 = sadd.s32 %s142, 1
    %p146 = scmp.eq.s32.totalorder %s19, 1
    %p147 = scmp.ne.s32.totalorder %s142, %s144
    %p148 = scmp.eq.s32.totalorder %s19, 0
    %p149 = por %p147, %p148
    %p150 = scmp.ne.s32.totalorder %s142, %s144
    %p151 = scmp.eq.s32.totalorder %s24, 1
    %p152 = por %p150, %p151
    %p153 = scmp.ne.s32.totalorder %s144, %s145
    %p154 = scmp.eq.s32.totalorder %s24, 0
    %p155 = por %p153, %p154
    %p156 = scmp.ne.s32.totalorder %s144, %s145
    %p157 = scmp.eq.s32.totalorder %s25, 1
    %p158 = por %p156, %p157
    %p160 = scmp.ne.s32.totalorder %s145, %s159
    %p161 = scmp.eq.s32.totalorder %s25, 0
    %p162 = por %p160, %p161
    %s164 = sadd.s32 %s163, 1
    %p167 = scmp.eq.s32.totalorder %s19, 1
    %p168 = scmp.ne.s32.totalorder %s163, %s165
    %p169 = scmp.eq.s32.totalorder %s19, 0
    %p170 = por %p168, %p169
    %p171 = scmp.ne.s32.totalorder %s163, %s165
    %p172 = scmp.eq.s32.totalorder %s24, 1
    %p173 = por %p171, %p172
    %p174 = scmp.ne.s32.totalorder %s165, %s166
    %p175 = scmp.eq.s32.totalorder %s24, 0
    %p176 = por %p174, %p175
    %p177 = scmp.ne.s32.totalorder %s165, %s166
    %p178 = scmp.eq.s32.totalorder %s25, 1
    %p179 = por %p177, %p178
    %p181 = scmp.ne.s32.totalorder %s166, %s180
    %p182 = scmp.eq.s32.totalorder %s25, 0
    %p183 = por %p181, %p182
    %s185 = sadd.s32 %s184, 1
    %p188 = scmp.eq.s32.totalorder %s19, 1
    %p189 = scmp.ne.s32.totalorder %s184, %s186
    %p190 = scmp.eq.s32.totalorder %s19, 0
    %p191 = por %p189, %p190
    %p192 = scmp.ne.s32.totalorder %s184, %s186
    %p193 = scmp.eq.s32.totalorder %s24, 1
    %p194 = por %p192, %p193
    %p195 = scmp.ne.s32.totalorder %s186, %s187
    %p196 = scmp.eq.s32.totalorder %s24, 0
    %p197 = por %p195, %p196
    %p198 = scmp.ne.s32.totalorder %s186, %s187
    %p199 = scmp.eq.s32.totalorder %s25, 1
    %p200 = por %p198, %p199
    %p202 = scmp.ne.s32.totalorder %s187, %s201
    %p203 = scmp.eq.s32.totalorder %s25, 0
    %p204 = por %p202, %p203
    %s206 = sadd.s32 %s205, 1
    %p209 = scmp.eq.s32.totalorder %s19, 1
    %p210 = scmp.ne.s32.totalorder %s205, %s207
    %p211 = scmp.eq.s32.totalorder %s19, 0
    %p212 = por %p210, %p211
    %p213 = scmp.ne.s32.totalorder %s205, %s207
    %p214 = scmp.eq.s32.totalorder %s24, 1
    %p215 = por %p213, %p214
    %p216 = scmp.ne.s32.totalorder %s207, %s208
    %p217 = scmp.eq.s32.totalorder %s24, 0
    %p218 = por %p216, %p217
    %p219 = scmp.ne.s32.totalorder %s207, %s208
    %p220 = scmp.eq.s32.totalorder %s25, 1
    %p221 = por %p219, %p220
    %p223 = scmp.ne.s32.totalorder %s208, %s222
    %p224 = scmp.eq.s32.totalorder %s25, 0
    %p225 = por %p223, %p224
    %s227 = sadd.s32 %s226, 1
    %p230 = scmp.eq.s32.totalorder %s19, 1
    %p231 = scmp.ne.s32.totalorder %s226, %s228
    %p232 = scmp.eq.s32.totalorder %s19, 0
    %p233 = por %p231, %p232
    %p234 = scmp.ne.s32.totalorder %s226, %s228
    %p235 = scmp.eq.s32.totalorder %s24, 1
    %p236 = por %p234, %p235
    %p237 = scmp.ne.s32.totalorder %s228, %s229
    %p238 = scmp.eq.s32.totalorder %s24, 0
    %p239 = por %p237, %p238
    %p240 = scmp.ne.s32.totalorder %s228, %s229
    %p241 = scmp.eq.s32.totalorder %s25, 1
    %p242 = por %p240, %p241
    %p244 = scmp.ne.s32.totalorder %s229, %s243
    %p245 = scmp.eq.s32.totalorder %s25, 0
    %p246 = por %p244, %p245
    %s248 = sadd.s32 %s247, 1
    %p251 = scmp.eq.s32.totalorder %s19, 1
    %p252 = scmp.ne.s32.totalorder %s247, %s249
    %p253 = scmp.eq.s32.totalorder %s19, 0
    %p254 = por %p252, %p253
    %p255 = scmp.ne.s32.totalorder %s247, %s249
    %p256 = scmp.eq.s32.totalorder %s24, 1
    %p257 = por %p255, %p256
    %p258 = scmp.ne.s32.totalorder %s249, %s250
    %p259 = scmp.eq.s32.totalorder %s24, 0
    %p260 = por %p258, %p259
    %p261 = scmp.ne.s32.totalorder %s249, %s250
    %p262 = scmp.eq.s32.totalorder %s25, 1
    %p263 = por %p261, %p262
    %p265 = scmp.ne.s32.totalorder %s250, %s264
    %p266 = scmp.eq.s32.totalorder %s25, 0
    %p267 = por %p265, %p266
    %s269 = sadd.s32 %s268, 1
    %p272 = scmp.eq.s32.totalorder %s19, 1
    %p273 = scmp.ne.s32.totalorder %s268, %s270
    %p274 = scmp.eq.s32.totalorder %s19, 0
    %p275 = por %p273, %p274
    %p276 = scmp.ne.s32.totalorder %s268, %s270
    %p277 = scmp.eq.s32.totalorder %s24, 1
    %p278 = por %p276, %p277
    %p279 = scmp.ne.s32.totalorder %s270, %s271
    %p280 = scmp.eq.s32.totalorder %s24, 0
    %p281 = por %p279, %p280
    %p282 = scmp.ne.s32.totalorder %s270, %s271
    %p283 = scmp.eq.s32.totalorder %s25, 1
    %p284 = por %p282, %p283
    %p286 = scmp.ne.s32.totalorder %s271, %s285
    %p287 = scmp.eq.s32.totalorder %s25, 0
    %p288 = por %p286, %p287
    %s290 = sadd.s32 %s289, 1
    %p293 = scmp.eq.s32.totalorder %s19, 1
    %p294 = scmp.ne.s32.totalorder %s289, %s291
    %p295 = scmp.eq.s32.totalorder %s19, 0
    %p296 = por %p294, %p295
    %p297 = scmp.ne.s32.totalorder %s289, %s291
    %p298 = scmp.eq.s32.totalorder %s24, 1
    %p299 = por %p297, %p298
    %p300 = scmp.ne.s32.totalorder %s291, %s292
    %p301 = scmp.eq.s32.totalorder %s24, 0
    %p302 = por %p300, %p301
    %p303 = scmp.ne.s32.totalorder %s291, %s292
    %p304 = scmp.eq.s32.totalorder %s25, 1
    %p305 = por %p303, %p304
    %p307 = scmp.ne.s32.totalorder %s292, %s306
    %p308 = scmp.eq.s32.totalorder %s25, 0
    %p309 = por %p307, %p308
    %s310 = ssub.s32 %s19, %s26
    %p311 = scmp.eq.s32.totalorder %s310, 0
    %s313 = sadd.s32 %s312, 1
    %s314 = scalar_select %p311, %s312, %s313
    %p317 = pneg %p311
    %p318 = scmp.eq.s32.totalorder %s19, 1
    %p319 = por %p317, %p318
    %p320 = scmp.ne.s32.totalorder %s312, %s315
    %p321 = scmp.eq.s32.totalorder %s19, 0
    %p322 = por %p320, %p321
    %p323 = scmp.ne.s32.totalorder %s312, %s315
    %p324 = scmp.eq.s32.totalorder %s24, 1
    %p325 = por %p323, %p324
    %p326 = scmp.ne.s32.totalorder %s315, %s316
    %p327 = scmp.eq.s32.totalorder %s24, 0
    %p328 = por %p326, %p327
    %p329 = scmp.ne.s32.totalorder %s315, %s316
    %p330 = scmp.eq.s32.totalorder %s25, 1
    %p331 = por %p329, %p330
    %p333 = scmp.ne.s32.totalorder %s316, %s332
    %p334 = scmp.eq.s32.totalorder %s25, 0
    %p335 = por %p333, %p334
    %p336 = scmp.le.s32.totalorder 1, %s19
    %p337 = scmp.lt.s32.totalorder %s19, 3
    %p338 = pnand %p336, %p337
    %p339 = pneg %p338
    // Predicated region
    $region9: #{_lambda_.1} parent=5 // pred_check
      _
    $region10: #{_lambda_.1} parent=5 // pred_check_branch
      %341 = sbr.rel (%p338) target = $region12
    $region11: #{_lambda_.1} parent=5 // pred_region
      %s342 = ssub.s32 %s19, 1
      // Predicated region
      $region13: #{_lambda_.1} parent=11 // pred_check
        %p343 = pneg %p92
      $region14: #{_lambda_.1} parent=11 // pred_check_branch
        %345 = sbr.rel (%p343) target = $region16
      $region15: #{_lambda_.1} parent=11 // pred_region
        _
      $region16: #{_lambda_.1} parent=11 // pred_fallthru
        _
      // Predicated region
      $region17: #{_lambda_.1} parent=11 // pred_check
        %p346 = pneg %p113
      $region18: #{_lambda_.1} parent=11 // pred_check_branch
        %348 = sbr.rel (%p346) target = $region20
      $region19: #{_lambda_.1} parent=11 // pred_region
        _
      $region20: #{_lambda_.1} parent=11 // pred_fallthru
        _
      // Predicated region
      $region21: #{_lambda_.1} parent=11 // pred_check
        %p349 = pneg %p134
      $region22: #{_lambda_.1} parent=11 // pred_check_branch
        %351 = sbr.rel (%p349) target = $region24
      $region23: #{_lambda_.1} parent=11 // pred_region
        _
      $region24: #{_lambda_.1} parent=11 // pred_fallthru
        _
      // Predicated region
      $region25: #{_lambda_.1} parent=11 // pred_check
        %p352 = pneg %p155
      $region26: #{_lambda_.1} parent=11 // pred_check_branch
        %354 = sbr.rel (%p352) target = $region28
      $region27: #{_lambda_.1} parent=11 // pred_region
        _
      $region28: #{_lambda_.1} parent=11 // pred_fallthru
        _
      // Predicated region
      $region29: #{_lambda_.1} parent=11 // pred_check
        %p355 = pneg %p176
      $region30: #{_lambda_.1} parent=11 // pred_check_branch
        %357 = sbr.rel (%p355) target = $region32
      $region31: #{_lambda_.1} parent=11 // pred_region
        _
      $region32: #{_lambda_.1} parent=11 // pred_fallthru
        _
      // Predicated region
      $region33: #{_lambda_.1} parent=11 // pred_check
        %p358 = pneg %p197
      $region34: #{_lambda_.1} parent=11 // pred_check_branch
        %360 = sbr.rel (%p358) target = $region36
      $region35: #{_lambda_.1} parent=11 // pred_region
        _
      $region36: #{_lambda_.1} parent=11 // pred_fallthru
        _
      // Predicated region
      $region37: #{_lambda_.1} parent=11 // pred_check
        %p361 = pneg %p218
      $region38: #{_lambda_.1} parent=11 // pred_check_branch
        %363 = sbr.rel (%p361) target = $region40
      $region39: #{_lambda_.1} parent=11 // pred_region
        _
      $region40: #{_lambda_.1} parent=11 // pred_fallthru
        _
      // Predicated region
      $region41: #{_lambda_.1} parent=11 // pred_check
        %p364 = pneg %p239
      $region42: #{_lambda_.1} parent=11 // pred_check_branch
        %366 = sbr.rel (%p364) target = $region44
      $region43: #{_lambda_.1} parent=11 // pred_region
        _
      $region44: #{_lambda_.1} parent=11 // pred_fallthru
        _
      // Predicated region
      $region45: #{_lambda_.1} parent=11 // pred_check
        %p367 = pneg %p260
      $region46: #{_lambda_.1} parent=11 // pred_check_branch
        %369 = sbr.rel (%p367) target = $region48
      $region47: #{_lambda_.1} parent=11 // pred_region
        _
      $region48: #{_lambda_.1} parent=11 // pred_fallthru
        _
      // Predicated region
      $region49: #{_lambda_.1} parent=11 // pred_check
        %p370 = pneg %p281
      $region50: #{_lambda_.1} parent=11 // pred_check_branch
        %372 = sbr.rel (%p370) target = $region52
      $region51: #{_lambda_.1} parent=11 // pred_region
        _
      $region52: #{_lambda_.1} parent=11 // pred_fallthru
        _
      // Predicated region
      $region53: #{_lambda_.1} parent=11 // pred_check
        %p373 = pneg %p302
      $region54: #{_lambda_.1} parent=11 // pred_check_branch
        %375 = sbr.rel (%p373) target = $region56
      $region55: #{_lambda_.1} parent=11 // pred_region
        _
      $region56: #{_lambda_.1} parent=11 // pred_fallthru
        _
    $region12: #{_lambda_.1} parent=5 // pred_fallthru
      _
    %p376 = scmp.lt.s32.totalorder %s19, 2
    // Predicated region
    $region57: #{_lambda_.1} parent=5 // pred_check
      %p377 = pneg %p376
    $region58: #{_lambda_.1} parent=5 // pred_check_branch
      %379 = sbr.rel (%p377) target = $region60
    $region59: #{_lambda_.1} parent=5 // pred_region
      // Predicated region
      $region61: #{_lambda_.1} parent=59 // pred_check
        %p380 = pneg %p39
      $region62: #{_lambda_.1} parent=59 // pred_check_branch
        %382 = sbr.rel (%p380) target = $region64
      $region63: #{_lambda_.1} parent=59 // pred_region
        %p383 = scmp.lt.s32.totalorder %s19, 1
        %s384 = scalar_select %p383, %s19, 1
        %s385 = smul.addr %s384, 8
        %s386 = smul.addr %s385, 8
        %s387 = scalar_lea.vmem %s0, %s386
      $region64: #{_lambda_.1} parent=59 // pred_fallthru
        _
      // Predicated region
      $region65: #{_lambda_.1} parent=59 // pred_check
        %p388 = pneg %p65
      $region66: #{_lambda_.1} parent=59 // pred_check_branch
        %390 = sbr.rel (%p388) target = $region68
      $region67: #{_lambda_.1} parent=59 // pred_region
        %p391 = scmp.lt.s32.totalorder %s19, 1
        %s392 = scalar_select %p391, %s19, 1
        %s393 = smul.addr %s392, 32
        %s394 = smul.addr %s393, 8
        %s395 = scalar_lea.vmem %s1, %s394
      $region68: #{_lambda_.1} parent=59 // pred_fallthru
        _
    $region60: #{_lambda_.1} parent=5 // pred_fallthru
      _
    %p396 = scmp.le.s32.totalorder 1, %s19
    %p397 = scmp.lt.s32.totalorder %s19, 3
    %p398 = pnand %p396, %p397
    %p399 = pneg %p398
    // Predicated region
    $region69: #{_lambda_.1} parent=5 // pred_check
      _
    $region70: #{_lambda_.1} parent=5 // pred_check_branch
      %401 = sbr.rel (%p398) target = $region72
    $region71: #{_lambda_.1} parent=5 // pred_region
      %s402 = ssub.s32 %s19, 1
      %p403 = scmp.lt.s32.totalorder %s24, 1
      %s404 = scalar_select %p403, %s24, 1
      %s405 = smul.addr %s404, 8
      %s406 = smul.addr %s405, 8
      %s407 = scalar_lea.vmem %s0, %s406
      %p408 = pneg %p45
      %p409 = pneg %p42
      %p410 = scmp.lt.s32.totalorder %s24, 1
      %s411 = scalar_select %p410, %s24, 1
      %s412 = smul.addr %s411, 32
      %s413 = smul.addr %s412, 8
      %s414 = scalar_lea.vmem %s1, %s413
      %p415 = pneg %p71
      %p416 = pneg %p68
      %p417 = pneg %p92
      %p418 = pneg %p89
      %p419 = pneg %p113
      %p420 = pneg %p110
      %p421 = pneg %p134
      %p422 = pneg %p131
      %p423 = pneg %p155
      %p424 = pneg %p152
      %p425 = pneg %p176
      %p426 = pneg %p173
      %p427 = pneg %p197
      %p428 = pneg %p194
      %p429 = pneg %p218
      %p430 = pneg %p215
      %p431 = pneg %p239
      %p432 = pneg %p236
      %p433 = pneg %p260
      %p434 = pneg %p257
      %p435 = pneg %p281
      %p436 = pneg %p278
      %p437 = pneg %p302
      %p438 = pneg %p299
      %p439 = pneg %p328
      %p440 = pneg %p325
      %p441 = scmp.lt.s32.totalorder %s24, 1
      %s442 = scalar_select %p441, %s24, 1
      %s443 = smul.addr %s442, 32
      %s444 = smul.addr %s443, 8
      %s445 = scalar_lea.vmem %s13, %s444
      %p446 = scmp.lt.s32.totalorder %s24, 1
      %s447 = scalar_select %p446, %s24, 1
      %s448 = smul.addr %s447, 8
      %s449 = smul.addr %s448, 8
      %s450 = scalar_lea.vmem %s0, %s449
      %p451 = scmp.lt.s32.totalorder %s24, 1
      %s452 = scalar_select %p451, %s24, 1
      %s453 = smul.addr %s452, 32
      %s454 = smul.addr %s453, 8
      %s455 = scalar_lea.vmem %s1, %s454
      %p456 = scmp.lt.s32.totalorder %s24, 1
      %s457 = scalar_select %p456, %s24, 1
      %s458 = smul.addr %s457, 32
      %s459 = smul.addr %s458, 8
      %s460 = scalar_lea.vmem %s13, %s459
      %vm461 = vcmask 31744
      %462 = vst.msk [vmem:[#allocation2] sm:$0xff] %vm461, 0.0
      %463 = vst.msk [vmem:[#allocation2 + $0x8] sm:$0xff] %vm461, 0.0
      %464 = vst.msk [vmem:[#allocation2 + $0x10] sm:$0xff] %vm461, 0.0
      %465 = vst.msk [vmem:[#allocation2 + $0x18] sm:$0xff] %vm461, 0.0
      %466 = vst.msk [vmem:[#allocation2 + $0x20] sm:$0xff] %vm461, 0.0
      %467 = vst.msk [vmem:[#allocation2 + $0x28] sm:$0xff] %vm461, 0.0
      %468 = vst.msk [vmem:[#allocation2 + $0x30] sm:$0xff] %vm461, 0.0
      %469 = vst.msk [vmem:[#allocation2 + $0x38] sm:$0xff] %vm461, 0.0
      %470 = vst.msk [vmem:[#allocation2 + $0x40] sm:$0xff] %vm461, 0.0
      %471 = vst.msk [vmem:[#allocation2 + $0x48] sm:$0xff] %vm461, 0.0
      %472 = vst.msk [vmem:[#allocation2 + $0x50] sm:$0xff] %vm461, 0.0
      %473 = vst.msk [vmem:[#allocation2 + $0x58] sm:$0xff] %vm461, 0.0
      %474 = vst.msk [vmem:[#allocation2 + $0x60] sm:$0xff] %vm461, 0.0
      %475 = vst.msk [vmem:[#allocation2 + $0x68] sm:$0xff] %vm461, 0.0
      %476 = vst.msk [vmem:[#allocation2 + $0x70] sm:$0xff] %vm461, 0.0
      %477 = vst.msk [vmem:[#allocation2 + $0x78] sm:$0xff] %vm461, 0.0
      %478 = vst.msk [vmem:[#allocation2 + $0x80] sm:$0xff] %vm461, 0.0
      %479 = vst.msk [vmem:[#allocation2 + $0x88] sm:$0xff] %vm461, 0.0
      %480 = vst.msk [vmem:[#allocation2 + $0x90] sm:$0xff] %vm461, 0.0
      %481 = vst.msk [vmem:[#allocation2 + $0x98] sm:$0xff] %vm461, 0.0
      %482 = vst.msk [vmem:[#allocation2 + $0xa0] sm:$0xff] %vm461, 0.0
      %483 = vst.msk [vmem:[#allocation2 + $0xa8] sm:$0xff] %vm461, 0.0
      %484 = vst.msk [vmem:[#allocation2 + $0xb0] sm:$0xff] %vm461, 0.0
      %485 = vst.msk [vmem:[#allocation2 + $0xb8] sm:$0xff] %vm461, 0.0
      %486 = vst.msk [vmem:[#allocation2 + $0xc0] sm:$0xff] %vm461, 0.0
      %487 = vst.msk [vmem:[#allocation2 + $0xc8] sm:$0xff] %vm461, 0.0
      %488 = vst.msk [vmem:[#allocation2 + $0xd0] sm:$0xff] %vm461, 0.0
      %489 = vst.msk [vmem:[#allocation2 + $0xd8] sm:$0xff] %vm461, 0.0
      %490 = vst.msk [vmem:[#allocation2 + $0xe0] sm:$0xff] %vm461, 0.0
      %491 = vst.msk [vmem:[#allocation2 + $0xe8] sm:$0xff] %vm461, 0.0
      %492 = vst.msk [vmem:[#allocation2 + $0xf0] sm:$0xff] %vm461, 0.0
      %493 = vst.msk [vmem:[#allocation2 + $0xf8] sm:$0xff] %vm461, 0.0
      %494 = vst.msk [vmem:[#allocation2 + $0x100] sm:$0xff] %vm461, 0.0
      %495 = vst.msk [vmem:[#allocation2 + $0x108] sm:$0xff] %vm461, 0.0
      %496 = vst.msk [vmem:[#allocation2 + $0x110] sm:$0xff] %vm461, 0.0
      %497 = vst.msk [vmem:[#allocation2 + $0x118] sm:$0xff] %vm461, 0.0
      %498 = vst.msk [vmem:[#allocation2 + $0x120] sm:$0xff] %vm461, 0.0
      %499 = vst.msk [vmem:[#allocation2 + $0x128] sm:$0xff] %vm461, 0.0
      %500 = vst.msk [vmem:[#allocation2 + $0x130] sm:$0xff] %vm461, 0.0
      %501 = vst.msk [vmem:[#allocation2 + $0x138] sm:$0xff] %vm461, 0.0
      %502 = vst.msk [vmem:[#allocation2 + $0x140] sm:$0xff] %vm461, 0.0
      %503 = vst.msk [vmem:[#allocation2 + $0x148] sm:$0xff] %vm461, 0.0
      %504 = vst.msk [vmem:[#allocation2 + $0x150] sm:$0xff] %vm461, 0.0
      %505 = vst.msk [vmem:[#allocation2 + $0x158] sm:$0xff] %vm461, 0.0
      %506 = vst.msk [vmem:[#allocation2 + $0x160] sm:$0xff] %vm461, 0.0
      %507 = vst.msk [vmem:[#allocation2 + $0x168] sm:$0xff] %vm461, 0.0
      %508 = vst.msk [vmem:[#allocation2 + $0x170] sm:$0xff] %vm461, 0.0
      %509 = vst.msk [vmem:[#allocation2 + $0x178] sm:$0xff] %vm461, 0.0
      %510 = vst.msk [vmem:[#allocation2 + $0x180] sm:$0xff] %vm461, 0.0
      %511 = vst.msk [vmem:[#allocation2 + $0x188] sm:$0xff] %vm461, 0.0
      %512 = vst.msk [vmem:[#allocation2 + $0x190] sm:$0xff] %vm461, 0.0
      %513 = vst.msk [vmem:[#allocation2 + $0x198] sm:$0xff] %vm461, 0.0
      %514 = vst.msk [vmem:[#allocation2 + $0x1a0] sm:$0xff] %vm461, 0.0
      %515 = vst.msk [vmem:[#allocation2 + $0x1a8] sm:$0xff] %vm461, 0.0
      %516 = vst.msk [vmem:[#allocation2 + $0x1b0] sm:$0xff] %vm461, 0.0
      %517 = vst.msk [vmem:[#allocation2 + $0x1b8] sm:$0xff] %vm461, 0.0
      %518 = vst.msk [vmem:[#allocation2 + $0x1c0] sm:$0xff] %vm461, 0.0
      %519 = vst.msk [vmem:[#allocation2 + $0x1c8] sm:$0xff] %vm461, 0.0
      %520 = vst.msk [vmem:[#allocation2 + $0x1d0] sm:$0xff] %vm461, 0.0
      %521 = vst.msk [vmem:[#allocation2 + $0x1d8] sm:$0xff] %vm461, 0.0
      %522 = vst.msk [vmem:[#allocation2 + $0x1e0] sm:$0xff] %vm461, 0.0
      %523 = vst.msk [vmem:[#allocation2 + $0x1e8] sm:$0xff] %vm461, 0.0
      %524 = vst.msk [vmem:[#allocation2 + $0x1f0] sm:$0xff] %vm461, 0.0
      %525 = vst.msk [vmem:[#allocation2 + $0x1f8] sm:$0xff] %vm461, 0.0
      %526 = vst.msk [vmem:[#allocation2 + $0x200] sm:$0xff] %vm461, 0.0
      %527 = vst.msk [vmem:[#allocation2 + $0x208] sm:$0xff] %vm461, 0.0
      %528 = vst.msk [vmem:[#allocation2 + $0x210] sm:$0xff] %vm461, 0.0
      %529 = vst.msk [vmem:[#allocation2 + $0x218] sm:$0xff] %vm461, 0.0
      %530 = vst.msk [vmem:[#allocation2 + $0x220] sm:$0xff] %vm461, 0.0
      %531 = vst.msk [vmem:[#allocation2 + $0x228] sm:$0xff] %vm461, 0.0
      %532 = vst.msk [vmem:[#allocation2 + $0x230] sm:$0xff] %vm461, 0.0
      %533 = vst.msk [vmem:[#allocation2 + $0x238] sm:$0xff] %vm461, 0.0
      %534 = vst.msk [vmem:[#allocation2 + $0x240] sm:$0xff] %vm461, 0.0
      %535 = vst.msk [vmem:[#allocation2 + $0x248] sm:$0xff] %vm461, 0.0
      %536 = vst.msk [vmem:[#allocation2 + $0x250] sm:$0xff] %vm461, 0.0
      %537 = vst.msk [vmem:[#allocation2 + $0x258] sm:$0xff] %vm461, 0.0
      %538 = vst.msk [vmem:[#allocation2 + $0x260] sm:$0xff] %vm461, 0.0
      %539 = vst.msk [vmem:[#allocation2 + $0x268] sm:$0xff] %vm461, 0.0
      %540 = vst.msk [vmem:[#allocation2 + $0x270] sm:$0xff] %vm461, 0.0
      %541 = vst.msk [vmem:[#allocation2 + $0x278] sm:$0xff] %vm461, 0.0
      %542 = vst.msk [vmem:[#allocation2 + $0x280] sm:$0xff] %vm461, 0.0
      %543 = vst.msk [vmem:[#allocation2 + $0x288] sm:$0xff] %vm461, 0.0
      %544 = vst.msk [vmem:[#allocation2 + $0x290] sm:$0xff] %vm461, 0.0
      %545 = vst.msk [vmem:[#allocation2 + $0x298] sm:$0xff] %vm461, 0.0
      %546 = vst.msk [vmem:[#allocation2 + $0x2a0] sm:$0xff] %vm461, 0.0
      %547 = vst.msk [vmem:[#allocation2 + $0x2a8] sm:$0xff] %vm461, 0.0
      %548 = vst.msk [vmem:[#allocation2 + $0x2b0] sm:$0xff] %vm461, 0.0
      %549 = vst.msk [vmem:[#allocation2 + $0x2b8] sm:$0xff] %vm461, 0.0
      %550 = vst.msk [vmem:[#allocation2 + $0x2c0] sm:$0xff] %vm461, 0.0
      %551 = vst.msk [vmem:[#allocation2 + $0x2c8] sm:$0xff] %vm461, 0.0
      %552 = vst.msk [vmem:[#allocation2 + $0x2d0] sm:$0xff] %vm461, 0.0
      %553 = vst.msk [vmem:[#allocation2 + $0x2d8] sm:$0xff] %vm461, 0.0
      %554 = vst.msk [vmem:[#allocation2 + $0x2e0] sm:$0xff] %vm461, 0.0
      %555 = vst.msk [vmem:[#allocation2 + $0x2e8] sm:$0xff] %vm461, 0.0
      %556 = vst.msk [vmem:[#allocation2 + $0x2f0] sm:$0xff] %vm461, 0.0
      %557 = vst.msk [vmem:[#allocation2 + $0x2f8] sm:$0xff] %vm461, 0.0
      %558 = vst.msk [vmem:[#allocation2 + $0x300] sm:$0xff] %vm461, 0.0
      %559 = vst.msk [vmem:[#allocation2 + $0x308] sm:$0xff] %vm461, 0.0
      %560 = vst.msk [vmem:[#allocation2 + $0x310] sm:$0xff] %vm461, 0.0
      %561 = vst.msk [vmem:[#allocation2 + $0x318] sm:$0xff] %vm461, 0.0
      %562 = vst.msk [vmem:[#allocation2 + $0x320] sm:$0xff] %vm461, 0.0
      %563 = vst.msk [vmem:[#allocation2 + $0x328] sm:$0xff] %vm461, 0.0
      %564 = vst.msk [vmem:[#allocation2 + $0x330] sm:$0xff] %vm461, 0.0
      %565 = vst.msk [vmem:[#allocation2 + $0x338] sm:$0xff] %vm461, 0.0
      %566 = vst.msk [vmem:[#allocation2 + $0x340] sm:$0xff] %vm461, 0.0
      %567 = vst.msk [vmem:[#allocation2 + $0x348] sm:$0xff] %vm461, 0.0
      %568 = vst.msk [vmem:[#allocation2 + $0x350] sm:$0xff] %vm461, 0.0
      %569 = vst.msk [vmem:[#allocation2 + $0x358] sm:$0xff] %vm461, 0.0
      %570 = vst.msk [vmem:[#allocation2 + $0x360] sm:$0xff] %vm461, 0.0
      %571 = vst.msk [vmem:[#allocation2 + $0x368] sm:$0xff] %vm461, 0.0
      %572 = vst.msk [vmem:[#allocation2 + $0x370] sm:$0xff] %vm461, 0.0
      %573 = vst.msk [vmem:[#allocation2 + $0x378] sm:$0xff] %vm461, 0.0
      %574 = vst.msk [vmem:[#allocation2 + $0x380] sm:$0xff] %vm461, 0.0
      %575 = vst.msk [vmem:[#allocation2 + $0x388] sm:$0xff] %vm461, 0.0
      %576 = vst.msk [vmem:[#allocation2 + $0x390] sm:$0xff] %vm461, 0.0
      %577 = vst.msk [vmem:[#allocation2 + $0x398] sm:$0xff] %vm461, 0.0
      %578 = vst.msk [vmem:[#allocation2 + $0x3a0] sm:$0xff] %vm461, 0.0
      %579 = vst.msk [vmem:[#allocation2 + $0x3a8] sm:$0xff] %vm461, 0.0
      %580 = vst.msk [vmem:[#allocation2 + $0x3b0] sm:$0xff] %vm461, 0.0
      %581 = vst.msk [vmem:[#allocation2 + $0x3b8] sm:$0xff] %vm461, 0.0
      %582 = vst.msk [vmem:[#allocation2 + $0x3c0] sm:$0xff] %vm461, 0.0
      %583 = vst.msk [vmem:[#allocation2 + $0x3c8] sm:$0xff] %vm461, 0.0
      %584 = vst.msk [vmem:[#allocation2 + $0x3d0] sm:$0xff] %vm461, 0.0
      %585 = vst.msk [vmem:[#allocation2 + $0x3d8] sm:$0xff] %vm461, 0.0
      %586 = vst.msk [vmem:[#allocation2 + $0x3e0] sm:$0xff] %vm461, 0.0
      %587 = vst.msk [vmem:[#allocation2 + $0x3e8] sm:$0xff] %vm461, 0.0
      %588 = vst.msk [vmem:[#allocation2 + $0x3f0] sm:$0xff] %vm461, 0.0
      %589 = vst.msk [vmem:[#allocation2 + $0x3f8] sm:$0xff] %vm461, 0.0
      %590 = vst.msk [vmem:[#allocation2 + $0x400] sm:$0xff] %vm461, 0.0
      %591 = vst.msk [vmem:[#allocation2 + $0x408] sm:$0xff] %vm461, 0.0
      %592 = vst.msk [vmem:[#allocation2 + $0x410] sm:$0xff] %vm461, 0.0
      %593 = vst.msk [vmem:[#allocation2 + $0x418] sm:$0xff] %vm461, 0.0
      %594 = vst.msk [vmem:[#allocation2 + $0x420] sm:$0xff] %vm461, 0.0
      %595 = vst.msk [vmem:[#allocation2 + $0x428] sm:$0xff] %vm461, 0.0
      %596 = vst.msk [vmem:[#allocation2 + $0x430] sm:$0xff] %vm461, 0.0
      %597 = vst.msk [vmem:[#allocation2 + $0x438] sm:$0xff] %vm461, 0.0
      %598 = vst.msk [vmem:[#allocation2 + $0x440] sm:$0xff] %vm461, 0.0
      %599 = vst.msk [vmem:[#allocation2 + $0x448] sm:$0xff] %vm461, 0.0
      %600 = vst.msk [vmem:[#allocation2 + $0x450] sm:$0xff] %vm461, 0.0
      %601 = vst.msk [vmem:[#allocation2 + $0x458] sm:$0xff] %vm461, 0.0
      %602 = vst.msk [vmem:[#allocation2 + $0x460] sm:$0xff] %vm461, 0.0
      %603 = vst.msk [vmem:[#allocation2 + $0x468] sm:$0xff] %vm461, 0.0
      %604 = vst.msk [vmem:[#allocation2 + $0x470] sm:$0xff] %vm461, 0.0
      %605 = vst.msk [vmem:[#allocation2 + $0x478] sm:$0xff] %vm461, 0.0
      %606 = vst.msk [vmem:[#allocation2 + $0x480] sm:$0xff] %vm461, 0.0
      %607 = vst.msk [vmem:[#allocation2 + $0x488] sm:$0xff] %vm461, 0.0
      %608 = vst.msk [vmem:[#allocation2 + $0x490] sm:$0xff] %vm461, 0.0
      %609 = vst.msk [vmem:[#allocation2 + $0x498] sm:$0xff] %vm461, 0.0
      %610 = vst.msk [vmem:[#allocation2 + $0x4a0] sm:$0xff] %vm461, 0.0
      %611 = vst.msk [vmem:[#allocation2 + $0x4a8] sm:$0xff] %vm461, 0.0
      %612 = vst.msk [vmem:[#allocation2 + $0x4b0] sm:$0xff] %vm461, 0.0
      %613 = vst.msk [vmem:[#allocation2 + $0x4b8] sm:$0xff] %vm461, 0.0
      %614 = vst.msk [vmem:[#allocation2 + $0x4c0] sm:$0xff] %vm461, 0.0
      %615 = vst.msk [vmem:[#allocation2 + $0x4c8] sm:$0xff] %vm461, 0.0
      %616 = vst.msk [vmem:[#allocation2 + $0x4d0] sm:$0xff] %vm461, 0.0
      %617 = vst.msk [vmem:[#allocation2 + $0x4d8] sm:$0xff] %vm461, 0.0
      %618 = vst.msk [vmem:[#allocation2 + $0x4e0] sm:$0xff] %vm461, 0.0
      %619 = vst.msk [vmem:[#allocation2 + $0x4e8] sm:$0xff] %vm461, 0.0
      %620 = vst.msk [vmem:[#allocation2 + $0x4f0] sm:$0xff] %vm461, 0.0
      %621 = vst.msk [vmem:[#allocation2 + $0x4f8] sm:$0xff] %vm461, 0.0
      %622 = vst.msk [vmem:[#allocation2 + $0x500] sm:$0xff] %vm461, 0.0
      %623 = vst.msk [vmem:[#allocation2 + $0x508] sm:$0xff] %vm461, 0.0
      %624 = vst.msk [vmem:[#allocation3] sm:$0xff] %vm461, 0.0
      %625 = vst.msk [vmem:[#allocation3 + $0x8] sm:$0xff] %vm461, 0.0
      %626 = vst.msk [vmem:[#allocation3 + $0x10] sm:$0xff] %vm461, 0.0
      %627 = vst.msk [vmem:[#allocation3 + $0x18] sm:$0xff] %vm461, 0.0
      %628 = vst.msk [vmem:[#allocation3 + $0x20] sm:$0xff] %vm461, 0.0
      %629 = vst.msk [vmem:[#allocation3 + $0x28] sm:$0xff] %vm461, 0.0
      %630 = vst.msk [vmem:[#allocation3 + $0x30] sm:$0xff] %vm461, 0.0
      %631 = vst.msk [vmem:[#allocation3 + $0x38] sm:$0xff] %vm461, 0.0
      %632 = vst.msk [vmem:[#allocation3 + $0x40] sm:$0xff] %vm461, 0.0
      %633 = vst.msk [vmem:[#allocation3 + $0x48] sm:$0xff] %vm461, 0.0
      %634 = vst.msk [vmem:[#allocation3 + $0x50] sm:$0xff] %vm461, 0.0
      %635 = vst.msk [vmem:[#allocation3 + $0x58] sm:$0xff] %vm461, 0.0
      %636 = vst.msk [vmem:[#allocation3 + $0x60] sm:$0xff] %vm461, 0.0
      %637 = vst.msk [vmem:[#allocation3 + $0x68] sm:$0xff] %vm461, 0.0
      %638 = vst.msk [vmem:[#allocation3 + $0x70] sm:$0xff] %vm461, 0.0
      %639 = vst.msk [vmem:[#allocation3 + $0x78] sm:$0xff] %vm461, 0.0
      %640 = vst.msk [vmem:[#allocation3 + $0x80] sm:$0xff] %vm461, 0.0
      %641 = vst.msk [vmem:[#allocation3 + $0x88] sm:$0xff] %vm461, 0.0
      %642 = vst.msk [vmem:[#allocation3 + $0x90] sm:$0xff] %vm461, 0.0
      %643 = vst.msk [vmem:[#allocation3 + $0x98] sm:$0xff] %vm461, 0.0
      %644 = vst.msk [vmem:[#allocation3 + $0xa0] sm:$0xff] %vm461, 0.0
      %645 = vst.msk [vmem:[#allocation3 + $0xa8] sm:$0xff] %vm461, 0.0
      %646 = vst.msk [vmem:[#allocation3 + $0xb0] sm:$0xff] %vm461, 0.0
      %647 = vst.msk [vmem:[#allocation3 + $0xb8] sm:$0xff] %vm461, 0.0
      %648 = vst.msk [vmem:[#allocation3 + $0xc0] sm:$0xff] %vm461, 0.0
      %649 = vst.msk [vmem:[#allocation3 + $0xc8] sm:$0xff] %vm461, 0.0
      %650 = vst.msk [vmem:[#allocation3 + $0xd0] sm:$0xff] %vm461, 0.0
      %651 = vst.msk [vmem:[#allocation3 + $0xd8] sm:$0xff] %vm461, 0.0
      %652 = vst.msk [vmem:[#allocation3 + $0xe0] sm:$0xff] %vm461, 0.0
      %653 = vst.msk [vmem:[#allocation3 + $0xe8] sm:$0xff] %vm461, 0.0
      %654 = vst.msk [vmem:[#allocation3 + $0xf0] sm:$0xff] %vm461, 0.0
      %655 = vst.msk [vmem:[#allocation3 + $0xf8] sm:$0xff] %vm461, 0.0
      %656 = vst.msk [vmem:[#allocation3 + $0x100] sm:$0xff] %vm461, 0.0
      %657 = vst.msk [vmem:[#allocation3 + $0x108] sm:$0xff] %vm461, 0.0
      %658 = vst.msk [vmem:[#allocation3 + $0x110] sm:$0xff] %vm461, 0.0
      %659 = vst.msk [vmem:[#allocation3 + $0x118] sm:$0xff] %vm461, 0.0
      %660 = vst.msk [vmem:[#allocation3 + $0x120] sm:$0xff] %vm461, 0.0
      %661 = vst.msk [vmem:[#allocation3 + $0x128] sm:$0xff] %vm461, 0.0
      %662 = vst.msk [vmem:[#allocation3 + $0x130] sm:$0xff] %vm461, 0.0
      %663 = vst.msk [vmem:[#allocation3 + $0x138] sm:$0xff] %vm461, 0.0
      %664 = vst.msk [vmem:[#allocation3 + $0x140] sm:$0xff] %vm461, 0.0
      %665 = vst.msk [vmem:[#allocation3 + $0x148] sm:$0xff] %vm461, 0.0
      %666 = vst.msk [vmem:[#allocation3 + $0x150] sm:$0xff] %vm461, 0.0
      %667 = vst.msk [vmem:[#allocation3 + $0x158] sm:$0xff] %vm461, 0.0
      %668 = vst.msk [vmem:[#allocation3 + $0x160] sm:$0xff] %vm461, 0.0
      %669 = vst.msk [vmem:[#allocation3 + $0x168] sm:$0xff] %vm461, 0.0
      %670 = vst.msk [vmem:[#allocation3 + $0x170] sm:$0xff] %vm461, 0.0
      %671 = vst.msk [vmem:[#allocation3 + $0x178] sm:$0xff] %vm461, 0.0
      %672 = vst.msk [vmem:[#allocation3 + $0x180] sm:$0xff] %vm461, 0.0
      %673 = vst.msk [vmem:[#allocation3 + $0x188] sm:$0xff] %vm461, 0.0
      %674 = vst.msk [vmem:[#allocation3 + $0x190] sm:$0xff] %vm461, 0.0
      %675 = vst.msk [vmem:[#allocation3 + $0x198] sm:$0xff] %vm461, 0.0
      %676 = vst.msk [vmem:[#allocation3 + $0x1a0] sm:$0xff] %vm461, 0.0
      %677 = vst.msk [vmem:[#allocation3 + $0x1a8] sm:$0xff] %vm461, 0.0
      %678 = vst.msk [vmem:[#allocation3 + $0x1b0] sm:$0xff] %vm461, 0.0
      %679 = vst.msk [vmem:[#allocation3 + $0x1b8] sm:$0xff] %vm461, 0.0
      %680 = vst.msk [vmem:[#allocation3 + $0x1c0] sm:$0xff] %vm461, 0.0
      %681 = vst.msk [vmem:[#allocation3 + $0x1c8] sm:$0xff] %vm461, 0.0
      %682 = vst.msk [vmem:[#allocation3 + $0x1d0] sm:$0xff] %vm461, 0.0
      %683 = vst.msk [vmem:[#allocation3 + $0x1d8] sm:$0xff] %vm461, 0.0
      %684 = vst.msk [vmem:[#allocation3 + $0x1e0] sm:$0xff] %vm461, 0.0
      %685 = vst.msk [vmem:[#allocation3 + $0x1e8] sm:$0xff] %vm461, 0.0
      %686 = vst.msk [vmem:[#allocation3 + $0x1f0] sm:$0xff] %vm461, 0.0
      %687 = vst.msk [vmem:[#allocation3 + $0x1f8] sm:$0xff] %vm461, 0.0
      %688 = vst.msk [vmem:[#allocation3 + $0x200] sm:$0xff] %vm461, 0.0
      %689 = vst.msk [vmem:[#allocation3 + $0x208] sm:$0xff] %vm461, 0.0
      %690 = vst.msk [vmem:[#allocation3 + $0x210] sm:$0xff] %vm461, 0.0
      %691 = vst.msk [vmem:[#allocation3 + $0x218] sm:$0xff] %vm461, 0.0
      %692 = vst.msk [vmem:[#allocation3 + $0x220] sm:$0xff] %vm461, 0.0
      %693 = vst.msk [vmem:[#allocation3 + $0x228] sm:$0xff] %vm461, 0.0
      %694 = vst.msk [vmem:[#allocation3 + $0x230] sm:$0xff] %vm461, 0.0
      %695 = vst.msk [vmem:[#allocation3 + $0x238] sm:$0xff] %vm461, 0.0
      %696 = vst.msk [vmem:[#allocation3 + $0x240] sm:$0xff] %vm461, 0.0
      %697 = vst.msk [vmem:[#allocation3 + $0x248] sm:$0xff] %vm461, 0.0
      %698 = vst.msk [vmem:[#allocation3 + $0x250] sm:$0xff] %vm461, 0.0
      %699 = vst.msk [vmem:[#allocation3 + $0x258] sm:$0xff] %vm461, 0.0
      %700 = vst.msk [vmem:[#allocation3 + $0x260] sm:$0xff] %vm461, 0.0
      %701 = vst.msk [vmem:[#allocation3 + $0x268] sm:$0xff] %vm461, 0.0
      %702 = vst.msk [vmem:[#allocation3 + $0x270] sm:$0xff] %vm461, 0.0
      %703 = vst.msk [vmem:[#allocation3 + $0x278] sm:$0xff] %vm461, 0.0
      %704 = vst.msk [vmem:[#allocation3 + $0x280] sm:$0xff] %vm461, 0.0
      %705 = vst.msk [vmem:[#allocation3 + $0x288] sm:$0xff] %vm461, 0.0
      %706 = vst.msk [vmem:[#allocation3 + $0x290] sm:$0xff] %vm461, 0.0
      %707 = vst.msk [vmem:[#allocation3 + $0x298] sm:$0xff] %vm461, 0.0
      %708 = vst.msk [vmem:[#allocation3 + $0x2a0] sm:$0xff] %vm461, 0.0
      %709 = vst.msk [vmem:[#allocation3 + $0x2a8] sm:$0xff] %vm461, 0.0
      %710 = vst.msk [vmem:[#allocation3 + $0x2b0] sm:$0xff] %vm461, 0.0
      %711 = vst.msk [vmem:[#allocation3 + $0x2b8] sm:$0xff] %vm461, 0.0
      %712 = vst.msk [vmem:[#allocation3 + $0x2c0] sm:$0xff] %vm461, 0.0
      %713 = vst.msk [vmem:[#allocation3 + $0x2c8] sm:$0xff] %vm461, 0.0
      %714 = vst.msk [vmem:[#allocation3 + $0x2d0] sm:$0xff] %vm461, 0.0
      %715 = vst.msk [vmem:[#allocation3 + $0x2d8] sm:$0xff] %vm461, 0.0
      %716 = vst.msk [vmem:[#allocation3 + $0x2e0] sm:$0xff] %vm461, 0.0
      %717 = vst.msk [vmem:[#allocation3 + $0x2e8] sm:$0xff] %vm461, 0.0
      %718 = vst.msk [vmem:[#allocation3 + $0x2f0] sm:$0xff] %vm461, 0.0
      %719 = vst.msk [vmem:[#allocation3 + $0x2f8] sm:$0xff] %vm461, 0.0
      %720 = vst.msk [vmem:[#allocation3 + $0x300] sm:$0xff] %vm461, 0.0
      %721 = vst.msk [vmem:[#allocation3 + $0x308] sm:$0xff] %vm461, 0.0
      %722 = vst.msk [vmem:[#allocation3 + $0x310] sm:$0xff] %vm461, 0.0
      %723 = vst.msk [vmem:[#allocation3 + $0x318] sm:$0xff] %vm461, 0.0
      %724 = vst.msk [vmem:[#allocation3 + $0x320] sm:$0xff] %vm461, 0.0
      %725 = vst.msk [vmem:[#allocation3 + $0x328] sm:$0xff] %vm461, 0.0
      %726 = vst.msk [vmem:[#allocation3 + $0x330] sm:$0xff] %vm461, 0.0
      %727 = vst.msk [vmem:[#allocation3 + $0x338] sm:$0xff] %vm461, 0.0
      %728 = vst.msk [vmem:[#allocation3 + $0x340] sm:$0xff] %vm461, 0.0
      %729 = vst.msk [vmem:[#allocation3 + $0x348] sm:$0xff] %vm461, 0.0
      %730 = vst.msk [vmem:[#allocation3 + $0x350] sm:$0xff] %vm461, 0.0
      %731 = vst.msk [vmem:[#allocation3 + $0x358] sm:$0xff] %vm461, 0.0
      %732 = vst.msk [vmem:[#allocation3 + $0x360] sm:$0xff] %vm461, 0.0
      %733 = vst.msk [vmem:[#allocation3 + $0x368] sm:$0xff] %vm461, 0.0
      %734 = vst.msk [vmem:[#allocation3 + $0x370] sm:$0xff] %vm461, 0.0
      %735 = vst.msk [vmem:[#allocation3 + $0x378] sm:$0xff] %vm461, 0.0
      %736 = vst.msk [vmem:[#allocation3 + $0x380] sm:$0xff] %vm461, 0.0
      %737 = vst.msk [vmem:[#allocation3 + $0x388] sm:$0xff] %vm461, 0.0
      %738 = vst.msk [vmem:[#allocation3 + $0x390] sm:$0xff] %vm461, 0.0
      %739 = vst.msk [vmem:[#allocation3 + $0x398] sm:$0xff] %vm461, 0.0
      %740 = vst.msk [vmem:[#allocation3 + $0x3a0] sm:$0xff] %vm461, 0.0
      %741 = vst.msk [vmem:[#allocation3 + $0x3a8] sm:$0xff] %vm461, 0.0
      %742 = vst.msk [vmem:[#allocation3 + $0x3b0] sm:$0xff] %vm461, 0.0
      %743 = vst.msk [vmem:[#allocation3 + $0x3b8] sm:$0xff] %vm461, 0.0
      %744 = vst.msk [vmem:[#allocation3 + $0x3c0] sm:$0xff] %vm461, 0.0
      %745 = vst.msk [vmem:[#allocation3 + $0x3c8] sm:$0xff] %vm461, 0.0
      %746 = vst.msk [vmem:[#allocation3 + $0x3d0] sm:$0xff] %vm461, 0.0
      %747 = vst.msk [vmem:[#allocation3 + $0x3d8] sm:$0xff] %vm461, 0.0
      %748 = vst.msk [vmem:[#allocation3 + $0x3e0] sm:$0xff] %vm461, 0.0
      %749 = vst.msk [vmem:[#allocation3 + $0x3e8] sm:$0xff] %vm461, 0.0
      %750 = vst.msk [vmem:[#allocation3 + $0x3f0] sm:$0xff] %vm461, 0.0
      %751 = vst.msk [vmem:[#allocation3 + $0x3f8] sm:$0xff] %vm461, 0.0
      %752 = vst.msk [vmem:[#allocation3 + $0x400] sm:$0xff] %vm461, 0.0
      %753 = vst.msk [vmem:[#allocation3 + $0x408] sm:$0xff] %vm461, 0.0
      %754 = vst.msk [vmem:[#allocation3 + $0x410] sm:$0xff] %vm461, 0.0
      %755 = vst.msk [vmem:[#allocation3 + $0x418] sm:$0xff] %vm461, 0.0
      %756 = vst.msk [vmem:[#allocation3 + $0x420] sm:$0xff] %vm461, 0.0
      %757 = vst.msk [vmem:[#allocation3 + $0x428] sm:$0xff] %vm461, 0.0
      %758 = vst.msk [vmem:[#allocation3 + $0x430] sm:$0xff] %vm461, 0.0
      %759 = vst.msk [vmem:[#allocation3 + $0x438] sm:$0xff] %vm461, 0.0
      %760 = vst.msk [vmem:[#allocation3 + $0x440] sm:$0xff] %vm461, 0.0
      %761 = vst.msk [vmem:[#allocation3 + $0x448] sm:$0xff] %vm461, 0.0
      %762 = vst.msk [vmem:[#allocation3 + $0x450] sm:$0xff] %vm461, 0.0
      %763 = vst.msk [vmem:[#allocation3 + $0x458] sm:$0xff] %vm461, 0.0
      %764 = vst.msk [vmem:[#allocation3 + $0x460] sm:$0xff] %vm461, 0.0
      %765 = vst.msk [vmem:[#allocation3 + $0x468] sm:$0xff] %vm461, 0.0
      %766 = vst.msk [vmem:[#allocation3 + $0x470] sm:$0xff] %vm461, 0.0
      %767 = vst.msk [vmem:[#allocation3 + $0x478] sm:$0xff] %vm461, 0.0
      %768 = vst.msk [vmem:[#allocation3 + $0x480] sm:$0xff] %vm461, 0.0
      %769 = vst.msk [vmem:[#allocation3 + $0x488] sm:$0xff] %vm461, 0.0
      %770 = vst.msk [vmem:[#allocation3 + $0x490] sm:$0xff] %vm461, 0.0
      %771 = vst.msk [vmem:[#allocation3 + $0x498] sm:$0xff] %vm461, 0.0
      %772 = vst.msk [vmem:[#allocation3 + $0x4a0] sm:$0xff] %vm461, 0.0
      %773 = vst.msk [vmem:[#allocation3 + $0x4a8] sm:$0xff] %vm461, 0.0
      %774 = vst.msk [vmem:[#allocation3 + $0x4b0] sm:$0xff] %vm461, 0.0
      %775 = vst.msk [vmem:[#allocation3 + $0x4b8] sm:$0xff] %vm461, 0.0
      %776 = vst.msk [vmem:[#allocation3 + $0x4c0] sm:$0xff] %vm461, 0.0
      %777 = vst.msk [vmem:[#allocation3 + $0x4c8] sm:$0xff] %vm461, 0.0
      %778 = vst.msk [vmem:[#allocation3 + $0x4d0] sm:$0xff] %vm461, 0.0
      %779 = vst.msk [vmem:[#allocation3 + $0x4d8] sm:$0xff] %vm461, 0.0
      %780 = vst.msk [vmem:[#allocation3 + $0x4e0] sm:$0xff] %vm461, 0.0
      %781 = vst.msk [vmem:[#allocation3 + $0x4e8] sm:$0xff] %vm461, 0.0
      %782 = vst.msk [vmem:[#allocation3 + $0x4f0] sm:$0xff] %vm461, 0.0
      %783 = vst.msk [vmem:[#allocation3 + $0x4f8] sm:$0xff] %vm461, 0.0
      %784 = vst.msk [vmem:[#allocation3 + $0x500] sm:$0xff] %vm461, 0.0
      %785 = vst.msk [vmem:[#allocation3 + $0x508] sm:$0xff] %vm461, 0.0
      %786 = vst.msk [vmem:[#allocation4] sm:$0xff] %vm461, 0.0
      %787 = vst.msk [vmem:[#allocation4 + $0x8] sm:$0xff] %vm461, 0.0
      %788 = vst.msk [vmem:[#allocation4 + $0x10] sm:$0xff] %vm461, 0.0
      %789 = vst.msk [vmem:[#allocation4 + $0x18] sm:$0xff] %vm461, 0.0
      %790 = vst.msk [vmem:[#allocation4 + $0x20] sm:$0xff] %vm461, 0.0
      %791 = vst.msk [vmem:[#allocation4 + $0x28] sm:$0xff] %vm461, 0.0
      %792 = vst.msk [vmem:[#allocation4 + $0x30] sm:$0xff] %vm461, 0.0
      %793 = vst.msk [vmem:[#allocation4 + $0x38] sm:$0xff] %vm461, 0.0
      %794 = vst.msk [vmem:[#allocation4 + $0x40] sm:$0xff] %vm461, 0.0
      %795 = vst.msk [vmem:[#allocation4 + $0x48] sm:$0xff] %vm461, 0.0
      %796 = vst.msk [vmem:[#allocation4 + $0x50] sm:$0xff] %vm461, 0.0
      %797 = vst.msk [vmem:[#allocation4 + $0x58] sm:$0xff] %vm461, 0.0
      %798 = vst.msk [vmem:[#allocation4 + $0x60] sm:$0xff] %vm461, 0.0
      %799 = vst.msk [vmem:[#allocation4 + $0x68] sm:$0xff] %vm461, 0.0
      %800 = vst.msk [vmem:[#allocation4 + $0x70] sm:$0xff] %vm461, 0.0
      %801 = vst.msk [vmem:[#allocation4 + $0x78] sm:$0xff] %vm461, 0.0
      %802 = vst.msk [vmem:[#allocation4 + $0x80] sm:$0xff] %vm461, 0.0
      %803 = vst.msk [vmem:[#allocation4 + $0x88] sm:$0xff] %vm461, 0.0
      %804 = vst.msk [vmem:[#allocation4 + $0x90] sm:$0xff] %vm461, 0.0
      %805 = vst.msk [vmem:[#allocation4 + $0x98] sm:$0xff] %vm461, 0.0
      %806 = vst.msk [vmem:[#allocation4 + $0xa0] sm:$0xff] %vm461, 0.0
      %807 = vst.msk [vmem:[#allocation4 + $0xa8] sm:$0xff] %vm461, 0.0
      %808 = vst.msk [vmem:[#allocation4 + $0xb0] sm:$0xff] %vm461, 0.0
      %809 = vst.msk [vmem:[#allocation4 + $0xb8] sm:$0xff] %vm461, 0.0
      %810 = vst.msk [vmem:[#allocation4 + $0xc0] sm:$0xff] %vm461, 0.0
      %811 = vst.msk [vmem:[#allocation4 + $0xc8] sm:$0xff] %vm461, 0.0
      %812 = vst.msk [vmem:[#allocation4 + $0xd0] sm:$0xff] %vm461, 0.0
      %813 = vst.msk [vmem:[#allocation4 + $0xd8] sm:$0xff] %vm461, 0.0
      %814 = vst.msk [vmem:[#allocation4 + $0xe0] sm:$0xff] %vm461, 0.0
      %815 = vst.msk [vmem:[#allocation4 + $0xe8] sm:$0xff] %vm461, 0.0
      %816 = vst.msk [vmem:[#allocation4 + $0xf0] sm:$0xff] %vm461, 0.0
      %817 = vst.msk [vmem:[#allocation4 + $0xf8] sm:$0xff] %vm461, 0.0
      %818 = vst.msk [vmem:[#allocation4 + $0x100] sm:$0xff] %vm461, 0.0
      %819 = vst.msk [vmem:[#allocation4 + $0x108] sm:$0xff] %vm461, 0.0
      %820 = vst.msk [vmem:[#allocation4 + $0x110] sm:$0xff] %vm461, 0.0
      %821 = vst.msk [vmem:[#allocation4 + $0x118] sm:$0xff] %vm461, 0.0
      %822 = vst.msk [vmem:[#allocation4 + $0x120] sm:$0xff] %vm461, 0.0
      %823 = vst.msk [vmem:[#allocation4 + $0x128] sm:$0xff] %vm461, 0.0
      %824 = vst.msk [vmem:[#allocation4 + $0x130] sm:$0xff] %vm461, 0.0
      %825 = vst.msk [vmem:[#allocation4 + $0x138] sm:$0xff] %vm461, 0.0
      %826 = vst.msk [vmem:[#allocation4 + $0x140] sm:$0xff] %vm461, 0.0
      %827 = vst.msk [vmem:[#allocation4 + $0x148] sm:$0xff] %vm461, 0.0
      %828 = vst.msk [vmem:[#allocation4 + $0x150] sm:$0xff] %vm461, 0.0
      %829 = vst.msk [vmem:[#allocation4 + $0x158] sm:$0xff] %vm461, 0.0
      %830 = vst.msk [vmem:[#allocation4 + $0x160] sm:$0xff] %vm461, 0.0
      %831 = vst.msk [vmem:[#allocation4 + $0x168] sm:$0xff] %vm461, 0.0
      %832 = vst.msk [vmem:[#allocation4 + $0x170] sm:$0xff] %vm461, 0.0
      %833 = vst.msk [vmem:[#allocation4 + $0x178] sm:$0xff] %vm461, 0.0
      %834 = vst.msk [vmem:[#allocation4 + $0x180] sm:$0xff] %vm461, 0.0
      %835 = vst.msk [vmem:[#allocation4 + $0x188] sm:$0xff] %vm461, 0.0
      %836 = vst.msk [vmem:[#allocation4 + $0x190] sm:$0xff] %vm461, 0.0
      %837 = vst.msk [vmem:[#allocation4 + $0x198] sm:$0xff] %vm461, 0.0
      %838 = vst.msk [vmem:[#allocation4 + $0x1a0] sm:$0xff] %vm461, 0.0
      %839 = vst.msk [vmem:[#allocation4 + $0x1a8] sm:$0xff] %vm461, 0.0
      %840 = vst.msk [vmem:[#allocation4 + $0x1b0] sm:$0xff] %vm461, 0.0
      %841 = vst.msk [vmem:[#allocation4 + $0x1b8] sm:$0xff] %vm461, 0.0
      %842 = vst.msk [vmem:[#allocation4 + $0x1c0] sm:$0xff] %vm461, 0.0
      %843 = vst.msk [vmem:[#allocation4 + $0x1c8] sm:$0xff] %vm461, 0.0
      %844 = vst.msk [vmem:[#allocation4 + $0x1d0] sm:$0xff] %vm461, 0.0
      %845 = vst.msk [vmem:[#allocation4 + $0x1d8] sm:$0xff] %vm461, 0.0
      %846 = vst.msk [vmem:[#allocation4 + $0x1e0] sm:$0xff] %vm461, 0.0
      %847 = vst.msk [vmem:[#allocation4 + $0x1e8] sm:$0xff] %vm461, 0.0
      %848 = vst.msk [vmem:[#allocation4 + $0x1f0] sm:$0xff] %vm461, 0.0
      %849 = vst.msk [vmem:[#allocation4 + $0x1f8] sm:$0xff] %vm461, 0.0
      %850 = vst.msk [vmem:[#allocation4 + $0x200] sm:$0xff] %vm461, 0.0
      %851 = vst.msk [vmem:[#allocation4 + $0x208] sm:$0xff] %vm461, 0.0
      %852 = vst.msk [vmem:[#allocation4 + $0x210] sm:$0xff] %vm461, 0.0
      %853 = vst.msk [vmem:[#allocation4 + $0x218] sm:$0xff] %vm461, 0.0
      %854 = vst.msk [vmem:[#allocation4 + $0x220] sm:$0xff] %vm461, 0.0
      %855 = vst.msk [vmem:[#allocation4 + $0x228] sm:$0xff] %vm461, 0.0
      %856 = vst.msk [vmem:[#allocation4 + $0x230] sm:$0xff] %vm461, 0.0
      %857 = vst.msk [vmem:[#allocation4 + $0x238] sm:$0xff] %vm461, 0.0
      %858 = vst.msk [vmem:[#allocation4 + $0x240] sm:$0xff] %vm461, 0.0
      %859 = vst.msk [vmem:[#allocation4 + $0x248] sm:$0xff] %vm461, 0.0
      %860 = vst.msk [vmem:[#allocation4 + $0x250] sm:$0xff] %vm461, 0.0
      %861 = vst.msk [vmem:[#allocation4 + $0x258] sm:$0xff] %vm461, 0.0
      %862 = vst.msk [vmem:[#allocation4 + $0x260] sm:$0xff] %vm461, 0.0
      %863 = vst.msk [vmem:[#allocation4 + $0x268] sm:$0xff] %vm461, 0.0
      %864 = vst.msk [vmem:[#allocation4 + $0x270] sm:$0xff] %vm461, 0.0
      %865 = vst.msk [vmem:[#allocation4 + $0x278] sm:$0xff] %vm461, 0.0
      %866 = vst.msk [vmem:[#allocation4 + $0x280] sm:$0xff] %vm461, 0.0
      %867 = vst.msk [vmem:[#allocation4 + $0x288] sm:$0xff] %vm461, 0.0
      %868 = vst.msk [vmem:[#allocation4 + $0x290] sm:$0xff] %vm461, 0.0
      %869 = vst.msk [vmem:[#allocation4 + $0x298] sm:$0xff] %vm461, 0.0
      %870 = vst.msk [vmem:[#allocation4 + $0x2a0] sm:$0xff] %vm461, 0.0
      %871 = vst.msk [vmem:[#allocation4 + $0x2a8] sm:$0xff] %vm461, 0.0
      %872 = vst.msk [vmem:[#allocation4 + $0x2b0] sm:$0xff] %vm461, 0.0
      %873 = vst.msk [vmem:[#allocation4 + $0x2b8] sm:$0xff] %vm461, 0.0
      %874 = vst.msk [vmem:[#allocation4 + $0x2c0] sm:$0xff] %vm461, 0.0
      %875 = vst.msk [vmem:[#allocation4 + $0x2c8] sm:$0xff] %vm461, 0.0
      %876 = vst.msk [vmem:[#allocation4 + $0x2d0] sm:$0xff] %vm461, 0.0
      %877 = vst.msk [vmem:[#allocation4 + $0x2d8] sm:$0xff] %vm461, 0.0
      %878 = vst.msk [vmem:[#allocation4 + $0x2e0] sm:$0xff] %vm461, 0.0
      %879 = vst.msk [vmem:[#allocation4 + $0x2e8] sm:$0xff] %vm461, 0.0
      %880 = vst.msk [vmem:[#allocation4 + $0x2f0] sm:$0xff] %vm461, 0.0
      %881 = vst.msk [vmem:[#allocation4 + $0x2f8] sm:$0xff] %vm461, 0.0
      %882 = vst.msk [vmem:[#allocation4 + $0x300] sm:$0xff] %vm461, 0.0
      %883 = vst.msk [vmem:[#allocation4 + $0x308] sm:$0xff] %vm461, 0.0
      %884 = vst.msk [vmem:[#allocation4 + $0x310] sm:$0xff] %vm461, 0.0
      %885 = vst.msk [vmem:[#allocation4 + $0x318] sm:$0xff] %vm461, 0.0
      %886 = vst.msk [vmem:[#allocation4 + $0x320] sm:$0xff] %vm461, 0.0
      %887 = vst.msk [vmem:[#allocation4 + $0x328] sm:$0xff] %vm461, 0.0
      %888 = vst.msk [vmem:[#allocation4 + $0x330] sm:$0xff] %vm461, 0.0
      %889 = vst.msk [vmem:[#allocation4 + $0x338] sm:$0xff] %vm461, 0.0
      %890 = vst.msk [vmem:[#allocation4 + $0x340] sm:$0xff] %vm461, 0.0
      %891 = vst.msk [vmem:[#allocation4 + $0x348] sm:$0xff] %vm461, 0.0
      %892 = vst.msk [vmem:[#allocation4 + $0x350] sm:$0xff] %vm461, 0.0
      %893 = vst.msk [vmem:[#allocation4 + $0x358] sm:$0xff] %vm461, 0.0
      %894 = vst.msk [vmem:[#allocation4 + $0x360] sm:$0xff] %vm461, 0.0
      %895 = vst.msk [vmem:[#allocation4 + $0x368] sm:$0xff] %vm461, 0.0
      %896 = vst.msk [vmem:[#allocation4 + $0x370] sm:$0xff] %vm461, 0.0
      %897 = vst.msk [vmem:[#allocation4 + $0x378] sm:$0xff] %vm461, 0.0
      %898 = vst.msk [vmem:[#allocation4 + $0x380] sm:$0xff] %vm461, 0.0
      %899 = vst.msk [vmem:[#allocation4 + $0x388] sm:$0xff] %vm461, 0.0
      %900 = vst.msk [vmem:[#allocation4 + $0x390] sm:$0xff] %vm461, 0.0
      %901 = vst.msk [vmem:[#allocation4 + $0x398] sm:$0xff] %vm461, 0.0
      %902 = vst.msk [vmem:[#allocation4 + $0x3a0] sm:$0xff] %vm461, 0.0
      %903 = vst.msk [vmem:[#allocation4 + $0x3a8] sm:$0xff] %vm461, 0.0
      %904 = vst.msk [vmem:[#allocation4 + $0x3b0] sm:$0xff] %vm461, 0.0
      %905 = vst.msk [vmem:[#allocation4 + $0x3b8] sm:$0xff] %vm461, 0.0
      %906 = vst.msk [vmem:[#allocation4 + $0x3c0] sm:$0xff] %vm461, 0.0
      %907 = vst.msk [vmem:[#allocation4 + $0x3c8] sm:$0xff] %vm461, 0.0
      %908 = vst.msk [vmem:[#allocation4 + $0x3d0] sm:$0xff] %vm461, 0.0
      %909 = vst.msk [vmem:[#allocation4 + $0x3d8] sm:$0xff] %vm461, 0.0
      %910 = vst.msk [vmem:[#allocation4 + $0x3e0] sm:$0xff] %vm461, 0.0
      %911 = vst.msk [vmem:[#allocation4 + $0x3e8] sm:$0xff] %vm461, 0.0
      %912 = vst.msk [vmem:[#allocation4 + $0x3f0] sm:$0xff] %vm461, 0.0
      %913 = vst.msk [vmem:[#allocation4 + $0x3f8] sm:$0xff] %vm461, 0.0
      %914 = vst.msk [vmem:[#allocation4 + $0x400] sm:$0xff] %vm461, 0.0
      %915 = vst.msk [vmem:[#allocation4 + $0x408] sm:$0xff] %vm461, 0.0
      %916 = vst.msk [vmem:[#allocation4 + $0x410] sm:$0xff] %vm461, 0.0
      %917 = vst.msk [vmem:[#allocation4 + $0x418] sm:$0xff] %vm461, 0.0
      %918 = vst.msk [vmem:[#allocation4 + $0x420] sm:$0xff] %vm461, 0.0
      %919 = vst.msk [vmem:[#allocation4 + $0x428] sm:$0xff] %vm461, 0.0
      %920 = vst.msk [vmem:[#allocation4 + $0x430] sm:$0xff] %vm461, 0.0
      %921 = vst.msk [vmem:[#allocation4 + $0x438] sm:$0xff] %vm461, 0.0
      %922 = vst.msk [vmem:[#allocation4 + $0x440] sm:$0xff] %vm461, 0.0
      %923 = vst.msk [vmem:[#allocation4 + $0x448] sm:$0xff] %vm461, 0.0
      %924 = vst.msk [vmem:[#allocation4 + $0x450] sm:$0xff] %vm461, 0.0
      %925 = vst.msk [vmem:[#allocation4 + $0x458] sm:$0xff] %vm461, 0.0
      %926 = vst.msk [vmem:[#allocation4 + $0x460] sm:$0xff] %vm461, 0.0
      %927 = vst.msk [vmem:[#allocation4 + $0x468] sm:$0xff] %vm461, 0.0
      %928 = vst.msk [vmem:[#allocation4 + $0x470] sm:$0xff] %vm461, 0.0
      %929 = vst.msk [vmem:[#allocation4 + $0x478] sm:$0xff] %vm461, 0.0
      %930 = vst.msk [vmem:[#allocation4 + $0x480] sm:$0xff] %vm461, 0.0
      %931 = vst.msk [vmem:[#allocation4 + $0x488] sm:$0xff] %vm461, 0.0
      %932 = vst.msk [vmem:[#allocation4 + $0x490] sm:$0xff] %vm461, 0.0
      %933 = vst.msk [vmem:[#allocation4 + $0x498] sm:$0xff] %vm461, 0.0
      %934 = vst.msk [vmem:[#allocation4 + $0x4a0] sm:$0xff] %vm461, 0.0
      %935 = vst.msk [vmem:[#allocation4 + $0x4a8] sm:$0xff] %vm461, 0.0
      %936 = vst.msk [vmem:[#allocation4 + $0x4b0] sm:$0xff] %vm461, 0.0
      %937 = vst.msk [vmem:[#allocation4 + $0x4b8] sm:$0xff] %vm461, 0.0
      %938 = vst.msk [vmem:[#allocation4 + $0x4c0] sm:$0xff] %vm461, 0.0
      %939 = vst.msk [vmem:[#allocation4 + $0x4c8] sm:$0xff] %vm461, 0.0
      %940 = vst.msk [vmem:[#allocation4 + $0x4d0] sm:$0xff] %vm461, 0.0
      %941 = vst.msk [vmem:[#allocation4 + $0x4d8] sm:$0xff] %vm461, 0.0
      %942 = vst.msk [vmem:[#allocation4 + $0x4e0] sm:$0xff] %vm461, 0.0
      %943 = vst.msk [vmem:[#allocation4 + $0x4e8] sm:$0xff] %vm461, 0.0
      %944 = vst.msk [vmem:[#allocation4 + $0x4f0] sm:$0xff] %vm461, 0.0
      %945 = vst.msk [vmem:[#allocation4 + $0x4f8] sm:$0xff] %vm461, 0.0
      %946 = vst.msk [vmem:[#allocation4 + $0x500] sm:$0xff] %vm461, 0.0
      %947 = vst.msk [vmem:[#allocation4 + $0x508] sm:$0xff] %vm461, 0.0
      %v948 = vld [vmem:[%s2] sm:$0xff]
      %v949 = vld [vmem:[%s2 + $0x8] sm:$0xff]
      %v950 = vld [vmem:[%s2 + $0x10] sm:$0xff]
      %v951 = vld [vmem:[%s2 + $0x18] sm:$0xff]
      %v952 = vld [vmem:[%s2 + $0x20] sm:$0xff]
      %v953 = vld [vmem:[%s2 + $0x28] sm:$0xff]
      %v954 = vld [vmem:[%s2 + $0x30] sm:$0xff]
      %v955 = vld [vmem:[%s2 + $0x38] sm:$0xff]
      %v956 = vld [vmem:[%s2 + $0x40] sm:$0xff]
      %v957 = vld [vmem:[%s2 + $0x48] sm:$0xff]
      %v958 = vld [vmem:[%s2 + $0x50] sm:$0xff]
      %v959 = vld [vmem:[%s2 + $0x58] sm:$0xff]
      %v960 = vld [vmem:[%s2 + $0x60] sm:$0xff]
      %v961 = vld [vmem:[%s2 + $0x68] sm:$0xff]
      %v962 = vld [vmem:[%s2 + $0x70] sm:$0xff]
      %v963 = vld [vmem:[%s2 + $0x78] sm:$0xff]
      %v964 = vld [vmem:[%s450] sm:$0xff]
      %v965 = vld [vmem:[%s450 + $0x8] sm:$0xff]
      %v966 = vld [vmem:[%s450 + $0x10] sm:$0xff]
      %v967 = vld [vmem:[%s450 + $0x18] sm:$0xff]
      %v968 = vld [vmem:[%s450 + $0x20] sm:$0xff]
      %v969 = vld [vmem:[%s450 + $0x28] sm:$0xff]
      %v970 = vld [vmem:[%s450 + $0x30] sm:$0xff]
      %v971 = vld [vmem:[%s450 + $0x38] sm:$0xff]
      %vm972 = vcmask 523264
      %v974 = vsel %vm972, %v948, 0
      %v977 = vsel %vm972, %v949, 0
      %v980 = vsel %vm972, %v950, 0
      %v983 = vsel %vm972, %v951, 0
      %v986 = vsel %vm972, %v952, 0
      %v989 = vsel %vm972, %v953, 0
      %v992 = vsel %vm972, %v954, 0
      %v995 = vsel %vm972, %v955, 0
      %v998 = vsel %vm972, %v956, 0
      %v1001 = vsel %vm972, %v957, 0
      %v1004 = vsel %vm972, %v958, 0
      %v1007 = vsel %vm972, %v959, 0
      %v1010 = vsel %vm972, %v960, 0
      %v1013 = vsel %vm972, %v961, 0
      %v1016 = vsel %vm972, %v962, 0
      %v1019 = vsel %vm972, %v963, 0
      %1021 = vmatpush.msra.mxu0 0.0
      %1022 = vmatpush.msra.mxu0 0.0
      %1023 = vmatpush.msra.mxu0 0.0
      %1024 = vmatpush.msra.mxu0 0.0
      %1025 = vmatpush.msra.mxu0 0.0
      %1026 = vmatpush.msra.mxu0 0.0
      %1027 = vmatpush.msra.mxu0 0.0
      %1028 = vmatpush.msra.mxu0 0.0
      %1029 = vmatpush.msra.mxu0 %v971
      %1030 = vmatpush.msra.mxu0 %v970
      %1031 = vmatpush.msra.mxu0 %v969
      %1032 = vmatpush.msra.mxu0 %v968
      %1033 = vmatpush.msra.mxu0 %v967
      %1034 = vmatpush.msra.mxu0 %v966
      %1035 = vmatpush.msra.mxu0 %v965
      %1036 = vmatpush.msra.mxu0 %v964
      %1037 = vmatmul.f32.gmra.mxu0 %v974
      %v1038 = vpop.f32.mrf.mxu0
      %v1039 = vadd.f32 0.0, %v1038
      %1040 = vmatmul.f32.gmra.mxu0 %v977
      %v1041 = vpop.f32.mrf.mxu0
      %v1042 = vadd.f32 0.0, %v1041
      %1043 = vmatmul.f32.gmra.mxu0 %v980
      %v1044 = vpop.f32.mrf.mxu0
      %v1045 = vadd.f32 0.0, %v1044
      %1046 = vmatmul.f32.gmra.mxu0 %v983
      %v1047 = vpop.f32.mrf.mxu0
      %v1048 = vadd.f32 0.0, %v1047
      %1049 = vmatmul.f32.gmra.mxu0 %v986
      %v1050 = vpop.f32.mrf.mxu0
      %v1051 = vadd.f32 0.0, %v1050
      %1052 = vmatmul.f32.gmra.mxu0 %v989
      %v1053 = vpop.f32.mrf.mxu0
      %v1054 = vadd.f32 0.0, %v1053
      %1055 = vmatmul.f32.gmra.mxu0 %v992
      %v1056 = vpop.f32.mrf.mxu0
      %v1057 = vadd.f32 0.0, %v1056
      %1058 = vmatmul.f32.gmra.mxu0 %v995
      %v1059 = vpop.f32.mrf.mxu0
      %v1060 = vadd.f32 0.0, %v1059
      %1061 = vmatmul.f32.gmra.mxu0 %v998
      %v1062 = vpop.f32.mrf.mxu0
      %v1063 = vadd.f32 0.0, %v1062
      %1064 = vmatmul.f32.gmra.mxu0 %v1001
      %v1065 = vpop.f32.mrf.mxu0
      %v1066 = vadd.f32 0.0, %v1065
      %1067 = vmatmul.f32.gmra.mxu0 %v1004
      %v1068 = vpop.f32.mrf.mxu0
      %v1069 = vadd.f32 0.0, %v1068
      %1070 = vmatmul.f32.gmra.mxu0 %v1007
      %v1071 = vpop.f32.mrf.mxu0
      %v1072 = vadd.f32 0.0, %v1071
      %1073 = vmatmul.f32.gmra.mxu0 %v1010
      %v1074 = vpop.f32.mrf.mxu0
      %v1075 = vadd.f32 0.0, %v1074
      %1076 = vmatmul.f32.gmra.mxu0 %v1013
      %v1077 = vpop.f32.mrf.mxu0
      %v1078 = vadd.f32 0.0, %v1077
      %1079 = vmatmul.f32.gmra.mxu0 %v1016
      %v1080 = vpop.f32.mrf.mxu0
      %v1081 = vadd.f32 0.0, %v1080
      %1082 = vmatmul.f32.gmra.mxu0 %v1019
      %v1083 = vpop.f32.mrf.mxu0
      %v1084 = vadd.f32 0.0, %v1083
      %1085 = vdwg.mxu0
      %v1086 = vld [vmem:[%s3] sm:$0xff]
      %v1087 = vld [vmem:[%s3 + $0x8] sm:$0xff]
      %v1088 = vld [vmem:[%s3 + $0x10] sm:$0xff]
      %v1089 = vld [vmem:[%s3 + $0x18] sm:$0xff]
      %v1090 = vld [vmem:[%s3 + $0x20] sm:$0xff]
      %v1091 = vld [vmem:[%s3 + $0x28] sm:$0xff]
      %v1092 = vld [vmem:[%s3 + $0x30] sm:$0xff]
      %v1093 = vld [vmem:[%s3 + $0x38] sm:$0xff]
      %v1094 = vld [vmem:[%s3 + $0x40] sm:$0xff]
      %v1095 = vld [vmem:[%s3 + $0x48] sm:$0xff]
      %v1096 = vld [vmem:[%s3 + $0x50] sm:$0xff]
      %v1097 = vld [vmem:[%s3 + $0x58] sm:$0xff]
      %v1098 = vld [vmem:[%s3 + $0x60] sm:$0xff]
      %v1099 = vld [vmem:[%s3 + $0x68] sm:$0xff]
      %v1100 = vld [vmem:[%s3 + $0x70] sm:$0xff]
      %v1101 = vld [vmem:[%s3 + $0x78] sm:$0xff]
      %v1102 = vld [vmem:[%s3 + $0x80] sm:$0xff]
      %v1103 = vld [vmem:[%s3 + $0x88] sm:$0xff]
      %v1104 = vld [vmem:[%s3 + $0x90] sm:$0xff]
      %v1105 = vld [vmem:[%s3 + $0x98] sm:$0xff]
      %v1106 = vld [vmem:[%s3 + $0xa0] sm:$0xff]
      %v1107 = vld [vmem:[%s3 + $0xa8] sm:$0xff]
      %v1108 = vld [vmem:[%s3 + $0xb0] sm:$0xff]
      %v1109 = vld [vmem:[%s3 + $0xb8] sm:$0xff]
      %v1110 = vld [vmem:[%s3 + $0xc0] sm:$0xff]
      %v1111 = vld [vmem:[%s3 + $0xc8] sm:$0xff]
      %v1112 = vld [vmem:[%s3 + $0xd0] sm:$0xff]
      %v1113 = vld [vmem:[%s3 + $0xd8] sm:$0xff]
      %v1114 = vld [vmem:[%s3 + $0xe0] sm:$0xff]
      %v1115 = vld [vmem:[%s3 + $0xe8] sm:$0xff]
      %v1116 = vld [vmem:[%s3 + $0xf0] sm:$0xff]
      %v1117 = vld [vmem:[%s3 + $0xf8] sm:$0xff]
      %1118 = vmatpush.msra.mxu0 %v1084
      %1119 = vmatpush.msra.mxu0 %v1081
      %1120 = vmatpush.msra.mxu0 %v1078
      %1121 = vmatpush.msra.mxu0 %v1075
      %1122 = vmatpush.msra.mxu0 %v1072
      %1123 = vmatpush.msra.mxu0 %v1069
      %1124 = vmatpush.msra.mxu0 %v1066
      %1125 = vmatpush.msra.mxu0 %v1063
      %1126 = vmatpush.msra.mxu0 %v1060
      %1127 = vmatpush.msra.mxu0 %v1057
      %1128 = vmatpush.msra.mxu0 %v1054
      %1129 = vmatpush.msra.mxu0 %v1051
      %1130 = vmatpush.msra.mxu0 %v1048
      %1131 = vmatpush.msra.mxu0 %v1045
      %1132 = vmatpush.msra.mxu0 %v1042
      %1133 = vmatpush.msra.mxu0 %v1039
      %1134 = vmatmul.f32.gmra.mxu0 %v1086
      %v1135 = vpop.f32.mrf.mxu0
      %v1136 = vadd.f32 0.0, %v1135
      %1137 = vmatmul.f32.gmra.mxu0 %v1087
      %v1138 = vpop.f32.mrf.mxu0
      %v1139 = vadd.f32 0.0, %v1138
      %1140 = vmatmul.f32.gmra.mxu0 %v1088
      %v1141 = vpop.f32.mrf.mxu0
      %v1142 = vadd.f32 0.0, %v1141
      %1143 = vmatmul.f32.gmra.mxu0 %v1089
      %v1144 = vpop.f32.mrf.mxu0
      %v1145 = vadd.f32 0.0, %v1144
      %1146 = vmatmul.f32.gmra.mxu0 %v1090
      %v1147 = vpop.f32.mrf.mxu0
      %v1148 = vadd.f32 0.0, %v1147
      %1149 = vmatmul.f32.gmra.mxu0 %v1091
      %v1150 = vpop.f32.mrf.mxu0
      %v1151 = vadd.f32 0.0, %v1150
      %1152 = vmatmul.f32.gmra.mxu0 %v1092
      %v1153 = vpop.f32.mrf.mxu0
      %v1154 = vadd.f32 0.0, %v1153
      %1155 = vmatmul.f32.gmra.mxu0 %v1093
      %v1156 = vpop.f32.mrf.mxu0
      %v1157 = vadd.f32 0.0, %v1156
      %1158 = vmatmul.f32.gmra.mxu0 %v1094
      %v1159 = vpop.f32.mrf.mxu0
      %v1160 = vadd.f32 0.0, %v1159
      %1161 = vmatmul.f32.gmra.mxu0 %v1095
      %v1162 = vpop.f32.mrf.mxu0
      %v1163 = vadd.f32 0.0, %v1162
      %1164 = vmatmul.f32.gmra.mxu0 %v1096
      %v1165 = vpop.f32.mrf.mxu0
      %v1166 = vadd.f32 0.0, %v1165
      %1167 = vmatmul.f32.gmra.mxu0 %v1097
      %v1168 = vpop.f32.mrf.mxu0
      %v1169 = vadd.f32 0.0, %v1168
      %1170 = vmatmul.f32.gmra.mxu0 %v1098
      %v1171 = vpop.f32.mrf.mxu0
      %v1172 = vadd.f32 0.0, %v1171
      %1173 = vmatmul.f32.gmra.mxu0 %v1099
      %v1174 = vpop.f32.mrf.mxu0
      %v1175 = vadd.f32 0.0, %v1174
      %1176 = vmatmul.f32.gmra.mxu0 %v1100
      %v1177 = vpop.f32.mrf.mxu0
      %v1178 = vadd.f32 0.0, %v1177
      %1179 = vmatmul.f32.gmra.mxu0 %v1101
      %v1180 = vpop.f32.mrf.mxu0
      %v1181 = vadd.f32 0.0, %v1180
      %1182 = vmatmul.f32.gmra.mxu0 %v1102
      %v1183 = vpop.f32.mrf.mxu0
      %v1184 = vadd.f32 0.0, %v1183
      %1185 = vmatmul.f32.gmra.mxu0 %v1103
      %v1186 = vpop.f32.mrf.mxu0
      %v1187 = vadd.f32 0.0, %v1186
      %1188 = vmatmul.f32.gmra.mxu0 %v1104
      %v1189 = vpop.f32.mrf.mxu0
      %v1190 = vadd.f32 0.0, %v1189
      %1191 = vmatmul.f32.gmra.mxu0 %v1105
      %v1192 = vpop.f32.mrf.mxu0
      %v1193 = vadd.f32 0.0, %v1192
      %1194 = vmatmul.f32.gmra.mxu0 %v1106
      %v1195 = vpop.f32.mrf.mxu0
      %v1196 = vadd.f32 0.0, %v1195
      %1197 = vmatmul.f32.gmra.mxu0 %v1107
      %v1198 = vpop.f32.mrf.mxu0
      %v1199 = vadd.f32 0.0, %v1198
      %1200 = vmatmul.f32.gmra.mxu0 %v1108
      %v1201 = vpop.f32.mrf.mxu0
      %v1202 = vadd.f32 0.0, %v1201
      %1203 = vmatmul.f32.gmra.mxu0 %v1109
      %v1204 = vpop.f32.mrf.mxu0
      %v1205 = vadd.f32 0.0, %v1204
      %1206 = vmatmul.f32.gmra.mxu0 %v1110
      %v1207 = vpop.f32.mrf.mxu0
      %v1208 = vadd.f32 0.0, %v1207
      %1209 = vmatmul.f32.gmra.mxu0 %v1111
      %v1210 = vpop.f32.mrf.mxu0
      %v1211 = vadd.f32 0.0, %v1210
      %1212 = vmatmul.f32.gmra.mxu0 %v1112
      %v1213 = vpop.f32.mrf.mxu0
      %v1214 = vadd.f32 0.0, %v1213
      %1215 = vmatmul.f32.gmra.mxu0 %v1113
      %v1216 = vpop.f32.mrf.mxu0
      %v1217 = vadd.f32 0.0, %v1216
      %1218 = vmatmul.f32.gmra.mxu0 %v1114
      %v1219 = vpop.f32.mrf.mxu0
      %v1220 = vadd.f32 0.0, %v1219
      %1221 = vmatmul.f32.gmra.mxu0 %v1115
      %v1222 = vpop.f32.mrf.mxu0
      %v1223 = vadd.f32 0.0, %v1222
      %1224 = vmatmul.f32.gmra.mxu0 %v1116
      %v1225 = vpop.f32.mrf.mxu0
      %v1226 = vadd.f32 0.0, %v1225
      %1227 = vmatmul.f32.gmra.mxu0 %v1117
      %v1228 = vpop.f32.mrf.mxu0
      %v1229 = vadd.f32 0.0, %v1228
      %1230 = vdwg.mxu0
      %v1231 = vld [vmem:[%s4] sm:$0xff]
      %v1232 = vld [vmem:[%s5] sm:$0x1]
      %v1234 = vperm.slane %v1232, 0
      %vm1236 = vcmask 64512
      %v1238 = vsel %vm1236, %v1136, 0
      %v1241 = vsel %vm1236, %v1139, 0
      %v1244 = vsel %vm1236, %v1142, 0
      %v1247 = vsel %vm1236, %v1145, 0
      %v1250 = vsel %vm1236, %v1148, 0
      %v1253 = vsel %vm1236, %v1151, 0
      %v1256 = vsel %vm1236, %v1154, 0
      %v1259 = vsel %vm1236, %v1157, 0
      %v1262 = vsel %vm1236, %v1160, 0
      %v1265 = vsel %vm1236, %v1163, 0
      %v1268 = vsel %vm1236, %v1166, 0
      %v1271 = vsel %vm1236, %v1169, 0
      %v1274 = vsel %vm1236, %v1172, 0
      %v1277 = vsel %vm1236, %v1175, 0
      %v1280 = vsel %vm1236, %v1178, 0
      %v1283 = vsel %vm1236, %v1181, 0
      %v1286 = vsel %vm1236, %v1184, 0
      %v1289 = vsel %vm1236, %v1187, 0
      %v1292 = vsel %vm1236, %v1190, 0
      %v1295 = vsel %vm1236, %v1193, 0
      %v1298 = vsel %vm1236, %v1196, 0
      %v1301 = vsel %vm1236, %v1199, 0
      %v1304 = vsel %vm1236, %v1202, 0
      %v1307 = vsel %vm1236, %v1205, 0
      %v1310 = vsel %vm1236, %v1208, 0
      %v1313 = vsel %vm1236, %v1211, 0
      %v1316 = vsel %vm1236, %v1214, 0
      %v1319 = vsel %vm1236, %v1217, 0
      %v1322 = vsel %vm1236, %v1220, 0
      %v1325 = vsel %vm1236, %v1223, 0
      %v1328 = vsel %vm1236, %v1226, 0
      %v1331 = vsel %vm1236, %v1229, 0
      %1333 = vmatpush.msra.mxu0 0.0
      %1334 = vmatpush.msra.mxu0 0.0
      %1335 = vmatpush.msra.mxu0 0.0
      %1336 = vmatpush.msra.mxu0 0.0
      %1337 = vmatpush.msra.mxu0 0.0
      %1338 = vmatpush.msra.mxu0 0.0
      %1339 = vmatpush.msra.mxu0 0.0
      %1340 = vmatpush.msra.mxu0 0.0
      %1341 = vmatpush.msra.mxu0 0.0
      %1342 = vmatpush.msra.mxu0 0.0
      %1343 = vmatpush.msra.mxu0 0.0
      %1344 = vmatpush.msra.mxu0 0.0
      %1345 = vmatpush.msra.mxu0 0.0
      %1346 = vmatpush.msra.mxu0 0.0
      %1347 = vmatpush.msra.mxu0 0.0
      %1348 = vmatpush.msra.mxu0 %v1231
      %1349 = vmatmul.f32.gmra.mxu0 %v1238
      %v1350 = vpop.f32.mrf.mxu0
      %v1351 = vadd.f32 %v1234, %v1350
      %1352 = vmatmul.f32.gmra.mxu0 %v1241
      %v1353 = vpop.f32.mrf.mxu0
      %v1354 = vadd.f32 %v1234, %v1353
      %1355 = vmatmul.f32.gmra.mxu0 %v1244
      %v1356 = vpop.f32.mrf.mxu0
      %v1357 = vadd.f32 %v1234, %v1356
      %1358 = vmatmul.f32.gmra.mxu0 %v1247
      %v1359 = vpop.f32.mrf.mxu0
      %v1360 = vadd.f32 %v1234, %v1359
      %1361 = vmatmul.f32.gmra.mxu0 %v1250
      %v1362 = vpop.f32.mrf.mxu0
      %v1363 = vadd.f32 %v1234, %v1362
      %1364 = vmatmul.f32.gmra.mxu0 %v1253
      %v1365 = vpop.f32.mrf.mxu0
      %v1366 = vadd.f32 %v1234, %v1365
      %1367 = vmatmul.f32.gmra.mxu0 %v1256
      %v1368 = vpop.f32.mrf.mxu0
      %v1369 = vadd.f32 %v1234, %v1368
      %1370 = vmatmul.f32.gmra.mxu0 %v1259
      %v1371 = vpop.f32.mrf.mxu0
      %v1372 = vadd.f32 %v1234, %v1371
      %1373 = vmatmul.f32.gmra.mxu0 %v1262
      %v1374 = vpop.f32.mrf.mxu0
      %v1375 = vadd.f32 %v1234, %v1374
      %1376 = vmatmul.f32.gmra.mxu0 %v1265
      %v1377 = vpop.f32.mrf.mxu0
      %v1378 = vadd.f32 %v1234, %v1377
      %1379 = vmatmul.f32.gmra.mxu0 %v1268
      %v1380 = vpop.f32.mrf.mxu0
      %v1381 = vadd.f32 %v1234, %v1380
      %1382 = vmatmul.f32.gmra.mxu0 %v1271
      %v1383 = vpop.f32.mrf.mxu0
      %v1384 = vadd.f32 %v1234, %v1383
      %1385 = vmatmul.f32.gmra.mxu0 %v1274
      %v1386 = vpop.f32.mrf.mxu0
      %v1387 = vadd.f32 %v1234, %v1386
      %1388 = vmatmul.f32.gmra.mxu0 %v1277
      %v1389 = vpop.f32.mrf.mxu0
      %v1390 = vadd.f32 %v1234, %v1389
      %1391 = vmatmul.f32.gmra.mxu0 %v1280
      %v1392 = vpop.f32.mrf.mxu0
      %v1393 = vadd.f32 %v1234, %v1392
      %1394 = vmatmul.f32.gmra.mxu0 %v1283
      %v1395 = vpop.f32.mrf.mxu0
      %v1396 = vadd.f32 %v1234, %v1395
      %1397 = vmatmul.f32.gmra.mxu0 %v1286
      %v1398 = vpop.f32.mrf.mxu0
      %v1399 = vadd.f32 %v1234, %v1398
      %1400 = vmatmul.f32.gmra.mxu0 %v1289
      %v1401 = vpop.f32.mrf.mxu0
      %v1402 = vadd.f32 %v1234, %v1401
      %1403 = vmatmul.f32.gmra.mxu0 %v1292
      %v1404 = vpop.f32.mrf.mxu0
      %v1405 = vadd.f32 %v1234, %v1404
      %1406 = vmatmul.f32.gmra.mxu0 %v1295
      %v1407 = vpop.f32.mrf.mxu0
      %v1408 = vadd.f32 %v1234, %v1407
      %1409 = vmatmul.f32.gmra.mxu0 %v1298
      %v1410 = vpop.f32.mrf.mxu0
      %v1411 = vadd.f32 %v1234, %v1410
      %1412 = vmatmul.f32.gmra.mxu0 %v1301
      %v1413 = vpop.f32.mrf.mxu0
      %v1414 = vadd.f32 %v1234, %v1413
      %1415 = vmatmul.f32.gmra.mxu0 %v1304
      %v1416 = vpop.f32.mrf.mxu0
      %v1417 = vadd.f32 %v1234, %v1416
      %1418 = vmatmul.f32.gmra.mxu0 %v1307
      %v1419 = vpop.f32.mrf.mxu0
      %v1420 = vadd.f32 %v1234, %v1419
      %1421 = vmatmul.f32.gmra.mxu0 %v1310
      %v1422 = vpop.f32.mrf.mxu0
      %v1423 = vadd.f32 %v1234, %v1422
      %1424 = vmatmul.f32.gmra.mxu0 %v1313
      %v1425 = vpop.f32.mrf.mxu0
      %v1426 = vadd.f32 %v1234, %v1425
      %1427 = vmatmul.f32.gmra.mxu0 %v1316
      %v1428 = vpop.f32.mrf.mxu0
      %v1429 = vadd.f32 %v1234, %v1428
      %1430 = vmatmul.f32.gmra.mxu0 %v1319
      %v1431 = vpop.f32.mrf.mxu0
      %v1432 = vadd.f32 %v1234, %v1431
      %1433 = vmatmul.f32.gmra.mxu0 %v1322
      %v1434 = vpop.f32.mrf.mxu0
      %v1435 = vadd.f32 %v1234, %v1434
      %1436 = vmatmul.f32.gmra.mxu0 %v1325
      %v1437 = vpop.f32.mrf.mxu0
      %v1438 = vadd.f32 %v1234, %v1437
      %1439 = vmatmul.f32.gmra.mxu0 %v1328
      %v1440 = vpop.f32.mrf.mxu0
      %v1441 = vadd.f32 %v1234, %v1440
      %1442 = vmatmul.f32.gmra.mxu0 %v1331
      %v1443 = vpop.f32.mrf.mxu0
      %v1444 = vadd.f32 %v1234, %v1443
      %1445 = vdwg.mxu0
      %s1446 = scalar_lea.vmem [#allocation2], 24
      %1447 = vst.msk [vmem:[%s1446 + $0x1] sm:$0xff] %vm461, %v1351
      %1448 = vst.msk [vmem:[%s1446 + $0x9] sm:$0xff] %vm461, %v1354
      %1449 = vst.msk [vmem:[%s1446 + $0x19] sm:$0xff] %vm461, %v1357
      %1450 = vst.msk [vmem:[%s1446 + $0x21] sm:$0xff] %vm461, %v1360
      %1451 = vst.msk [vmem:[%s1446 + $0x31] sm:$0xff] %vm461, %v1363
      %1452 = vst.msk [vmem:[%s1446 + $0x39] sm:$0xff] %vm461, %v1366
      %1453 = vst.msk [vmem:[%s1446 + $0x49] sm:$0xff] %vm461, %v1369
      %1454 = vst.msk [vmem:[%s1446 + $0x51] sm:$0xff] %vm461, %v1372
      %1455 = vst.msk [vmem:[%s1446 + $0x61] sm:$0xff] %vm461, %v1375
      %1456 = vst.msk [vmem:[%s1446 + $0x69] sm:$0xff] %vm461, %v1378
      %1457 = vst.msk [vmem:[%s1446 + $0x79] sm:$0xff] %vm461, %v1381
      %1458 = vst.msk [vmem:[%s1446 + $0x81] sm:$0xff] %vm461, %v1384
      %1459 = vst.msk [vmem:[%s1446 + $0x91] sm:$0xff] %vm461, %v1387
      %1460 = vst.msk [vmem:[%s1446 + $0x99] sm:$0xff] %vm461, %v1390
      %1461 = vst.msk [vmem:[%s1446 + $0xa9] sm:$0xff] %vm461, %v1393
      %1462 = vst.msk [vmem:[%s1446 + $0xb1] sm:$0xff] %vm461, %v1396
      %1463 = vst.msk [vmem:[%s1446 + $0xc1] sm:$0xff] %vm461, %v1399
      %1464 = vst.msk [vmem:[%s1446 + $0xc9] sm:$0xff] %vm461, %v1402
      %1465 = vst.msk [vmem:[%s1446 + $0xd9] sm:$0xff] %vm461, %v1405
      %1466 = vst.msk [vmem:[%s1446 + $0xe1] sm:$0xff] %vm461, %v1408
      %1467 = vst.msk [vmem:[%s1446 + $0xf1] sm:$0xff] %vm461, %v1411
      %1468 = vst.msk [vmem:[%s1446 + $0xf9] sm:$0xff] %vm461, %v1414
      %1469 = vst.msk [vmem:[%s1446 + $0x109] sm:$0xff] %vm461, %v1417
      %1470 = vst.msk [vmem:[%s1446 + $0x111] sm:$0xff] %vm461, %v1420
      %1471 = vst.msk [vmem:[%s1446 + $0x121] sm:$0xff] %vm461, %v1423
      %1472 = vst.msk [vmem:[%s1446 + $0x129] sm:$0xff] %vm461, %v1426
      %1473 = vst.msk [vmem:[%s1446 + $0x139] sm:$0xff] %vm461, %v1429
      %1474 = vst.msk [vmem:[%s1446 + $0x141] sm:$0xff] %vm461, %v1432
      %1475 = vst.msk [vmem:[%s1446 + $0x151] sm:$0xff] %vm461, %v1435
      %1476 = vst.msk [vmem:[%s1446 + $0x159] sm:$0xff] %vm461, %v1438
      %1477 = vst.msk [vmem:[%s1446 + $0x169] sm:$0xff] %vm461, %v1441
      %1478 = vst.msk [vmem:[%s1446 + $0x171] sm:$0xff] %vm461, %v1444
      %s1479 = scalar_lea.vmem [#allocation2], 456
      %1480 = vst.msk [vmem:[%s1479] sm:$0xff] %vm461, %v1351
      %1481 = vst.msk [vmem:[%s1479 + $0x8] sm:$0xff] %vm461, %v1354
      %1482 = vst.msk [vmem:[%s1479 + $0x18] sm:$0xff] %vm461, %v1357
      %1483 = vst.msk [vmem:[%s1479 + $0x20] sm:$0xff] %vm461, %v1360
      %1484 = vst.msk [vmem:[%s1479 + $0x30] sm:$0xff] %vm461, %v1363
      %1485 = vst.msk [vmem:[%s1479 + $0x38] sm:$0xff] %vm461, %v1366
      %1486 = vst.msk [vmem:[%s1479 + $0x48] sm:$0xff] %vm461, %v1369
      %1487 = vst.msk [vmem:[%s1479 + $0x50] sm:$0xff] %vm461, %v1372
      %1488 = vst.msk [vmem:[%s1479 + $0x60] sm:$0xff] %vm461, %v1375
      %1489 = vst.msk [vmem:[%s1479 + $0x68] sm:$0xff] %vm461, %v1378
      %1490 = vst.msk [vmem:[%s1479 + $0x78] sm:$0xff] %vm461, %v1381
      %1491 = vst.msk [vmem:[%s1479 + $0x80] sm:$0xff] %vm461, %v1384
      %1492 = vst.msk [vmem:[%s1479 + $0x90] sm:$0xff] %vm461, %v1387
      %1493 = vst.msk [vmem:[%s1479 + $0x98] sm:$0xff] %vm461, %v1390
      %1494 = vst.msk [vmem:[%s1479 + $0xa8] sm:$0xff] %vm461, %v1393
      %1495 = vst.msk [vmem:[%s1479 + $0xb0] sm:$0xff] %vm461, %v1396
      %1496 = vst.msk [vmem:[%s1479 + $0xc0] sm:$0xff] %vm461, %v1399
      %1497 = vst.msk [vmem:[%s1479 + $0xc8] sm:$0xff] %vm461, %v1402
      %1498 = vst.msk [vmem:[%s1479 + $0xd8] sm:$0xff] %vm461, %v1405
      %1499 = vst.msk [vmem:[%s1479 + $0xe0] sm:$0xff] %vm461, %v1408
      %1500 = vst.msk [vmem:[%s1479 + $0xf0] sm:$0xff] %vm461, %v1411
      %1501 = vst.msk [vmem:[%s1479 + $0xf8] sm:$0xff] %vm461, %v1414
      %1502 = vst.msk [vmem:[%s1479 + $0x108] sm:$0xff] %vm461, %v1417
      %1503 = vst.msk [vmem:[%s1479 + $0x110] sm:$0xff] %vm461, %v1420
      %1504 = vst.msk [vmem:[%s1479 + $0x120] sm:$0xff] %vm461, %v1423
      %1505 = vst.msk [vmem:[%s1479 + $0x128] sm:$0xff] %vm461, %v1426
      %1506 = vst.msk [vmem:[%s1479 + $0x138] sm:$0xff] %vm461, %v1429
      %1507 = vst.msk [vmem:[%s1479 + $0x140] sm:$0xff] %vm461, %v1432
      %1508 = vst.msk [vmem:[%s1479 + $0x150] sm:$0xff] %vm461, %v1435
      %1509 = vst.msk [vmem:[%s1479 + $0x158] sm:$0xff] %vm461, %v1438
      %1510 = vst.msk [vmem:[%s1479 + $0x168] sm:$0xff] %vm461, %v1441
      %1511 = vst.msk [vmem:[%s1479 + $0x170] sm:$0xff] %vm461, %v1444
      %s1512 = scalar_lea.vmem [#allocation2], 888
      %vm1513 = vcmask 31745
      %1514 = vst.msk [vmem:[%s1512 - $0x1] sm:$0xfe] %vm1513, %v1351
      %1515 = vst.msk [vmem:[%s1512 + $0x7] sm:$0xff] %vm461, %v1354
      %1516 = vst.msk [vmem:[%s1512 + $0x17] sm:$0xfe] %vm1513, %v1357
      %1517 = vst.msk [vmem:[%s1512 + $0x1f] sm:$0xff] %vm461, %v1360
      %1518 = vst.msk [vmem:[%s1512 + $0x2f] sm:$0xfe] %vm1513, %v1363
      %1519 = vst.msk [vmem:[%s1512 + $0x37] sm:$0xff] %vm461, %v1366
      %1520 = vst.msk [vmem:[%s1512 + $0x47] sm:$0xfe] %vm1513, %v1369
      %1521 = vst.msk [vmem:[%s1512 + $0x4f] sm:$0xff] %vm461, %v1372
      %1522 = vst.msk [vmem:[%s1512 + $0x5f] sm:$0xfe] %vm1513, %v1375
      %1523 = vst.msk [vmem:[%s1512 + $0x67] sm:$0xff] %vm461, %v1378
      %1524 = vst.msk [vmem:[%s1512 + $0x77] sm:$0xfe] %vm1513, %v1381
      %1525 = vst.msk [vmem:[%s1512 + $0x7f] sm:$0xff] %vm461, %v1384
      %1526 = vst.msk [vmem:[%s1512 + $0x8f] sm:$0xfe] %vm1513, %v1387
      %1527 = vst.msk [vmem:[%s1512 + $0x97] sm:$0xff] %vm461, %v1390
      %1528 = vst.msk [vmem:[%s1512 + $0xa7] sm:$0xfe] %vm1513, %v1393
      %1529 = vst.msk [vmem:[%s1512 + $0xaf] sm:$0xff] %vm461, %v1396
      %1530 = vst.msk [vmem:[%s1512 + $0xbf] sm:$0xfe] %vm1513, %v1399
      %1531 = vst.msk [vmem:[%s1512 + $0xc7] sm:$0xff] %vm461, %v1402
      %1532 = vst.msk [vmem:[%s1512 + $0xd7] sm:$0xfe] %vm1513, %v1405
      %1533 = vst.msk [vmem:[%s1512 + $0xdf] sm:$0xff] %vm461, %v1408
      %1534 = vst.msk [vmem:[%s1512 + $0xef] sm:$0xfe] %vm1513, %v1411
      %1535 = vst.msk [vmem:[%s1512 + $0xf7] sm:$0xff] %vm461, %v1414
      %1536 = vst.msk [vmem:[%s1512 + $0x107] sm:$0xfe] %vm1513, %v1417
      %1537 = vst.msk [vmem:[%s1512 + $0x10f] sm:$0xff] %vm461, %v1420
      %1538 = vst.msk [vmem:[%s1512 + $0x11f] sm:$0xfe] %vm1513, %v1423
      %1539 = vst.msk [vmem:[%s1512 + $0x127] sm:$0xff] %vm461, %v1426
      %1540 = vst.msk [vmem:[%s1512 + $0x137] sm:$0xfe] %vm1513, %v1429
      %1541 = vst.msk [vmem:[%s1512 + $0x13f] sm:$0xff] %vm461, %v1432
      %1542 = vst.msk [vmem:[%s1512 + $0x14f] sm:$0xfe] %vm1513, %v1435
      %1543 = vst.msk [vmem:[%s1512 + $0x157] sm:$0xff] %vm461, %v1438
      %1544 = vst.msk [vmem:[%s1512 + $0x167] sm:$0xfe] %vm1513, %v1441
      %1545 = vst.msk [vmem:[%s1512 + $0x16f] sm:$0xff] %vm461, %v1444
      %v1546 = vld [vmem:[%s455] sm:$0xff]
      %v1547 = vld [vmem:[%s455 + $0x8] sm:$0xff]
      %v1548 = vld [vmem:[%s455 + $0x10] sm:$0xff]
      %v1549 = vld [vmem:[%s455 + $0x18] sm:$0xff]
      %v1550 = vld [vmem:[%s455 + $0x20] sm:$0xff]
      %v1551 = vld [vmem:[%s455 + $0x28] sm:$0xff]
      %v1552 = vld [vmem:[%s455 + $0x30] sm:$0xff]
      %v1553 = vld [vmem:[%s455 + $0x38] sm:$0xff]
      %v1554 = vld [vmem:[%s455 + $0x40] sm:$0xff]
      %v1555 = vld [vmem:[%s455 + $0x48] sm:$0xff]
      %v1556 = vld [vmem:[%s455 + $0x50] sm:$0xff]
      %v1557 = vld [vmem:[%s455 + $0x58] sm:$0xff]
      %v1558 = vld [vmem:[%s455 + $0x60] sm:$0xff]
      %v1559 = vld [vmem:[%s455 + $0x68] sm:$0xff]
      %v1560 = vld [vmem:[%s455 + $0x70] sm:$0xff]
      %v1561 = vld [vmem:[%s455 + $0x78] sm:$0xff]
      %v1562 = vld [vmem:[%s455 + $0x80] sm:$0xff]
      %v1563 = vld [vmem:[%s455 + $0x88] sm:$0xff]
      %v1564 = vld [vmem:[%s455 + $0x90] sm:$0xff]
      %v1565 = vld [vmem:[%s455 + $0x98] sm:$0xff]
      %v1566 = vld [vmem:[%s455 + $0xa0] sm:$0xff]
      %v1567 = vld [vmem:[%s455 + $0xa8] sm:$0xff]
      %v1568 = vld [vmem:[%s455 + $0xb0] sm:$0xff]
      %v1569 = vld [vmem:[%s455 + $0xb8] sm:$0xff]
      %v1570 = vld [vmem:[%s455 + $0xc0] sm:$0xff]
      %v1571 = vld [vmem:[%s455 + $0xc8] sm:$0xff]
      %v1572 = vld [vmem:[%s455 + $0xd0] sm:$0xff]
      %v1573 = vld [vmem:[%s455 + $0xd8] sm:$0xff]
      %v1574 = vld [vmem:[%s455 + $0xe0] sm:$0xff]
      %v1575 = vld [vmem:[%s455 + $0xe8] sm:$0xff]
      %v1576 = vld [vmem:[%s455 + $0xf0] sm:$0xff]
      %v1577 = vld [vmem:[%s455 + $0xf8] sm:$0xff]
      %s1578 = scalar_lea.vmem [#allocation3], 24
      %1579 = vst.msk [vmem:[%s1578 + $0x1] sm:$0xff] %vm461, %v1546
      %1580 = vst.msk [vmem:[%s1578 + $0x9] sm:$0xff] %vm461, %v1547
      %1581 = vst.msk [vmem:[%s1578 + $0x19] sm:$0xff] %vm461, %v1548
      %1582 = vst.msk [vmem:[%s1578 + $0x21] sm:$0xff] %vm461, %v1549
      %1583 = vst.msk [vmem:[%s1578 + $0x31] sm:$0xff] %vm461, %v1550
      %1584 = vst.msk [vmem:[%s1578 + $0x39] sm:$0xff] %vm461, %v1551
      %1585 = vst.msk [vmem:[%s1578 + $0x49] sm:$0xff] %vm461, %v1552
      %1586 = vst.msk [vmem:[%s1578 + $0x51] sm:$0xff] %vm461, %v1553
      %1587 = vst.msk [vmem:[%s1578 + $0x61] sm:$0xff] %vm461, %v1554
      %1588 = vst.msk [vmem:[%s1578 + $0x69] sm:$0xff] %vm461, %v1555
      %1589 = vst.msk [vmem:[%s1578 + $0x79] sm:$0xff] %vm461, %v1556
      %1590 = vst.msk [vmem:[%s1578 + $0x81] sm:$0xff] %vm461, %v1557
      %1591 = vst.msk [vmem:[%s1578 + $0x91] sm:$0xff] %vm461, %v1558
      %1592 = vst.msk [vmem:[%s1578 + $0x99] sm:$0xff] %vm461, %v1559
      %1593 = vst.msk [vmem:[%s1578 + $0xa9] sm:$0xff] %vm461, %v1560
      %1594 = vst.msk [vmem:[%s1578 + $0xb1] sm:$0xff] %vm461, %v1561
      %1595 = vst.msk [vmem:[%s1578 + $0xc1] sm:$0xff] %vm461, %v1562
      %1596 = vst.msk [vmem:[%s1578 + $0xc9] sm:$0xff] %vm461, %v1563
      %1597 = vst.msk [vmem:[%s1578 + $0xd9] sm:$0xff] %vm461, %v1564
      %1598 = vst.msk [vmem:[%s1578 + $0xe1] sm:$0xff] %vm461, %v1565
      %1599 = vst.msk [vmem:[%s1578 + $0xf1] sm:$0xff] %vm461, %v1566
      %1600 = vst.msk [vmem:[%s1578 + $0xf9] sm:$0xff] %vm461, %v1567
      %1601 = vst.msk [vmem:[%s1578 + $0x109] sm:$0xff] %vm461, %v1568
      %1602 = vst.msk [vmem:[%s1578 + $0x111] sm:$0xff] %vm461, %v1569
      %1603 = vst.msk [vmem:[%s1578 + $0x121] sm:$0xff] %vm461, %v1570
      %1604 = vst.msk [vmem:[%s1578 + $0x129] sm:$0xff] %vm461, %v1571
      %1605 = vst.msk [vmem:[%s1578 + $0x139] sm:$0xff] %vm461, %v1572
      %1606 = vst.msk [vmem:[%s1578 + $0x141] sm:$0xff] %vm461, %v1573
      %1607 = vst.msk [vmem:[%s1578 + $0x151] sm:$0xff] %vm461, %v1574
      %1608 = vst.msk [vmem:[%s1578 + $0x159] sm:$0xff] %vm461, %v1575
      %1609 = vst.msk [vmem:[%s1578 + $0x169] sm:$0xff] %vm461, %v1576
      %1610 = vst.msk [vmem:[%s1578 + $0x171] sm:$0xff] %vm461, %v1577
      %s1611 = scalar_lea.vmem [#allocation3], 456
      %1612 = vst.msk [vmem:[%s1611] sm:$0xff] %vm461, %v1546
      %1613 = vst.msk [vmem:[%s1611 + $0x8] sm:$0xff] %vm461, %v1547
      %1614 = vst.msk [vmem:[%s1611 + $0x18] sm:$0xff] %vm461, %v1548
      %1615 = vst.msk [vmem:[%s1611 + $0x20] sm:$0xff] %vm461, %v1549
      %1616 = vst.msk [vmem:[%s1611 + $0x30] sm:$0xff] %vm461, %v1550
      %1617 = vst.msk [vmem:[%s1611 + $0x38] sm:$0xff] %vm461, %v1551
      %1618 = vst.msk [vmem:[%s1611 + $0x48] sm:$0xff] %vm461, %v1552
      %1619 = vst.msk [vmem:[%s1611 + $0x50] sm:$0xff] %vm461, %v1553
      %1620 = vst.msk [vmem:[%s1611 + $0x60] sm:$0xff] %vm461, %v1554
      %1621 = vst.msk [vmem:[%s1611 + $0x68] sm:$0xff] %vm461, %v1555
      %1622 = vst.msk [vmem:[%s1611 + $0x78] sm:$0xff] %vm461, %v1556
      %1623 = vst.msk [vmem:[%s1611 + $0x80] sm:$0xff] %vm461, %v1557
      %1624 = vst.msk [vmem:[%s1611 + $0x90] sm:$0xff] %vm461, %v1558
      %1625 = vst.msk [vmem:[%s1611 + $0x98] sm:$0xff] %vm461, %v1559
      %1626 = vst.msk [vmem:[%s1611 + $0xa8] sm:$0xff] %vm461, %v1560
      %1627 = vst.msk [vmem:[%s1611 + $0xb0] sm:$0xff] %vm461, %v1561
      %1628 = vst.msk [vmem:[%s1611 + $0xc0] sm:$0xff] %vm461, %v1562
      %1629 = vst.msk [vmem:[%s1611 + $0xc8] sm:$0xff] %vm461, %v1563
      %1630 = vst.msk [vmem:[%s1611 + $0xd8] sm:$0xff] %vm461, %v1564
      %1631 = vst.msk [vmem:[%s1611 + $0xe0] sm:$0xff] %vm461, %v1565
      %1632 = vst.msk [vmem:[%s1611 + $0xf0] sm:$0xff] %vm461, %v1566
      %1633 = vst.msk [vmem:[%s1611 + $0xf8] sm:$0xff] %vm461, %v1567
      %1634 = vst.msk [vmem:[%s1611 + $0x108] sm:$0xff] %vm461, %v1568
      %1635 = vst.msk [vmem:[%s1611 + $0x110] sm:$0xff] %vm461, %v1569
      %1636 = vst.msk [vmem:[%s1611 + $0x120] sm:$0xff] %vm461, %v1570
      %1637 = vst.msk [vmem:[%s1611 + $0x128] sm:$0xff] %vm461, %v1571
      %1638 = vst.msk [vmem:[%s1611 + $0x138] sm:$0xff] %vm461, %v1572
      %1639 = vst.msk [vmem:[%s1611 + $0x140] sm:$0xff] %vm461, %v1573
      %1640 = vst.msk [vmem:[%s1611 + $0x150] sm:$0xff] %vm461, %v1574
      %1641 = vst.msk [vmem:[%s1611 + $0x158] sm:$0xff] %vm461, %v1575
      %1642 = vst.msk [vmem:[%s1611 + $0x168] sm:$0xff] %vm461, %v1576
      %1643 = vst.msk [vmem:[%s1611 + $0x170] sm:$0xff] %vm461, %v1577
      %s1644 = scalar_lea.vmem [#allocation3], 888
      %1645 = vst.msk [vmem:[%s1644 - $0x1] sm:$0xfe] %vm1513, %v1546
      %1646 = vst.msk [vmem:[%s1644 + $0x7] sm:$0xff] %vm461, %v1547
      %1647 = vst.msk [vmem:[%s1644 + $0x17] sm:$0xfe] %vm1513, %v1548
      %1648 = vst.msk [vmem:[%s1644 + $0x1f] sm:$0xff] %vm461, %v1549
      %1649 = vst.msk [vmem:[%s1644 + $0x2f] sm:$0xfe] %vm1513, %v1550
      %1650 = vst.msk [vmem:[%s1644 + $0x37] sm:$0xff] %vm461, %v1551
      %1651 = vst.msk [vmem:[%s1644 + $0x47] sm:$0xfe] %vm1513, %v1552
      %1652 = vst.msk [vmem:[%s1644 + $0x4f] sm:$0xff] %vm461, %v1553
      %1653 = vst.msk [vmem:[%s1644 + $0x5f] sm:$0xfe] %vm1513, %v1554
      %1654 = vst.msk [vmem:[%s1644 + $0x67] sm:$0xff] %vm461, %v1555
      %1655 = vst.msk [vmem:[%s1644 + $0x77] sm:$0xfe] %vm1513, %v1556
      %1656 = vst.msk [vmem:[%s1644 + $0x7f] sm:$0xff] %vm461, %v1557
      %1657 = vst.msk [vmem:[%s1644 + $0x8f] sm:$0xfe] %vm1513, %v1558
      %1658 = vst.msk [vmem:[%s1644 + $0x97] sm:$0xff] %vm461, %v1559
      %1659 = vst.msk [vmem:[%s1644 + $0xa7] sm:$0xfe] %vm1513, %v1560
      %1660 = vst.msk [vmem:[%s1644 + $0xaf] sm:$0xff] %vm461, %v1561
      %1661 = vst.msk [vmem:[%s1644 + $0xbf] sm:$0xfe] %vm1513, %v1562
      %1662 = vst.msk [vmem:[%s1644 + $0xc7] sm:$0xff] %vm461, %v1563
      %1663 = vst.msk [vmem:[%s1644 + $0xd7] sm:$0xfe] %vm1513, %v1564
      %1664 = vst.msk [vmem:[%s1644 + $0xdf] sm:$0xff] %vm461, %v1565
      %1665 = vst.msk [vmem:[%s1644 + $0xef] sm:$0xfe] %vm1513, %v1566
      %1666 = vst.msk [vmem:[%s1644 + $0xf7] sm:$0xff] %vm461, %v1567
      %1667 = vst.msk [vmem:[%s1644 + $0x107] sm:$0xfe] %vm1513, %v1568
      %1668 = vst.msk [vmem:[%s1644 + $0x10f] sm:$0xff] %vm461, %v1569
      %1669 = vst.msk [vmem:[%s1644 + $0x11f] sm:$0xfe] %vm1513, %v1570
      %1670 = vst.msk [vmem:[%s1644 + $0x127] sm:$0xff] %vm461, %v1571
      %1671 = vst.msk [vmem:[%s1644 + $0x137] sm:$0xfe] %vm1513, %v1572
      %1672 = vst.msk [vmem:[%s1644 + $0x13f] sm:$0xff] %vm461, %v1573
      %1673 = vst.msk [vmem:[%s1644 + $0x14f] sm:$0xfe] %vm1513, %v1574
      %1674 = vst.msk [vmem:[%s1644 + $0x157] sm:$0xff] %vm461, %v1575
      %1675 = vst.msk [vmem:[%s1644 + $0x167] sm:$0xfe] %vm1513, %v1576
      %1676 = vst.msk [vmem:[%s1644 + $0x16f] sm:$0xff] %vm461, %v1577
      %v1677 = vld [vmem:[#allocation2] sm:$0xff]
      %v1678 = vld [vmem:[#allocation2 + $0x8] sm:$0xff]
      %v1679 = vld [vmem:[#allocation2 + $0x18] sm:$0xff]
      %v1680 = vld [vmem:[#allocation2 + $0x20] sm:$0xff]
      %v1681 = vld [vmem:[#allocation2 + $0x30] sm:$0xff]
      %v1682 = vld [vmem:[#allocation2 + $0x38] sm:$0xff]
      %v1683 = vld [vmem:[#allocation2 + $0x48] sm:$0xff]
      %v1684 = vld [vmem:[#allocation2 + $0x50] sm:$0xff]
      %v1685 = vld [vmem:[#allocation2 + $0x60] sm:$0xff]
      %v1686 = vld [vmem:[#allocation2 + $0x68] sm:$0xff]
      %v1687 = vld [vmem:[#allocation2 + $0x78] sm:$0xff]
      %v1688 = vld [vmem:[#allocation2 + $0x80] sm:$0xff]
      %v1689 = vld [vmem:[#allocation2 + $0x90] sm:$0xff]
      %v1690 = vld [vmem:[#allocation2 + $0x98] sm:$0xff]
      %v1691 = vld [vmem:[#allocation2 + $0xa8] sm:$0xff]
      %v1692 = vld [vmem:[#allocation2 + $0xb0] sm:$0xff]
      %v1693 = vld [vmem:[#allocation2 + $0xc0] sm:$0xff]
      %v1694 = vld [vmem:[#allocation2 + $0xc8] sm:$0xff]
      %v1695 = vld [vmem:[#allocation2 + $0xd8] sm:$0xff]
      %v1696 = vld [vmem:[#allocation2 + $0xe0] sm:$0xff]
      %v1697 = vld [vmem:[#allocation2 + $0xf0] sm:$0xff]
      %v1698 = vld [vmem:[#allocation2 + $0xf8] sm:$0xff]
      %v1699 = vld [vmem:[#allocation2 + $0x108] sm:$0xff]
      %v1700 = vld [vmem:[#allocation2 + $0x110] sm:$0xff]
      %v1701 = vld [vmem:[#allocation2 + $0x120] sm:$0xff]
      %v1702 = vld [vmem:[#allocation2 + $0x128] sm:$0xff]
      %v1703 = vld [vmem:[#allocation2 + $0x138] sm:$0xff]
      %v1704 = vld [vmem:[#allocation2 + $0x140] sm:$0xff]
      %v1705 = vld [vmem:[#allocation2 + $0x150] sm:$0xff]
      %v1706 = vld [vmem:[#allocation2 + $0x158] sm:$0xff]
      %v1707 = vld [vmem:[#allocation2 + $0x168] sm:$0xff]
      %v1708 = vld [vmem:[#allocation2 + $0x170] sm:$0xff]
      %s1709 = scalar_lea.vmem [#allocation2], 432
      %v1710 = vld [vmem:[%s1709] sm:$0xff]
      %v1711 = vld [vmem:[%s1709 + $0x8] sm:$0xff]
      %v1712 = vld [vmem:[%s1709 + $0x18] sm:$0xff]
      %v1713 = vld [vmem:[%s1709 + $0x20] sm:$0xff]
      %v1714 = vld [vmem:[%s1709 + $0x30] sm:$0xff]
      %v1715 = vld [vmem:[%s1709 + $0x38] sm:$0xff]
      %v1716 = vld [vmem:[%s1709 + $0x48] sm:$0xff]
      %v1717 = vld [vmem:[%s1709 + $0x50] sm:$0xff]
      %v1718 = vld [vmem:[%s1709 + $0x60] sm:$0xff]
      %v1719 = vld [vmem:[%s1709 + $0x68] sm:$0xff]
      %v1720 = vld [vmem:[%s1709 + $0x78] sm:$0xff]
      %v1721 = vld [vmem:[%s1709 + $0x80] sm:$0xff]
      %v1722 = vld [vmem:[%s1709 + $0x90] sm:$0xff]
      %v1723 = vld [vmem:[%s1709 + $0x98] sm:$0xff]
      %v1724 = vld [vmem:[%s1709 + $0xa8] sm:$0xff]
      %v1725 = vld [vmem:[%s1709 + $0xb0] sm:$0xff]
      %v1726 = vld [vmem:[%s1709 + $0xc0] sm:$0xff]
      %v1727 = vld [vmem:[%s1709 + $0xc8] sm:$0xff]
      %v1728 = vld [vmem:[%s1709 + $0xd8] sm:$0xff]
      %v1729 = vld [vmem:[%s1709 + $0xe0] sm:$0xff]
      %v1730 = vld [vmem:[%s1709 + $0xf0] sm:$0xff]
      %v1731 = vld [vmem:[%s1709 + $0xf8] sm:$0xff]
      %v1732 = vld [vmem:[%s1709 + $0x108] sm:$0xff]
      %v1733 = vld [vmem:[%s1709 + $0x110] sm:$0xff]
      %v1734 = vld [vmem:[%s1709 + $0x120] sm:$0xff]
      %v1735 = vld [vmem:[%s1709 + $0x128] sm:$0xff]
      %v1736 = vld [vmem:[%s1709 + $0x138] sm:$0xff]
      %v1737 = vld [vmem:[%s1709 + $0x140] sm:$0xff]
      %v1738 = vld [vmem:[%s1709 + $0x150] sm:$0xff]
      %v1739 = vld [vmem:[%s1709 + $0x158] sm:$0xff]
      %v1740 = vld [vmem:[%s1709 + $0x168] sm:$0xff]
      %v1741 = vld [vmem:[%s1709 + $0x170] sm:$0xff]
      %s1742 = scalar_lea.vmem [#allocation2], 864
      %v1743 = vld [vmem:[%s1742] sm:$0xff]
      %v1744 = vld [vmem:[%s1742 + $0x8] sm:$0xff]
      %v1745 = vld [vmem:[%s1742 + $0x18] sm:$0xff]
      %v1746 = vld [vmem:[%s1742 + $0x20] sm:$0xff]
      %v1747 = vld [vmem:[%s1742 + $0x30] sm:$0xff]
      %v1748 = vld [vmem:[%s1742 + $0x38] sm:$0xff]
      %v1749 = vld [vmem:[%s1742 + $0x48] sm:$0xff]
      %v1750 = vld [vmem:[%s1742 + $0x50] sm:$0xff]
      %v1751 = vld [vmem:[%s1742 + $0x60] sm:$0xff]
      %v1752 = vld [vmem:[%s1742 + $0x68] sm:$0xff]
      %v1753 = vld [vmem:[%s1742 + $0x78] sm:$0xff]
      %v1754 = vld [vmem:[%s1742 + $0x80] sm:$0xff]
      %v1755 = vld [vmem:[%s1742 + $0x90] sm:$0xff]
      %v1756 = vld [vmem:[%s1742 + $0x98] sm:$0xff]
      %v1757 = vld [vmem:[%s1742 + $0xa8] sm:$0xff]
      %v1758 = vld [vmem:[%s1742 + $0xb0] sm:$0xff]
      %v1759 = vld [vmem:[%s1742 + $0xc0] sm:$0xff]
      %v1760 = vld [vmem:[%s1742 + $0xc8] sm:$0xff]
      %v1761 = vld [vmem:[%s1742 + $0xd8] sm:$0xff]
      %v1762 = vld [vmem:[%s1742 + $0xe0] sm:$0xff]
      %v1763 = vld [vmem:[%s1742 + $0xf0] sm:$0xff]
      %v1764 = vld [vmem:[%s1742 + $0xf8] sm:$0xff]
      %v1765 = vld [vmem:[%s1742 + $0x108] sm:$0xff]
      %v1766 = vld [vmem:[%s1742 + $0x110] sm:$0xff]
      %v1767 = vld [vmem:[%s1742 + $0x120] sm:$0xff]
      %v1768 = vld [vmem:[%s1742 + $0x128] sm:$0xff]
      %v1769 = vld [vmem:[%s1742 + $0x138] sm:$0xff]
      %v1770 = vld [vmem:[%s1742 + $0x140] sm:$0xff]
      %v1771 = vld [vmem:[%s1742 + $0x150] sm:$0xff]
      %v1772 = vld [vmem:[%s1742 + $0x158] sm:$0xff]
      %v1773 = vld [vmem:[%s1742 + $0x168] sm:$0xff]
      %v1774 = vld [vmem:[%s1742 + $0x170] sm:$0xff]
      %v1775 = vld [vmem:[%s1446] sm:$0xff]
      %v1776 = vld [vmem:[%s1446 + $0x8] sm:$0xff]
      %v1777 = vld [vmem:[%s1446 + $0x18] sm:$0xff]
      %v1778 = vld [vmem:[%s1446 + $0x20] sm:$0xff]
      %v1779 = vld [vmem:[%s1446 + $0x30] sm:$0xff]
      %v1780 = vld [vmem:[%s1446 + $0x38] sm:$0xff]
      %v1781 = vld [vmem:[%s1446 + $0x48] sm:$0xff]
      %v1782 = vld [vmem:[%s1446 + $0x50] sm:$0xff]
      %v1783 = vld [vmem:[%s1446 + $0x60] sm:$0xff]
      %v1784 = vld [vmem:[%s1446 + $0x68] sm:$0xff]
      %v1785 = vld [vmem:[%s1446 + $0x78] sm:$0xff]
      %v1786 = vld [vmem:[%s1446 + $0x80] sm:$0xff]
      %v1787 = vld [vmem:[%s1446 + $0x90] sm:$0xff]
      %v1788 = vld [vmem:[%s1446 + $0x98] sm:$0xff]
      %v1789 = vld [vmem:[%s1446 + $0xa8] sm:$0xff]
      %v1790 = vld [vmem:[%s1446 + $0xb0] sm:$0xff]
      %v1791 = vld [vmem:[%s1446 + $0xc0] sm:$0xff]
      %v1792 = vld [vmem:[%s1446 + $0xc8] sm:$0xff]
      %v1793 = vld [vmem:[%s1446 + $0xd8] sm:$0xff]
      %v1794 = vld [vmem:[%s1446 + $0xe0] sm:$0xff]
      %v1795 = vld [vmem:[%s1446 + $0xf0] sm:$0xff]
      %v1796 = vld [vmem:[%s1446 + $0xf8] sm:$0xff]
      %v1797 = vld [vmem:[%s1446 + $0x108] sm:$0xff]
      %v1798 = vld [vmem:[%s1446 + $0x110] sm:$0xff]
      %v1799 = vld [vmem:[%s1446 + $0x120] sm:$0xff]
      %v1800 = vld [vmem:[%s1446 + $0x128] sm:$0xff]
      %v1801 = vld [vmem:[%s1446 + $0x138] sm:$0xff]
      %v1802 = vld [vmem:[%s1446 + $0x140] sm:$0xff]
      %v1803 = vld [vmem:[%s1446 + $0x150] sm:$0xff]
      %v1804 = vld [vmem:[%s1446 + $0x158] sm:$0xff]
      %v1805 = vld [vmem:[%s1446 + $0x168] sm:$0xff]
      %v1806 = vld [vmem:[%s1446 + $0x170] sm:$0xff]
      %v1807 = vld [vmem:[%s1479] sm:$0xff]
      %v1808 = vld [vmem:[%s1479 + $0x8] sm:$0xff]
      %v1809 = vld [vmem:[%s1479 + $0x18] sm:$0xff]
      %v1810 = vld [vmem:[%s1479 + $0x20] sm:$0xff]
      %v1811 = vld [vmem:[%s1479 + $0x30] sm:$0xff]
      %v1812 = vld [vmem:[%s1479 + $0x38] sm:$0xff]
      %v1813 = vld [vmem:[%s1479 + $0x48] sm:$0xff]
      %v1814 = vld [vmem:[%s1479 + $0x50] sm:$0xff]
      %v1815 = vld [vmem:[%s1479 + $0x60] sm:$0xff]
      %v1816 = vld [vmem:[%s1479 + $0x68] sm:$0xff]
      %v1817 = vld [vmem:[%s1479 + $0x78] sm:$0xff]
      %v1818 = vld [vmem:[%s1479 + $0x80] sm:$0xff]
      %v1819 = vld [vmem:[%s1479 + $0x90] sm:$0xff]
      %v1820 = vld [vmem:[%s1479 + $0x98] sm:$0xff]
      %v1821 = vld [vmem:[%s1479 + $0xa8] sm:$0xff]
      %v1822 = vld [vmem:[%s1479 + $0xb0] sm:$0xff]
      %v1823 = vld [vmem:[%s1479 + $0xc0] sm:$0xff]
      %v1824 = vld [vmem:[%s1479 + $0xc8] sm:$0xff]
      %v1825 = vld [vmem:[%s1479 + $0xd8] sm:$0xff]
      %v1826 = vld [vmem:[%s1479 + $0xe0] sm:$0xff]
      %v1827 = vld [vmem:[%s1479 + $0xf0] sm:$0xff]
      %v1828 = vld [vmem:[%s1479 + $0xf8] sm:$0xff]
      %v1829 = vld [vmem:[%s1479 + $0x108] sm:$0xff]
      %v1830 = vld [vmem:[%s1479 + $0x110] sm:$0xff]
      %v1831 = vld [vmem:[%s1479 + $0x120] sm:$0xff]
      %v1832 = vld [vmem:[%s1479 + $0x128] sm:$0xff]
      %v1833 = vld [vmem:[%s1479 + $0x138] sm:$0xff]
      %v1834 = vld [vmem:[%s1479 + $0x140] sm:$0xff]
      %v1835 = vld [vmem:[%s1479 + $0x150] sm:$0xff]
      %v1836 = vld [vmem:[%s1479 + $0x158] sm:$0xff]
      %v1837 = vld [vmem:[%s1479 + $0x168] sm:$0xff]
      %v1838 = vld [vmem:[%s1479 + $0x170] sm:$0xff]
      %v1839 = vld [vmem:[%s1512] sm:$0xff]
      %v1840 = vld [vmem:[%s1512 + $0x8] sm:$0xff]
      %v1841 = vld [vmem:[%s1512 + $0x18] sm:$0xff]
      %v1842 = vld [vmem:[%s1512 + $0x20] sm:$0xff]
      %v1843 = vld [vmem:[%s1512 + $0x30] sm:$0xff]
      %v1844 = vld [vmem:[%s1512 + $0x38] sm:$0xff]
      %v1845 = vld [vmem:[%s1512 + $0x48] sm:$0xff]
      %v1846 = vld [vmem:[%s1512 + $0x50] sm:$0xff]
      %v1847 = vld [vmem:[%s1512 + $0x60] sm:$0xff]
      %v1848 = vld [vmem:[%s1512 + $0x68] sm:$0xff]
      %v1849 = vld [vmem:[%s1512 + $0x78] sm:$0xff]
      %v1850 = vld [vmem:[%s1512 + $0x80] sm:$0xff]
      %v1851 = vld [vmem:[%s1512 + $0x90] sm:$0xff]
      %v1852 = vld [vmem:[%s1512 + $0x98] sm:$0xff]
      %v1853 = vld [vmem:[%s1512 + $0xa8] sm:$0xff]
      %v1854 = vld [vmem:[%s1512 + $0xb0] sm:$0xff]
      %v1855 = vld [vmem:[%s1512 + $0xc0] sm:$0xff]
      %v1856 = vld [vmem:[%s1512 + $0xc8] sm:$0xff]
      %v1857 = vld [vmem:[%s1512 + $0xd8] sm:$0xff]
      %v1858 = vld [vmem:[%s1512 + $0xe0] sm:$0xff]
      %v1859 = vld [vmem:[%s1512 + $0xf0] sm:$0xff]
      %v1860 = vld [vmem:[%s1512 + $0xf8] sm:$0xff]
      %v1861 = vld [vmem:[%s1512 + $0x108] sm:$0xff]
      %v1862 = vld [vmem:[%s1512 + $0x110] sm:$0xff]
      %v1863 = vld [vmem:[%s1512 + $0x120] sm:$0xff]
      %v1864 = vld [vmem:[%s1512 + $0x128] sm:$0xff]
      %v1865 = vld [vmem:[%s1512 + $0x138] sm:$0xff]
      %v1866 = vld [vmem:[%s1512 + $0x140] sm:$0xff]
      %v1867 = vld [vmem:[%s1512 + $0x150] sm:$0xff]
      %v1868 = vld [vmem:[%s1512 + $0x158] sm:$0xff]
      %v1869 = vld [vmem:[%s1512 + $0x168] sm:$0xff]
      %v1870 = vld [vmem:[%s1512 + $0x170] sm:$0xff]
      %s1871 = scalar_lea.vmem [#allocation2], 48
      %v1872 = vld [vmem:[%s1871] sm:$0xff]
      %v1873 = vld [vmem:[%s1871 + $0x8] sm:$0xff]
      %v1874 = vld [vmem:[%s1871 + $0x18] sm:$0xff]
      %v1875 = vld [vmem:[%s1871 + $0x20] sm:$0xff]
      %v1876 = vld [vmem:[%s1871 + $0x30] sm:$0xff]
      %v1877 = vld [vmem:[%s1871 + $0x38] sm:$0xff]
      %v1878 = vld [vmem:[%s1871 + $0x48] sm:$0xff]
      %v1879 = vld [vmem:[%s1871 + $0x50] sm:$0xff]
      %v1880 = vld [vmem:[%s1871 + $0x60] sm:$0xff]
      %v1881 = vld [vmem:[%s1871 + $0x68] sm:$0xff]
      %v1882 = vld [vmem:[%s1871 + $0x78] sm:$0xff]
      %v1883 = vld [vmem:[%s1871 + $0x80] sm:$0xff]
      %v1884 = vld [vmem:[%s1871 + $0x90] sm:$0xff]
      %v1885 = vld [vmem:[%s1871 + $0x98] sm:$0xff]
      %v1886 = vld [vmem:[%s1871 + $0xa8] sm:$0xff]
      %v1887 = vld [vmem:[%s1871 + $0xb0] sm:$0xff]
      %v1888 = vld [vmem:[%s1871 + $0xc0] sm:$0xff]
      %v1889 = vld [vmem:[%s1871 + $0xc8] sm:$0xff]
      %v1890 = vld [vmem:[%s1871 + $0xd8] sm:$0xff]
      %v1891 = vld [vmem:[%s1871 + $0xe0] sm:$0xff]
      %v1892 = vld [vmem:[%s1871 + $0xf0] sm:$0xff]
      %v1893 = vld [vmem:[%s1871 + $0xf8] sm:$0xff]
      %v1894 = vld [vmem:[%s1871 + $0x108] sm:$0xff]
      %v1895 = vld [vmem:[%s1871 + $0x110] sm:$0xff]
      %v1896 = vld [vmem:[%s1871 + $0x120] sm:$0xff]
      %v1897 = vld [vmem:[%s1871 + $0x128] sm:$0xff]
      %v1898 = vld [vmem:[%s1871 + $0x138] sm:$0xff]
      %v1899 = vld [vmem:[%s1871 + $0x140] sm:$0xff]
      %v1900 = vld [vmem:[%s1871 + $0x150] sm:$0xff]
      %v1901 = vld [vmem:[%s1871 + $0x158] sm:$0xff]
      %v1902 = vld [vmem:[%s1871 + $0x168] sm:$0xff]
      %v1903 = vld [vmem:[%s1871 + $0x170] sm:$0xff]
      %s1904 = scalar_lea.vmem [#allocation2], 480
      %v1905 = vld [vmem:[%s1904] sm:$0xff]
      %v1906 = vld [vmem:[%s1904 + $0x8] sm:$0xff]
      %v1907 = vld [vmem:[%s1904 + $0x18] sm:$0xff]
      %v1908 = vld [vmem:[%s1904 + $0x20] sm:$0xff]
      %v1909 = vld [vmem:[%s1904 + $0x30] sm:$0xff]
      %v1910 = vld [vmem:[%s1904 + $0x38] sm:$0xff]
      %v1911 = vld [vmem:[%s1904 + $0x48] sm:$0xff]
      %v1912 = vld [vmem:[%s1904 + $0x50] sm:$0xff]
      %v1913 = vld [vmem:[%s1904 + $0x60] sm:$0xff]
      %v1914 = vld [vmem:[%s1904 + $0x68] sm:$0xff]
      %v1915 = vld [vmem:[%s1904 + $0x78] sm:$0xff]
      %v1916 = vld [vmem:[%s1904 + $0x80] sm:$0xff]
      %v1917 = vld [vmem:[%s1904 + $0x90] sm:$0xff]
      %v1918 = vld [vmem:[%s1904 + $0x98] sm:$0xff]
      %v1919 = vld [vmem:[%s1904 + $0xa8] sm:$0xff]
      %v1920 = vld [vmem:[%s1904 + $0xb0] sm:$0xff]
      %v1921 = vld [vmem:[%s1904 + $0xc0] sm:$0xff]
      %v1922 = vld [vmem:[%s1904 + $0xc8] sm:$0xff]
      %v1923 = vld [vmem:[%s1904 + $0xd8] sm:$0xff]
      %v1924 = vld [vmem:[%s1904 + $0xe0] sm:$0xff]
      %v1925 = vld [vmem:[%s1904 + $0xf0] sm:$0xff]
      %v1926 = vld [vmem:[%s1904 + $0xf8] sm:$0xff]
      %v1927 = vld [vmem:[%s1904 + $0x108] sm:$0xff]
      %v1928 = vld [vmem:[%s1904 + $0x110] sm:$0xff]
      %v1929 = vld [vmem:[%s1904 + $0x120] sm:$0xff]
      %v1930 = vld [vmem:[%s1904 + $0x128] sm:$0xff]
      %v1931 = vld [vmem:[%s1904 + $0x138] sm:$0xff]
      %v1932 = vld [vmem:[%s1904 + $0x140] sm:$0xff]
      %v1933 = vld [vmem:[%s1904 + $0x150] sm:$0xff]
      %v1934 = vld [vmem:[%s1904 + $0x158] sm:$0xff]
      %v1935 = vld [vmem:[%s1904 + $0x168] sm:$0xff]
      %v1936 = vld [vmem:[%s1904 + $0x170] sm:$0xff]
      %s1937 = scalar_lea.vmem [#allocation2], 912
      %v1938 = vld [vmem:[%s1937] sm:$0xff]
      %v1939 = vld [vmem:[%s1937 + $0x8] sm:$0xff]
      %v1940 = vld [vmem:[%s1937 + $0x18] sm:$0xff]
      %v1941 = vld [vmem:[%s1937 + $0x20] sm:$0xff]
      %v1942 = vld [vmem:[%s1937 + $0x30] sm:$0xff]
      %v1943 = vld [vmem:[%s1937 + $0x38] sm:$0xff]
      %v1944 = vld [vmem:[%s1937 + $0x48] sm:$0xff]
      %v1945 = vld [vmem:[%s1937 + $0x50] sm:$0xff]
      %v1946 = vld [vmem:[%s1937 + $0x60] sm:$0xff]
      %v1947 = vld [vmem:[%s1937 + $0x68] sm:$0xff]
      %v1948 = vld [vmem:[%s1937 + $0x78] sm:$0xff]
      %v1949 = vld [vmem:[%s1937 + $0x80] sm:$0xff]
      %v1950 = vld [vmem:[%s1937 + $0x90] sm:$0xff]
      %v1951 = vld [vmem:[%s1937 + $0x98] sm:$0xff]
      %v1952 = vld [vmem:[%s1937 + $0xa8] sm:$0xff]
      %v1953 = vld [vmem:[%s1937 + $0xb0] sm:$0xff]
      %v1954 = vld [vmem:[%s1937 + $0xc0] sm:$0xff]
      %v1955 = vld [vmem:[%s1937 + $0xc8] sm:$0xff]
      %v1956 = vld [vmem:[%s1937 + $0xd8] sm:$0xff]
      %v1957 = vld [vmem:[%s1937 + $0xe0] sm:$0xff]
      %v1958 = vld [vmem:[%s1937 + $0xf0] sm:$0xff]
      %v1959 = vld [vmem:[%s1937 + $0xf8] sm:$0xff]
      %v1960 = vld [vmem:[%s1937 + $0x108] sm:$0xff]
      %v1961 = vld [vmem:[%s1937 + $0x110] sm:$0xff]
      %v1962 = vld [vmem:[%s1937 + $0x120] sm:$0xff]
      %v1963 = vld [vmem:[%s1937 + $0x128] sm:$0xff]
      %v1964 = vld [vmem:[%s1937 + $0x138] sm:$0xff]
      %v1965 = vld [vmem:[%s1937 + $0x140] sm:$0xff]
      %v1966 = vld [vmem:[%s1937 + $0x150] sm:$0xff]
      %v1967 = vld [vmem:[%s1937 + $0x158] sm:$0xff]
      %v1968 = vld [vmem:[%s1937 + $0x168] sm:$0xff]
      %v1969 = vld [vmem:[%s1937 + $0x170] sm:$0xff]
      %2002 = vrot.lane.b32.xlu0 %v1710, 4
      %v2003 = vpop.permute.xlu0 %2002
      %2004 = vrot.lane.b32.xlu0 %v1711, 4
      %v2005 = vpop.permute.xlu0 %2004
      %2006 = vrot.lane.b32.xlu0 %v1712, 4
      %v2007 = vpop.permute.xlu0 %2006
      %2008 = vrot.lane.b32.xlu0 %v1713, 4
      %v2009 = vpop.permute.xlu0 %2008
      %2010 = vrot.lane.b32.xlu0 %v1714, 4
      %v2011 = vpop.permute.xlu0 %2010
      %2012 = vrot.lane.b32.xlu0 %v1715, 4
      %v2013 = vpop.permute.xlu0 %2012
      %2014 = vrot.lane.b32.xlu0 %v1716, 4
      %v2015 = vpop.permute.xlu0 %2014
      %2016 = vrot.lane.b32.xlu0 %v1717, 4
      %v2017 = vpop.permute.xlu0 %2016
      %2018 = vrot.lane.b32.xlu0 %v1718, 4
      %v2019 = vpop.permute.xlu0 %2018
      %2020 = vrot.lane.b32.xlu0 %v1719, 4
      %v2021 = vpop.permute.xlu0 %2020
      %2022 = vrot.lane.b32.xlu0 %v1720, 4
      %v2023 = vpop.permute.xlu0 %2022
      %2024 = vrot.lane.b32.xlu0 %v1721, 4
      %v2025 = vpop.permute.xlu0 %2024
      %2026 = vrot.lane.b32.xlu0 %v1722, 4
      %v2027 = vpop.permute.xlu0 %2026
      %2028 = vrot.lane.b32.xlu0 %v1723, 4
      %v2029 = vpop.permute.xlu0 %2028
      %2030 = vrot.lane.b32.xlu0 %v1724, 4
      %v2031 = vpop.permute.xlu0 %2030
      %2032 = vrot.lane.b32.xlu0 %v1725, 4
      %v2033 = vpop.permute.xlu0 %2032
      %2034 = vrot.lane.b32.xlu0 %v1726, 4
      %v2035 = vpop.permute.xlu0 %2034
      %2036 = vrot.lane.b32.xlu0 %v1727, 4
      %v2037 = vpop.permute.xlu0 %2036
      %2038 = vrot.lane.b32.xlu0 %v1728, 4
      %v2039 = vpop.permute.xlu0 %2038
      %2040 = vrot.lane.b32.xlu0 %v1729, 4
      %v2041 = vpop.permute.xlu0 %2040
      %2042 = vrot.lane.b32.xlu0 %v1730, 4
      %v2043 = vpop.permute.xlu0 %2042
      %2044 = vrot.lane.b32.xlu0 %v1731, 4
      %v2045 = vpop.permute.xlu0 %2044
      %2046 = vrot.lane.b32.xlu0 %v1732, 4
      %v2047 = vpop.permute.xlu0 %2046
      %2048 = vrot.lane.b32.xlu0 %v1733, 4
      %v2049 = vpop.permute.xlu0 %2048
      %2050 = vrot.lane.b32.xlu0 %v1734, 4
      %v2051 = vpop.permute.xlu0 %2050
      %2052 = vrot.lane.b32.xlu0 %v1735, 4
      %v2053 = vpop.permute.xlu0 %2052
      %2054 = vrot.lane.b32.xlu0 %v1736, 4
      %v2055 = vpop.permute.xlu0 %2054
      %2056 = vrot.lane.b32.xlu0 %v1737, 4
      %v2057 = vpop.permute.xlu0 %2056
      %2058 = vrot.lane.b32.xlu0 %v1738, 4
      %v2059 = vpop.permute.xlu0 %2058
      %2060 = vrot.lane.b32.xlu0 %v1739, 4
      %v2061 = vpop.permute.xlu0 %2060
      %2062 = vrot.lane.b32.xlu0 %v1740, 4
      %v2063 = vpop.permute.xlu0 %2062
      %2064 = vrot.lane.b32.xlu0 %v1741, 4
      %v2065 = vpop.permute.xlu0 %2064
      %2130 = vrot.lane.b32.xlu0 %v1743, 8
      %v2131 = vpop.permute.xlu0 %2130
      %2132 = vrot.lane.b32.xlu0 %v1744, 8
      %v2133 = vpop.permute.xlu0 %2132
      %2134 = vrot.lane.b32.xlu0 %v1745, 8
      %v2135 = vpop.permute.xlu0 %2134
      %2136 = vrot.lane.b32.xlu0 %v1746, 8
      %v2137 = vpop.permute.xlu0 %2136
      %2138 = vrot.lane.b32.xlu0 %v1747, 8
      %v2139 = vpop.permute.xlu0 %2138
      %2140 = vrot.lane.b32.xlu0 %v1748, 8
      %v2141 = vpop.permute.xlu0 %2140
      %2142 = vrot.lane.b32.xlu0 %v1749, 8
      %v2143 = vpop.permute.xlu0 %2142
      %2144 = vrot.lane.b32.xlu0 %v1750, 8
      %v2145 = vpop.permute.xlu0 %2144
      %2146 = vrot.lane.b32.xlu0 %v1751, 8
      %v2147 = vpop.permute.xlu0 %2146
      %2148 = vrot.lane.b32.xlu0 %v1752, 8
      %v2149 = vpop.permute.xlu0 %2148
      %2150 = vrot.lane.b32.xlu0 %v1753, 8
      %v2151 = vpop.permute.xlu0 %2150
      %2152 = vrot.lane.b32.xlu0 %v1754, 8
      %v2153 = vpop.permute.xlu0 %2152
      %2154 = vrot.lane.b32.xlu0 %v1755, 8
      %v2155 = vpop.permute.xlu0 %2154
      %2156 = vrot.lane.b32.xlu0 %v1756, 8
      %v2157 = vpop.permute.xlu0 %2156
      %2158 = vrot.lane.b32.xlu0 %v1757, 8
      %v2159 = vpop.permute.xlu0 %2158
      %2160 = vrot.lane.b32.xlu0 %v1758, 8
      %v2161 = vpop.permute.xlu0 %2160
      %2162 = vrot.lane.b32.xlu0 %v1759, 8
      %v2163 = vpop.permute.xlu0 %2162
      %2164 = vrot.lane.b32.xlu0 %v1760, 8
      %v2165 = vpop.permute.xlu0 %2164
      %2166 = vrot.lane.b32.xlu0 %v1761, 8
      %v2167 = vpop.permute.xlu0 %2166
      %2168 = vrot.lane.b32.xlu0 %v1762, 8
      %v2169 = vpop.permute.xlu0 %2168
      %2170 = vrot.lane.b32.xlu0 %v1763, 8
      %v2171 = vpop.permute.xlu0 %2170
      %2172 = vrot.lane.b32.xlu0 %v1764, 8
      %v2173 = vpop.permute.xlu0 %2172
      %2174 = vrot.lane.b32.xlu0 %v1765, 8
      %v2175 = vpop.permute.xlu0 %2174
      %2176 = vrot.lane.b32.xlu0 %v1766, 8
      %v2177 = vpop.permute.xlu0 %2176
      %2178 = vrot.lane.b32.xlu0 %v1767, 8
      %v2179 = vpop.permute.xlu0 %2178
      %2180 = vrot.lane.b32.xlu0 %v1768, 8
      %v2181 = vpop.permute.xlu0 %2180
      %2182 = vrot.lane.b32.xlu0 %v1769, 8
      %v2183 = vpop.permute.xlu0 %2182
      %2184 = vrot.lane.b32.xlu0 %v1770, 8
      %v2185 = vpop.permute.xlu0 %2184
      %2186 = vrot.lane.b32.xlu0 %v1771, 8
      %v2187 = vpop.permute.xlu0 %2186
      %2188 = vrot.lane.b32.xlu0 %v1772, 8
      %v2189 = vpop.permute.xlu0 %2188
      %2190 = vrot.lane.b32.xlu0 %v1773, 8
      %v2191 = vpop.permute.xlu0 %2190
      %2192 = vrot.lane.b32.xlu0 %v1774, 8
      %v2193 = vpop.permute.xlu0 %2192
      %2258 = vrot.lane.b32.xlu0 %v1775, 12
      %v2259 = vpop.permute.xlu0 %2258
      %2260 = vrot.lane.b32.xlu0 %v1776, 12
      %v2261 = vpop.permute.xlu0 %2260
      %2262 = vrot.lane.b32.xlu0 %v1777, 12
      %v2263 = vpop.permute.xlu0 %2262
      %2264 = vrot.lane.b32.xlu0 %v1778, 12
      %v2265 = vpop.permute.xlu0 %2264
      %2266 = vrot.lane.b32.xlu0 %v1779, 12
      %v2267 = vpop.permute.xlu0 %2266
      %2268 = vrot.lane.b32.xlu0 %v1780, 12
      %v2269 = vpop.permute.xlu0 %2268
      %2270 = vrot.lane.b32.xlu0 %v1781, 12
      %v2271 = vpop.permute.xlu0 %2270
      %2272 = vrot.lane.b32.xlu0 %v1782, 12
      %v2273 = vpop.permute.xlu0 %2272
      %2274 = vrot.lane.b32.xlu0 %v1783, 12
      %v2275 = vpop.permute.xlu0 %2274
      %2276 = vrot.lane.b32.xlu0 %v1784, 12
      %v2277 = vpop.permute.xlu0 %2276
      %2278 = vrot.lane.b32.xlu0 %v1785, 12
      %v2279 = vpop.permute.xlu0 %2278
      %2280 = vrot.lane.b32.xlu0 %v1786, 12
      %v2281 = vpop.permute.xlu0 %2280
      %2282 = vrot.lane.b32.xlu0 %v1787, 12
      %v2283 = vpop.permute.xlu0 %2282
      %2284 = vrot.lane.b32.xlu0 %v1788, 12
      %v2285 = vpop.permute.xlu0 %2284
      %2286 = vrot.lane.b32.xlu0 %v1789, 12
      %v2287 = vpop.permute.xlu0 %2286
      %2288 = vrot.lane.b32.xlu0 %v1790, 12
      %v2289 = vpop.permute.xlu0 %2288
      %2290 = vrot.lane.b32.xlu0 %v1791, 12
      %v2291 = vpop.permute.xlu0 %2290
      %2292 = vrot.lane.b32.xlu0 %v1792, 12
      %v2293 = vpop.permute.xlu0 %2292
      %2294 = vrot.lane.b32.xlu0 %v1793, 12
      %v2295 = vpop.permute.xlu0 %2294
      %2296 = vrot.lane.b32.xlu0 %v1794, 12
      %v2297 = vpop.permute.xlu0 %2296
      %2298 = vrot.lane.b32.xlu0 %v1795, 12
      %v2299 = vpop.permute.xlu0 %2298
      %2300 = vrot.lane.b32.xlu0 %v1796, 12
      %v2301 = vpop.permute.xlu0 %2300
      %2302 = vrot.lane.b32.xlu0 %v1797, 12
      %v2303 = vpop.permute.xlu0 %2302
      %2304 = vrot.lane.b32.xlu0 %v1798, 12
      %v2305 = vpop.permute.xlu0 %2304
      %2306 = vrot.lane.b32.xlu0 %v1799, 12
      %v2307 = vpop.permute.xlu0 %2306
      %2308 = vrot.lane.b32.xlu0 %v1800, 12
      %v2309 = vpop.permute.xlu0 %2308
      %2310 = vrot.lane.b32.xlu0 %v1801, 12
      %v2311 = vpop.permute.xlu0 %2310
      %2312 = vrot.lane.b32.xlu0 %v1802, 12
      %v2313 = vpop.permute.xlu0 %2312
      %2314 = vrot.lane.b32.xlu0 %v1803, 12
      %v2315 = vpop.permute.xlu0 %2314
      %2316 = vrot.lane.b32.xlu0 %v1804, 12
      %v2317 = vpop.permute.xlu0 %2316
      %2318 = vrot.lane.b32.xlu0 %v1805, 12
      %v2319 = vpop.permute.xlu0 %2318
      %2320 = vrot.lane.b32.xlu0 %v1806, 12
      %v2321 = vpop.permute.xlu0 %2320
      %2386 = vrot.lane.b32.xlu0 %v1807, 16
      %v2387 = vpop.permute.xlu0 %2386
      %2388 = vrot.lane.b32.xlu0 %v1808, 16
      %v2389 = vpop.permute.xlu0 %2388
      %2390 = vrot.lane.b32.xlu0 %v1809, 16
      %v2391 = vpop.permute.xlu0 %2390
      %2392 = vrot.lane.b32.xlu0 %v1810, 16
      %v2393 = vpop.permute.xlu0 %2392
      %2394 = vrot.lane.b32.xlu0 %v1811, 16
      %v2395 = vpop.permute.xlu0 %2394
      %2396 = vrot.lane.b32.xlu0 %v1812, 16
      %v2397 = vpop.permute.xlu0 %2396
      %2398 = vrot.lane.b32.xlu0 %v1813, 16
      %v2399 = vpop.permute.xlu0 %2398
      %2400 = vrot.lane.b32.xlu0 %v1814, 16
      %v2401 = vpop.permute.xlu0 %2400
      %2402 = vrot.lane.b32.xlu0 %v1815, 16
      %v2403 = vpop.permute.xlu0 %2402
      %2404 = vrot.lane.b32.xlu0 %v1816, 16
      %v2405 = vpop.permute.xlu0 %2404
      %2406 = vrot.lane.b32.xlu0 %v1817, 16
      %v2407 = vpop.permute.xlu0 %2406
      %2408 = vrot.lane.b32.xlu0 %v1818, 16
      %v2409 = vpop.permute.xlu0 %2408
      %2410 = vrot.lane.b32.xlu0 %v1819, 16
      %v2411 = vpop.permute.xlu0 %2410
      %2412 = vrot.lane.b32.xlu0 %v1820, 16
      %v2413 = vpop.permute.xlu0 %2412
      %2414 = vrot.lane.b32.xlu0 %v1821, 16
      %v2415 = vpop.permute.xlu0 %2414
      %2416 = vrot.lane.b32.xlu0 %v1822, 16
      %v2417 = vpop.permute.xlu0 %2416
      %2418 = vrot.lane.b32.xlu0 %v1823, 16
      %v2419 = vpop.permute.xlu0 %2418
      %2420 = vrot.lane.b32.xlu0 %v1824, 16
      %v2421 = vpop.permute.xlu0 %2420
      %2422 = vrot.lane.b32.xlu0 %v1825, 16
      %v2423 = vpop.permute.xlu0 %2422
      %2424 = vrot.lane.b32.xlu0 %v1826, 16
      %v2425 = vpop.permute.xlu0 %2424
      %2426 = vrot.lane.b32.xlu0 %v1827, 16
      %v2427 = vpop.permute.xlu0 %2426
      %2428 = vrot.lane.b32.xlu0 %v1828, 16
      %v2429 = vpop.permute.xlu0 %2428
      %2430 = vrot.lane.b32.xlu0 %v1829, 16
      %v2431 = vpop.permute.xlu0 %2430
      %2432 = vrot.lane.b32.xlu0 %v1830, 16
      %v2433 = vpop.permute.xlu0 %2432
      %2434 = vrot.lane.b32.xlu0 %v1831, 16
      %v2435 = vpop.permute.xlu0 %2434
      %2436 = vrot.lane.b32.xlu0 %v1832, 16
      %v2437 = vpop.permute.xlu0 %2436
      %2438 = vrot.lane.b32.xlu0 %v1833, 16
      %v2439 = vpop.permute.xlu0 %2438
      %2440 = vrot.lane.b32.xlu0 %v1834, 16
      %v2441 = vpop.permute.xlu0 %2440
      %2442 = vrot.lane.b32.xlu0 %v1835, 16
      %v2443 = vpop.permute.xlu0 %2442
      %2444 = vrot.lane.b32.xlu0 %v1836, 16
      %v2445 = vpop.permute.xlu0 %2444
      %2446 = vrot.lane.b32.xlu0 %v1837, 16
      %v2447 = vpop.permute.xlu0 %2446
      %2448 = vrot.lane.b32.xlu0 %v1838, 16
      %v2449 = vpop.permute.xlu0 %2448
      %2514 = vrot.lane.b32.xlu0 %v1839, 20
      %v2515 = vpop.permute.xlu0 %2514
      %2516 = vrot.lane.b32.xlu0 %v1840, 20
      %v2517 = vpop.permute.xlu0 %2516
      %2518 = vrot.lane.b32.xlu0 %v1841, 20
      %v2519 = vpop.permute.xlu0 %2518
      %2520 = vrot.lane.b32.xlu0 %v1842, 20
      %v2521 = vpop.permute.xlu0 %2520
      %2522 = vrot.lane.b32.xlu0 %v1843, 20
      %v2523 = vpop.permute.xlu0 %2522
      %2524 = vrot.lane.b32.xlu0 %v1844, 20
      %v2525 = vpop.permute.xlu0 %2524
      %2526 = vrot.lane.b32.xlu0 %v1845, 20
      %v2527 = vpop.permute.xlu0 %2526
      %2528 = vrot.lane.b32.xlu0 %v1846, 20
      %v2529 = vpop.permute.xlu0 %2528
      %2530 = vrot.lane.b32.xlu0 %v1847, 20
      %v2531 = vpop.permute.xlu0 %2530
      %2532 = vrot.lane.b32.xlu0 %v1848, 20
      %v2533 = vpop.permute.xlu0 %2532
      %2534 = vrot.lane.b32.xlu0 %v1849, 20
      %v2535 = vpop.permute.xlu0 %2534
      %2536 = vrot.lane.b32.xlu0 %v1850, 20
      %v2537 = vpop.permute.xlu0 %2536
      %2538 = vrot.lane.b32.xlu0 %v1851, 20
      %v2539 = vpop.permute.xlu0 %2538
      %2540 = vrot.lane.b32.xlu0 %v1852, 20
      %v2541 = vpop.permute.xlu0 %2540
      %2542 = vrot.lane.b32.xlu0 %v1853, 20
      %v2543 = vpop.permute.xlu0 %2542
      %2544 = vrot.lane.b32.xlu0 %v1854, 20
      %v2545 = vpop.permute.xlu0 %2544
      %2546 = vrot.lane.b32.xlu0 %v1855, 20
      %v2547 = vpop.permute.xlu0 %2546
      %2548 = vrot.lane.b32.xlu0 %v1856, 20
      %v2549 = vpop.permute.xlu0 %2548
      %2550 = vrot.lane.b32.xlu0 %v1857, 20
      %v2551 = vpop.permute.xlu0 %2550
      %2552 = vrot.lane.b32.xlu0 %v1858, 20
      %v2553 = vpop.permute.xlu0 %2552
      %2554 = vrot.lane.b32.xlu0 %v1859, 20
      %v2555 = vpop.permute.xlu0 %2554
      %2556 = vrot.lane.b32.xlu0 %v1860, 20
      %v2557 = vpop.permute.xlu0 %2556
      %2558 = vrot.lane.b32.xlu0 %v1861, 20
      %v2559 = vpop.permute.xlu0 %2558
      %2560 = vrot.lane.b32.xlu0 %v1862, 20
      %v2561 = vpop.permute.xlu0 %2560
      %2562 = vrot.lane.b32.xlu0 %v1863, 20
      %v2563 = vpop.permute.xlu0 %2562
      %2564 = vrot.lane.b32.xlu0 %v1864, 20
      %v2565 = vpop.permute.xlu0 %2564
      %2566 = vrot.lane.b32.xlu0 %v1865, 20
      %v2567 = vpop.permute.xlu0 %2566
      %2568 = vrot.lane.b32.xlu0 %v1866, 20
      %v2569 = vpop.permute.xlu0 %2568
      %2570 = vrot.lane.b32.xlu0 %v1867, 20
      %v2571 = vpop.permute.xlu0 %2570
      %2572 = vrot.lane.b32.xlu0 %v1868, 20
      %v2573 = vpop.permute.xlu0 %2572
      %2574 = vrot.lane.b32.xlu0 %v1869, 20
      %v2575 = vpop.permute.xlu0 %2574
      %2576 = vrot.lane.b32.xlu0 %v1870, 20
      %v2577 = vpop.permute.xlu0 %2576
      %2642 = vrot.lane.b32.xlu0 %v1872, 24
      %v2643 = vpop.permute.xlu0 %2642
      %2644 = vrot.lane.b32.xlu0 %v1873, 24
      %v2645 = vpop.permute.xlu0 %2644
      %2646 = vrot.lane.b32.xlu0 %v1874, 24
      %v2647 = vpop.permute.xlu0 %2646
      %2648 = vrot.lane.b32.xlu0 %v1875, 24
      %v2649 = vpop.permute.xlu0 %2648
      %2650 = vrot.lane.b32.xlu0 %v1876, 24
      %v2651 = vpop.permute.xlu0 %2650
      %2652 = vrot.lane.b32.xlu0 %v1877, 24
      %v2653 = vpop.permute.xlu0 %2652
      %2654 = vrot.lane.b32.xlu0 %v1878, 24
      %v2655 = vpop.permute.xlu0 %2654
      %2656 = vrot.lane.b32.xlu0 %v1879, 24
      %v2657 = vpop.permute.xlu0 %2656
      %2658 = vrot.lane.b32.xlu0 %v1880, 24
      %v2659 = vpop.permute.xlu0 %2658
      %2660 = vrot.lane.b32.xlu0 %v1881, 24
      %v2661 = vpop.permute.xlu0 %2660
      %2662 = vrot.lane.b32.xlu0 %v1882, 24
      %v2663 = vpop.permute.xlu0 %2662
      %2664 = vrot.lane.b32.xlu0 %v1883, 24
      %v2665 = vpop.permute.xlu0 %2664
      %2666 = vrot.lane.b32.xlu0 %v1884, 24
      %v2667 = vpop.permute.xlu0 %2666
      %2668 = vrot.lane.b32.xlu0 %v1885, 24
      %v2669 = vpop.permute.xlu0 %2668
      %2670 = vrot.lane.b32.xlu0 %v1886, 24
      %v2671 = vpop.permute.xlu0 %2670
      %2672 = vrot.lane.b32.xlu0 %v1887, 24
      %v2673 = vpop.permute.xlu0 %2672
      %2674 = vrot.lane.b32.xlu0 %v1888, 24
      %v2675 = vpop.permute.xlu0 %2674
      %2676 = vrot.lane.b32.xlu0 %v1889, 24
      %v2677 = vpop.permute.xlu0 %2676
      %2678 = vrot.lane.b32.xlu0 %v1890, 24
      %v2679 = vpop.permute.xlu0 %2678
      %2680 = vrot.lane.b32.xlu0 %v1891, 24
      %v2681 = vpop.permute.xlu0 %2680
      %2682 = vrot.lane.b32.xlu0 %v1892, 24
      %v2683 = vpop.permute.xlu0 %2682
      %2684 = vrot.lane.b32.xlu0 %v1893, 24
      %v2685 = vpop.permute.xlu0 %2684
      %2686 = vrot.lane.b32.xlu0 %v1894, 24
      %v2687 = vpop.permute.xlu0 %2686
      %2688 = vrot.lane.b32.xlu0 %v1895, 24
      %v2689 = vpop.permute.xlu0 %2688
      %2690 = vrot.lane.b32.xlu0 %v1896, 24
      %v2691 = vpop.permute.xlu0 %2690
      %2692 = vrot.lane.b32.xlu0 %v1897, 24
      %v2693 = vpop.permute.xlu0 %2692
      %2694 = vrot.lane.b32.xlu0 %v1898, 24
      %v2695 = vpop.permute.xlu0 %2694
      %2696 = vrot.lane.b32.xlu0 %v1899, 24
      %v2697 = vpop.permute.xlu0 %2696
      %2698 = vrot.lane.b32.xlu0 %v1900, 24
      %v2699 = vpop.permute.xlu0 %2698
      %2700 = vrot.lane.b32.xlu0 %v1901, 24
      %v2701 = vpop.permute.xlu0 %2700
      %2702 = vrot.lane.b32.xlu0 %v1902, 24
      %v2703 = vpop.permute.xlu0 %2702
      %2704 = vrot.lane.b32.xlu0 %v1903, 24
      %v2705 = vpop.permute.xlu0 %2704
      %2770 = vrot.lane.b32.xlu0 %v1905, 28
      %v2771 = vpop.permute.xlu0 %2770
      %2772 = vrot.lane.b32.xlu0 %v1906, 28
      %v2773 = vpop.permute.xlu0 %2772
      %2774 = vrot.lane.b32.xlu0 %v1907, 28
      %v2775 = vpop.permute.xlu0 %2774
      %2776 = vrot.lane.b32.xlu0 %v1908, 28
      %v2777 = vpop.permute.xlu0 %2776
      %2778 = vrot.lane.b32.xlu0 %v1909, 28
      %v2779 = vpop.permute.xlu0 %2778
      %2780 = vrot.lane.b32.xlu0 %v1910, 28
      %v2781 = vpop.permute.xlu0 %2780
      %2782 = vrot.lane.b32.xlu0 %v1911, 28
      %v2783 = vpop.permute.xlu0 %2782
      %2784 = vrot.lane.b32.xlu0 %v1912, 28
      %v2785 = vpop.permute.xlu0 %2784
      %2786 = vrot.lane.b32.xlu0 %v1913, 28
      %v2787 = vpop.permute.xlu0 %2786
      %2788 = vrot.lane.b32.xlu0 %v1914, 28
      %v2789 = vpop.permute.xlu0 %2788
      %2790 = vrot.lane.b32.xlu0 %v1915, 28
      %v2791 = vpop.permute.xlu0 %2790
      %2792 = vrot.lane.b32.xlu0 %v1916, 28
      %v2793 = vpop.permute.xlu0 %2792
      %2794 = vrot.lane.b32.xlu0 %v1917, 28
      %v2795 = vpop.permute.xlu0 %2794
      %2796 = vrot.lane.b32.xlu0 %v1918, 28
      %v2797 = vpop.permute.xlu0 %2796
      %2798 = vrot.lane.b32.xlu0 %v1919, 28
      %v2799 = vpop.permute.xlu0 %2798
      %2800 = vrot.lane.b32.xlu0 %v1920, 28
      %v2801 = vpop.permute.xlu0 %2800
      %2802 = vrot.lane.b32.xlu0 %v1921, 28
      %v2803 = vpop.permute.xlu0 %2802
      %2804 = vrot.lane.b32.xlu0 %v1922, 28
      %v2805 = vpop.permute.xlu0 %2804
      %2806 = vrot.lane.b32.xlu0 %v1923, 28
      %v2807 = vpop.permute.xlu0 %2806
      %2808 = vrot.lane.b32.xlu0 %v1924, 28
      %v2809 = vpop.permute.xlu0 %2808
      %2810 = vrot.lane.b32.xlu0 %v1925, 28
      %v2811 = vpop.permute.xlu0 %2810
      %2812 = vrot.lane.b32.xlu0 %v1926, 28
      %v2813 = vpop.permute.xlu0 %2812
      %2814 = vrot.lane.b32.xlu0 %v1927, 28
      %v2815 = vpop.permute.xlu0 %2814
      %2816 = vrot.lane.b32.xlu0 %v1928, 28
      %v2817 = vpop.permute.xlu0 %2816
      %2818 = vrot.lane.b32.xlu0 %v1929, 28
      %v2819 = vpop.permute.xlu0 %2818
      %2820 = vrot.lane.b32.xlu0 %v1930, 28
      %v2821 = vpop.permute.xlu0 %2820
      %2822 = vrot.lane.b32.xlu0 %v1931, 28
      %v2823 = vpop.permute.xlu0 %2822
      %2824 = vrot.lane.b32.xlu0 %v1932, 28
      %v2825 = vpop.permute.xlu0 %2824
      %2826 = vrot.lane.b32.xlu0 %v1933, 28
      %v2827 = vpop.permute.xlu0 %2826
      %2828 = vrot.lane.b32.xlu0 %v1934, 28
      %v2829 = vpop.permute.xlu0 %2828
      %2830 = vrot.lane.b32.xlu0 %v1935, 28
      %v2831 = vpop.permute.xlu0 %2830
      %2832 = vrot.lane.b32.xlu0 %v1936, 28
      %v2833 = vpop.permute.xlu0 %2832
      %2898 = vrot.lane.b32.xlu0 %v1938, 32
      %v2899 = vpop.permute.xlu0 %2898
      %2900 = vrot.lane.b32.xlu0 %v1939, 32
      %v2901 = vpop.permute.xlu0 %2900
      %2902 = vrot.lane.b32.xlu0 %v1940, 32
      %v2903 = vpop.permute.xlu0 %2902
      %2904 = vrot.lane.b32.xlu0 %v1941, 32
      %v2905 = vpop.permute.xlu0 %2904
      %2906 = vrot.lane.b32.xlu0 %v1942, 32
      %v2907 = vpop.permute.xlu0 %2906
      %2908 = vrot.lane.b32.xlu0 %v1943, 32
      %v2909 = vpop.permute.xlu0 %2908
      %2910 = vrot.lane.b32.xlu0 %v1944, 32
      %v2911 = vpop.permute.xlu0 %2910
      %2912 = vrot.lane.b32.xlu0 %v1945, 32
      %v2913 = vpop.permute.xlu0 %2912
      %2914 = vrot.lane.b32.xlu0 %v1946, 32
      %v2915 = vpop.permute.xlu0 %2914
      %2916 = vrot.lane.b32.xlu0 %v1947, 32
      %v2917 = vpop.permute.xlu0 %2916
      %2918 = vrot.lane.b32.xlu0 %v1948, 32
      %v2919 = vpop.permute.xlu0 %2918
      %2920 = vrot.lane.b32.xlu0 %v1949, 32
      %v2921 = vpop.permute.xlu0 %2920
      %2922 = vrot.lane.b32.xlu0 %v1950, 32
      %v2923 = vpop.permute.xlu0 %2922
      %2924 = vrot.lane.b32.xlu0 %v1951, 32
      %v2925 = vpop.permute.xlu0 %2924
      %2926 = vrot.lane.b32.xlu0 %v1952, 32
      %v2927 = vpop.permute.xlu0 %2926
      %2928 = vrot.lane.b32.xlu0 %v1953, 32
      %v2929 = vpop.permute.xlu0 %2928
      %2930 = vrot.lane.b32.xlu0 %v1954, 32
      %v2931 = vpop.permute.xlu0 %2930
      %2932 = vrot.lane.b32.xlu0 %v1955, 32
      %v2933 = vpop.permute.xlu0 %2932
      %2934 = vrot.lane.b32.xlu0 %v1956, 32
      %v2935 = vpop.permute.xlu0 %2934
      %2936 = vrot.lane.b32.xlu0 %v1957, 32
      %v2937 = vpop.permute.xlu0 %2936
      %2938 = vrot.lane.b32.xlu0 %v1958, 32
      %v2939 = vpop.permute.xlu0 %2938
      %2940 = vrot.lane.b32.xlu0 %v1959, 32
      %v2941 = vpop.permute.xlu0 %2940
      %2942 = vrot.lane.b32.xlu0 %v1960, 32
      %v2943 = vpop.permute.xlu0 %2942
      %2944 = vrot.lane.b32.xlu0 %v1961, 32
      %v2945 = vpop.permute.xlu0 %2944
      %2946 = vrot.lane.b32.xlu0 %v1962, 32
      %v2947 = vpop.permute.xlu0 %2946
      %2948 = vrot.lane.b32.xlu0 %v1963, 32
      %v2949 = vpop.permute.xlu0 %2948
      %2950 = vrot.lane.b32.xlu0 %v1964, 32
      %v2951 = vpop.permute.xlu0 %2950
      %2952 = vrot.lane.b32.xlu0 %v1965, 32
      %v2953 = vpop.permute.xlu0 %2952
      %2954 = vrot.lane.b32.xlu0 %v1966, 32
      %v2955 = vpop.permute.xlu0 %2954
      %2956 = vrot.lane.b32.xlu0 %v1967, 32
      %v2957 = vpop.permute.xlu0 %2956
      %2958 = vrot.lane.b32.xlu0 %v1968, 32
      %v2959 = vpop.permute.xlu0 %2958
      %2960 = vrot.lane.b32.xlu0 %v1969, 32
      %v2961 = vpop.permute.xlu0 %2960
      %v2994 = vsel %vm461, %v1677, %v2003
      %v2995 = vsel %vm461, %v1678, %v2005
      %v2996 = vsel %vm461, %v1679, %v2007
      %v2997 = vsel %vm461, %v1680, %v2009
      %v2998 = vsel %vm461, %v1681, %v2011
      %v2999 = vsel %vm461, %v1682, %v2013
      %v3000 = vsel %vm461, %v1683, %v2015
      %v3001 = vsel %vm461, %v1684, %v2017
      %v3002 = vsel %vm461, %v1685, %v2019
      %v3003 = vsel %vm461, %v1686, %v2021
      %v3004 = vsel %vm461, %v1687, %v2023
      %v3005 = vsel %vm461, %v1688, %v2025
      %v3006 = vsel %vm461, %v1689, %v2027
      %v3007 = vsel %vm461, %v1690, %v2029
      %v3008 = vsel %vm461, %v1691, %v2031
      %v3009 = vsel %vm461, %v1692, %v2033
      %v3010 = vsel %vm461, %v1693, %v2035
      %v3011 = vsel %vm461, %v1694, %v2037
      %v3012 = vsel %vm461, %v1695, %v2039
      %v3013 = vsel %vm461, %v1696, %v2041
      %v3014 = vsel %vm461, %v1697, %v2043
      %v3015 = vsel %vm461, %v1698, %v2045
      %v3016 = vsel %vm461, %v1699, %v2047
      %v3017 = vsel %vm461, %v1700, %v2049
      %v3018 = vsel %vm461, %v1701, %v2051
      %v3019 = vsel %vm461, %v1702, %v2053
      %v3020 = vsel %vm461, %v1703, %v2055
      %v3021 = vsel %vm461, %v1704, %v2057
      %v3022 = vsel %vm461, %v1705, %v2059
      %v3023 = vsel %vm461, %v1706, %v2061
      %v3024 = vsel %vm461, %v1707, %v2063
      %v3025 = vsel %vm461, %v1708, %v2065
      %v3026 = vsel %vm1236, %v2994, %v2131
      %v3027 = vsel %vm1236, %v2995, %v2133
      %v3028 = vsel %vm1236, %v2996, %v2135
      %v3029 = vsel %vm1236, %v2997, %v2137
      %v3030 = vsel %vm1236, %v2998, %v2139
      %v3031 = vsel %vm1236, %v2999, %v2141
      %v3032 = vsel %vm1236, %v3000, %v2143
      %v3033 = vsel %vm1236, %v3001, %v2145
      %v3034 = vsel %vm1236, %v3002, %v2147
      %v3035 = vsel %vm1236, %v3003, %v2149
      %v3036 = vsel %vm1236, %v3004, %v2151
      %v3037 = vsel %vm1236, %v3005, %v2153
      %v3038 = vsel %vm1236, %v3006, %v2155
      %v3039 = vsel %vm1236, %v3007, %v2157
      %v3040 = vsel %vm1236, %v3008, %v2159
      %v3041 = vsel %vm1236, %v3009, %v2161
      %v3042 = vsel %vm1236, %v3010, %v2163
      %v3043 = vsel %vm1236, %v3011, %v2165
      %v3044 = vsel %vm1236, %v3012, %v2167
      %v3045 = vsel %vm1236, %v3013, %v2169
      %v3046 = vsel %vm1236, %v3014, %v2171
      %v3047 = vsel %vm1236, %v3015, %v2173
      %v3048 = vsel %vm1236, %v3016, %v2175
      %v3049 = vsel %vm1236, %v3017, %v2177
      %v3050 = vsel %vm1236, %v3018, %v2179
      %v3051 = vsel %vm1236, %v3019, %v2181
      %v3052 = vsel %vm1236, %v3020, %v2183
      %v3053 = vsel %vm1236, %v3021, %v2185
      %v3054 = vsel %vm1236, %v3022, %v2187
      %v3055 = vsel %vm1236, %v3023, %v2189
      %v3056 = vsel %vm1236, %v3024, %v2191
      %v3057 = vsel %vm1236, %v3025, %v2193
      %vm3058 = vcmask 97280
      %v3059 = vsel %vm3058, %v3026, %v2259
      %v3060 = vsel %vm3058, %v3027, %v2261
      %v3061 = vsel %vm3058, %v3028, %v2263
      %v3062 = vsel %vm3058, %v3029, %v2265
      %v3063 = vsel %vm3058, %v3030, %v2267
      %v3064 = vsel %vm3058, %v3031, %v2269
      %v3065 = vsel %vm3058, %v3032, %v2271
      %v3066 = vsel %vm3058, %v3033, %v2273
      %v3067 = vsel %vm3058, %v3034, %v2275
      %v3068 = vsel %vm3058, %v3035, %v2277
      %v3069 = vsel %vm3058, %v3036, %v2279
      %v3070 = vsel %vm3058, %v3037, %v2281
      %v3071 = vsel %vm3058, %v3038, %v2283
      %v3072 = vsel %vm3058, %v3039, %v2285
      %v3073 = vsel %vm3058, %v3040, %v2287
      %v3074 = vsel %vm3058, %v3041, %v2289
      %v3075 = vsel %vm3058, %v3042, %v2291
      %v3076 = vsel %vm3058, %v3043, %v2293
      %v3077 = vsel %vm3058, %v3044, %v2295
      %v3078 = vsel %vm3058, %v3045, %v2297
      %v3079 = vsel %vm3058, %v3046, %v2299
      %v3080 = vsel %vm3058, %v3047, %v2301
      %v3081 = vsel %vm3058, %v3048, %v2303
      %v3082 = vsel %vm3058, %v3049, %v2305
      %v3083 = vsel %vm3058, %v3050, %v2307
      %v3084 = vsel %vm3058, %v3051, %v2309
      %v3085 = vsel %vm3058, %v3052, %v2311
      %v3086 = vsel %vm3058, %v3053, %v2313
      %v3087 = vsel %vm3058, %v3054, %v2315
      %v3088 = vsel %vm3058, %v3055, %v2317
      %v3089 = vsel %vm3058, %v3056, %v2319
      %v3090 = vsel %vm3058, %v3057, %v2321
      %vm3091 = vcmask 130048
      %v3092 = vsel %vm3091, %v3059, %v2387
      %v3093 = vsel %vm3091, %v3060, %v2389
      %v3094 = vsel %vm3091, %v3061, %v2391
      %v3095 = vsel %vm3091, %v3062, %v2393
      %v3096 = vsel %vm3091, %v3063, %v2395
      %v3097 = vsel %vm3091, %v3064, %v2397
      %v3098 = vsel %vm3091, %v3065, %v2399
      %v3099 = vsel %vm3091, %v3066, %v2401
      %v3100 = vsel %vm3091, %v3067, %v2403
      %v3101 = vsel %vm3091, %v3068, %v2405
      %v3102 = vsel %vm3091, %v3069, %v2407
      %v3103 = vsel %vm3091, %v3070, %v2409
      %v3104 = vsel %vm3091, %v3071, %v2411
      %v3105 = vsel %vm3091, %v3072, %v2413
      %v3106 = vsel %vm3091, %v3073, %v2415
      %v3107 = vsel %vm3091, %v3074, %v2417
      %v3108 = vsel %vm3091, %v3075, %v2419
      %v3109 = vsel %vm3091, %v3076, %v2421
      %v3110 = vsel %vm3091, %v3077, %v2423
      %v3111 = vsel %vm3091, %v3078, %v2425
      %v3112 = vsel %vm3091, %v3079, %v2427
      %v3113 = vsel %vm3091, %v3080, %v2429
      %v3114 = vsel %vm3091, %v3081, %v2431
      %v3115 = vsel %vm3091, %v3082, %v2433
      %v3116 = vsel %vm3091, %v3083, %v2435
      %v3117 = vsel %vm3091, %v3084, %v2437
      %v3118 = vsel %vm3091, %v3085, %v2439
      %v3119 = vsel %vm3091, %v3086, %v2441
      %v3120 = vsel %vm3091, %v3087, %v2443
      %v3121 = vsel %vm3091, %v3088, %v2445
      %v3122 = vsel %vm3091, %v3089, %v2447
      %v3123 = vsel %vm3091, %v3090, %v2449
      %vm3124 = vcmask 162816
      %v3125 = vsel %vm3124, %v3092, %v2515
      %v3126 = vsel %vm3124, %v3093, %v2517
      %v3127 = vsel %vm3124, %v3094, %v2519
      %v3128 = vsel %vm3124, %v3095, %v2521
      %v3129 = vsel %vm3124, %v3096, %v2523
      %v3130 = vsel %vm3124, %v3097, %v2525
      %v3131 = vsel %vm3124, %v3098, %v2527
      %v3132 = vsel %vm3124, %v3099, %v2529
      %v3133 = vsel %vm3124, %v3100, %v2531
      %v3134 = vsel %vm3124, %v3101, %v2533
      %v3135 = vsel %vm3124, %v3102, %v2535
      %v3136 = vsel %vm3124, %v3103, %v2537
      %v3137 = vsel %vm3124, %v3104, %v2539
      %v3138 = vsel %vm3124, %v3105, %v2541
      %v3139 = vsel %vm3124, %v3106, %v2543
      %v3140 = vsel %vm3124, %v3107, %v2545
      %v3141 = vsel %vm3124, %v3108, %v2547
      %v3142 = vsel %vm3124, %v3109, %v2549
      %v3143 = vsel %vm3124, %v3110, %v2551
      %v3144 = vsel %vm3124, %v3111, %v2553
      %v3145 = vsel %vm3124, %v3112, %v2555
      %v3146 = vsel %vm3124, %v3113, %v2557
      %v3147 = vsel %vm3124, %v3114, %v2559
      %v3148 = vsel %vm3124, %v3115, %v2561
      %v3149 = vsel %vm3124, %v3116, %v2563
      %v3150 = vsel %vm3124, %v3117, %v2565
      %v3151 = vsel %vm3124, %v3118, %v2567
      %v3152 = vsel %vm3124, %v3119, %v2569
      %v3153 = vsel %vm3124, %v3120, %v2571
      %v3154 = vsel %vm3124, %v3121, %v2573
      %v3155 = vsel %vm3124, %v3122, %v2575
      %v3156 = vsel %vm3124, %v3123, %v2577
      %vm3157 = vcmask 195584
      %v3158 = vsel %vm3157, %v3125, %v2643
      %v3159 = vsel %vm3157, %v3126, %v2645
      %v3160 = vsel %vm3157, %v3127, %v2647
      %v3161 = vsel %vm3157, %v3128, %v2649
      %v3162 = vsel %vm3157, %v3129, %v2651
      %v3163 = vsel %vm3157, %v3130, %v2653
      %v3164 = vsel %vm3157, %v3131, %v2655
      %v3165 = vsel %vm3157, %v3132, %v2657
      %v3166 = vsel %vm3157, %v3133, %v2659
      %v3167 = vsel %vm3157, %v3134, %v2661
      %v3168 = vsel %vm3157, %v3135, %v2663
      %v3169 = vsel %vm3157, %v3136, %v2665
      %v3170 = vsel %vm3157, %v3137, %v2667
      %v3171 = vsel %vm3157, %v3138, %v2669
      %v3172 = vsel %vm3157, %v3139, %v2671
      %v3173 = vsel %vm3157, %v3140, %v2673
      %v3174 = vsel %vm3157, %v3141, %v2675
      %v3175 = vsel %vm3157, %v3142, %v2677
      %v3176 = vsel %vm3157, %v3143, %v2679
      %v3177 = vsel %vm3157, %v3144, %v2681
      %v3178 = vsel %vm3157, %v3145, %v2683
      %v3179 = vsel %vm3157, %v3146, %v2685
      %v3180 = vsel %vm3157, %v3147, %v2687
      %v3181 = vsel %vm3157, %v3148, %v2689
      %v3182 = vsel %vm3157, %v3149, %v2691
      %v3183 = vsel %vm3157, %v3150, %v2693
      %v3184 = vsel %vm3157, %v3151, %v2695
      %v3185 = vsel %vm3157, %v3152, %v2697
      %v3186 = vsel %vm3157, %v3153, %v2699
      %v3187 = vsel %vm3157, %v3154, %v2701
      %v3188 = vsel %vm3157, %v3155, %v2703
      %v3189 = vsel %vm3157, %v3156, %v2705
      %vm3190 = vcmask 228352
      %v3191 = vsel %vm3190, %v3158, %v2771
      %v3192 = vsel %vm3190, %v3159, %v2773
      %v3193 = vsel %vm3190, %v3160, %v2775
      %v3194 = vsel %vm3190, %v3161, %v2777
      %v3195 = vsel %vm3190, %v3162, %v2779
      %v3196 = vsel %vm3190, %v3163, %v2781
      %v3197 = vsel %vm3190, %v3164, %v2783
      %v3198 = vsel %vm3190, %v3165, %v2785
      %v3199 = vsel %vm3190, %v3166, %v2787
      %v3200 = vsel %vm3190, %v3167, %v2789
      %v3201 = vsel %vm3190, %v3168, %v2791
      %v3202 = vsel %vm3190, %v3169, %v2793
      %v3203 = vsel %vm3190, %v3170, %v2795
      %v3204 = vsel %vm3190, %v3171, %v2797
      %v3205 = vsel %vm3190, %v3172, %v2799
      %v3206 = vsel %vm3190, %v3173, %v2801
      %v3207 = vsel %vm3190, %v3174, %v2803
      %v3208 = vsel %vm3190, %v3175, %v2805
      %v3209 = vsel %vm3190, %v3176, %v2807
      %v3210 = vsel %vm3190, %v3177, %v2809
      %v3211 = vsel %vm3190, %v3178, %v2811
      %v3212 = vsel %vm3190, %v3179, %v2813
      %v3213 = vsel %vm3190, %v3180, %v2815
      %v3214 = vsel %vm3190, %v3181, %v2817
      %v3215 = vsel %vm3190, %v3182, %v2819
      %v3216 = vsel %vm3190, %v3183, %v2821
      %v3217 = vsel %vm3190, %v3184, %v2823
      %v3218 = vsel %vm3190, %v3185, %v2825
      %v3219 = vsel %vm3190, %v3186, %v2827
      %v3220 = vsel %vm3190, %v3187, %v2829
      %v3221 = vsel %vm3190, %v3188, %v2831
      %v3222 = vsel %vm3190, %v3189, %v2833
      %vm3223 = vcmask 261120
      %v3224 = vsel %vm3223, %v3191, %v2899
      %v3225 = vsel %vm3223, %v3192, %v2901
      %v3226 = vsel %vm3223, %v3193, %v2903
      %v3227 = vsel %vm3223, %v3194, %v2905
      %v3228 = vsel %vm3223, %v3195, %v2907
      %v3229 = vsel %vm3223, %v3196, %v2909
      %v3230 = vsel %vm3223, %v3197, %v2911
      %v3231 = vsel %vm3223, %v3198, %v2913
      %v3232 = vsel %vm3223, %v3199, %v2915
      %v3233 = vsel %vm3223, %v3200, %v2917
      %v3234 = vsel %vm3223, %v3201, %v2919
      %v3235 = vsel %vm3223, %v3202, %v2921
      %v3236 = vsel %vm3223, %v3203, %v2923
      %v3237 = vsel %vm3223, %v3204, %v2925
      %v3238 = vsel %vm3223, %v3205, %v2927
      %v3239 = vsel %vm3223, %v3206, %v2929
      %v3240 = vsel %vm3223, %v3207, %v2931
      %v3241 = vsel %vm3223, %v3208, %v2933
      %v3242 = vsel %vm3223, %v3209, %v2935
      %v3243 = vsel %vm3223, %v3210, %v2937
      %v3244 = vsel %vm3223, %v3211, %v2939
      %v3245 = vsel %vm3223, %v3212, %v2941
      %v3246 = vsel %vm3223, %v3213, %v2943
      %v3247 = vsel %vm3223, %v3214, %v2945
      %v3248 = vsel %vm3223, %v3215, %v2947
      %v3249 = vsel %vm3223, %v3216, %v2949
      %v3250 = vsel %vm3223, %v3217, %v2951
      %v3251 = vsel %vm3223, %v3218, %v2953
      %v3252 = vsel %vm3223, %v3219, %v2955
      %v3253 = vsel %vm3223, %v3220, %v2957
      %v3254 = vsel %vm3223, %v3221, %v2959
      %v3255 = vsel %vm3223, %v3222, %v2961
      %v3256 = vld [vmem:[%s6] sm:$0xff]
      %v3257 = vld [vmem:[%s6 + $0x8] sm:$0xff]
      %v3258 = vld [vmem:[%s6 + $0x10] sm:$0xff]
      %v3259 = vld [vmem:[%s6 + $0x18] sm:$0xff]
      %v3260 = vld [vmem:[%s6 + $0x20] sm:$0xf]
      %v3261 = vld [vmem:[#allocation3] sm:$0xff]
      %v3262 = vld [vmem:[#allocation3 + $0x8] sm:$0xff]
      %v3263 = vld [vmem:[#allocation3 + $0x18] sm:$0xff]
      %v3264 = vld [vmem:[#allocation3 + $0x20] sm:$0xff]
      %v3265 = vld [vmem:[#allocation3 + $0x30] sm:$0xff]
      %v3266 = vld [vmem:[#allocation3 + $0x38] sm:$0xff]
      %v3267 = vld [vmem:[#allocation3 + $0x48] sm:$0xff]
      %v3268 = vld [vmem:[#allocation3 + $0x50] sm:$0xff]
      %v3269 = vld [vmem:[#allocation3 + $0x60] sm:$0xff]
      %v3270 = vld [vmem:[#allocation3 + $0x68] sm:$0xff]
      %v3271 = vld [vmem:[#allocation3 + $0x78] sm:$0xff]
      %v3272 = vld [vmem:[#allocation3 + $0x80] sm:$0xff]
      %v3273 = vld [vmem:[#allocation3 + $0x90] sm:$0xff]
      %v3274 = vld [vmem:[#allocation3 + $0x98] sm:$0xff]
      %v3275 = vld [vmem:[#allocation3 + $0xa8] sm:$0xff]
      %v3276 = vld [vmem:[#allocation3 + $0xb0] sm:$0xff]
      %v3277 = vld [vmem:[#allocation3 + $0xc0] sm:$0xff]
      %v3278 = vld [vmem:[#allocation3 + $0xc8] sm:$0xff]
      %v3279 = vld [vmem:[#allocation3 + $0xd8] sm:$0xff]
      %v3280 = vld [vmem:[#allocation3 + $0xe0] sm:$0xff]
      %v3281 = vld [vmem:[#allocation3 + $0xf0] sm:$0xff]
      %v3282 = vld [vmem:[#allocation3 + $0xf8] sm:$0xff]
      %v3283 = vld [vmem:[#allocation3 + $0x108] sm:$0xff]
      %v3284 = vld [vmem:[#allocation3 + $0x110] sm:$0xff]
      %v3285 = vld [vmem:[#allocation3 + $0x120] sm:$0xff]
      %v3286 = vld [vmem:[#allocation3 + $0x128] sm:$0xff]
      %v3287 = vld [vmem:[#allocation3 + $0x138] sm:$0xff]
      %v3288 = vld [vmem:[#allocation3 + $0x140] sm:$0xff]
      %v3289 = vld [vmem:[#allocation3 + $0x150] sm:$0xff]
      %v3290 = vld [vmem:[#allocation3 + $0x158] sm:$0xff]
      %v3291 = vld [vmem:[#allocation3 + $0x168] sm:$0xff]
      %v3292 = vld [vmem:[#allocation3 + $0x170] sm:$0xff]
      %s3293 = scalar_lea.vmem [#allocation3], 432
      %v3294 = vld [vmem:[%s3293] sm:$0xff]
      %v3295 = vld [vmem:[%s3293 + $0x8] sm:$0xff]
      %v3296 = vld [vmem:[%s3293 + $0x18] sm:$0xff]
      %v3297 = vld [vmem:[%s3293 + $0x20] sm:$0xff]
      %v3298 = vld [vmem:[%s3293 + $0x30] sm:$0xff]
      %v3299 = vld [vmem:[%s3293 + $0x38] sm:$0xff]
      %v3300 = vld [vmem:[%s3293 + $0x48] sm:$0xff]
      %v3301 = vld [vmem:[%s3293 + $0x50] sm:$0xff]
      %v3302 = vld [vmem:[%s3293 + $0x60] sm:$0xff]
      %v3303 = vld [vmem:[%s3293 + $0x68] sm:$0xff]
      %v3304 = vld [vmem:[%s3293 + $0x78] sm:$0xff]
      %v3305 = vld [vmem:[%s3293 + $0x80] sm:$0xff]
      %v3306 = vld [vmem:[%s3293 + $0x90] sm:$0xff]
      %v3307 = vld [vmem:[%s3293 + $0x98] sm:$0xff]
      %v3308 = vld [vmem:[%s3293 + $0xa8] sm:$0xff]
      %v3309 = vld [vmem:[%s3293 + $0xb0] sm:$0xff]
      %v3310 = vld [vmem:[%s3293 + $0xc0] sm:$0xff]
      %v3311 = vld [vmem:[%s3293 + $0xc8] sm:$0xff]
      %v3312 = vld [vmem:[%s3293 + $0xd8] sm:$0xff]
      %v3313 = vld [vmem:[%s3293 + $0xe0] sm:$0xff]
      %v3314 = vld [vmem:[%s3293 + $0xf0] sm:$0xff]
      %v3315 = vld [vmem:[%s3293 + $0xf8] sm:$0xff]
      %v3316 = vld [vmem:[%s3293 + $0x108] sm:$0xff]
      %v3317 = vld [vmem:[%s3293 + $0x110] sm:$0xff]
      %v3318 = vld [vmem:[%s3293 + $0x120] sm:$0xff]
      %v3319 = vld [vmem:[%s3293 + $0x128] sm:$0xff]
      %v3320 = vld [vmem:[%s3293 + $0x138] sm:$0xff]
      %v3321 = vld [vmem:[%s3293 + $0x140] sm:$0xff]
      %v3322 = vld [vmem:[%s3293 + $0x150] sm:$0xff]
      %v3323 = vld [vmem:[%s3293 + $0x158] sm:$0xff]
      %v3324 = vld [vmem:[%s3293 + $0x168] sm:$0xff]
      %v3325 = vld [vmem:[%s3293 + $0x170] sm:$0xff]
      %s3326 = scalar_lea.vmem [#allocation3], 864
      %v3327 = vld [vmem:[%s3326] sm:$0xff]
      %v3328 = vld [vmem:[%s3326 + $0x8] sm:$0xff]
      %v3329 = vld [vmem:[%s3326 + $0x18] sm:$0xff]
      %v3330 = vld [vmem:[%s3326 + $0x20] sm:$0xff]
      %v3331 = vld [vmem:[%s3326 + $0x30] sm:$0xff]
      %v3332 = vld [vmem:[%s3326 + $0x38] sm:$0xff]
      %v3333 = vld [vmem:[%s3326 + $0x48] sm:$0xff]
      %v3334 = vld [vmem:[%s3326 + $0x50] sm:$0xff]
      %v3335 = vld [vmem:[%s3326 + $0x60] sm:$0xff]
      %v3336 = vld [vmem:[%s3326 + $0x68] sm:$0xff]
      %v3337 = vld [vmem:[%s3326 + $0x78] sm:$0xff]
      %v3338 = vld [vmem:[%s3326 + $0x80] sm:$0xff]
      %v3339 = vld [vmem:[%s3326 + $0x90] sm:$0xff]
      %v3340 = vld [vmem:[%s3326 + $0x98] sm:$0xff]
      %v3341 = vld [vmem:[%s3326 + $0xa8] sm:$0xff]
      %v3342 = vld [vmem:[%s3326 + $0xb0] sm:$0xff]
      %v3343 = vld [vmem:[%s3326 + $0xc0] sm:$0xff]
      %v3344 = vld [vmem:[%s3326 + $0xc8] sm:$0xff]
      %v3345 = vld [vmem:[%s3326 + $0xd8] sm:$0xff]
      %v3346 = vld [vmem:[%s3326 + $0xe0] sm:$0xff]
      %v3347 = vld [vmem:[%s3326 + $0xf0] sm:$0xff]
      %v3348 = vld [vmem:[%s3326 + $0xf8] sm:$0xff]
      %v3349 = vld [vmem:[%s3326 + $0x108] sm:$0xff]
      %v3350 = vld [vmem:[%s3326 + $0x110] sm:$0xff]
      %v3351 = vld [vmem:[%s3326 + $0x120] sm:$0xff]
      %v3352 = vld [vmem:[%s3326 + $0x128] sm:$0xff]
      %v3353 = vld [vmem:[%s3326 + $0x138] sm:$0xff]
      %v3354 = vld [vmem:[%s3326 + $0x140] sm:$0xff]
      %v3355 = vld [vmem:[%s3326 + $0x150] sm:$0xff]
      %v3356 = vld [vmem:[%s3326 + $0x158] sm:$0xff]
      %v3357 = vld [vmem:[%s3326 + $0x168] sm:$0xff]
      %v3358 = vld [vmem:[%s3326 + $0x170] sm:$0xff]
      %v3359 = vld [vmem:[%s1578] sm:$0xff]
      %v3360 = vld [vmem:[%s1578 + $0x8] sm:$0xff]
      %v3361 = vld [vmem:[%s1578 + $0x18] sm:$0xff]
      %v3362 = vld [vmem:[%s1578 + $0x20] sm:$0xff]
      %v3363 = vld [vmem:[%s1578 + $0x30] sm:$0xff]
      %v3364 = vld [vmem:[%s1578 + $0x38] sm:$0xff]
      %v3365 = vld [vmem:[%s1578 + $0x48] sm:$0xff]
      %v3366 = vld [vmem:[%s1578 + $0x50] sm:$0xff]
      %v3367 = vld [vmem:[%s1578 + $0x60] sm:$0xff]
      %v3368 = vld [vmem:[%s1578 + $0x68] sm:$0xff]
      %v3369 = vld [vmem:[%s1578 + $0x78] sm:$0xff]
      %v3370 = vld [vmem:[%s1578 + $0x80] sm:$0xff]
      %v3371 = vld [vmem:[%s1578 + $0x90] sm:$0xff]
      %v3372 = vld [vmem:[%s1578 + $0x98] sm:$0xff]
      %v3373 = vld [vmem:[%s1578 + $0xa8] sm:$0xff]
      %v3374 = vld [vmem:[%s1578 + $0xb0] sm:$0xff]
      %v3375 = vld [vmem:[%s1578 + $0xc0] sm:$0xff]
      %v3376 = vld [vmem:[%s1578 + $0xc8] sm:$0xff]
      %v3377 = vld [vmem:[%s1578 + $0xd8] sm:$0xff]
      %v3378 = vld [vmem:[%s1578 + $0xe0] sm:$0xff]
      %v3379 = vld [vmem:[%s1578 + $0xf0] sm:$0xff]
      %v3380 = vld [vmem:[%s1578 + $0xf8] sm:$0xff]
      %v3381 = vld [vmem:[%s1578 + $0x108] sm:$0xff]
      %v3382 = vld [vmem:[%s1578 + $0x110] sm:$0xff]
      %v3383 = vld [vmem:[%s1578 + $0x120] sm:$0xff]
      %v3384 = vld [vmem:[%s1578 + $0x128] sm:$0xff]
      %v3385 = vld [vmem:[%s1578 + $0x138] sm:$0xff]
      %v3386 = vld [vmem:[%s1578 + $0x140] sm:$0xff]
      %v3387 = vld [vmem:[%s1578 + $0x150] sm:$0xff]
      %v3388 = vld [vmem:[%s1578 + $0x158] sm:$0xff]
      %v3389 = vld [vmem:[%s1578 + $0x168] sm:$0xff]
      %v3390 = vld [vmem:[%s1578 + $0x170] sm:$0xff]
      %v3391 = vld [vmem:[%s1611] sm:$0xff]
      %v3392 = vld [vmem:[%s1611 + $0x8] sm:$0xff]
      %v3393 = vld [vmem:[%s1611 + $0x18] sm:$0xff]
      %v3394 = vld [vmem:[%s1611 + $0x20] sm:$0xff]
      %v3395 = vld [vmem:[%s1611 + $0x30] sm:$0xff]
      %v3396 = vld [vmem:[%s1611 + $0x38] sm:$0xff]
      %v3397 = vld [vmem:[%s1611 + $0x48] sm:$0xff]
      %v3398 = vld [vmem:[%s1611 + $0x50] sm:$0xff]
      %v3399 = vld [vmem:[%s1611 + $0x60] sm:$0xff]
      %v3400 = vld [vmem:[%s1611 + $0x68] sm:$0xff]
      %v3401 = vld [vmem:[%s1611 + $0x78] sm:$0xff]
      %v3402 = vld [vmem:[%s1611 + $0x80] sm:$0xff]
      %v3403 = vld [vmem:[%s1611 + $0x90] sm:$0xff]
      %v3404 = vld [vmem:[%s1611 + $0x98] sm:$0xff]
      %v3405 = vld [vmem:[%s1611 + $0xa8] sm:$0xff]
      %v3406 = vld [vmem:[%s1611 + $0xb0] sm:$0xff]
      %v3407 = vld [vmem:[%s1611 + $0xc0] sm:$0xff]
      %v3408 = vld [vmem:[%s1611 + $0xc8] sm:$0xff]
      %v3409 = vld [vmem:[%s1611 + $0xd8] sm:$0xff]
      %v3410 = vld [vmem:[%s1611 + $0xe0] sm:$0xff]
      %v3411 = vld [vmem:[%s1611 + $0xf0] sm:$0xff]
      %v3412 = vld [vmem:[%s1611 + $0xf8] sm:$0xff]
      %v3413 = vld [vmem:[%s1611 + $0x108] sm:$0xff]
      %v3414 = vld [vmem:[%s1611 + $0x110] sm:$0xff]
      %v3415 = vld [vmem:[%s1611 + $0x120] sm:$0xff]
      %v3416 = vld [vmem:[%s1611 + $0x128] sm:$0xff]
      %v3417 = vld [vmem:[%s1611 + $0x138] sm:$0xff]
      %v3418 = vld [vmem:[%s1611 + $0x140] sm:$0xff]
      %v3419 = vld [vmem:[%s1611 + $0x150] sm:$0xff]
      %v3420 = vld [vmem:[%s1611 + $0x158] sm:$0xff]
      %v3421 = vld [vmem:[%s1611 + $0x168] sm:$0xff]
      %v3422 = vld [vmem:[%s1611 + $0x170] sm:$0xff]
      %v3423 = vld [vmem:[%s1644] sm:$0xff]
      %v3424 = vld [vmem:[%s1644 + $0x8] sm:$0xff]
      %v3425 = vld [vmem:[%s1644 + $0x18] sm:$0xff]
      %v3426 = vld [vmem:[%s1644 + $0x20] sm:$0xff]
      %v3427 = vld [vmem:[%s1644 + $0x30] sm:$0xff]
      %v3428 = vld [vmem:[%s1644 + $0x38] sm:$0xff]
      %v3429 = vld [vmem:[%s1644 + $0x48] sm:$0xff]
      %v3430 = vld [vmem:[%s1644 + $0x50] sm:$0xff]
      %v3431 = vld [vmem:[%s1644 + $0x60] sm:$0xff]
      %v3432 = vld [vmem:[%s1644 + $0x68] sm:$0xff]
      %v3433 = vld [vmem:[%s1644 + $0x78] sm:$0xff]
      %v3434 = vld [vmem:[%s1644 + $0x80] sm:$0xff]
      %v3435 = vld [vmem:[%s1644 + $0x90] sm:$0xff]
      %v3436 = vld [vmem:[%s1644 + $0x98] sm:$0xff]
      %v3437 = vld [vmem:[%s1644 + $0xa8] sm:$0xff]
      %v3438 = vld [vmem:[%s1644 + $0xb0] sm:$0xff]
      %v3439 = vld [vmem:[%s1644 + $0xc0] sm:$0xff]
      %v3440 = vld [vmem:[%s1644 + $0xc8] sm:$0xff]
      %v3441 = vld [vmem:[%s1644 + $0xd8] sm:$0xff]
      %v3442 = vld [vmem:[%s1644 + $0xe0] sm:$0xff]
      %v3443 = vld [vmem:[%s1644 + $0xf0] sm:$0xff]
      %v3444 = vld [vmem:[%s1644 + $0xf8] sm:$0xff]
      %v3445 = vld [vmem:[%s1644 + $0x108] sm:$0xff]
      %v3446 = vld [vmem:[%s1644 + $0x110] sm:$0xff]
      %v3447 = vld [vmem:[%s1644 + $0x120] sm:$0xff]
      %v3448 = vld [vmem:[%s1644 + $0x128] sm:$0xff]
      %v3449 = vld [vmem:[%s1644 + $0x138] sm:$0xff]
      %v3450 = vld [vmem:[%s1644 + $0x140] sm:$0xff]
      %v3451 = vld [vmem:[%s1644 + $0x150] sm:$0xff]
      %v3452 = vld [vmem:[%s1644 + $0x158] sm:$0xff]
      %v3453 = vld [vmem:[%s1644 + $0x168] sm:$0xff]
      %v3454 = vld [vmem:[%s1644 + $0x170] sm:$0xff]
      %s3455 = scalar_lea.vmem [#allocation3], 48
      %v3456 = vld [vmem:[%s3455] sm:$0xff]
      %v3457 = vld [vmem:[%s3455 + $0x8] sm:$0xff]
      %v3458 = vld [vmem:[%s3455 + $0x18] sm:$0xff]
      %v3459 = vld [vmem:[%s3455 + $0x20] sm:$0xff]
      %v3460 = vld [vmem:[%s3455 + $0x30] sm:$0xff]
      %v3461 = vld [vmem:[%s3455 + $0x38] sm:$0xff]
      %v3462 = vld [vmem:[%s3455 + $0x48] sm:$0xff]
      %v3463 = vld [vmem:[%s3455 + $0x50] sm:$0xff]
      %v3464 = vld [vmem:[%s3455 + $0x60] sm:$0xff]
      %v3465 = vld [vmem:[%s3455 + $0x68] sm:$0xff]
      %v3466 = vld [vmem:[%s3455 + $0x78] sm:$0xff]
      %v3467 = vld [vmem:[%s3455 + $0x80] sm:$0xff]
      %v3468 = vld [vmem:[%s3455 + $0x90] sm:$0xff]
      %v3469 = vld [vmem:[%s3455 + $0x98] sm:$0xff]
      %v3470 = vld [vmem:[%s3455 + $0xa8] sm:$0xff]
      %v3471 = vld [vmem:[%s3455 + $0xb0] sm:$0xff]
      %v3472 = vld [vmem:[%s3455 + $0xc0] sm:$0xff]
      %v3473 = vld [vmem:[%s3455 + $0xc8] sm:$0xff]
      %v3474 = vld [vmem:[%s3455 + $0xd8] sm:$0xff]
      %v3475 = vld [vmem:[%s3455 + $0xe0] sm:$0xff]
      %v3476 = vld [vmem:[%s3455 + $0xf0] sm:$0xff]
      %v3477 = vld [vmem:[%s3455 + $0xf8] sm:$0xff]
      %v3478 = vld [vmem:[%s3455 + $0x108] sm:$0xff]
      %v3479 = vld [vmem:[%s3455 + $0x110] sm:$0xff]
      %v3480 = vld [vmem:[%s3455 + $0x120] sm:$0xff]
      %v3481 = vld [vmem:[%s3455 + $0x128] sm:$0xff]
      %v3482 = vld [vmem:[%s3455 + $0x138] sm:$0xff]
      %v3483 = vld [vmem:[%s3455 + $0x140] sm:$0xff]
      %v3484 = vld [vmem:[%s3455 + $0x150] sm:$0xff]
      %v3485 = vld [vmem:[%s3455 + $0x158] sm:$0xff]
      %v3486 = vld [vmem:[%s3455 + $0x168] sm:$0xff]
      %v3487 = vld [vmem:[%s3455 + $0x170] sm:$0xff]
      %s3488 = scalar_lea.vmem [#allocation3], 480
      %v3489 = vld [vmem:[%s3488] sm:$0xff]
      %v3490 = vld [vmem:[%s3488 + $0x8] sm:$0xff]
      %v3491 = vld [vmem:[%s3488 + $0x18] sm:$0xff]
      %v3492 = vld [vmem:[%s3488 + $0x20] sm:$0xff]
      %v3493 = vld [vmem:[%s3488 + $0x30] sm:$0xff]
      %v3494 = vld [vmem:[%s3488 + $0x38] sm:$0xff]
      %v3495 = vld [vmem:[%s3488 + $0x48] sm:$0xff]
      %v3496 = vld [vmem:[%s3488 + $0x50] sm:$0xff]
      %v3497 = vld [vmem:[%s3488 + $0x60] sm:$0xff]
      %v3498 = vld [vmem:[%s3488 + $0x68] sm:$0xff]
      %v3499 = vld [vmem:[%s3488 + $0x78] sm:$0xff]
      %v3500 = vld [vmem:[%s3488 + $0x80] sm:$0xff]
      %v3501 = vld [vmem:[%s3488 + $0x90] sm:$0xff]
      %v3502 = vld [vmem:[%s3488 + $0x98] sm:$0xff]
      %v3503 = vld [vmem:[%s3488 + $0xa8] sm:$0xff]
      %v3504 = vld [vmem:[%s3488 + $0xb0] sm:$0xff]
      %v3505 = vld [vmem:[%s3488 + $0xc0] sm:$0xff]
      %v3506 = vld [vmem:[%s3488 + $0xc8] sm:$0xff]
      %v3507 = vld [vmem:[%s3488 + $0xd8] sm:$0xff]
      %v3508 = vld [vmem:[%s3488 + $0xe0] sm:$0xff]
      %v3509 = vld [vmem:[%s3488 + $0xf0] sm:$0xff]
      %v3510 = vld [vmem:[%s3488 + $0xf8] sm:$0xff]
      %v3511 = vld [vmem:[%s3488 + $0x108] sm:$0xff]
      %v3512 = vld [vmem:[%s3488 + $0x110] sm:$0xff]
      %v3513 = vld [vmem:[%s3488 + $0x120] sm:$0xff]
      %v3514 = vld [vmem:[%s3488 + $0x128] sm:$0xff]
      %v3515 = vld [vmem:[%s3488 + $0x138] sm:$0xff]
      %v3516 = vld [vmem:[%s3488 + $0x140] sm:$0xff]
      %v3517 = vld [vmem:[%s3488 + $0x150] sm:$0xff]
      %v3518 = vld [vmem:[%s3488 + $0x158] sm:$0xff]
      %v3519 = vld [vmem:[%s3488 + $0x168] sm:$0xff]
      %v3520 = vld [vmem:[%s3488 + $0x170] sm:$0xff]
      %s3521 = scalar_lea.vmem [#allocation3], 912
      %v3522 = vld [vmem:[%s3521] sm:$0xff]
      %v3523 = vld [vmem:[%s3521 + $0x8] sm:$0xff]
      %v3524 = vld [vmem:[%s3521 + $0x18] sm:$0xff]
      %v3525 = vld [vmem:[%s3521 + $0x20] sm:$0xff]
      %v3526 = vld [vmem:[%s3521 + $0x30] sm:$0xff]
      %v3527 = vld [vmem:[%s3521 + $0x38] sm:$0xff]
      %v3528 = vld [vmem:[%s3521 + $0x48] sm:$0xff]
      %v3529 = vld [vmem:[%s3521 + $0x50] sm:$0xff]
      %v3530 = vld [vmem:[%s3521 + $0x60] sm:$0xff]
      %v3531 = vld [vmem:[%s3521 + $0x68] sm:$0xff]
      %v3532 = vld [vmem:[%s3521 + $0x78] sm:$0xff]
      %v3533 = vld [vmem:[%s3521 + $0x80] sm:$0xff]
      %v3534 = vld [vmem:[%s3521 + $0x90] sm:$0xff]
      %v3535 = vld [vmem:[%s3521 + $0x98] sm:$0xff]
      %v3536 = vld [vmem:[%s3521 + $0xa8] sm:$0xff]
      %v3537 = vld [vmem:[%s3521 + $0xb0] sm:$0xff]
      %v3538 = vld [vmem:[%s3521 + $0xc0] sm:$0xff]
      %v3539 = vld [vmem:[%s3521 + $0xc8] sm:$0xff]
      %v3540 = vld [vmem:[%s3521 + $0xd8] sm:$0xff]
      %v3541 = vld [vmem:[%s3521 + $0xe0] sm:$0xff]
      %v3542 = vld [vmem:[%s3521 + $0xf0] sm:$0xff]
      %v3543 = vld [vmem:[%s3521 + $0xf8] sm:$0xff]
      %v3544 = vld [vmem:[%s3521 + $0x108] sm:$0xff]
      %v3545 = vld [vmem:[%s3521 + $0x110] sm:$0xff]
      %v3546 = vld [vmem:[%s3521 + $0x120] sm:$0xff]
      %v3547 = vld [vmem:[%s3521 + $0x128] sm:$0xff]
      %v3548 = vld [vmem:[%s3521 + $0x138] sm:$0xff]
      %v3549 = vld [vmem:[%s3521 + $0x140] sm:$0xff]
      %v3550 = vld [vmem:[%s3521 + $0x150] sm:$0xff]
      %v3551 = vld [vmem:[%s3521 + $0x158] sm:$0xff]
      %v3552 = vld [vmem:[%s3521 + $0x168] sm:$0xff]
      %v3553 = vld [vmem:[%s3521 + $0x170] sm:$0xff]
      %3586 = vrot.lane.b32.xlu0 %v3294, 4
      %v3587 = vpop.permute.xlu0 %3586
      %3588 = vrot.lane.b32.xlu0 %v3295, 4
      %v3589 = vpop.permute.xlu0 %3588
      %3590 = vrot.lane.b32.xlu0 %v3296, 4
      %v3591 = vpop.permute.xlu0 %3590
      %3592 = vrot.lane.b32.xlu0 %v3297, 4
      %v3593 = vpop.permute.xlu0 %3592
      %3594 = vrot.lane.b32.xlu0 %v3298, 4
      %v3595 = vpop.permute.xlu0 %3594
      %3596 = vrot.lane.b32.xlu0 %v3299, 4
      %v3597 = vpop.permute.xlu0 %3596
      %3598 = vrot.lane.b32.xlu0 %v3300, 4
      %v3599 = vpop.permute.xlu0 %3598
      %3600 = vrot.lane.b32.xlu0 %v3301, 4
      %v3601 = vpop.permute.xlu0 %3600
      %3602 = vrot.lane.b32.xlu0 %v3302, 4
      %v3603 = vpop.permute.xlu0 %3602
      %3604 = vrot.lane.b32.xlu0 %v3303, 4
      %v3605 = vpop.permute.xlu0 %3604
      %3606 = vrot.lane.b32.xlu0 %v3304, 4
      %v3607 = vpop.permute.xlu0 %3606
      %3608 = vrot.lane.b32.xlu0 %v3305, 4
      %v3609 = vpop.permute.xlu0 %3608
      %3610 = vrot.lane.b32.xlu0 %v3306, 4
      %v3611 = vpop.permute.xlu0 %3610
      %3612 = vrot.lane.b32.xlu0 %v3307, 4
      %v3613 = vpop.permute.xlu0 %3612
      %3614 = vrot.lane.b32.xlu0 %v3308, 4
      %v3615 = vpop.permute.xlu0 %3614
      %3616 = vrot.lane.b32.xlu0 %v3309, 4
      %v3617 = vpop.permute.xlu0 %3616
      %3618 = vrot.lane.b32.xlu0 %v3310, 4
      %v3619 = vpop.permute.xlu0 %3618
      %3620 = vrot.lane.b32.xlu0 %v3311, 4
      %v3621 = vpop.permute.xlu0 %3620
      %3622 = vrot.lane.b32.xlu0 %v3312, 4
      %v3623 = vpop.permute.xlu0 %3622
      %3624 = vrot.lane.b32.xlu0 %v3313, 4
      %v3625 = vpop.permute.xlu0 %3624
      %3626 = vrot.lane.b32.xlu0 %v3314, 4
      %v3627 = vpop.permute.xlu0 %3626
      %3628 = vrot.lane.b32.xlu0 %v3315, 4
      %v3629 = vpop.permute.xlu0 %3628
      %3630 = vrot.lane.b32.xlu0 %v3316, 4
      %v3631 = vpop.permute.xlu0 %3630
      %3632 = vrot.lane.b32.xlu0 %v3317, 4
      %v3633 = vpop.permute.xlu0 %3632
      %3634 = vrot.lane.b32.xlu0 %v3318, 4
      %v3635 = vpop.permute.xlu0 %3634
      %3636 = vrot.lane.b32.xlu0 %v3319, 4
      %v3637 = vpop.permute.xlu0 %3636
      %3638 = vrot.lane.b32.xlu0 %v3320, 4
      %v3639 = vpop.permute.xlu0 %3638
      %3640 = vrot.lane.b32.xlu0 %v3321, 4
      %v3641 = vpop.permute.xlu0 %3640
      %3642 = vrot.lane.b32.xlu0 %v3322, 4
      %v3643 = vpop.permute.xlu0 %3642
      %3644 = vrot.lane.b32.xlu0 %v3323, 4
      %v3645 = vpop.permute.xlu0 %3644
      %3646 = vrot.lane.b32.xlu0 %v3324, 4
      %v3647 = vpop.permute.xlu0 %3646
      %3648 = vrot.lane.b32.xlu0 %v3325, 4
      %v3649 = vpop.permute.xlu0 %3648
      %3714 = vrot.lane.b32.xlu0 %v3327, 8
      %v3715 = vpop.permute.xlu0 %3714
      %3716 = vrot.lane.b32.xlu0 %v3328, 8
      %v3717 = vpop.permute.xlu0 %3716
      %3718 = vrot.lane.b32.xlu0 %v3329, 8
      %v3719 = vpop.permute.xlu0 %3718
      %3720 = vrot.lane.b32.xlu0 %v3330, 8
      %v3721 = vpop.permute.xlu0 %3720
      %3722 = vrot.lane.b32.xlu0 %v3331, 8
      %v3723 = vpop.permute.xlu0 %3722
      %3724 = vrot.lane.b32.xlu0 %v3332, 8
      %v3725 = vpop.permute.xlu0 %3724
      %3726 = vrot.lane.b32.xlu0 %v3333, 8
      %v3727 = vpop.permute.xlu0 %3726
      %3728 = vrot.lane.b32.xlu0 %v3334, 8
      %v3729 = vpop.permute.xlu0 %3728
      %3730 = vrot.lane.b32.xlu0 %v3335, 8
      %v3731 = vpop.permute.xlu0 %3730
      %3732 = vrot.lane.b32.xlu0 %v3336, 8
      %v3733 = vpop.permute.xlu0 %3732
      %3734 = vrot.lane.b32.xlu0 %v3337, 8
      %v3735 = vpop.permute.xlu0 %3734
      %3736 = vrot.lane.b32.xlu0 %v3338, 8
      %v3737 = vpop.permute.xlu0 %3736
      %3738 = vrot.lane.b32.xlu0 %v3339, 8
      %v3739 = vpop.permute.xlu0 %3738
      %3740 = vrot.lane.b32.xlu0 %v3340, 8
      %v3741 = vpop.permute.xlu0 %3740
      %3742 = vrot.lane.b32.xlu0 %v3341, 8
      %v3743 = vpop.permute.xlu0 %3742
      %3744 = vrot.lane.b32.xlu0 %v3342, 8
      %v3745 = vpop.permute.xlu0 %3744
      %3746 = vrot.lane.b32.xlu0 %v3343, 8
      %v3747 = vpop.permute.xlu0 %3746
      %3748 = vrot.lane.b32.xlu0 %v3344, 8
      %v3749 = vpop.permute.xlu0 %3748
      %3750 = vrot.lane.b32.xlu0 %v3345, 8
      %v3751 = vpop.permute.xlu0 %3750
      %3752 = vrot.lane.b32.xlu0 %v3346, 8
      %v3753 = vpop.permute.xlu0 %3752
      %3754 = vrot.lane.b32.xlu0 %v3347, 8
      %v3755 = vpop.permute.xlu0 %3754
      %3756 = vrot.lane.b32.xlu0 %v3348, 8
      %v3757 = vpop.permute.xlu0 %3756
      %3758 = vrot.lane.b32.xlu0 %v3349, 8
      %v3759 = vpop.permute.xlu0 %3758
      %3760 = vrot.lane.b32.xlu0 %v3350, 8
      %v3761 = vpop.permute.xlu0 %3760
      %3762 = vrot.lane.b32.xlu0 %v3351, 8
      %v3763 = vpop.permute.xlu0 %3762
      %3764 = vrot.lane.b32.xlu0 %v3352, 8
      %v3765 = vpop.permute.xlu0 %3764
      %3766 = vrot.lane.b32.xlu0 %v3353, 8
      %v3767 = vpop.permute.xlu0 %3766
      %3768 = vrot.lane.b32.xlu0 %v3354, 8
      %v3769 = vpop.permute.xlu0 %3768
      %3770 = vrot.lane.b32.xlu0 %v3355, 8
      %v3771 = vpop.permute.xlu0 %3770
      %3772 = vrot.lane.b32.xlu0 %v3356, 8
      %v3773 = vpop.permute.xlu0 %3772
      %3774 = vrot.lane.b32.xlu0 %v3357, 8
      %v3775 = vpop.permute.xlu0 %3774
      %3776 = vrot.lane.b32.xlu0 %v3358, 8
      %v3777 = vpop.permute.xlu0 %3776
      %3842 = vrot.lane.b32.xlu0 %v3359, 12
      %v3843 = vpop.permute.xlu0 %3842
      %3844 = vrot.lane.b32.xlu0 %v3360, 12
      %v3845 = vpop.permute.xlu0 %3844
      %3846 = vrot.lane.b32.xlu0 %v3361, 12
      %v3847 = vpop.permute.xlu0 %3846
      %3848 = vrot.lane.b32.xlu0 %v3362, 12
      %v3849 = vpop.permute.xlu0 %3848
      %3850 = vrot.lane.b32.xlu0 %v3363, 12
      %v3851 = vpop.permute.xlu0 %3850
      %3852 = vrot.lane.b32.xlu0 %v3364, 12
      %v3853 = vpop.permute.xlu0 %3852
      %3854 = vrot.lane.b32.xlu0 %v3365, 12
      %v3855 = vpop.permute.xlu0 %3854
      %3856 = vrot.lane.b32.xlu0 %v3366, 12
      %v3857 = vpop.permute.xlu0 %3856
      %3858 = vrot.lane.b32.xlu0 %v3367, 12
      %v3859 = vpop.permute.xlu0 %3858
      %3860 = vrot.lane.b32.xlu0 %v3368, 12
      %v3861 = vpop.permute.xlu0 %3860
      %3862 = vrot.lane.b32.xlu0 %v3369, 12
      %v3863 = vpop.permute.xlu0 %3862
      %3864 = vrot.lane.b32.xlu0 %v3370, 12
      %v3865 = vpop.permute.xlu0 %3864
      %3866 = vrot.lane.b32.xlu0 %v3371, 12
      %v3867 = vpop.permute.xlu0 %3866
      %3868 = vrot.lane.b32.xlu0 %v3372, 12
      %v3869 = vpop.permute.xlu0 %3868
      %3870 = vrot.lane.b32.xlu0 %v3373, 12
      %v3871 = vpop.permute.xlu0 %3870
      %3872 = vrot.lane.b32.xlu0 %v3374, 12
      %v3873 = vpop.permute.xlu0 %3872
      %3874 = vrot.lane.b32.xlu0 %v3375, 12
      %v3875 = vpop.permute.xlu0 %3874
      %3876 = vrot.lane.b32.xlu0 %v3376, 12
      %v3877 = vpop.permute.xlu0 %3876
      %3878 = vrot.lane.b32.xlu0 %v3377, 12
      %v3879 = vpop.permute.xlu0 %3878
      %3880 = vrot.lane.b32.xlu0 %v3378, 12
      %v3881 = vpop.permute.xlu0 %3880
      %3882 = vrot.lane.b32.xlu0 %v3379, 12
      %v3883 = vpop.permute.xlu0 %3882
      %3884 = vrot.lane.b32.xlu0 %v3380, 12
      %v3885 = vpop.permute.xlu0 %3884
      %3886 = vrot.lane.b32.xlu0 %v3381, 12
      %v3887 = vpop.permute.xlu0 %3886
      %3888 = vrot.lane.b32.xlu0 %v3382, 12
      %v3889 = vpop.permute.xlu0 %3888
      %3890 = vrot.lane.b32.xlu0 %v3383, 12
      %v3891 = vpop.permute.xlu0 %3890
      %3892 = vrot.lane.b32.xlu0 %v3384, 12
      %v3893 = vpop.permute.xlu0 %3892
      %3894 = vrot.lane.b32.xlu0 %v3385, 12
      %v3895 = vpop.permute.xlu0 %3894
      %3896 = vrot.lane.b32.xlu0 %v3386, 12
      %v3897 = vpop.permute.xlu0 %3896
      %3898 = vrot.lane.b32.xlu0 %v3387, 12
      %v3899 = vpop.permute.xlu0 %3898
      %3900 = vrot.lane.b32.xlu0 %v3388, 12
      %v3901 = vpop.permute.xlu0 %3900
      %3902 = vrot.lane.b32.xlu0 %v3389, 12
      %v3903 = vpop.permute.xlu0 %3902
      %3904 = vrot.lane.b32.xlu0 %v3390, 12
      %v3905 = vpop.permute.xlu0 %3904
      %3970 = vrot.lane.b32.xlu0 %v3391, 16
      %v3971 = vpop.permute.xlu0 %3970
      %3972 = vrot.lane.b32.xlu0 %v3392, 16
      %v3973 = vpop.permute.xlu0 %3972
      %3974 = vrot.lane.b32.xlu0 %v3393, 16
      %v3975 = vpop.permute.xlu0 %3974
      %3976 = vrot.lane.b32.xlu0 %v3394, 16
      %v3977 = vpop.permute.xlu0 %3976
      %3978 = vrot.lane.b32.xlu0 %v3395, 16
      %v3979 = vpop.permute.xlu0 %3978
      %3980 = vrot.lane.b32.xlu0 %v3396, 16
      %v3981 = vpop.permute.xlu0 %3980
      %3982 = vrot.lane.b32.xlu0 %v3397, 16
      %v3983 = vpop.permute.xlu0 %3982
      %3984 = vrot.lane.b32.xlu0 %v3398, 16
      %v3985 = vpop.permute.xlu0 %3984
      %3986 = vrot.lane.b32.xlu0 %v3399, 16
      %v3987 = vpop.permute.xlu0 %3986
      %3988 = vrot.lane.b32.xlu0 %v3400, 16
      %v3989 = vpop.permute.xlu0 %3988
      %3990 = vrot.lane.b32.xlu0 %v3401, 16
      %v3991 = vpop.permute.xlu0 %3990
      %3992 = vrot.lane.b32.xlu0 %v3402, 16
      %v3993 = vpop.permute.xlu0 %3992
      %3994 = vrot.lane.b32.xlu0 %v3403, 16
      %v3995 = vpop.permute.xlu0 %3994
      %3996 = vrot.lane.b32.xlu0 %v3404, 16
      %v3997 = vpop.permute.xlu0 %3996
      %3998 = vrot.lane.b32.xlu0 %v3405, 16
      %v3999 = vpop.permute.xlu0 %3998
      %4000 = vrot.lane.b32.xlu0 %v3406, 16
      %v4001 = vpop.permute.xlu0 %4000
      %4002 = vrot.lane.b32.xlu0 %v3407, 16
      %v4003 = vpop.permute.xlu0 %4002
      %4004 = vrot.lane.b32.xlu0 %v3408, 16
      %v4005 = vpop.permute.xlu0 %4004
      %4006 = vrot.lane.b32.xlu0 %v3409, 16
      %v4007 = vpop.permute.xlu0 %4006
      %4008 = vrot.lane.b32.xlu0 %v3410, 16
      %v4009 = vpop.permute.xlu0 %4008
      %4010 = vrot.lane.b32.xlu0 %v3411, 16
      %v4011 = vpop.permute.xlu0 %4010
      %4012 = vrot.lane.b32.xlu0 %v3412, 16
      %v4013 = vpop.permute.xlu0 %4012
      %4014 = vrot.lane.b32.xlu0 %v3413, 16
      %v4015 = vpop.permute.xlu0 %4014
      %4016 = vrot.lane.b32.xlu0 %v3414, 16
      %v4017 = vpop.permute.xlu0 %4016
      %4018 = vrot.lane.b32.xlu0 %v3415, 16
      %v4019 = vpop.permute.xlu0 %4018
      %4020 = vrot.lane.b32.xlu0 %v3416, 16
      %v4021 = vpop.permute.xlu0 %4020
      %4022 = vrot.lane.b32.xlu0 %v3417, 16
      %v4023 = vpop.permute.xlu0 %4022
      %4024 = vrot.lane.b32.xlu0 %v3418, 16
      %v4025 = vpop.permute.xlu0 %4024
      %4026 = vrot.lane.b32.xlu0 %v3419, 16
      %v4027 = vpop.permute.xlu0 %4026
      %4028 = vrot.lane.b32.xlu0 %v3420, 16
      %v4029 = vpop.permute.xlu0 %4028
      %4030 = vrot.lane.b32.xlu0 %v3421, 16
      %v4031 = vpop.permute.xlu0 %4030
      %4032 = vrot.lane.b32.xlu0 %v3422, 16
      %v4033 = vpop.permute.xlu0 %4032
      %4098 = vrot.lane.b32.xlu0 %v3423, 20
      %v4099 = vpop.permute.xlu0 %4098
      %4100 = vrot.lane.b32.xlu0 %v3424, 20
      %v4101 = vpop.permute.xlu0 %4100
      %4102 = vrot.lane.b32.xlu0 %v3425, 20
      %v4103 = vpop.permute.xlu0 %4102
      %4104 = vrot.lane.b32.xlu0 %v3426, 20
      %v4105 = vpop.permute.xlu0 %4104
      %4106 = vrot.lane.b32.xlu0 %v3427, 20
      %v4107 = vpop.permute.xlu0 %4106
      %4108 = vrot.lane.b32.xlu0 %v3428, 20
      %v4109 = vpop.permute.xlu0 %4108
      %4110 = vrot.lane.b32.xlu0 %v3429, 20
      %v4111 = vpop.permute.xlu0 %4110
      %4112 = vrot.lane.b32.xlu0 %v3430, 20
      %v4113 = vpop.permute.xlu0 %4112
      %4114 = vrot.lane.b32.xlu0 %v3431, 20
      %v4115 = vpop.permute.xlu0 %4114
      %4116 = vrot.lane.b32.xlu0 %v3432, 20
      %v4117 = vpop.permute.xlu0 %4116
      %4118 = vrot.lane.b32.xlu0 %v3433, 20
      %v4119 = vpop.permute.xlu0 %4118
      %4120 = vrot.lane.b32.xlu0 %v3434, 20
      %v4121 = vpop.permute.xlu0 %4120
      %4122 = vrot.lane.b32.xlu0 %v3435, 20
      %v4123 = vpop.permute.xlu0 %4122
      %4124 = vrot.lane.b32.xlu0 %v3436, 20
      %v4125 = vpop.permute.xlu0 %4124
      %4126 = vrot.lane.b32.xlu0 %v3437, 20
      %v4127 = vpop.permute.xlu0 %4126
      %4128 = vrot.lane.b32.xlu0 %v3438, 20
      %v4129 = vpop.permute.xlu0 %4128
      %4130 = vrot.lane.b32.xlu0 %v3439, 20
      %v4131 = vpop.permute.xlu0 %4130
      %4132 = vrot.lane.b32.xlu0 %v3440, 20
      %v4133 = vpop.permute.xlu0 %4132
      %4134 = vrot.lane.b32.xlu0 %v3441, 20
      %v4135 = vpop.permute.xlu0 %4134
      %4136 = vrot.lane.b32.xlu0 %v3442, 20
      %v4137 = vpop.permute.xlu0 %4136
      %4138 = vrot.lane.b32.xlu0 %v3443, 20
      %v4139 = vpop.permute.xlu0 %4138
      %4140 = vrot.lane.b32.xlu0 %v3444, 20
      %v4141 = vpop.permute.xlu0 %4140
      %4142 = vrot.lane.b32.xlu0 %v3445, 20
      %v4143 = vpop.permute.xlu0 %4142
      %4144 = vrot.lane.b32.xlu0 %v3446, 20
      %v4145 = vpop.permute.xlu0 %4144
      %4146 = vrot.lane.b32.xlu0 %v3447, 20
      %v4147 = vpop.permute.xlu0 %4146
      %4148 = vrot.lane.b32.xlu0 %v3448, 20
      %v4149 = vpop.permute.xlu0 %4148
      %4150 = vrot.lane.b32.xlu0 %v3449, 20
      %v4151 = vpop.permute.xlu0 %4150
      %4152 = vrot.lane.b32.xlu0 %v3450, 20
      %v4153 = vpop.permute.xlu0 %4152
      %4154 = vrot.lane.b32.xlu0 %v3451, 20
      %v4155 = vpop.permute.xlu0 %4154
      %4156 = vrot.lane.b32.xlu0 %v3452, 20
      %v4157 = vpop.permute.xlu0 %4156
      %4158 = vrot.lane.b32.xlu0 %v3453, 20
      %v4159 = vpop.permute.xlu0 %4158
      %4160 = vrot.lane.b32.xlu0 %v3454, 20
      %v4161 = vpop.permute.xlu0 %4160
      %4226 = vrot.lane.b32.xlu0 %v3456, 24
      %v4227 = vpop.permute.xlu0 %4226
      %4228 = vrot.lane.b32.xlu0 %v3457, 24
      %v4229 = vpop.permute.xlu0 %4228
      %4230 = vrot.lane.b32.xlu0 %v3458, 24
      %v4231 = vpop.permute.xlu0 %4230
      %4232 = vrot.lane.b32.xlu0 %v3459, 24
      %v4233 = vpop.permute.xlu0 %4232
      %4234 = vrot.lane.b32.xlu0 %v3460, 24
      %v4235 = vpop.permute.xlu0 %4234
      %4236 = vrot.lane.b32.xlu0 %v3461, 24
      %v4237 = vpop.permute.xlu0 %4236
      %4238 = vrot.lane.b32.xlu0 %v3462, 24
      %v4239 = vpop.permute.xlu0 %4238
      %4240 = vrot.lane.b32.xlu0 %v3463, 24
      %v4241 = vpop.permute.xlu0 %4240
      %4242 = vrot.lane.b32.xlu0 %v3464, 24
      %v4243 = vpop.permute.xlu0 %4242
      %4244 = vrot.lane.b32.xlu0 %v3465, 24
      %v4245 = vpop.permute.xlu0 %4244
      %4246 = vrot.lane.b32.xlu0 %v3466, 24
      %v4247 = vpop.permute.xlu0 %4246
      %4248 = vrot.lane.b32.xlu0 %v3467, 24
      %v4249 = vpop.permute.xlu0 %4248
      %4250 = vrot.lane.b32.xlu0 %v3468, 24
      %v4251 = vpop.permute.xlu0 %4250
      %4252 = vrot.lane.b32.xlu0 %v3469, 24
      %v4253 = vpop.permute.xlu0 %4252
      %4254 = vrot.lane.b32.xlu0 %v3470, 24
      %v4255 = vpop.permute.xlu0 %4254
      %4256 = vrot.lane.b32.xlu0 %v3471, 24
      %v4257 = vpop.permute.xlu0 %4256
      %4258 = vrot.lane.b32.xlu0 %v3472, 24
      %v4259 = vpop.permute.xlu0 %4258
      %4260 = vrot.lane.b32.xlu0 %v3473, 24
      %v4261 = vpop.permute.xlu0 %4260
      %4262 = vrot.lane.b32.xlu0 %v3474, 24
      %v4263 = vpop.permute.xlu0 %4262
      %4264 = vrot.lane.b32.xlu0 %v3475, 24
      %v4265 = vpop.permute.xlu0 %4264
      %4266 = vrot.lane.b32.xlu0 %v3476, 24
      %v4267 = vpop.permute.xlu0 %4266
      %4268 = vrot.lane.b32.xlu0 %v3477, 24
      %v4269 = vpop.permute.xlu0 %4268
      %4270 = vrot.lane.b32.xlu0 %v3478, 24
      %v4271 = vpop.permute.xlu0 %4270
      %4272 = vrot.lane.b32.xlu0 %v3479, 24
      %v4273 = vpop.permute.xlu0 %4272
      %4274 = vrot.lane.b32.xlu0 %v3480, 24
      %v4275 = vpop.permute.xlu0 %4274
      %4276 = vrot.lane.b32.xlu0 %v3481, 24
      %v4277 = vpop.permute.xlu0 %4276
      %4278 = vrot.lane.b32.xlu0 %v3482, 24
      %v4279 = vpop.permute.xlu0 %4278
      %4280 = vrot.lane.b32.xlu0 %v3483, 24
      %v4281 = vpop.permute.xlu0 %4280
      %4282 = vrot.lane.b32.xlu0 %v3484, 24
      %v4283 = vpop.permute.xlu0 %4282
      %4284 = vrot.lane.b32.xlu0 %v3485, 24
      %v4285 = vpop.permute.xlu0 %4284
      %4286 = vrot.lane.b32.xlu0 %v3486, 24
      %v4287 = vpop.permute.xlu0 %4286
      %4288 = vrot.lane.b32.xlu0 %v3487, 24
      %v4289 = vpop.permute.xlu0 %4288
      %4354 = vrot.lane.b32.xlu0 %v3489, 28
      %v4355 = vpop.permute.xlu0 %4354
      %4356 = vrot.lane.b32.xlu0 %v3490, 28
      %v4357 = vpop.permute.xlu0 %4356
      %4358 = vrot.lane.b32.xlu0 %v3491, 28
      %v4359 = vpop.permute.xlu0 %4358
      %4360 = vrot.lane.b32.xlu0 %v3492, 28
      %v4361 = vpop.permute.xlu0 %4360
      %4362 = vrot.lane.b32.xlu0 %v3493, 28
      %v4363 = vpop.permute.xlu0 %4362
      %4364 = vrot.lane.b32.xlu0 %v3494, 28
      %v4365 = vpop.permute.xlu0 %4364
      %4366 = vrot.lane.b32.xlu0 %v3495, 28
      %v4367 = vpop.permute.xlu0 %4366
      %4368 = vrot.lane.b32.xlu0 %v3496, 28
      %v4369 = vpop.permute.xlu0 %4368
      %4370 = vrot.lane.b32.xlu0 %v3497, 28
      %v4371 = vpop.permute.xlu0 %4370
      %4372 = vrot.lane.b32.xlu0 %v3498, 28
      %v4373 = vpop.permute.xlu0 %4372
      %4374 = vrot.lane.b32.xlu0 %v3499, 28
      %v4375 = vpop.permute.xlu0 %4374
      %4376 = vrot.lane.b32.xlu0 %v3500, 28
      %v4377 = vpop.permute.xlu0 %4376
      %4378 = vrot.lane.b32.xlu0 %v3501, 28
      %v4379 = vpop.permute.xlu0 %4378
      %4380 = vrot.lane.b32.xlu0 %v3502, 28
      %v4381 = vpop.permute.xlu0 %4380
      %4382 = vrot.lane.b32.xlu0 %v3503, 28
      %v4383 = vpop.permute.xlu0 %4382
      %4384 = vrot.lane.b32.xlu0 %v3504, 28
      %v4385 = vpop.permute.xlu0 %4384
      %4386 = vrot.lane.b32.xlu0 %v3505, 28
      %v4387 = vpop.permute.xlu0 %4386
      %4388 = vrot.lane.b32.xlu0 %v3506, 28
      %v4389 = vpop.permute.xlu0 %4388
      %4390 = vrot.lane.b32.xlu0 %v3507, 28
      %v4391 = vpop.permute.xlu0 %4390
      %4392 = vrot.lane.b32.xlu0 %v3508, 28
      %v4393 = vpop.permute.xlu0 %4392
      %4394 = vrot.lane.b32.xlu0 %v3509, 28
      %v4395 = vpop.permute.xlu0 %4394
      %4396 = vrot.lane.b32.xlu0 %v3510, 28
      %v4397 = vpop.permute.xlu0 %4396
      %4398 = vrot.lane.b32.xlu0 %v3511, 28
      %v4399 = vpop.permute.xlu0 %4398
      %4400 = vrot.lane.b32.xlu0 %v3512, 28
      %v4401 = vpop.permute.xlu0 %4400
      %4402 = vrot.lane.b32.xlu0 %v3513, 28
      %v4403 = vpop.permute.xlu0 %4402
      %4404 = vrot.lane.b32.xlu0 %v3514, 28
      %v4405 = vpop.permute.xlu0 %4404
      %4406 = vrot.lane.b32.xlu0 %v3515, 28
      %v4407 = vpop.permute.xlu0 %4406
      %4408 = vrot.lane.b32.xlu0 %v3516, 28
      %v4409 = vpop.permute.xlu0 %4408
      %4410 = vrot.lane.b32.xlu0 %v3517, 28
      %v4411 = vpop.permute.xlu0 %4410
      %4412 = vrot.lane.b32.xlu0 %v3518, 28
      %v4413 = vpop.permute.xlu0 %4412
      %4414 = vrot.lane.b32.xlu0 %v3519, 28
      %v4415 = vpop.permute.xlu0 %4414
      %4416 = vrot.lane.b32.xlu0 %v3520, 28
      %v4417 = vpop.permute.xlu0 %4416
      %4482 = vrot.lane.b32.xlu0 %v3522, 32
      %v4483 = vpop.permute.xlu0 %4482
      %4484 = vrot.lane.b32.xlu0 %v3523, 32
      %v4485 = vpop.permute.xlu0 %4484
      %4486 = vrot.lane.b32.xlu0 %v3524, 32
      %v4487 = vpop.permute.xlu0 %4486
      %4488 = vrot.lane.b32.xlu0 %v3525, 32
      %v4489 = vpop.permute.xlu0 %4488
      %4490 = vrot.lane.b32.xlu0 %v3526, 32
      %v4491 = vpop.permute.xlu0 %4490
      %4492 = vrot.lane.b32.xlu0 %v3527, 32
      %v4493 = vpop.permute.xlu0 %4492
      %4494 = vrot.lane.b32.xlu0 %v3528, 32
      %v4495 = vpop.permute.xlu0 %4494
      %4496 = vrot.lane.b32.xlu0 %v3529, 32
      %v4497 = vpop.permute.xlu0 %4496
      %4498 = vrot.lane.b32.xlu0 %v3530, 32
      %v4499 = vpop.permute.xlu0 %4498
      %4500 = vrot.lane.b32.xlu0 %v3531, 32
      %v4501 = vpop.permute.xlu0 %4500
      %4502 = vrot.lane.b32.xlu0 %v3532, 32
      %v4503 = vpop.permute.xlu0 %4502
      %4504 = vrot.lane.b32.xlu0 %v3533, 32
      %v4505 = vpop.permute.xlu0 %4504
      %4506 = vrot.lane.b32.xlu0 %v3534, 32
      %v4507 = vpop.permute.xlu0 %4506
      %4508 = vrot.lane.b32.xlu0 %v3535, 32
      %v4509 = vpop.permute.xlu0 %4508
      %4510 = vrot.lane.b32.xlu0 %v3536, 32
      %v4511 = vpop.permute.xlu0 %4510
      %4512 = vrot.lane.b32.xlu0 %v3537, 32
      %v4513 = vpop.permute.xlu0 %4512
      %4514 = vrot.lane.b32.xlu0 %v3538, 32
      %v4515 = vpop.permute.xlu0 %4514
      %4516 = vrot.lane.b32.xlu0 %v3539, 32
      %v4517 = vpop.permute.xlu0 %4516
      %4518 = vrot.lane.b32.xlu0 %v3540, 32
      %v4519 = vpop.permute.xlu0 %4518
      %4520 = vrot.lane.b32.xlu0 %v3541, 32
      %v4521 = vpop.permute.xlu0 %4520
      %4522 = vrot.lane.b32.xlu0 %v3542, 32
      %v4523 = vpop.permute.xlu0 %4522
      %4524 = vrot.lane.b32.xlu0 %v3543, 32
      %v4525 = vpop.permute.xlu0 %4524
      %4526 = vrot.lane.b32.xlu0 %v3544, 32
      %v4527 = vpop.permute.xlu0 %4526
      %4528 = vrot.lane.b32.xlu0 %v3545, 32
      %v4529 = vpop.permute.xlu0 %4528
      %4530 = vrot.lane.b32.xlu0 %v3546, 32
      %v4531 = vpop.permute.xlu0 %4530
      %4532 = vrot.lane.b32.xlu0 %v3547, 32
      %v4533 = vpop.permute.xlu0 %4532
      %4534 = vrot.lane.b32.xlu0 %v3548, 32
      %v4535 = vpop.permute.xlu0 %4534
      %4536 = vrot.lane.b32.xlu0 %v3549, 32
      %v4537 = vpop.permute.xlu0 %4536
      %4538 = vrot.lane.b32.xlu0 %v3550, 32
      %v4539 = vpop.permute.xlu0 %4538
      %4540 = vrot.lane.b32.xlu0 %v3551, 32
      %v4541 = vpop.permute.xlu0 %4540
      %4542 = vrot.lane.b32.xlu0 %v3552, 32
      %v4543 = vpop.permute.xlu0 %4542
      %4544 = vrot.lane.b32.xlu0 %v3553, 32
      %v4545 = vpop.permute.xlu0 %4544
      %v4578 = vsel %vm461, %v3261, %v3587
      %v4579 = vsel %vm461, %v3262, %v3589
      %v4580 = vsel %vm461, %v3263, %v3591
      %v4581 = vsel %vm461, %v3264, %v3593
      %v4582 = vsel %vm461, %v3265, %v3595
      %v4583 = vsel %vm461, %v3266, %v3597
      %v4584 = vsel %vm461, %v3267, %v3599
      %v4585 = vsel %vm461, %v3268, %v3601
      %v4586 = vsel %vm461, %v3269, %v3603
      %v4587 = vsel %vm461, %v3270, %v3605
      %v4588 = vsel %vm461, %v3271, %v3607
      %v4589 = vsel %vm461, %v3272, %v3609
      %v4590 = vsel %vm461, %v3273, %v3611
      %v4591 = vsel %vm461, %v3274, %v3613
      %v4592 = vsel %vm461, %v3275, %v3615
      %v4593 = vsel %vm461, %v3276, %v3617
      %v4594 = vsel %vm461, %v3277, %v3619
      %v4595 = vsel %vm461, %v3278, %v3621
      %v4596 = vsel %vm461, %v3279, %v3623
      %v4597 = vsel %vm461, %v3280, %v3625
      %v4598 = vsel %vm461, %v3281, %v3627
      %v4599 = vsel %vm461, %v3282, %v3629
      %v4600 = vsel %vm461, %v3283, %v3631
      %v4601 = vsel %vm461, %v3284, %v3633
      %v4602 = vsel %vm461, %v3285, %v3635
      %v4603 = vsel %vm461, %v3286, %v3637
      %v4604 = vsel %vm461, %v3287, %v3639
      %v4605 = vsel %vm461, %v3288, %v3641
      %v4606 = vsel %vm461, %v3289, %v3643
      %v4607 = vsel %vm461, %v3290, %v3645
      %v4608 = vsel %vm461, %v3291, %v3647
      %v4609 = vsel %vm461, %v3292, %v3649
      %v4610 = vsel %vm1236, %v4578, %v3715
      %v4611 = vsel %vm1236, %v4579, %v3717
      %v4612 = vsel %vm1236, %v4580, %v3719
      %v4613 = vsel %vm1236, %v4581, %v3721
      %v4614 = vsel %vm1236, %v4582, %v3723
      %v4615 = vsel %vm1236, %v4583, %v3725
      %v4616 = vsel %vm1236, %v4584, %v3727
      %v4617 = vsel %vm1236, %v4585, %v3729
      %v4618 = vsel %vm1236, %v4586, %v3731
      %v4619 = vsel %vm1236, %v4587, %v3733
      %v4620 = vsel %vm1236, %v4588, %v3735
      %v4621 = vsel %vm1236, %v4589, %v3737
      %v4622 = vsel %vm1236, %v4590, %v3739
      %v4623 = vsel %vm1236, %v4591, %v3741
      %v4624 = vsel %vm1236, %v4592, %v3743
      %v4625 = vsel %vm1236, %v4593, %v3745
      %v4626 = vsel %vm1236, %v4594, %v3747
      %v4627 = vsel %vm1236, %v4595, %v3749
      %v4628 = vsel %vm1236, %v4596, %v3751
      %v4629 = vsel %vm1236, %v4597, %v3753
      %v4630 = vsel %vm1236, %v4598, %v3755
      %v4631 = vsel %vm1236, %v4599, %v3757
      %v4632 = vsel %vm1236, %v4600, %v3759
      %v4633 = vsel %vm1236, %v4601, %v3761
      %v4634 = vsel %vm1236, %v4602, %v3763
      %v4635 = vsel %vm1236, %v4603, %v3765
      %v4636 = vsel %vm1236, %v4604, %v3767
      %v4637 = vsel %vm1236, %v4605, %v3769
      %v4638 = vsel %vm1236, %v4606, %v3771
      %v4639 = vsel %vm1236, %v4607, %v3773
      %v4640 = vsel %vm1236, %v4608, %v3775
      %v4641 = vsel %vm1236, %v4609, %v3777
      %v4642 = vsel %vm3058, %v4610, %v3843
      %v4643 = vsel %vm3058, %v4611, %v3845
      %v4644 = vsel %vm3058, %v4612, %v3847
      %v4645 = vsel %vm3058, %v4613, %v3849
      %v4646 = vsel %vm3058, %v4614, %v3851
      %v4647 = vsel %vm3058, %v4615, %v3853
      %v4648 = vsel %vm3058, %v4616, %v3855
      %v4649 = vsel %vm3058, %v4617, %v3857
      %v4650 = vsel %vm3058, %v4618, %v3859
      %v4651 = vsel %vm3058, %v4619, %v3861
      %v4652 = vsel %vm3058, %v4620, %v3863
      %v4653 = vsel %vm3058, %v4621, %v3865
      %v4654 = vsel %vm3058, %v4622, %v3867
      %v4655 = vsel %vm3058, %v4623, %v3869
      %v4656 = vsel %vm3058, %v4624, %v3871
      %v4657 = vsel %vm3058, %v4625, %v3873
      %v4658 = vsel %vm3058, %v4626, %v3875
      %v4659 = vsel %vm3058, %v4627, %v3877
      %v4660 = vsel %vm3058, %v4628, %v3879
      %v4661 = vsel %vm3058, %v4629, %v3881
      %v4662 = vsel %vm3058, %v4630, %v3883
      %v4663 = vsel %vm3058, %v4631, %v3885
      %v4664 = vsel %vm3058, %v4632, %v3887
      %v4665 = vsel %vm3058, %v4633, %v3889
      %v4666 = vsel %vm3058, %v4634, %v3891
      %v4667 = vsel %vm3058, %v4635, %v3893
      %v4668 = vsel %vm3058, %v4636, %v3895
      %v4669 = vsel %vm3058, %v4637, %v3897
      %v4670 = vsel %vm3058, %v4638, %v3899
      %v4671 = vsel %vm3058, %v4639, %v3901
      %v4672 = vsel %vm3058, %v4640, %v3903
      %v4673 = vsel %vm3058, %v4641, %v3905
      %v4674 = vsel %vm3091, %v4642, %v3971
      %v4675 = vsel %vm3091, %v4643, %v3973
      %v4676 = vsel %vm3091, %v4644, %v3975
      %v4677 = vsel %vm3091, %v4645, %v3977
      %v4678 = vsel %vm3091, %v4646, %v3979
      %v4679 = vsel %vm3091, %v4647, %v3981
      %v4680 = vsel %vm3091, %v4648, %v3983
      %v4681 = vsel %vm3091, %v4649, %v3985
      %v4682 = vsel %vm3091, %v4650, %v3987
      %v4683 = vsel %vm3091, %v4651, %v3989
      %v4684 = vsel %vm3091, %v4652, %v3991
      %v4685 = vsel %vm3091, %v4653, %v3993
      %v4686 = vsel %vm3091, %v4654, %v3995
      %v4687 = vsel %vm3091, %v4655, %v3997
      %v4688 = vsel %vm3091, %v4656, %v3999
      %v4689 = vsel %vm3091, %v4657, %v4001
      %v4690 = vsel %vm3091, %v4658, %v4003
      %v4691 = vsel %vm3091, %v4659, %v4005
      %v4692 = vsel %vm3091, %v4660, %v4007
      %v4693 = vsel %vm3091, %v4661, %v4009
      %v4694 = vsel %vm3091, %v4662, %v4011
      %v4695 = vsel %vm3091, %v4663, %v4013
      %v4696 = vsel %vm3091, %v4664, %v4015
      %v4697 = vsel %vm3091, %v4665, %v4017
      %v4698 = vsel %vm3091, %v4666, %v4019
      %v4699 = vsel %vm3091, %v4667, %v4021
      %v4700 = vsel %vm3091, %v4668, %v4023
      %v4701 = vsel %vm3091, %v4669, %v4025
      %v4702 = vsel %vm3091, %v4670, %v4027
      %v4703 = vsel %vm3091, %v4671, %v4029
      %v4704 = vsel %vm3091, %v4672, %v4031
      %v4705 = vsel %vm3091, %v4673, %v4033
      %v4706 = vsel %vm3124, %v4674, %v4099
      %v4707 = vsel %vm3124, %v4675, %v4101
      %v4708 = vsel %vm3124, %v4676, %v4103
      %v4709 = vsel %vm3124, %v4677, %v4105
      %v4710 = vsel %vm3124, %v4678, %v4107
      %v4711 = vsel %vm3124, %v4679, %v4109
      %v4712 = vsel %vm3124, %v4680, %v4111
      %v4713 = vsel %vm3124, %v4681, %v4113
      %v4714 = vsel %vm3124, %v4682, %v4115
      %v4715 = vsel %vm3124, %v4683, %v4117
      %v4716 = vsel %vm3124, %v4684, %v4119
      %v4717 = vsel %vm3124, %v4685, %v4121
      %v4718 = vsel %vm3124, %v4686, %v4123
      %v4719 = vsel %vm3124, %v4687, %v4125
      %v4720 = vsel %vm3124, %v4688, %v4127
      %v4721 = vsel %vm3124, %v4689, %v4129
      %v4722 = vsel %vm3124, %v4690, %v4131
      %v4723 = vsel %vm3124, %v4691, %v4133
      %v4724 = vsel %vm3124, %v4692, %v4135
      %v4725 = vsel %vm3124, %v4693, %v4137
      %v4726 = vsel %vm3124, %v4694, %v4139
      %v4727 = vsel %vm3124, %v4695, %v4141
      %v4728 = vsel %vm3124, %v4696, %v4143
      %v4729 = vsel %vm3124, %v4697, %v4145
      %v4730 = vsel %vm3124, %v4698, %v4147
      %v4731 = vsel %vm3124, %v4699, %v4149
      %v4732 = vsel %vm3124, %v4700, %v4151
      %v4733 = vsel %vm3124, %v4701, %v4153
      %v4734 = vsel %vm3124, %v4702, %v4155
      %v4735 = vsel %vm3124, %v4703, %v4157
      %v4736 = vsel %vm3124, %v4704, %v4159
      %v4737 = vsel %vm3124, %v4705, %v4161
      %v4738 = vsel %vm3157, %v4706, %v4227
      %v4739 = vsel %vm3157, %v4707, %v4229
      %v4740 = vsel %vm3157, %v4708, %v4231
      %v4741 = vsel %vm3157, %v4709, %v4233
      %v4742 = vsel %vm3157, %v4710, %v4235
      %v4743 = vsel %vm3157, %v4711, %v4237
      %v4744 = vsel %vm3157, %v4712, %v4239
      %v4745 = vsel %vm3157, %v4713, %v4241
      %v4746 = vsel %vm3157, %v4714, %v4243
      %v4747 = vsel %vm3157, %v4715, %v4245
      %v4748 = vsel %vm3157, %v4716, %v4247
      %v4749 = vsel %vm3157, %v4717, %v4249
      %v4750 = vsel %vm3157, %v4718, %v4251
      %v4751 = vsel %vm3157, %v4719, %v4253
      %v4752 = vsel %vm3157, %v4720, %v4255
      %v4753 = vsel %vm3157, %v4721, %v4257
      %v4754 = vsel %vm3157, %v4722, %v4259
      %v4755 = vsel %vm3157, %v4723, %v4261
      %v4756 = vsel %vm3157, %v4724, %v4263
      %v4757 = vsel %vm3157, %v4725, %v4265
      %v4758 = vsel %vm3157, %v4726, %v4267
      %v4759 = vsel %vm3157, %v4727, %v4269
      %v4760 = vsel %vm3157, %v4728, %v4271
      %v4761 = vsel %vm3157, %v4729, %v4273
      %v4762 = vsel %vm3157, %v4730, %v4275
      %v4763 = vsel %vm3157, %v4731, %v4277
      %v4764 = vsel %vm3157, %v4732, %v4279
      %v4765 = vsel %vm3157, %v4733, %v4281
      %v4766 = vsel %vm3157, %v4734, %v4283
      %v4767 = vsel %vm3157, %v4735, %v4285
      %v4768 = vsel %vm3157, %v4736, %v4287
      %v4769 = vsel %vm3157, %v4737, %v4289
      %v4770 = vsel %vm3190, %v4738, %v4355
      %v4771 = vsel %vm3190, %v4739, %v4357
      %v4772 = vsel %vm3190, %v4740, %v4359
      %v4773 = vsel %vm3190, %v4741, %v4361
      %v4774 = vsel %vm3190, %v4742, %v4363
      %v4775 = vsel %vm3190, %v4743, %v4365
      %v4776 = vsel %vm3190, %v4744, %v4367
      %v4777 = vsel %vm3190, %v4745, %v4369
      %v4778 = vsel %vm3190, %v4746, %v4371
      %v4779 = vsel %vm3190, %v4747, %v4373
      %v4780 = vsel %vm3190, %v4748, %v4375
      %v4781 = vsel %vm3190, %v4749, %v4377
      %v4782 = vsel %vm3190, %v4750, %v4379
      %v4783 = vsel %vm3190, %v4751, %v4381
      %v4784 = vsel %vm3190, %v4752, %v4383
      %v4785 = vsel %vm3190, %v4753, %v4385
      %v4786 = vsel %vm3190, %v4754, %v4387
      %v4787 = vsel %vm3190, %v4755, %v4389
      %v4788 = vsel %vm3190, %v4756, %v4391
      %v4789 = vsel %vm3190, %v4757, %v4393
      %v4790 = vsel %vm3190, %v4758, %v4395
      %v4791 = vsel %vm3190, %v4759, %v4397
      %v4792 = vsel %vm3190, %v4760, %v4399
      %v4793 = vsel %vm3190, %v4761, %v4401
      %v4794 = vsel %vm3190, %v4762, %v4403
      %v4795 = vsel %vm3190, %v4763, %v4405
      %v4796 = vsel %vm3190, %v4764, %v4407
      %v4797 = vsel %vm3190, %v4765, %v4409
      %v4798 = vsel %vm3190, %v4766, %v4411
      %v4799 = vsel %vm3190, %v4767, %v4413
      %v4800 = vsel %vm3190, %v4768, %v4415
      %v4801 = vsel %vm3190, %v4769, %v4417
      %v4802 = vsel %vm3223, %v4770, %v4483
      %v4803 = vsel %vm3223, %v4771, %v4485
      %v4804 = vsel %vm3223, %v4772, %v4487
      %v4805 = vsel %vm3223, %v4773, %v4489
      %v4806 = vsel %vm3223, %v4774, %v4491
      %v4807 = vsel %vm3223, %v4775, %v4493
      %v4808 = vsel %vm3223, %v4776, %v4495
      %v4809 = vsel %vm3223, %v4777, %v4497
      %v4810 = vsel %vm3223, %v4778, %v4499
      %v4811 = vsel %vm3223, %v4779, %v4501
      %v4812 = vsel %vm3223, %v4780, %v4503
      %v4813 = vsel %vm3223, %v4781, %v4505
      %v4814 = vsel %vm3223, %v4782, %v4507
      %v4815 = vsel %vm3223, %v4783, %v4509
      %v4816 = vsel %vm3223, %v4784, %v4511
      %v4817 = vsel %vm3223, %v4785, %v4513
      %v4818 = vsel %vm3223, %v4786, %v4515
      %v4819 = vsel %vm3223, %v4787, %v4517
      %v4820 = vsel %vm3223, %v4788, %v4519
      %v4821 = vsel %vm3223, %v4789, %v4521
      %v4822 = vsel %vm3223, %v4790, %v4523
      %v4823 = vsel %vm3223, %v4791, %v4525
      %v4824 = vsel %vm3223, %v4792, %v4527
      %v4825 = vsel %vm3223, %v4793, %v4529
      %v4826 = vsel %vm3223, %v4794, %v4531
      %v4827 = vsel %vm3223, %v4795, %v4533
      %v4828 = vsel %vm3223, %v4796, %v4535
      %v4829 = vsel %vm3223, %v4797, %v4537
      %v4830 = vsel %vm3223, %v4798, %v4539
      %v4831 = vsel %vm3223, %v4799, %v4541
      %v4832 = vsel %vm3223, %v4800, %v4543
      %v4833 = vsel %vm3223, %v4801, %v4545
      %v4834 = vld [vmem:[%s7] sm:$0xff]
      %v4835 = vld [vmem:[%s7 + $0x8] sm:$0xff]
      %v4836 = vld [vmem:[%s7 + $0x10] sm:$0xff]
      %v4837 = vld [vmem:[%s7 + $0x18] sm:$0xff]
      %v4838 = vld [vmem:[%s7 + $0x20] sm:$0xf]
      %vm4839 = vcmask 293888
      %v4841 = vsel %vm4839, %v4802, 0
      %v4844 = vsel %vm4839, %v4803, 0
      %v4847 = vsel %vm4839, %v4804, 0
      %v4850 = vsel %vm4839, %v4805, 0
      %v4853 = vsel %vm4839, %v4806, 0
      %v4856 = vsel %vm4839, %v4807, 0
      %v4859 = vsel %vm4839, %v4808, 0
      %v4862 = vsel %vm4839, %v4809, 0
      %v4865 = vsel %vm4839, %v4810, 0
      %v4868 = vsel %vm4839, %v4811, 0
      %v4871 = vsel %vm4839, %v4812, 0
      %v4874 = vsel %vm4839, %v4813, 0
      %v4877 = vsel %vm4839, %v4814, 0
      %v4880 = vsel %vm4839, %v4815, 0
      %v4883 = vsel %vm4839, %v4816, 0
      %v4886 = vsel %vm4839, %v4817, 0
      %v4889 = vsel %vm4839, %v4818, 0
      %v4892 = vsel %vm4839, %v4819, 0
      %v4895 = vsel %vm4839, %v4820, 0
      %v4898 = vsel %vm4839, %v4821, 0
      %v4901 = vsel %vm4839, %v4822, 0
      %v4904 = vsel %vm4839, %v4823, 0
      %v4907 = vsel %vm4839, %v4824, 0
      %v4910 = vsel %vm4839, %v4825, 0
      %v4913 = vsel %vm4839, %v4826, 0
      %v4916 = vsel %vm4839, %v4827, 0
      %v4919 = vsel %vm4839, %v4828, 0
      %v4922 = vsel %vm4839, %v4829, 0
      %v4925 = vsel %vm4839, %v4830, 0
      %v4928 = vsel %vm4839, %v4831, 0
      %v4931 = vsel %vm4839, %v4832, 0
      %v4934 = vsel %vm4839, %v4833, 0
      %vm4936 = vcmask 1043456
      %v4938 = vsel %vm4936, %v4838, 0
      %4940 = vmatpush.msra.mxu0 0.0
      %4941 = vmatpush.msra.mxu0 0.0
      %4942 = vmatpush.msra.mxu0 0.0
      %4943 = vmatpush.msra.mxu0 0.0
      %4944 = vmatpush.msra.mxu0 0.0
      %4945 = vmatpush.msra.mxu0 0.0
      %4946 = vmatpush.msra.mxu0 0.0
      %4947 = vmatpush.msra.mxu0 0.0
      %4948 = vmatpush.msra.mxu0 0.0
      %4949 = vmatpush.msra.mxu0 0.0
      %4950 = vmatpush.msra.mxu0 0.0
      %4951 = vmatpush.msra.mxu0 %v4938
      %4952 = vmatpush.msra.mxu0 %v4837
      %4953 = vmatpush.msra.mxu0 %v4836
      %4954 = vmatpush.msra.mxu0 %v4835
      %4955 = vmatpush.msra.mxu0 %v4834
      %4956 = vmatmul.f32.gmra.mxu0 %v4841
      %v4957 = vpop.f32.mrf.mxu0
      %v4958 = vadd.f32 0.0, %v4957
      %4959 = vmatmul.f32.gmra.mxu0 %v4844
      %v4960 = vpop.f32.mrf.mxu0
      %v4961 = vadd.f32 0.0, %v4960
      %4962 = vmatmul.f32.gmra.mxu0 %v4847
      %v4963 = vpop.f32.mrf.mxu0
      %v4964 = vadd.f32 0.0, %v4963
      %4965 = vmatmul.f32.gmra.mxu0 %v4850
      %v4966 = vpop.f32.mrf.mxu0
      %v4967 = vadd.f32 0.0, %v4966
      %4968 = vmatmul.f32.gmra.mxu0 %v4853
      %v4969 = vpop.f32.mrf.mxu0
      %v4970 = vadd.f32 0.0, %v4969
      %4971 = vmatmul.f32.gmra.mxu0 %v4856
      %v4972 = vpop.f32.mrf.mxu0
      %v4973 = vadd.f32 0.0, %v4972
      %4974 = vmatmul.f32.gmra.mxu0 %v4859
      %v4975 = vpop.f32.mrf.mxu0
      %v4976 = vadd.f32 0.0, %v4975
      %4977 = vmatmul.f32.gmra.mxu0 %v4862
      %v4978 = vpop.f32.mrf.mxu0
      %v4979 = vadd.f32 0.0, %v4978
      %4980 = vmatmul.f32.gmra.mxu0 %v4865
      %v4981 = vpop.f32.mrf.mxu0
      %v4982 = vadd.f32 0.0, %v4981
      %4983 = vmatmul.f32.gmra.mxu0 %v4868
      %v4984 = vpop.f32.mrf.mxu0
      %v4985 = vadd.f32 0.0, %v4984
      %4986 = vmatmul.f32.gmra.mxu0 %v4871
      %v4987 = vpop.f32.mrf.mxu0
      %v4988 = vadd.f32 0.0, %v4987
      %4989 = vmatmul.f32.gmra.mxu0 %v4874
      %v4990 = vpop.f32.mrf.mxu0
      %v4991 = vadd.f32 0.0, %v4990
      %4992 = vmatmul.f32.gmra.mxu0 %v4877
      %v4993 = vpop.f32.mrf.mxu0
      %v4994 = vadd.f32 0.0, %v4993
      %4995 = vmatmul.f32.gmra.mxu0 %v4880
      %v4996 = vpop.f32.mrf.mxu0
      %v4997 = vadd.f32 0.0, %v4996
      %4998 = vmatmul.f32.gmra.mxu0 %v4883
      %v4999 = vpop.f32.mrf.mxu0
      %v5000 = vadd.f32 0.0, %v4999
      %5001 = vmatmul.f32.gmra.mxu0 %v4886
      %v5002 = vpop.f32.mrf.mxu0
      %v5003 = vadd.f32 0.0, %v5002
      %5004 = vmatmul.f32.gmra.mxu0 %v4889
      %v5005 = vpop.f32.mrf.mxu0
      %v5006 = vadd.f32 0.0, %v5005
      %5007 = vmatmul.f32.gmra.mxu0 %v4892
      %v5008 = vpop.f32.mrf.mxu0
      %v5009 = vadd.f32 0.0, %v5008
      %5010 = vmatmul.f32.gmra.mxu0 %v4895
      %v5011 = vpop.f32.mrf.mxu0
      %v5012 = vadd.f32 0.0, %v5011
      %5013 = vmatmul.f32.gmra.mxu0 %v4898
      %v5014 = vpop.f32.mrf.mxu0
      %v5015 = vadd.f32 0.0, %v5014
      %5016 = vmatmul.f32.gmra.mxu0 %v4901
      %v5017 = vpop.f32.mrf.mxu0
      %v5018 = vadd.f32 0.0, %v5017
      %5019 = vmatmul.f32.gmra.mxu0 %v4904
      %v5020 = vpop.f32.mrf.mxu0
      %v5021 = vadd.f32 0.0, %v5020
      %5022 = vmatmul.f32.gmra.mxu0 %v4907
      %v5023 = vpop.f32.mrf.mxu0
      %v5024 = vadd.f32 0.0, %v5023
      %5025 = vmatmul.f32.gmra.mxu0 %v4910
      %v5026 = vpop.f32.mrf.mxu0
      %v5027 = vadd.f32 0.0, %v5026
      %5028 = vmatmul.f32.gmra.mxu0 %v4913
      %v5029 = vpop.f32.mrf.mxu0
      %v5030 = vadd.f32 0.0, %v5029
      %5031 = vmatmul.f32.gmra.mxu0 %v4916
      %v5032 = vpop.f32.mrf.mxu0
      %v5033 = vadd.f32 0.0, %v5032
      %5034 = vmatmul.f32.gmra.mxu0 %v4919
      %v5035 = vpop.f32.mrf.mxu0
      %v5036 = vadd.f32 0.0, %v5035
      %5037 = vmatmul.f32.gmra.mxu0 %v4922
      %v5038 = vpop.f32.mrf.mxu0
      %v5039 = vadd.f32 0.0, %v5038
      %5040 = vmatmul.f32.gmra.mxu0 %v4925
      %v5041 = vpop.f32.mrf.mxu0
      %v5042 = vadd.f32 0.0, %v5041
      %5043 = vmatmul.f32.gmra.mxu0 %v4928
      %v5044 = vpop.f32.mrf.mxu0
      %v5045 = vadd.f32 0.0, %v5044
      %5046 = vmatmul.f32.gmra.mxu0 %v4931
      %v5047 = vpop.f32.mrf.mxu0
      %v5048 = vadd.f32 0.0, %v5047
      %5049 = vmatmul.f32.gmra.mxu0 %v4934
      %v5050 = vpop.f32.mrf.mxu0
      %v5051 = vadd.f32 0.0, %v5050
      %5052 = vdwg.mxu0
      %v5054 = vsel %vm4839, %v3224, 0
      %v5057 = vsel %vm4839, %v3225, 0
      %v5060 = vsel %vm4839, %v3226, 0
      %v5063 = vsel %vm4839, %v3227, 0
      %v5066 = vsel %vm4839, %v3228, 0
      %v5069 = vsel %vm4839, %v3229, 0
      %v5072 = vsel %vm4839, %v3230, 0
      %v5075 = vsel %vm4839, %v3231, 0
      %v5078 = vsel %vm4839, %v3232, 0
      %v5081 = vsel %vm4839, %v3233, 0
      %v5084 = vsel %vm4839, %v3234, 0
      %v5087 = vsel %vm4839, %v3235, 0
      %v5090 = vsel %vm4839, %v3236, 0
      %v5093 = vsel %vm4839, %v3237, 0
      %v5096 = vsel %vm4839, %v3238, 0
      %v5099 = vsel %vm4839, %v3239, 0
      %v5102 = vsel %vm4839, %v3240, 0
      %v5105 = vsel %vm4839, %v3241, 0
      %v5108 = vsel %vm4839, %v3242, 0
      %v5111 = vsel %vm4839, %v3243, 0
      %v5114 = vsel %vm4839, %v3244, 0
      %v5117 = vsel %vm4839, %v3245, 0
      %v5120 = vsel %vm4839, %v3246, 0
      %v5123 = vsel %vm4839, %v3247, 0
      %v5126 = vsel %vm4839, %v3248, 0
      %v5129 = vsel %vm4839, %v3249, 0
      %v5132 = vsel %vm4839, %v3250, 0
      %v5135 = vsel %vm4839, %v3251, 0
      %v5138 = vsel %vm4839, %v3252, 0
      %v5141 = vsel %vm4839, %v3253, 0
      %v5144 = vsel %vm4839, %v3254, 0
      %v5147 = vsel %vm4839, %v3255, 0
      %v5150 = vsel %vm4936, %v3260, 0
      %5152 = vmatpush.msra.mxu0 0.0
      %5153 = vmatpush.msra.mxu0 0.0
      %5154 = vmatpush.msra.mxu0 0.0
      %5155 = vmatpush.msra.mxu0 0.0
      %5156 = vmatpush.msra.mxu0 0.0
      %5157 = vmatpush.msra.mxu0 0.0
      %5158 = vmatpush.msra.mxu0 0.0
      %5159 = vmatpush.msra.mxu0 0.0
      %5160 = vmatpush.msra.mxu0 0.0
      %5161 = vmatpush.msra.mxu0 0.0
      %5162 = vmatpush.msra.mxu0 0.0
      %5163 = vmatpush.msra.mxu0 %v5150
      %5164 = vmatpush.msra.mxu0 %v3259
      %5165 = vmatpush.msra.mxu0 %v3258
      %5166 = vmatpush.msra.mxu0 %v3257
      %5167 = vmatpush.msra.mxu0 %v3256
      %5168 = vmatmul.f32.gmra.mxu0 %v5054
      %v5169 = vpop.f32.mrf.mxu0
      %v5170 = vadd.f32 %v4958, %v5169
      %5171 = vmatmul.f32.gmra.mxu0 %v5057
      %v5172 = vpop.f32.mrf.mxu0
      %v5173 = vadd.f32 %v4961, %v5172
      %5174 = vmatmul.f32.gmra.mxu0 %v5060
      %v5175 = vpop.f32.mrf.mxu0
      %v5176 = vadd.f32 %v4964, %v5175
      %5177 = vmatmul.f32.gmra.mxu0 %v5063
      %v5178 = vpop.f32.mrf.mxu0
      %v5179 = vadd.f32 %v4967, %v5178
      %5180 = vmatmul.f32.gmra.mxu0 %v5066
      %v5181 = vpop.f32.mrf.mxu0
      %v5182 = vadd.f32 %v4970, %v5181
      %5183 = vmatmul.f32.gmra.mxu0 %v5069
      %v5184 = vpop.f32.mrf.mxu0
      %v5185 = vadd.f32 %v4973, %v5184
      %5186 = vmatmul.f32.gmra.mxu0 %v5072
      %v5187 = vpop.f32.mrf.mxu0
      %v5188 = vadd.f32 %v4976, %v5187
      %5189 = vmatmul.f32.gmra.mxu0 %v5075
      %v5190 = vpop.f32.mrf.mxu0
      %v5191 = vadd.f32 %v4979, %v5190
      %5192 = vmatmul.f32.gmra.mxu0 %v5078
      %v5193 = vpop.f32.mrf.mxu0
      %v5194 = vadd.f32 %v4982, %v5193
      %5195 = vmatmul.f32.gmra.mxu0 %v5081
      %v5196 = vpop.f32.mrf.mxu0
      %v5197 = vadd.f32 %v4985, %v5196
      %5198 = vmatmul.f32.gmra.mxu0 %v5084
      %v5199 = vpop.f32.mrf.mxu0
      %v5200 = vadd.f32 %v4988, %v5199
      %5201 = vmatmul.f32.gmra.mxu0 %v5087
      %v5202 = vpop.f32.mrf.mxu0
      %v5203 = vadd.f32 %v4991, %v5202
      %5204 = vmatmul.f32.gmra.mxu0 %v5090
      %v5205 = vpop.f32.mrf.mxu0
      %v5206 = vadd.f32 %v4994, %v5205
      %5207 = vmatmul.f32.gmra.mxu0 %v5093
      %v5208 = vpop.f32.mrf.mxu0
      %v5209 = vadd.f32 %v4997, %v5208
      %5210 = vmatmul.f32.gmra.mxu0 %v5096
      %v5211 = vpop.f32.mrf.mxu0
      %v5212 = vadd.f32 %v5000, %v5211
      %5213 = vmatmul.f32.gmra.mxu0 %v5099
      %v5214 = vpop.f32.mrf.mxu0
      %v5215 = vadd.f32 %v5003, %v5214
      %5216 = vmatmul.f32.gmra.mxu0 %v5102
      %v5217 = vpop.f32.mrf.mxu0
      %v5218 = vadd.f32 %v5006, %v5217
      %5219 = vmatmul.f32.gmra.mxu0 %v5105
      %v5220 = vpop.f32.mrf.mxu0
      %v5221 = vadd.f32 %v5009, %v5220
      %5222 = vmatmul.f32.gmra.mxu0 %v5108
      %v5223 = vpop.f32.mrf.mxu0
      %v5224 = vadd.f32 %v5012, %v5223
      %5225 = vmatmul.f32.gmra.mxu0 %v5111
      %v5226 = vpop.f32.mrf.mxu0
      %v5227 = vadd.f32 %v5015, %v5226
      %5228 = vmatmul.f32.gmra.mxu0 %v5114
      %v5229 = vpop.f32.mrf.mxu0
      %v5230 = vadd.f32 %v5018, %v5229
      %5231 = vmatmul.f32.gmra.mxu0 %v5117
      %v5232 = vpop.f32.mrf.mxu0
      %v5233 = vadd.f32 %v5021, %v5232
      %5234 = vmatmul.f32.gmra.mxu0 %v5120
      %v5235 = vpop.f32.mrf.mxu0
      %v5236 = vadd.f32 %v5024, %v5235
      %5237 = vmatmul.f32.gmra.mxu0 %v5123
      %v5238 = vpop.f32.mrf.mxu0
      %v5239 = vadd.f32 %v5027, %v5238
      %5240 = vmatmul.f32.gmra.mxu0 %v5126
      %v5241 = vpop.f32.mrf.mxu0
      %v5242 = vadd.f32 %v5030, %v5241
      %5243 = vmatmul.f32.gmra.mxu0 %v5129
      %v5244 = vpop.f32.mrf.mxu0
      %v5245 = vadd.f32 %v5033, %v5244
      %5246 = vmatmul.f32.gmra.mxu0 %v5132
      %v5247 = vpop.f32.mrf.mxu0
      %v5248 = vadd.f32 %v5036, %v5247
      %5249 = vmatmul.f32.gmra.mxu0 %v5135
      %v5250 = vpop.f32.mrf.mxu0
      %v5251 = vadd.f32 %v5039, %v5250
      %5252 = vmatmul.f32.gmra.mxu0 %v5138
      %v5253 = vpop.f32.mrf.mxu0
      %v5254 = vadd.f32 %v5042, %v5253
      %5255 = vmatmul.f32.gmra.mxu0 %v5141
      %v5256 = vpop.f32.mrf.mxu0
      %v5257 = vadd.f32 %v5045, %v5256
      %5258 = vmatmul.f32.gmra.mxu0 %v5144
      %v5259 = vpop.f32.mrf.mxu0
      %v5260 = vadd.f32 %v5048, %v5259
      %5261 = vmatmul.f32.gmra.mxu0 %v5147
      %v5262 = vpop.f32.mrf.mxu0
      %v5263 = vadd.f32 %v5051, %v5262
      %5264 = vdwg.mxu0
      %v5265 = vld [vmem:[%s8] sm:$0x1]
      %v5267 = vperm.slane %v5265, 0
      %v5269 = vadd.f32 %v5170, %v5267
      %v5270 = vadd.f32 %v5173, %v5267
      %v5271 = vadd.f32 %v5176, %v5267
      %v5272 = vadd.f32 %v5179, %v5267
      %v5273 = vadd.f32 %v5182, %v5267
      %v5274 = vadd.f32 %v5185, %v5267
      %v5275 = vadd.f32 %v5188, %v5267
      %v5276 = vadd.f32 %v5191, %v5267
      %v5277 = vadd.f32 %v5194, %v5267
      %v5278 = vadd.f32 %v5197, %v5267
      %v5279 = vadd.f32 %v5200, %v5267
      %v5280 = vadd.f32 %v5203, %v5267
      %v5281 = vadd.f32 %v5206, %v5267
      %v5282 = vadd.f32 %v5209, %v5267
      %v5283 = vadd.f32 %v5212, %v5267
      %v5284 = vadd.f32 %v5215, %v5267
      %v5285 = vadd.f32 %v5218, %v5267
      %v5286 = vadd.f32 %v5221, %v5267
      %v5287 = vadd.f32 %v5224, %v5267
      %v5288 = vadd.f32 %v5227, %v5267
      %v5289 = vadd.f32 %v5230, %v5267
      %v5290 = vadd.f32 %v5233, %v5267
      %v5291 = vadd.f32 %v5236, %v5267
      %v5292 = vadd.f32 %v5239, %v5267
      %v5293 = vadd.f32 %v5242, %v5267
      %v5294 = vadd.f32 %v5245, %v5267
      %v5295 = vadd.f32 %v5248, %v5267
      %v5296 = vadd.f32 %v5251, %v5267
      %v5297 = vadd.f32 %v5254, %v5267
      %v5298 = vadd.f32 %v5257, %v5267
      %v5299 = vadd.f32 %v5260, %v5267
      %v5300 = vadd.f32 %v5263, %v5267
      %v5301 = vmax.f32 %v5269, 0.0
      %v5302 = vmax.f32 %v5270, 0.0
      %v5303 = vmax.f32 %v5271, 0.0
      %v5304 = vmax.f32 %v5272, 0.0
      %v5305 = vmax.f32 %v5273, 0.0
      %v5306 = vmax.f32 %v5274, 0.0
      %v5307 = vmax.f32 %v5275, 0.0
      %v5308 = vmax.f32 %v5276, 0.0
      %v5309 = vmax.f32 %v5277, 0.0
      %v5310 = vmax.f32 %v5278, 0.0
      %v5311 = vmax.f32 %v5279, 0.0
      %v5312 = vmax.f32 %v5280, 0.0
      %v5313 = vmax.f32 %v5281, 0.0
      %v5314 = vmax.f32 %v5282, 0.0
      %v5315 = vmax.f32 %v5283, 0.0
      %v5316 = vmax.f32 %v5284, 0.0
      %v5317 = vmax.f32 %v5285, 0.0
      %v5318 = vmax.f32 %v5286, 0.0
      %v5319 = vmax.f32 %v5287, 0.0
      %v5320 = vmax.f32 %v5288, 0.0
      %v5321 = vmax.f32 %v5289, 0.0
      %v5322 = vmax.f32 %v5290, 0.0
      %v5323 = vmax.f32 %v5291, 0.0
      %v5324 = vmax.f32 %v5292, 0.0
      %v5325 = vmax.f32 %v5293, 0.0
      %v5326 = vmax.f32 %v5294, 0.0
      %v5327 = vmax.f32 %v5295, 0.0
      %v5328 = vmax.f32 %v5296, 0.0
      %v5329 = vmax.f32 %v5297, 0.0
      %v5330 = vmax.f32 %v5298, 0.0
      %v5331 = vmax.f32 %v5299, 0.0
      %v5332 = vmax.f32 %v5300, 0.0
      %s5333 = scalar_lea.vmem [#allocation4], 24
      %5334 = vst.msk [vmem:[%s5333 + $0x1] sm:$0xff] %vm461, %v5301
      %5335 = vst.msk [vmem:[%s5333 + $0x9] sm:$0xff] %vm461, %v5302
      %5336 = vst.msk [vmem:[%s5333 + $0x19] sm:$0xff] %vm461, %v5303
      %5337 = vst.msk [vmem:[%s5333 + $0x21] sm:$0xff] %vm461, %v5304
      %5338 = vst.msk [vmem:[%s5333 + $0x31] sm:$0xff] %vm461, %v5305
      %5339 = vst.msk [vmem:[%s5333 + $0x39] sm:$0xff] %vm461, %v5306
      %5340 = vst.msk [vmem:[%s5333 + $0x49] sm:$0xff] %vm461, %v5307
      %5341 = vst.msk [vmem:[%s5333 + $0x51] sm:$0xff] %vm461, %v5308
      %5342 = vst.msk [vmem:[%s5333 + $0x61] sm:$0xff] %vm461, %v5309
      %5343 = vst.msk [vmem:[%s5333 + $0x69] sm:$0xff] %vm461, %v5310
      %5344 = vst.msk [vmem:[%s5333 + $0x79] sm:$0xff] %vm461, %v5311
      %5345 = vst.msk [vmem:[%s5333 + $0x81] sm:$0xff] %vm461, %v5312
      %5346 = vst.msk [vmem:[%s5333 + $0x91] sm:$0xff] %vm461, %v5313
      %5347 = vst.msk [vmem:[%s5333 + $0x99] sm:$0xff] %vm461, %v5314
      %5348 = vst.msk [vmem:[%s5333 + $0xa9] sm:$0xff] %vm461, %v5315
      %5349 = vst.msk [vmem:[%s5333 + $0xb1] sm:$0xff] %vm461, %v5316
      %5350 = vst.msk [vmem:[%s5333 + $0xc1] sm:$0xff] %vm461, %v5317
      %5351 = vst.msk [vmem:[%s5333 + $0xc9] sm:$0xff] %vm461, %v5318
      %5352 = vst.msk [vmem:[%s5333 + $0xd9] sm:$0xff] %vm461, %v5319
      %5353 = vst.msk [vmem:[%s5333 + $0xe1] sm:$0xff] %vm461, %v5320
      %5354 = vst.msk [vmem:[%s5333 + $0xf1] sm:$0xff] %vm461, %v5321
      %5355 = vst.msk [vmem:[%s5333 + $0xf9] sm:$0xff] %vm461, %v5322
      %5356 = vst.msk [vmem:[%s5333 + $0x109] sm:$0xff] %vm461, %v5323
      %5357 = vst.msk [vmem:[%s5333 + $0x111] sm:$0xff] %vm461, %v5324
      %5358 = vst.msk [vmem:[%s5333 + $0x121] sm:$0xff] %vm461, %v5325
      %5359 = vst.msk [vmem:[%s5333 + $0x129] sm:$0xff] %vm461, %v5326
      %5360 = vst.msk [vmem:[%s5333 + $0x139] sm:$0xff] %vm461, %v5327
      %5361 = vst.msk [vmem:[%s5333 + $0x141] sm:$0xff] %vm461, %v5328
      %5362 = vst.msk [vmem:[%s5333 + $0x151] sm:$0xff] %vm461, %v5329
      %5363 = vst.msk [vmem:[%s5333 + $0x159] sm:$0xff] %vm461, %v5330
      %5364 = vst.msk [vmem:[%s5333 + $0x169] sm:$0xff] %vm461, %v5331
      %5365 = vst.msk [vmem:[%s5333 + $0x171] sm:$0xff] %vm461, %v5332
      %s5366 = scalar_lea.vmem [#allocation4], 456
      %5367 = vst.msk [vmem:[%s5366] sm:$0xff] %vm461, %v5301
      %5368 = vst.msk [vmem:[%s5366 + $0x8] sm:$0xff] %vm461, %v5302
      %5369 = vst.msk [vmem:[%s5366 + $0x18] sm:$0xff] %vm461, %v5303
      %5370 = vst.msk [vmem:[%s5366 + $0x20] sm:$0xff] %vm461, %v5304
      %5371 = vst.msk [vmem:[%s5366 + $0x30] sm:$0xff] %vm461, %v5305
      %5372 = vst.msk [vmem:[%s5366 + $0x38] sm:$0xff] %vm461, %v5306
      %5373 = vst.msk [vmem:[%s5366 + $0x48] sm:$0xff] %vm461, %v5307
      %5374 = vst.msk [vmem:[%s5366 + $0x50] sm:$0xff] %vm461, %v5308
      %5375 = vst.msk [vmem:[%s5366 + $0x60] sm:$0xff] %vm461, %v5309
      %5376 = vst.msk [vmem:[%s5366 + $0x68] sm:$0xff] %vm461, %v5310
      %5377 = vst.msk [vmem:[%s5366 + $0x78] sm:$0xff] %vm461, %v5311
      %5378 = vst.msk [vmem:[%s5366 + $0x80] sm:$0xff] %vm461, %v5312
      %5379 = vst.msk [vmem:[%s5366 + $0x90] sm:$0xff] %vm461, %v5313
      %5380 = vst.msk [vmem:[%s5366 + $0x98] sm:$0xff] %vm461, %v5314
      %5381 = vst.msk [vmem:[%s5366 + $0xa8] sm:$0xff] %vm461, %v5315
      %5382 = vst.msk [vmem:[%s5366 + $0xb0] sm:$0xff] %vm461, %v5316
      %5383 = vst.msk [vmem:[%s5366 + $0xc0] sm:$0xff] %vm461, %v5317
      %5384 = vst.msk [vmem:[%s5366 + $0xc8] sm:$0xff] %vm461, %v5318
      %5385 = vst.msk [vmem:[%s5366 + $0xd8] sm:$0xff] %vm461, %v5319
      %5386 = vst.msk [vmem:[%s5366 + $0xe0] sm:$0xff] %vm461, %v5320
      %5387 = vst.msk [vmem:[%s5366 + $0xf0] sm:$0xff] %vm461, %v5321
      %5388 = vst.msk [vmem:[%s5366 + $0xf8] sm:$0xff] %vm461, %v5322
      %5389 = vst.msk [vmem:[%s5366 + $0x108] sm:$0xff] %vm461, %v5323
      %5390 = vst.msk [vmem:[%s5366 + $0x110] sm:$0xff] %vm461, %v5324
      %5391 = vst.msk [vmem:[%s5366 + $0x120] sm:$0xff] %vm461, %v5325
      %5392 = vst.msk [vmem:[%s5366 + $0x128] sm:$0xff] %vm461, %v5326
      %5393 = vst.msk [vmem:[%s5366 + $0x138] sm:$0xff] %vm461, %v5327
      %5394 = vst.msk [vmem:[%s5366 + $0x140] sm:$0xff] %vm461, %v5328
      %5395 = vst.msk [vmem:[%s5366 + $0x150] sm:$0xff] %vm461, %v5329
      %5396 = vst.msk [vmem:[%s5366 + $0x158] sm:$0xff] %vm461, %v5330
      %5397 = vst.msk [vmem:[%s5366 + $0x168] sm:$0xff] %vm461, %v5331
      %5398 = vst.msk [vmem:[%s5366 + $0x170] sm:$0xff] %vm461, %v5332
      %s5399 = scalar_lea.vmem [#allocation4], 888
      %5400 = vst.msk [vmem:[%s5399 - $0x1] sm:$0xfe] %vm1513, %v5301
      %5401 = vst.msk [vmem:[%s5399 + $0x7] sm:$0xff] %vm461, %v5302
      %5402 = vst.msk [vmem:[%s5399 + $0x17] sm:$0xfe] %vm1513, %v5303
      %5403 = vst.msk [vmem:[%s5399 + $0x1f] sm:$0xff] %vm461, %v5304
      %5404 = vst.msk [vmem:[%s5399 + $0x2f] sm:$0xfe] %vm1513, %v5305
      %5405 = vst.msk [vmem:[%s5399 + $0x37] sm:$0xff] %vm461, %v5306
      %5406 = vst.msk [vmem:[%s5399 + $0x47] sm:$0xfe] %vm1513, %v5307
      %5407 = vst.msk [vmem:[%s5399 + $0x4f] sm:$0xff] %vm461, %v5308
      %5408 = vst.msk [vmem:[%s5399 + $0x5f] sm:$0xfe] %vm1513, %v5309
      %5409 = vst.msk [vmem:[%s5399 + $0x67] sm:$0xff] %vm461, %v5310
      %5410 = vst.msk [vmem:[%s5399 + $0x77] sm:$0xfe] %vm1513, %v5311
      %5411 = vst.msk [vmem:[%s5399 + $0x7f] sm:$0xff] %vm461, %v5312
      %5412 = vst.msk [vmem:[%s5399 + $0x8f] sm:$0xfe] %vm1513, %v5313
      %5413 = vst.msk [vmem:[%s5399 + $0x97] sm:$0xff] %vm461, %v5314
      %5414 = vst.msk [vmem:[%s5399 + $0xa7] sm:$0xfe] %vm1513, %v5315
      %5415 = vst.msk [vmem:[%s5399 + $0xaf] sm:$0xff] %vm461, %v5316
      %5416 = vst.msk [vmem:[%s5399 + $0xbf] sm:$0xfe] %vm1513, %v5317
      %5417 = vst.msk [vmem:[%s5399 + $0xc7] sm:$0xff] %vm461, %v5318
      %5418 = vst.msk [vmem:[%s5399 + $0xd7] sm:$0xfe] %vm1513, %v5319
      %5419 = vst.msk [vmem:[%s5399 + $0xdf] sm:$0xff] %vm461, %v5320
      %5420 = vst.msk [vmem:[%s5399 + $0xef] sm:$0xfe] %vm1513, %v5321
      %5421 = vst.msk [vmem:[%s5399 + $0xf7] sm:$0xff] %vm461, %v5322
      %5422 = vst.msk [vmem:[%s5399 + $0x107] sm:$0xfe] %vm1513, %v5323
      %5423 = vst.msk [vmem:[%s5399 + $0x10f] sm:$0xff] %vm461, %v5324
      %5424 = vst.msk [vmem:[%s5399 + $0x11f] sm:$0xfe] %vm1513, %v5325
      %5425 = vst.msk [vmem:[%s5399 + $0x127] sm:$0xff] %vm461, %v5326
      %5426 = vst.msk [vmem:[%s5399 + $0x137] sm:$0xfe] %vm1513, %v5327
      %5427 = vst.msk [vmem:[%s5399 + $0x13f] sm:$0xff] %vm461, %v5328
      %5428 = vst.msk [vmem:[%s5399 + $0x14f] sm:$0xfe] %vm1513, %v5329
      %5429 = vst.msk [vmem:[%s5399 + $0x157] sm:$0xff] %vm461, %v5330
      %5430 = vst.msk [vmem:[%s5399 + $0x167] sm:$0xfe] %vm1513, %v5331
      %5431 = vst.msk [vmem:[%s5399 + $0x16f] sm:$0xff] %vm461, %v5332
      %v5432 = vld [vmem:[#allocation4] sm:$0xff]
      %v5433 = vld [vmem:[#allocation4 + $0x8] sm:$0xff]
      %v5434 = vld [vmem:[#allocation4 + $0x18] sm:$0xff]
      %v5435 = vld [vmem:[#allocation4 + $0x20] sm:$0xff]
      %v5436 = vld [vmem:[#allocation4 + $0x30] sm:$0xff]
      %v5437 = vld [vmem:[#allocation4 + $0x38] sm:$0xff]
      %v5438 = vld [vmem:[#allocation4 + $0x48] sm:$0xff]
      %v5439 = vld [vmem:[#allocation4 + $0x50] sm:$0xff]
      %v5440 = vld [vmem:[#allocation4 + $0x60] sm:$0xff]
      %v5441 = vld [vmem:[#allocation4 + $0x68] sm:$0xff]
      %v5442 = vld [vmem:[#allocation4 + $0x78] sm:$0xff]
      %v5443 = vld [vmem:[#allocation4 + $0x80] sm:$0xff]
      %v5444 = vld [vmem:[#allocation4 + $0x90] sm:$0xff]
      %v5445 = vld [vmem:[#allocation4 + $0x98] sm:$0xff]
      %v5446 = vld [vmem:[#allocation4 + $0xa8] sm:$0xff]
      %v5447 = vld [vmem:[#allocation4 + $0xb0] sm:$0xff]
      %v5448 = vld [vmem:[#allocation4 + $0xc0] sm:$0xff]
      %v5449 = vld [vmem:[#allocation4 + $0xc8] sm:$0xff]
      %v5450 = vld [vmem:[#allocation4 + $0xd8] sm:$0xff]
      %v5451 = vld [vmem:[#allocation4 + $0xe0] sm:$0xff]
      %v5452 = vld [vmem:[#allocation4 + $0xf0] sm:$0xff]
      %v5453 = vld [vmem:[#allocation4 + $0xf8] sm:$0xff]
      %v5454 = vld [vmem:[#allocation4 + $0x108] sm:$0xff]
      %v5455 = vld [vmem:[#allocation4 + $0x110] sm:$0xff]
      %v5456 = vld [vmem:[#allocation4 + $0x120] sm:$0xff]
      %v5457 = vld [vmem:[#allocation4 + $0x128] sm:$0xff]
      %v5458 = vld [vmem:[#allocation4 + $0x138] sm:$0xff]
      %v5459 = vld [vmem:[#allocation4 + $0x140] sm:$0xff]
      %v5460 = vld [vmem:[#allocation4 + $0x150] sm:$0xff]
      %v5461 = vld [vmem:[#allocation4 + $0x158] sm:$0xff]
      %v5462 = vld [vmem:[#allocation4 + $0x168] sm:$0xff]
      %v5463 = vld [vmem:[#allocation4 + $0x170] sm:$0xff]
      %s5464 = scalar_lea.vmem [#allocation4], 432
      %v5465 = vld [vmem:[%s5464] sm:$0xff]
      %v5466 = vld [vmem:[%s5464 + $0x8] sm:$0xff]
      %v5467 = vld [vmem:[%s5464 + $0x18] sm:$0xff]
      %v5468 = vld [vmem:[%s5464 + $0x20] sm:$0xff]
      %v5469 = vld [vmem:[%s5464 + $0x30] sm:$0xff]
      %v5470 = vld [vmem:[%s5464 + $0x38] sm:$0xff]
      %v5471 = vld [vmem:[%s5464 + $0x48] sm:$0xff]
      %v5472 = vld [vmem:[%s5464 + $0x50] sm:$0xff]
      %v5473 = vld [vmem:[%s5464 + $0x60] sm:$0xff]
      %v5474 = vld [vmem:[%s5464 + $0x68] sm:$0xff]
      %v5475 = vld [vmem:[%s5464 + $0x78] sm:$0xff]
      %v5476 = vld [vmem:[%s5464 + $0x80] sm:$0xff]
      %v5477 = vld [vmem:[%s5464 + $0x90] sm:$0xff]
      %v5478 = vld [vmem:[%s5464 + $0x98] sm:$0xff]
      %v5479 = vld [vmem:[%s5464 + $0xa8] sm:$0xff]
      %v5480 = vld [vmem:[%s5464 + $0xb0] sm:$0xff]
      %v5481 = vld [vmem:[%s5464 + $0xc0] sm:$0xff]
      %v5482 = vld [vmem:[%s5464 + $0xc8] sm:$0xff]
      %v5483 = vld [vmem:[%s5464 + $0xd8] sm:$0xff]
      %v5484 = vld [vmem:[%s5464 + $0xe0] sm:$0xff]
      %v5485 = vld [vmem:[%s5464 + $0xf0] sm:$0xff]
      %v5486 = vld [vmem:[%s5464 + $0xf8] sm:$0xff]
      %v5487 = vld [vmem:[%s5464 + $0x108] sm:$0xff]
      %v5488 = vld [vmem:[%s5464 + $0x110] sm:$0xff]
      %v5489 = vld [vmem:[%s5464 + $0x120] sm:$0xff]
      %v5490 = vld [vmem:[%s5464 + $0x128] sm:$0xff]
      %v5491 = vld [vmem:[%s5464 + $0x138] sm:$0xff]
      %v5492 = vld [vmem:[%s5464 + $0x140] sm:$0xff]
      %v5493 = vld [vmem:[%s5464 + $0x150] sm:$0xff]
      %v5494 = vld [vmem:[%s5464 + $0x158] sm:$0xff]
      %v5495 = vld [vmem:[%s5464 + $0x168] sm:$0xff]
      %v5496 = vld [vmem:[%s5464 + $0x170] sm:$0xff]
      %s5497 = scalar_lea.vmem [#allocation4], 864
      %v5498 = vld [vmem:[%s5497] sm:$0xff]
      %v5499 = vld [vmem:[%s5497 + $0x8] sm:$0xff]
      %v5500 = vld [vmem:[%s5497 + $0x18] sm:$0xff]
      %v5501 = vld [vmem:[%s5497 + $0x20] sm:$0xff]
      %v5502 = vld [vmem:[%s5497 + $0x30] sm:$0xff]
      %v5503 = vld [vmem:[%s5497 + $0x38] sm:$0xff]
      %v5504 = vld [vmem:[%s5497 + $0x48] sm:$0xff]
      %v5505 = vld [vmem:[%s5497 + $0x50] sm:$0xff]
      %v5506 = vld [vmem:[%s5497 + $0x60] sm:$0xff]
      %v5507 = vld [vmem:[%s5497 + $0x68] sm:$0xff]
      %v5508 = vld [vmem:[%s5497 + $0x78] sm:$0xff]
      %v5509 = vld [vmem:[%s5497 + $0x80] sm:$0xff]
      %v5510 = vld [vmem:[%s5497 + $0x90] sm:$0xff]
      %v5511 = vld [vmem:[%s5497 + $0x98] sm:$0xff]
      %v5512 = vld [vmem:[%s5497 + $0xa8] sm:$0xff]
      %v5513 = vld [vmem:[%s5497 + $0xb0] sm:$0xff]
      %v5514 = vld [vmem:[%s5497 + $0xc0] sm:$0xff]
      %v5515 = vld [vmem:[%s5497 + $0xc8] sm:$0xff]
      %v5516 = vld [vmem:[%s5497 + $0xd8] sm:$0xff]
      %v5517 = vld [vmem:[%s5497 + $0xe0] sm:$0xff]
      %v5518 = vld [vmem:[%s5497 + $0xf0] sm:$0xff]
      %v5519 = vld [vmem:[%s5497 + $0xf8] sm:$0xff]
      %v5520 = vld [vmem:[%s5497 + $0x108] sm:$0xff]
      %v5521 = vld [vmem:[%s5497 + $0x110] sm:$0xff]
      %v5522 = vld [vmem:[%s5497 + $0x120] sm:$0xff]
      %v5523 = vld [vmem:[%s5497 + $0x128] sm:$0xff]
      %v5524 = vld [vmem:[%s5497 + $0x138] sm:$0xff]
      %v5525 = vld [vmem:[%s5497 + $0x140] sm:$0xff]
      %v5526 = vld [vmem:[%s5497 + $0x150] sm:$0xff]
      %v5527 = vld [vmem:[%s5497 + $0x158] sm:$0xff]
      %v5528 = vld [vmem:[%s5497 + $0x168] sm:$0xff]
      %v5529 = vld [vmem:[%s5497 + $0x170] sm:$0xff]
      %v5530 = vld [vmem:[%s5333] sm:$0xff]
      %v5531 = vld [vmem:[%s5333 + $0x8] sm:$0xff]
      %v5532 = vld [vmem:[%s5333 + $0x18] sm:$0xff]
      %v5533 = vld [vmem:[%s5333 + $0x20] sm:$0xff]
      %v5534 = vld [vmem:[%s5333 + $0x30] sm:$0xff]
      %v5535 = vld [vmem:[%s5333 + $0x38] sm:$0xff]
      %v5536 = vld [vmem:[%s5333 + $0x48] sm:$0xff]
      %v5537 = vld [vmem:[%s5333 + $0x50] sm:$0xff]
      %v5538 = vld [vmem:[%s5333 + $0x60] sm:$0xff]
      %v5539 = vld [vmem:[%s5333 + $0x68] sm:$0xff]
      %v5540 = vld [vmem:[%s5333 + $0x78] sm:$0xff]
      %v5541 = vld [vmem:[%s5333 + $0x80] sm:$0xff]
      %v5542 = vld [vmem:[%s5333 + $0x90] sm:$0xff]
      %v5543 = vld [vmem:[%s5333 + $0x98] sm:$0xff]
      %v5544 = vld [vmem:[%s5333 + $0xa8] sm:$0xff]
      %v5545 = vld [vmem:[%s5333 + $0xb0] sm:$0xff]
      %v5546 = vld [vmem:[%s5333 + $0xc0] sm:$0xff]
      %v5547 = vld [vmem:[%s5333 + $0xc8] sm:$0xff]
      %v5548 = vld [vmem:[%s5333 + $0xd8] sm:$0xff]
      %v5549 = vld [vmem:[%s5333 + $0xe0] sm:$0xff]
      %v5550 = vld [vmem:[%s5333 + $0xf0] sm:$0xff]
      %v5551 = vld [vmem:[%s5333 + $0xf8] sm:$0xff]
      %v5552 = vld [vmem:[%s5333 + $0x108] sm:$0xff]
      %v5553 = vld [vmem:[%s5333 + $0x110] sm:$0xff]
      %v5554 = vld [vmem:[%s5333 + $0x120] sm:$0xff]
      %v5555 = vld [vmem:[%s5333 + $0x128] sm:$0xff]
      %v5556 = vld [vmem:[%s5333 + $0x138] sm:$0xff]
      %v5557 = vld [vmem:[%s5333 + $0x140] sm:$0xff]
      %v5558 = vld [vmem:[%s5333 + $0x150] sm:$0xff]
      %v5559 = vld [vmem:[%s5333 + $0x158] sm:$0xff]
      %v5560 = vld [vmem:[%s5333 + $0x168] sm:$0xff]
      %v5561 = vld [vmem:[%s5333 + $0x170] sm:$0xff]
      %v5562 = vld [vmem:[%s5366] sm:$0xff]
      %v5563 = vld [vmem:[%s5366 + $0x8] sm:$0xff]
      %v5564 = vld [vmem:[%s5366 + $0x18] sm:$0xff]
      %v5565 = vld [vmem:[%s5366 + $0x20] sm:$0xff]
      %v5566 = vld [vmem:[%s5366 + $0x30] sm:$0xff]
      %v5567 = vld [vmem:[%s5366 + $0x38] sm:$0xff]
      %v5568 = vld [vmem:[%s5366 + $0x48] sm:$0xff]
      %v5569 = vld [vmem:[%s5366 + $0x50] sm:$0xff]
      %v5570 = vld [vmem:[%s5366 + $0x60] sm:$0xff]
      %v5571 = vld [vmem:[%s5366 + $0x68] sm:$0xff]
      %v5572 = vld [vmem:[%s5366 + $0x78] sm:$0xff]
      %v5573 = vld [vmem:[%s5366 + $0x80] sm:$0xff]
      %v5574 = vld [vmem:[%s5366 + $0x90] sm:$0xff]
      %v5575 = vld [vmem:[%s5366 + $0x98] sm:$0xff]
      %v5576 = vld [vmem:[%s5366 + $0xa8] sm:$0xff]
      %v5577 = vld [vmem:[%s5366 + $0xb0] sm:$0xff]
      %v5578 = vld [vmem:[%s5366 + $0xc0] sm:$0xff]
      %v5579 = vld [vmem:[%s5366 + $0xc8] sm:$0xff]
      %v5580 = vld [vmem:[%s5366 + $0xd8] sm:$0xff]
      %v5581 = vld [vmem:[%s5366 + $0xe0] sm:$0xff]
      %v5582 = vld [vmem:[%s5366 + $0xf0] sm:$0xff]
      %v5583 = vld [vmem:[%s5366 + $0xf8] sm:$0xff]
      %v5584 = vld [vmem:[%s5366 + $0x108] sm:$0xff]
      %v5585 = vld [vmem:[%s5366 + $0x110] sm:$0xff]
      %v5586 = vld [vmem:[%s5366 + $0x120] sm:$0xff]
      %v5587 = vld [vmem:[%s5366 + $0x128] sm:$0xff]
      %v5588 = vld [vmem:[%s5366 + $0x138] sm:$0xff]
      %v5589 = vld [vmem:[%s5366 + $0x140] sm:$0xff]
      %v5590 = vld [vmem:[%s5366 + $0x150] sm:$0xff]
      %v5591 = vld [vmem:[%s5366 + $0x158] sm:$0xff]
      %v5592 = vld [vmem:[%s5366 + $0x168] sm:$0xff]
      %v5593 = vld [vmem:[%s5366 + $0x170] sm:$0xff]
      %v5594 = vld [vmem:[%s5399] sm:$0xff]
      %v5595 = vld [vmem:[%s5399 + $0x8] sm:$0xff]
      %v5596 = vld [vmem:[%s5399 + $0x18] sm:$0xff]
      %v5597 = vld [vmem:[%s5399 + $0x20] sm:$0xff]
      %v5598 = vld [vmem:[%s5399 + $0x30] sm:$0xff]
      %v5599 = vld [vmem:[%s5399 + $0x38] sm:$0xff]
      %v5600 = vld [vmem:[%s5399 + $0x48] sm:$0xff]
      %v5601 = vld [vmem:[%s5399 + $0x50] sm:$0xff]
      %v5602 = vld [vmem:[%s5399 + $0x60] sm:$0xff]
      %v5603 = vld [vmem:[%s5399 + $0x68] sm:$0xff]
      %v5604 = vld [vmem:[%s5399 + $0x78] sm:$0xff]
      %v5605 = vld [vmem:[%s5399 + $0x80] sm:$0xff]
      %v5606 = vld [vmem:[%s5399 + $0x90] sm:$0xff]
      %v5607 = vld [vmem:[%s5399 + $0x98] sm:$0xff]
      %v5608 = vld [vmem:[%s5399 + $0xa8] sm:$0xff]
      %v5609 = vld [vmem:[%s5399 + $0xb0] sm:$0xff]
      %v5610 = vld [vmem:[%s5399 + $0xc0] sm:$0xff]
      %v5611 = vld [vmem:[%s5399 + $0xc8] sm:$0xff]
      %v5612 = vld [vmem:[%s5399 + $0xd8] sm:$0xff]
      %v5613 = vld [vmem:[%s5399 + $0xe0] sm:$0xff]
      %v5614 = vld [vmem:[%s5399 + $0xf0] sm:$0xff]
      %v5615 = vld [vmem:[%s5399 + $0xf8] sm:$0xff]
      %v5616 = vld [vmem:[%s5399 + $0x108] sm:$0xff]
      %v5617 = vld [vmem:[%s5399 + $0x110] sm:$0xff]
      %v5618 = vld [vmem:[%s5399 + $0x120] sm:$0xff]
      %v5619 = vld [vmem:[%s5399 + $0x128] sm:$0xff]
      %v5620 = vld [vmem:[%s5399 + $0x138] sm:$0xff]
      %v5621 = vld [vmem:[%s5399 + $0x140] sm:$0xff]
      %v5622 = vld [vmem:[%s5399 + $0x150] sm:$0xff]
      %v5623 = vld [vmem:[%s5399 + $0x158] sm:$0xff]
      %v5624 = vld [vmem:[%s5399 + $0x168] sm:$0xff]
      %v5625 = vld [vmem:[%s5399 + $0x170] sm:$0xff]
      %s5626 = scalar_lea.vmem [#allocation4], 48
      %v5627 = vld [vmem:[%s5626] sm:$0xff]
      %v5628 = vld [vmem:[%s5626 + $0x8] sm:$0xff]
      %v5629 = vld [vmem:[%s5626 + $0x18] sm:$0xff]
      %v5630 = vld [vmem:[%s5626 + $0x20] sm:$0xff]
      %v5631 = vld [vmem:[%s5626 + $0x30] sm:$0xff]
      %v5632 = vld [vmem:[%s5626 + $0x38] sm:$0xff]
      %v5633 = vld [vmem:[%s5626 + $0x48] sm:$0xff]
      %v5634 = vld [vmem:[%s5626 + $0x50] sm:$0xff]
      %v5635 = vld [vmem:[%s5626 + $0x60] sm:$0xff]
      %v5636 = vld [vmem:[%s5626 + $0x68] sm:$0xff]
      %v5637 = vld [vmem:[%s5626 + $0x78] sm:$0xff]
      %v5638 = vld [vmem:[%s5626 + $0x80] sm:$0xff]
      %v5639 = vld [vmem:[%s5626 + $0x90] sm:$0xff]
      %v5640 = vld [vmem:[%s5626 + $0x98] sm:$0xff]
      %v5641 = vld [vmem:[%s5626 + $0xa8] sm:$0xff]
      %v5642 = vld [vmem:[%s5626 + $0xb0] sm:$0xff]
      %v5643 = vld [vmem:[%s5626 + $0xc0] sm:$0xff]
      %v5644 = vld [vmem:[%s5626 + $0xc8] sm:$0xff]
      %v5645 = vld [vmem:[%s5626 + $0xd8] sm:$0xff]
      %v5646 = vld [vmem:[%s5626 + $0xe0] sm:$0xff]
      %v5647 = vld [vmem:[%s5626 + $0xf0] sm:$0xff]
      %v5648 = vld [vmem:[%s5626 + $0xf8] sm:$0xff]
      %v5649 = vld [vmem:[%s5626 + $0x108] sm:$0xff]
      %v5650 = vld [vmem:[%s5626 + $0x110] sm:$0xff]
      %v5651 = vld [vmem:[%s5626 + $0x120] sm:$0xff]
      %v5652 = vld [vmem:[%s5626 + $0x128] sm:$0xff]
      %v5653 = vld [vmem:[%s5626 + $0x138] sm:$0xff]
      %v5654 = vld [vmem:[%s5626 + $0x140] sm:$0xff]
      %v5655 = vld [vmem:[%s5626 + $0x150] sm:$0xff]
      %v5656 = vld [vmem:[%s5626 + $0x158] sm:$0xff]
      %v5657 = vld [vmem:[%s5626 + $0x168] sm:$0xff]
      %v5658 = vld [vmem:[%s5626 + $0x170] sm:$0xff]
      %s5659 = scalar_lea.vmem [#allocation4], 480
      %v5660 = vld [vmem:[%s5659] sm:$0xff]
      %v5661 = vld [vmem:[%s5659 + $0x8] sm:$0xff]
      %v5662 = vld [vmem:[%s5659 + $0x18] sm:$0xff]
      %v5663 = vld [vmem:[%s5659 + $0x20] sm:$0xff]
      %v5664 = vld [vmem:[%s5659 + $0x30] sm:$0xff]
      %v5665 = vld [vmem:[%s5659 + $0x38] sm:$0xff]
      %v5666 = vld [vmem:[%s5659 + $0x48] sm:$0xff]
      %v5667 = vld [vmem:[%s5659 + $0x50] sm:$0xff]
      %v5668 = vld [vmem:[%s5659 + $0x60] sm:$0xff]
      %v5669 = vld [vmem:[%s5659 + $0x68] sm:$0xff]
      %v5670 = vld [vmem:[%s5659 + $0x78] sm:$0xff]
      %v5671 = vld [vmem:[%s5659 + $0x80] sm:$0xff]
      %v5672 = vld [vmem:[%s5659 + $0x90] sm:$0xff]
      %v5673 = vld [vmem:[%s5659 + $0x98] sm:$0xff]
      %v5674 = vld [vmem:[%s5659 + $0xa8] sm:$0xff]
      %v5675 = vld [vmem:[%s5659 + $0xb0] sm:$0xff]
      %v5676 = vld [vmem:[%s5659 + $0xc0] sm:$0xff]
      %v5677 = vld [vmem:[%s5659 + $0xc8] sm:$0xff]
      %v5678 = vld [vmem:[%s5659 + $0xd8] sm:$0xff]
      %v5679 = vld [vmem:[%s5659 + $0xe0] sm:$0xff]
      %v5680 = vld [vmem:[%s5659 + $0xf0] sm:$0xff]
      %v5681 = vld [vmem:[%s5659 + $0xf8] sm:$0xff]
      %v5682 = vld [vmem:[%s5659 + $0x108] sm:$0xff]
      %v5683 = vld [vmem:[%s5659 + $0x110] sm:$0xff]
      %v5684 = vld [vmem:[%s5659 + $0x120] sm:$0xff]
      %v5685 = vld [vmem:[%s5659 + $0x128] sm:$0xff]
      %v5686 = vld [vmem:[%s5659 + $0x138] sm:$0xff]
      %v5687 = vld [vmem:[%s5659 + $0x140] sm:$0xff]
      %v5688 = vld [vmem:[%s5659 + $0x150] sm:$0xff]
      %v5689 = vld [vmem:[%s5659 + $0x158] sm:$0xff]
      %v5690 = vld [vmem:[%s5659 + $0x168] sm:$0xff]
      %v5691 = vld [vmem:[%s5659 + $0x170] sm:$0xff]
      %s5692 = scalar_lea.vmem [#allocation4], 912
      %v5693 = vld [vmem:[%s5692] sm:$0xff]
      %v5694 = vld [vmem:[%s5692 + $0x8] sm:$0xff]
      %v5695 = vld [vmem:[%s5692 + $0x18] sm:$0xff]
      %v5696 = vld [vmem:[%s5692 + $0x20] sm:$0xff]
      %v5697 = vld [vmem:[%s5692 + $0x30] sm:$0xff]
      %v5698 = vld [vmem:[%s5692 + $0x38] sm:$0xff]
      %v5699 = vld [vmem:[%s5692 + $0x48] sm:$0xff]
      %v5700 = vld [vmem:[%s5692 + $0x50] sm:$0xff]
      %v5701 = vld [vmem:[%s5692 + $0x60] sm:$0xff]
      %v5702 = vld [vmem:[%s5692 + $0x68] sm:$0xff]
      %v5703 = vld [vmem:[%s5692 + $0x78] sm:$0xff]
      %v5704 = vld [vmem:[%s5692 + $0x80] sm:$0xff]
      %v5705 = vld [vmem:[%s5692 + $0x90] sm:$0xff]
      %v5706 = vld [vmem:[%s5692 + $0x98] sm:$0xff]
      %v5707 = vld [vmem:[%s5692 + $0xa8] sm:$0xff]
      %v5708 = vld [vmem:[%s5692 + $0xb0] sm:$0xff]
      %v5709 = vld [vmem:[%s5692 + $0xc0] sm:$0xff]
      %v5710 = vld [vmem:[%s5692 + $0xc8] sm:$0xff]
      %v5711 = vld [vmem:[%s5692 + $0xd8] sm:$0xff]
      %v5712 = vld [vmem:[%s5692 + $0xe0] sm:$0xff]
      %v5713 = vld [vmem:[%s5692 + $0xf0] sm:$0xff]
      %v5714 = vld [vmem:[%s5692 + $0xf8] sm:$0xff]
      %v5715 = vld [vmem:[%s5692 + $0x108] sm:$0xff]
      %v5716 = vld [vmem:[%s5692 + $0x110] sm:$0xff]
      %v5717 = vld [vmem:[%s5692 + $0x120] sm:$0xff]
      %v5718 = vld [vmem:[%s5692 + $0x128] sm:$0xff]
      %v5719 = vld [vmem:[%s5692 + $0x138] sm:$0xff]
      %v5720 = vld [vmem:[%s5692 + $0x140] sm:$0xff]
      %v5721 = vld [vmem:[%s5692 + $0x150] sm:$0xff]
      %v5722 = vld [vmem:[%s5692 + $0x158] sm:$0xff]
      %v5723 = vld [vmem:[%s5692 + $0x168] sm:$0xff]
      %v5724 = vld [vmem:[%s5692 + $0x170] sm:$0xff]
      %5757 = vrot.lane.b32.xlu0 %v5465, 4
      %v5758 = vpop.permute.xlu0 %5757
      %5759 = vrot.lane.b32.xlu0 %v5466, 4
      %v5760 = vpop.permute.xlu0 %5759
      %5761 = vrot.lane.b32.xlu0 %v5467, 4
      %v5762 = vpop.permute.xlu0 %5761
      %5763 = vrot.lane.b32.xlu0 %v5468, 4
      %v5764 = vpop.permute.xlu0 %5763
      %5765 = vrot.lane.b32.xlu0 %v5469, 4
      %v5766 = vpop.permute.xlu0 %5765
      %5767 = vrot.lane.b32.xlu0 %v5470, 4
      %v5768 = vpop.permute.xlu0 %5767
      %5769 = vrot.lane.b32.xlu0 %v5471, 4
      %v5770 = vpop.permute.xlu0 %5769
      %5771 = vrot.lane.b32.xlu0 %v5472, 4
      %v5772 = vpop.permute.xlu0 %5771
      %5773 = vrot.lane.b32.xlu0 %v5473, 4
      %v5774 = vpop.permute.xlu0 %5773
      %5775 = vrot.lane.b32.xlu0 %v5474, 4
      %v5776 = vpop.permute.xlu0 %5775
      %5777 = vrot.lane.b32.xlu0 %v5475, 4
      %v5778 = vpop.permute.xlu0 %5777
      %5779 = vrot.lane.b32.xlu0 %v5476, 4
      %v5780 = vpop.permute.xlu0 %5779
      %5781 = vrot.lane.b32.xlu0 %v5477, 4
      %v5782 = vpop.permute.xlu0 %5781
      %5783 = vrot.lane.b32.xlu0 %v5478, 4
      %v5784 = vpop.permute.xlu0 %5783
      %5785 = vrot.lane.b32.xlu0 %v5479, 4
      %v5786 = vpop.permute.xlu0 %5785
      %5787 = vrot.lane.b32.xlu0 %v5480, 4
      %v5788 = vpop.permute.xlu0 %5787
      %5789 = vrot.lane.b32.xlu0 %v5481, 4
      %v5790 = vpop.permute.xlu0 %5789
      %5791 = vrot.lane.b32.xlu0 %v5482, 4
      %v5792 = vpop.permute.xlu0 %5791
      %5793 = vrot.lane.b32.xlu0 %v5483, 4
      %v5794 = vpop.permute.xlu0 %5793
      %5795 = vrot.lane.b32.xlu0 %v5484, 4
      %v5796 = vpop.permute.xlu0 %5795
      %5797 = vrot.lane.b32.xlu0 %v5485, 4
      %v5798 = vpop.permute.xlu0 %5797
      %5799 = vrot.lane.b32.xlu0 %v5486, 4
      %v5800 = vpop.permute.xlu0 %5799
      %5801 = vrot.lane.b32.xlu0 %v5487, 4
      %v5802 = vpop.permute.xlu0 %5801
      %5803 = vrot.lane.b32.xlu0 %v5488, 4
      %v5804 = vpop.permute.xlu0 %5803
      %5805 = vrot.lane.b32.xlu0 %v5489, 4
      %v5806 = vpop.permute.xlu0 %5805
      %5807 = vrot.lane.b32.xlu0 %v5490, 4
      %v5808 = vpop.permute.xlu0 %5807
      %5809 = vrot.lane.b32.xlu0 %v5491, 4
      %v5810 = vpop.permute.xlu0 %5809
      %5811 = vrot.lane.b32.xlu0 %v5492, 4
      %v5812 = vpop.permute.xlu0 %5811
      %5813 = vrot.lane.b32.xlu0 %v5493, 4
      %v5814 = vpop.permute.xlu0 %5813
      %5815 = vrot.lane.b32.xlu0 %v5494, 4
      %v5816 = vpop.permute.xlu0 %5815
      %5817 = vrot.lane.b32.xlu0 %v5495, 4
      %v5818 = vpop.permute.xlu0 %5817
      %5819 = vrot.lane.b32.xlu0 %v5496, 4
      %v5820 = vpop.permute.xlu0 %5819
      %5885 = vrot.lane.b32.xlu0 %v5498, 8
      %v5886 = vpop.permute.xlu0 %5885
      %5887 = vrot.lane.b32.xlu0 %v5499, 8
      %v5888 = vpop.permute.xlu0 %5887
      %5889 = vrot.lane.b32.xlu0 %v5500, 8
      %v5890 = vpop.permute.xlu0 %5889
      %5891 = vrot.lane.b32.xlu0 %v5501, 8
      %v5892 = vpop.permute.xlu0 %5891
      %5893 = vrot.lane.b32.xlu0 %v5502, 8
      %v5894 = vpop.permute.xlu0 %5893
      %5895 = vrot.lane.b32.xlu0 %v5503, 8
      %v5896 = vpop.permute.xlu0 %5895
      %5897 = vrot.lane.b32.xlu0 %v5504, 8
      %v5898 = vpop.permute.xlu0 %5897
      %5899 = vrot.lane.b32.xlu0 %v5505, 8
      %v5900 = vpop.permute.xlu0 %5899
      %5901 = vrot.lane.b32.xlu0 %v5506, 8
      %v5902 = vpop.permute.xlu0 %5901
      %5903 = vrot.lane.b32.xlu0 %v5507, 8
      %v5904 = vpop.permute.xlu0 %5903
      %5905 = vrot.lane.b32.xlu0 %v5508, 8
      %v5906 = vpop.permute.xlu0 %5905
      %5907 = vrot.lane.b32.xlu0 %v5509, 8
      %v5908 = vpop.permute.xlu0 %5907
      %5909 = vrot.lane.b32.xlu0 %v5510, 8
      %v5910 = vpop.permute.xlu0 %5909
      %5911 = vrot.lane.b32.xlu0 %v5511, 8
      %v5912 = vpop.permute.xlu0 %5911
      %5913 = vrot.lane.b32.xlu0 %v5512, 8
      %v5914 = vpop.permute.xlu0 %5913
      %5915 = vrot.lane.b32.xlu0 %v5513, 8
      %v5916 = vpop.permute.xlu0 %5915
      %5917 = vrot.lane.b32.xlu0 %v5514, 8
      %v5918 = vpop.permute.xlu0 %5917
      %5919 = vrot.lane.b32.xlu0 %v5515, 8
      %v5920 = vpop.permute.xlu0 %5919
      %5921 = vrot.lane.b32.xlu0 %v5516, 8
      %v5922 = vpop.permute.xlu0 %5921
      %5923 = vrot.lane.b32.xlu0 %v5517, 8
      %v5924 = vpop.permute.xlu0 %5923
      %5925 = vrot.lane.b32.xlu0 %v5518, 8
      %v5926 = vpop.permute.xlu0 %5925
      %5927 = vrot.lane.b32.xlu0 %v5519, 8
      %v5928 = vpop.permute.xlu0 %5927
      %5929 = vrot.lane.b32.xlu0 %v5520, 8
      %v5930 = vpop.permute.xlu0 %5929
      %5931 = vrot.lane.b32.xlu0 %v5521, 8
      %v5932 = vpop.permute.xlu0 %5931
      %5933 = vrot.lane.b32.xlu0 %v5522, 8
      %v5934 = vpop.permute.xlu0 %5933
      %5935 = vrot.lane.b32.xlu0 %v5523, 8
      %v5936 = vpop.permute.xlu0 %5935
      %5937 = vrot.lane.b32.xlu0 %v5524, 8
      %v5938 = vpop.permute.xlu0 %5937
      %5939 = vrot.lane.b32.xlu0 %v5525, 8
      %v5940 = vpop.permute.xlu0 %5939
      %5941 = vrot.lane.b32.xlu0 %v5526, 8
      %v5942 = vpop.permute.xlu0 %5941
      %5943 = vrot.lane.b32.xlu0 %v5527, 8
      %v5944 = vpop.permute.xlu0 %5943
      %5945 = vrot.lane.b32.xlu0 %v5528, 8
      %v5946 = vpop.permute.xlu0 %5945
      %5947 = vrot.lane.b32.xlu0 %v5529, 8
      %v5948 = vpop.permute.xlu0 %5947
      %6013 = vrot.lane.b32.xlu0 %v5530, 12
      %v6014 = vpop.permute.xlu0 %6013
      %6015 = vrot.lane.b32.xlu0 %v5531, 12
      %v6016 = vpop.permute.xlu0 %6015
      %6017 = vrot.lane.b32.xlu0 %v5532, 12
      %v6018 = vpop.permute.xlu0 %6017
      %6019 = vrot.lane.b32.xlu0 %v5533, 12
      %v6020 = vpop.permute.xlu0 %6019
      %6021 = vrot.lane.b32.xlu0 %v5534, 12
      %v6022 = vpop.permute.xlu0 %6021
      %6023 = vrot.lane.b32.xlu0 %v5535, 12
      %v6024 = vpop.permute.xlu0 %6023
      %6025 = vrot.lane.b32.xlu0 %v5536, 12
      %v6026 = vpop.permute.xlu0 %6025
      %6027 = vrot.lane.b32.xlu0 %v5537, 12
      %v6028 = vpop.permute.xlu0 %6027
      %6029 = vrot.lane.b32.xlu0 %v5538, 12
      %v6030 = vpop.permute.xlu0 %6029
      %6031 = vrot.lane.b32.xlu0 %v5539, 12
      %v6032 = vpop.permute.xlu0 %6031
      %6033 = vrot.lane.b32.xlu0 %v5540, 12
      %v6034 = vpop.permute.xlu0 %6033
      %6035 = vrot.lane.b32.xlu0 %v5541, 12
      %v6036 = vpop.permute.xlu0 %6035
      %6037 = vrot.lane.b32.xlu0 %v5542, 12
      %v6038 = vpop.permute.xlu0 %6037
      %6039 = vrot.lane.b32.xlu0 %v5543, 12
      %v6040 = vpop.permute.xlu0 %6039
      %6041 = vrot.lane.b32.xlu0 %v5544, 12
      %v6042 = vpop.permute.xlu0 %6041
      %6043 = vrot.lane.b32.xlu0 %v5545, 12
      %v6044 = vpop.permute.xlu0 %6043
      %6045 = vrot.lane.b32.xlu0 %v5546, 12
      %v6046 = vpop.permute.xlu0 %6045
      %6047 = vrot.lane.b32.xlu0 %v5547, 12
      %v6048 = vpop.permute.xlu0 %6047
      %6049 = vrot.lane.b32.xlu0 %v5548, 12
      %v6050 = vpop.permute.xlu0 %6049
      %6051 = vrot.lane.b32.xlu0 %v5549, 12
      %v6052 = vpop.permute.xlu0 %6051
      %6053 = vrot.lane.b32.xlu0 %v5550, 12
      %v6054 = vpop.permute.xlu0 %6053
      %6055 = vrot.lane.b32.xlu0 %v5551, 12
      %v6056 = vpop.permute.xlu0 %6055
      %6057 = vrot.lane.b32.xlu0 %v5552, 12
      %v6058 = vpop.permute.xlu0 %6057
      %6059 = vrot.lane.b32.xlu0 %v5553, 12
      %v6060 = vpop.permute.xlu0 %6059
      %6061 = vrot.lane.b32.xlu0 %v5554, 12
      %v6062 = vpop.permute.xlu0 %6061
      %6063 = vrot.lane.b32.xlu0 %v5555, 12
      %v6064 = vpop.permute.xlu0 %6063
      %6065 = vrot.lane.b32.xlu0 %v5556, 12
      %v6066 = vpop.permute.xlu0 %6065
      %6067 = vrot.lane.b32.xlu0 %v5557, 12
      %v6068 = vpop.permute.xlu0 %6067
      %6069 = vrot.lane.b32.xlu0 %v5558, 12
      %v6070 = vpop.permute.xlu0 %6069
      %6071 = vrot.lane.b32.xlu0 %v5559, 12
      %v6072 = vpop.permute.xlu0 %6071
      %6073 = vrot.lane.b32.xlu0 %v5560, 12
      %v6074 = vpop.permute.xlu0 %6073
      %6075 = vrot.lane.b32.xlu0 %v5561, 12
      %v6076 = vpop.permute.xlu0 %6075
      %6141 = vrot.lane.b32.xlu0 %v5562, 16
      %v6142 = vpop.permute.xlu0 %6141
      %6143 = vrot.lane.b32.xlu0 %v5563, 16
      %v6144 = vpop.permute.xlu0 %6143
      %6145 = vrot.lane.b32.xlu0 %v5564, 16
      %v6146 = vpop.permute.xlu0 %6145
      %6147 = vrot.lane.b32.xlu0 %v5565, 16
      %v6148 = vpop.permute.xlu0 %6147
      %6149 = vrot.lane.b32.xlu0 %v5566, 16
      %v6150 = vpop.permute.xlu0 %6149
      %6151 = vrot.lane.b32.xlu0 %v5567, 16
      %v6152 = vpop.permute.xlu0 %6151
      %6153 = vrot.lane.b32.xlu0 %v5568, 16
      %v6154 = vpop.permute.xlu0 %6153
      %6155 = vrot.lane.b32.xlu0 %v5569, 16
      %v6156 = vpop.permute.xlu0 %6155
      %6157 = vrot.lane.b32.xlu0 %v5570, 16
      %v6158 = vpop.permute.xlu0 %6157
      %6159 = vrot.lane.b32.xlu0 %v5571, 16
      %v6160 = vpop.permute.xlu0 %6159
      %6161 = vrot.lane.b32.xlu0 %v5572, 16
      %v6162 = vpop.permute.xlu0 %6161
      %6163 = vrot.lane.b32.xlu0 %v5573, 16
      %v6164 = vpop.permute.xlu0 %6163
      %6165 = vrot.lane.b32.xlu0 %v5574, 16
      %v6166 = vpop.permute.xlu0 %6165
      %6167 = vrot.lane.b32.xlu0 %v5575, 16
      %v6168 = vpop.permute.xlu0 %6167
      %6169 = vrot.lane.b32.xlu0 %v5576, 16
      %v6170 = vpop.permute.xlu0 %6169
      %6171 = vrot.lane.b32.xlu0 %v5577, 16
      %v6172 = vpop.permute.xlu0 %6171
      %6173 = vrot.lane.b32.xlu0 %v5578, 16
      %v6174 = vpop.permute.xlu0 %6173
      %6175 = vrot.lane.b32.xlu0 %v5579, 16
      %v6176 = vpop.permute.xlu0 %6175
      %6177 = vrot.lane.b32.xlu0 %v5580, 16
      %v6178 = vpop.permute.xlu0 %6177
      %6179 = vrot.lane.b32.xlu0 %v5581, 16
      %v6180 = vpop.permute.xlu0 %6179
      %6181 = vrot.lane.b32.xlu0 %v5582, 16
      %v6182 = vpop.permute.xlu0 %6181
      %6183 = vrot.lane.b32.xlu0 %v5583, 16
      %v6184 = vpop.permute.xlu0 %6183
      %6185 = vrot.lane.b32.xlu0 %v5584, 16
      %v6186 = vpop.permute.xlu0 %6185
      %6187 = vrot.lane.b32.xlu0 %v5585, 16
      %v6188 = vpop.permute.xlu0 %6187
      %6189 = vrot.lane.b32.xlu0 %v5586, 16
      %v6190 = vpop.permute.xlu0 %6189
      %6191 = vrot.lane.b32.xlu0 %v5587, 16
      %v6192 = vpop.permute.xlu0 %6191
      %6193 = vrot.lane.b32.xlu0 %v5588, 16
      %v6194 = vpop.permute.xlu0 %6193
      %6195 = vrot.lane.b32.xlu0 %v5589, 16
      %v6196 = vpop.permute.xlu0 %6195
      %6197 = vrot.lane.b32.xlu0 %v5590, 16
      %v6198 = vpop.permute.xlu0 %6197
      %6199 = vrot.lane.b32.xlu0 %v5591, 16
      %v6200 = vpop.permute.xlu0 %6199
      %6201 = vrot.lane.b32.xlu0 %v5592, 16
      %v6202 = vpop.permute.xlu0 %6201
      %6203 = vrot.lane.b32.xlu0 %v5593, 16
      %v6204 = vpop.permute.xlu0 %6203
      %6269 = vrot.lane.b32.xlu0 %v5594, 20
      %v6270 = vpop.permute.xlu0 %6269
      %6271 = vrot.lane.b32.xlu0 %v5595, 20
      %v6272 = vpop.permute.xlu0 %6271
      %6273 = vrot.lane.b32.xlu0 %v5596, 20
      %v6274 = vpop.permute.xlu0 %6273
      %6275 = vrot.lane.b32.xlu0 %v5597, 20
      %v6276 = vpop.permute.xlu0 %6275
      %6277 = vrot.lane.b32.xlu0 %v5598, 20
      %v6278 = vpop.permute.xlu0 %6277
      %6279 = vrot.lane.b32.xlu0 %v5599, 20
      %v6280 = vpop.permute.xlu0 %6279
      %6281 = vrot.lane.b32.xlu0 %v5600, 20
      %v6282 = vpop.permute.xlu0 %6281
      %6283 = vrot.lane.b32.xlu0 %v5601, 20
      %v6284 = vpop.permute.xlu0 %6283
      %6285 = vrot.lane.b32.xlu0 %v5602, 20
      %v6286 = vpop.permute.xlu0 %6285
      %6287 = vrot.lane.b32.xlu0 %v5603, 20
      %v6288 = vpop.permute.xlu0 %6287
      %6289 = vrot.lane.b32.xlu0 %v5604, 20
      %v6290 = vpop.permute.xlu0 %6289
      %6291 = vrot.lane.b32.xlu0 %v5605, 20
      %v6292 = vpop.permute.xlu0 %6291
      %6293 = vrot.lane.b32.xlu0 %v5606, 20
      %v6294 = vpop.permute.xlu0 %6293
      %6295 = vrot.lane.b32.xlu0 %v5607, 20
      %v6296 = vpop.permute.xlu0 %6295
      %6297 = vrot.lane.b32.xlu0 %v5608, 20
      %v6298 = vpop.permute.xlu0 %6297
      %6299 = vrot.lane.b32.xlu0 %v5609, 20
      %v6300 = vpop.permute.xlu0 %6299
      %6301 = vrot.lane.b32.xlu0 %v5610, 20
      %v6302 = vpop.permute.xlu0 %6301
      %6303 = vrot.lane.b32.xlu0 %v5611, 20
      %v6304 = vpop.permute.xlu0 %6303
      %6305 = vrot.lane.b32.xlu0 %v5612, 20
      %v6306 = vpop.permute.xlu0 %6305
      %6307 = vrot.lane.b32.xlu0 %v5613, 20
      %v6308 = vpop.permute.xlu0 %6307
      %6309 = vrot.lane.b32.xlu0 %v5614, 20
      %v6310 = vpop.permute.xlu0 %6309
      %6311 = vrot.lane.b32.xlu0 %v5615, 20
      %v6312 = vpop.permute.xlu0 %6311
      %6313 = vrot.lane.b32.xlu0 %v5616, 20
      %v6314 = vpop.permute.xlu0 %6313
      %6315 = vrot.lane.b32.xlu0 %v5617, 20
      %v6316 = vpop.permute.xlu0 %6315
      %6317 = vrot.lane.b32.xlu0 %v5618, 20
      %v6318 = vpop.permute.xlu0 %6317
      %6319 = vrot.lane.b32.xlu0 %v5619, 20
      %v6320 = vpop.permute.xlu0 %6319
      %6321 = vrot.lane.b32.xlu0 %v5620, 20
      %v6322 = vpop.permute.xlu0 %6321
      %6323 = vrot.lane.b32.xlu0 %v5621, 20
      %v6324 = vpop.permute.xlu0 %6323
      %6325 = vrot.lane.b32.xlu0 %v5622, 20
      %v6326 = vpop.permute.xlu0 %6325
      %6327 = vrot.lane.b32.xlu0 %v5623, 20
      %v6328 = vpop.permute.xlu0 %6327
      %6329 = vrot.lane.b32.xlu0 %v5624, 20
      %v6330 = vpop.permute.xlu0 %6329
      %6331 = vrot.lane.b32.xlu0 %v5625, 20
      %v6332 = vpop.permute.xlu0 %6331
      %6397 = vrot.lane.b32.xlu0 %v5627, 24
      %v6398 = vpop.permute.xlu0 %6397
      %6399 = vrot.lane.b32.xlu0 %v5628, 24
      %v6400 = vpop.permute.xlu0 %6399
      %6401 = vrot.lane.b32.xlu0 %v5629, 24
      %v6402 = vpop.permute.xlu0 %6401
      %6403 = vrot.lane.b32.xlu0 %v5630, 24
      %v6404 = vpop.permute.xlu0 %6403
      %6405 = vrot.lane.b32.xlu0 %v5631, 24
      %v6406 = vpop.permute.xlu0 %6405
      %6407 = vrot.lane.b32.xlu0 %v5632, 24
      %v6408 = vpop.permute.xlu0 %6407
      %6409 = vrot.lane.b32.xlu0 %v5633, 24
      %v6410 = vpop.permute.xlu0 %6409
      %6411 = vrot.lane.b32.xlu0 %v5634, 24
      %v6412 = vpop.permute.xlu0 %6411
      %6413 = vrot.lane.b32.xlu0 %v5635, 24
      %v6414 = vpop.permute.xlu0 %6413
      %6415 = vrot.lane.b32.xlu0 %v5636, 24
      %v6416 = vpop.permute.xlu0 %6415
      %6417 = vrot.lane.b32.xlu0 %v5637, 24
      %v6418 = vpop.permute.xlu0 %6417
      %6419 = vrot.lane.b32.xlu0 %v5638, 24
      %v6420 = vpop.permute.xlu0 %6419
      %6421 = vrot.lane.b32.xlu0 %v5639, 24
      %v6422 = vpop.permute.xlu0 %6421
      %6423 = vrot.lane.b32.xlu0 %v5640, 24
      %v6424 = vpop.permute.xlu0 %6423
      %6425 = vrot.lane.b32.xlu0 %v5641, 24
      %v6426 = vpop.permute.xlu0 %6425
      %6427 = vrot.lane.b32.xlu0 %v5642, 24
      %v6428 = vpop.permute.xlu0 %6427
      %6429 = vrot.lane.b32.xlu0 %v5643, 24
      %v6430 = vpop.permute.xlu0 %6429
      %6431 = vrot.lane.b32.xlu0 %v5644, 24
      %v6432 = vpop.permute.xlu0 %6431
      %6433 = vrot.lane.b32.xlu0 %v5645, 24
      %v6434 = vpop.permute.xlu0 %6433
      %6435 = vrot.lane.b32.xlu0 %v5646, 24
      %v6436 = vpop.permute.xlu0 %6435
      %6437 = vrot.lane.b32.xlu0 %v5647, 24
      %v6438 = vpop.permute.xlu0 %6437
      %6439 = vrot.lane.b32.xlu0 %v5648, 24
      %v6440 = vpop.permute.xlu0 %6439
      %6441 = vrot.lane.b32.xlu0 %v5649, 24
      %v6442 = vpop.permute.xlu0 %6441
      %6443 = vrot.lane.b32.xlu0 %v5650, 24
      %v6444 = vpop.permute.xlu0 %6443
      %6445 = vrot.lane.b32.xlu0 %v5651, 24
      %v6446 = vpop.permute.xlu0 %6445
      %6447 = vrot.lane.b32.xlu0 %v5652, 24
      %v6448 = vpop.permute.xlu0 %6447
      %6449 = vrot.lane.b32.xlu0 %v5653, 24
      %v6450 = vpop.permute.xlu0 %6449
      %6451 = vrot.lane.b32.xlu0 %v5654, 24
      %v6452 = vpop.permute.xlu0 %6451
      %6453 = vrot.lane.b32.xlu0 %v5655, 24
      %v6454 = vpop.permute.xlu0 %6453
      %6455 = vrot.lane.b32.xlu0 %v5656, 24
      %v6456 = vpop.permute.xlu0 %6455
      %6457 = vrot.lane.b32.xlu0 %v5657, 24
      %v6458 = vpop.permute.xlu0 %6457
      %6459 = vrot.lane.b32.xlu0 %v5658, 24
      %v6460 = vpop.permute.xlu0 %6459
      %6525 = vrot.lane.b32.xlu0 %v5660, 28
      %v6526 = vpop.permute.xlu0 %6525
      %6527 = vrot.lane.b32.xlu0 %v5661, 28
      %v6528 = vpop.permute.xlu0 %6527
      %6529 = vrot.lane.b32.xlu0 %v5662, 28
      %v6530 = vpop.permute.xlu0 %6529
      %6531 = vrot.lane.b32.xlu0 %v5663, 28
      %v6532 = vpop.permute.xlu0 %6531
      %6533 = vrot.lane.b32.xlu0 %v5664, 28
      %v6534 = vpop.permute.xlu0 %6533
      %6535 = vrot.lane.b32.xlu0 %v5665, 28
      %v6536 = vpop.permute.xlu0 %6535
      %6537 = vrot.lane.b32.xlu0 %v5666, 28
      %v6538 = vpop.permute.xlu0 %6537
      %6539 = vrot.lane.b32.xlu0 %v5667, 28
      %v6540 = vpop.permute.xlu0 %6539
      %6541 = vrot.lane.b32.xlu0 %v5668, 28
      %v6542 = vpop.permute.xlu0 %6541
      %6543 = vrot.lane.b32.xlu0 %v5669, 28
      %v6544 = vpop.permute.xlu0 %6543
      %6545 = vrot.lane.b32.xlu0 %v5670, 28
      %v6546 = vpop.permute.xlu0 %6545
      %6547 = vrot.lane.b32.xlu0 %v5671, 28
      %v6548 = vpop.permute.xlu0 %6547
      %6549 = vrot.lane.b32.xlu0 %v5672, 28
      %v6550 = vpop.permute.xlu0 %6549
      %6551 = vrot.lane.b32.xlu0 %v5673, 28
      %v6552 = vpop.permute.xlu0 %6551
      %6553 = vrot.lane.b32.xlu0 %v5674, 28
      %v6554 = vpop.permute.xlu0 %6553
      %6555 = vrot.lane.b32.xlu0 %v5675, 28
      %v6556 = vpop.permute.xlu0 %6555
      %6557 = vrot.lane.b32.xlu0 %v5676, 28
      %v6558 = vpop.permute.xlu0 %6557
      %6559 = vrot.lane.b32.xlu0 %v5677, 28
      %v6560 = vpop.permute.xlu0 %6559
      %6561 = vrot.lane.b32.xlu0 %v5678, 28
      %v6562 = vpop.permute.xlu0 %6561
      %6563 = vrot.lane.b32.xlu0 %v5679, 28
      %v6564 = vpop.permute.xlu0 %6563
      %6565 = vrot.lane.b32.xlu0 %v5680, 28
      %v6566 = vpop.permute.xlu0 %6565
      %6567 = vrot.lane.b32.xlu0 %v5681, 28
      %v6568 = vpop.permute.xlu0 %6567
      %6569 = vrot.lane.b32.xlu0 %v5682, 28
      %v6570 = vpop.permute.xlu0 %6569
      %6571 = vrot.lane.b32.xlu0 %v5683, 28
      %v6572 = vpop.permute.xlu0 %6571
      %6573 = vrot.lane.b32.xlu0 %v5684, 28
      %v6574 = vpop.permute.xlu0 %6573
      %6575 = vrot.lane.b32.xlu0 %v5685, 28
      %v6576 = vpop.permute.xlu0 %6575
      %6577 = vrot.lane.b32.xlu0 %v5686, 28
      %v6578 = vpop.permute.xlu0 %6577
      %6579 = vrot.lane.b32.xlu0 %v5687, 28
      %v6580 = vpop.permute.xlu0 %6579
      %6581 = vrot.lane.b32.xlu0 %v5688, 28
      %v6582 = vpop.permute.xlu0 %6581
      %6583 = vrot.lane.b32.xlu0 %v5689, 28
      %v6584 = vpop.permute.xlu0 %6583
      %6585 = vrot.lane.b32.xlu0 %v5690, 28
      %v6586 = vpop.permute.xlu0 %6585
      %6587 = vrot.lane.b32.xlu0 %v5691, 28
      %v6588 = vpop.permute.xlu0 %6587
      %6653 = vrot.lane.b32.xlu0 %v5693, 32
      %v6654 = vpop.permute.xlu0 %6653
      %6655 = vrot.lane.b32.xlu0 %v5694, 32
      %v6656 = vpop.permute.xlu0 %6655
      %6657 = vrot.lane.b32.xlu0 %v5695, 32
      %v6658 = vpop.permute.xlu0 %6657
      %6659 = vrot.lane.b32.xlu0 %v5696, 32
      %v6660 = vpop.permute.xlu0 %6659
      %6661 = vrot.lane.b32.xlu0 %v5697, 32
      %v6662 = vpop.permute.xlu0 %6661
      %6663 = vrot.lane.b32.xlu0 %v5698, 32
      %v6664 = vpop.permute.xlu0 %6663
      %6665 = vrot.lane.b32.xlu0 %v5699, 32
      %v6666 = vpop.permute.xlu0 %6665
      %6667 = vrot.lane.b32.xlu0 %v5700, 32
      %v6668 = vpop.permute.xlu0 %6667
      %6669 = vrot.lane.b32.xlu0 %v5701, 32
      %v6670 = vpop.permute.xlu0 %6669
      %6671 = vrot.lane.b32.xlu0 %v5702, 32
      %v6672 = vpop.permute.xlu0 %6671
      %6673 = vrot.lane.b32.xlu0 %v5703, 32
      %v6674 = vpop.permute.xlu0 %6673
      %6675 = vrot.lane.b32.xlu0 %v5704, 32
      %v6676 = vpop.permute.xlu0 %6675
      %6677 = vrot.lane.b32.xlu0 %v5705, 32
      %v6678 = vpop.permute.xlu0 %6677
      %6679 = vrot.lane.b32.xlu0 %v5706, 32
      %v6680 = vpop.permute.xlu0 %6679
      %6681 = vrot.lane.b32.xlu0 %v5707, 32
      %v6682 = vpop.permute.xlu0 %6681
      %6683 = vrot.lane.b32.xlu0 %v5708, 32
      %v6684 = vpop.permute.xlu0 %6683
      %6685 = vrot.lane.b32.xlu0 %v5709, 32
      %v6686 = vpop.permute.xlu0 %6685
      %6687 = vrot.lane.b32.xlu0 %v5710, 32
      %v6688 = vpop.permute.xlu0 %6687
      %6689 = vrot.lane.b32.xlu0 %v5711, 32
      %v6690 = vpop.permute.xlu0 %6689
      %6691 = vrot.lane.b32.xlu0 %v5712, 32
      %v6692 = vpop.permute.xlu0 %6691
      %6693 = vrot.lane.b32.xlu0 %v5713, 32
      %v6694 = vpop.permute.xlu0 %6693
      %6695 = vrot.lane.b32.xlu0 %v5714, 32
      %v6696 = vpop.permute.xlu0 %6695
      %6697 = vrot.lane.b32.xlu0 %v5715, 32
      %v6698 = vpop.permute.xlu0 %6697
      %6699 = vrot.lane.b32.xlu0 %v5716, 32
      %v6700 = vpop.permute.xlu0 %6699
      %6701 = vrot.lane.b32.xlu0 %v5717, 32
      %v6702 = vpop.permute.xlu0 %6701
      %6703 = vrot.lane.b32.xlu0 %v5718, 32
      %v6704 = vpop.permute.xlu0 %6703
      %6705 = vrot.lane.b32.xlu0 %v5719, 32
      %v6706 = vpop.permute.xlu0 %6705
      %6707 = vrot.lane.b32.xlu0 %v5720, 32
      %v6708 = vpop.permute.xlu0 %6707
      %6709 = vrot.lane.b32.xlu0 %v5721, 32
      %v6710 = vpop.permute.xlu0 %6709
      %6711 = vrot.lane.b32.xlu0 %v5722, 32
      %v6712 = vpop.permute.xlu0 %6711
      %6713 = vrot.lane.b32.xlu0 %v5723, 32
      %v6714 = vpop.permute.xlu0 %6713
      %6715 = vrot.lane.b32.xlu0 %v5724, 32
      %v6716 = vpop.permute.xlu0 %6715
      %v6749 = vsel %vm461, %v5432, %v5758
      %v6750 = vsel %vm461, %v5433, %v5760
      %v6751 = vsel %vm461, %v5434, %v5762
      %v6752 = vsel %vm461, %v5435, %v5764
      %v6753 = vsel %vm461, %v5436, %v5766
      %v6754 = vsel %vm461, %v5437, %v5768
      %v6755 = vsel %vm461, %v5438, %v5770
      %v6756 = vsel %vm461, %v5439, %v5772
      %v6757 = vsel %vm461, %v5440, %v5774
      %v6758 = vsel %vm461, %v5441, %v5776
      %v6759 = vsel %vm461, %v5442, %v5778
      %v6760 = vsel %vm461, %v5443, %v5780
      %v6761 = vsel %vm461, %v5444, %v5782
      %v6762 = vsel %vm461, %v5445, %v5784
      %v6763 = vsel %vm461, %v5446, %v5786
      %v6764 = vsel %vm461, %v5447, %v5788
      %v6765 = vsel %vm461, %v5448, %v5790
      %v6766 = vsel %vm461, %v5449, %v5792
      %v6767 = vsel %vm461, %v5450, %v5794
      %v6768 = vsel %vm461, %v5451, %v5796
      %v6769 = vsel %vm461, %v5452, %v5798
      %v6770 = vsel %vm461, %v5453, %v5800
      %v6771 = vsel %vm461, %v5454, %v5802
      %v6772 = vsel %vm461, %v5455, %v5804
      %v6773 = vsel %vm461, %v5456, %v5806
      %v6774 = vsel %vm461, %v5457, %v5808
      %v6775 = vsel %vm461, %v5458, %v5810
      %v6776 = vsel %vm461, %v5459, %v5812
      %v6777 = vsel %vm461, %v5460, %v5814
      %v6778 = vsel %vm461, %v5461, %v5816
      %v6779 = vsel %vm461, %v5462, %v5818
      %v6780 = vsel %vm461, %v5463, %v5820
      %v6781 = vsel %vm1236, %v6749, %v5886
      %v6782 = vsel %vm1236, %v6750, %v5888
      %v6783 = vsel %vm1236, %v6751, %v5890
      %v6784 = vsel %vm1236, %v6752, %v5892
      %v6785 = vsel %vm1236, %v6753, %v5894
      %v6786 = vsel %vm1236, %v6754, %v5896
      %v6787 = vsel %vm1236, %v6755, %v5898
      %v6788 = vsel %vm1236, %v6756, %v5900
      %v6789 = vsel %vm1236, %v6757, %v5902
      %v6790 = vsel %vm1236, %v6758, %v5904
      %v6791 = vsel %vm1236, %v6759, %v5906
      %v6792 = vsel %vm1236, %v6760, %v5908
      %v6793 = vsel %vm1236, %v6761, %v5910
      %v6794 = vsel %vm1236, %v6762, %v5912
      %v6795 = vsel %vm1236, %v6763, %v5914
      %v6796 = vsel %vm1236, %v6764, %v5916
      %v6797 = vsel %vm1236, %v6765, %v5918
      %v6798 = vsel %vm1236, %v6766, %v5920
      %v6799 = vsel %vm1236, %v6767, %v5922
      %v6800 = vsel %vm1236, %v6768, %v5924
      %v6801 = vsel %vm1236, %v6769, %v5926
      %v6802 = vsel %vm1236, %v6770, %v5928
      %v6803 = vsel %vm1236, %v6771, %v5930
      %v6804 = vsel %vm1236, %v6772, %v5932
      %v6805 = vsel %vm1236, %v6773, %v5934
      %v6806 = vsel %vm1236, %v6774, %v5936
      %v6807 = vsel %vm1236, %v6775, %v5938
      %v6808 = vsel %vm1236, %v6776, %v5940
      %v6809 = vsel %vm1236, %v6777, %v5942
      %v6810 = vsel %vm1236, %v6778, %v5944
      %v6811 = vsel %vm1236, %v6779, %v5946
      %v6812 = vsel %vm1236, %v6780, %v5948
      %v6813 = vsel %vm3058, %v6781, %v6014
      %v6814 = vsel %vm3058, %v6782, %v6016
      %v6815 = vsel %vm3058, %v6783, %v6018
      %v6816 = vsel %vm3058, %v6784, %v6020
      %v6817 = vsel %vm3058, %v6785, %v6022
      %v6818 = vsel %vm3058, %v6786, %v6024
      %v6819 = vsel %vm3058, %v6787, %v6026
      %v6820 = vsel %vm3058, %v6788, %v6028
      %v6821 = vsel %vm3058, %v6789, %v6030
      %v6822 = vsel %vm3058, %v6790, %v6032
      %v6823 = vsel %vm3058, %v6791, %v6034
      %v6824 = vsel %vm3058, %v6792, %v6036
      %v6825 = vsel %vm3058, %v6793, %v6038
      %v6826 = vsel %vm3058, %v6794, %v6040
      %v6827 = vsel %vm3058, %v6795, %v6042
      %v6828 = vsel %vm3058, %v6796, %v6044
      %v6829 = vsel %vm3058, %v6797, %v6046
      %v6830 = vsel %vm3058, %v6798, %v6048
      %v6831 = vsel %vm3058, %v6799, %v6050
      %v6832 = vsel %vm3058, %v6800, %v6052
      %v6833 = vsel %vm3058, %v6801, %v6054
      %v6834 = vsel %vm3058, %v6802, %v6056
      %v6835 = vsel %vm3058, %v6803, %v6058
      %v6836 = vsel %vm3058, %v6804, %v6060
      %v6837 = vsel %vm3058, %v6805, %v6062
      %v6838 = vsel %vm3058, %v6806, %v6064
      %v6839 = vsel %vm3058, %v6807, %v6066
      %v6840 = vsel %vm3058, %v6808, %v6068
      %v6841 = vsel %vm3058, %v6809, %v6070
      %v6842 = vsel %vm3058, %v6810, %v6072
      %v6843 = vsel %vm3058, %v6811, %v6074
      %v6844 = vsel %vm3058, %v6812, %v6076
      %v6845 = vsel %vm3091, %v6813, %v6142
      %v6846 = vsel %vm3091, %v6814, %v6144
      %v6847 = vsel %vm3091, %v6815, %v6146
      %v6848 = vsel %vm3091, %v6816, %v6148
      %v6849 = vsel %vm3091, %v6817, %v6150
      %v6850 = vsel %vm3091, %v6818, %v6152
      %v6851 = vsel %vm3091, %v6819, %v6154
      %v6852 = vsel %vm3091, %v6820, %v6156
      %v6853 = vsel %vm3091, %v6821, %v6158
      %v6854 = vsel %vm3091, %v6822, %v6160
      %v6855 = vsel %vm3091, %v6823, %v6162
      %v6856 = vsel %vm3091, %v6824, %v6164
      %v6857 = vsel %vm3091, %v6825, %v6166
      %v6858 = vsel %vm3091, %v6826, %v6168
      %v6859 = vsel %vm3091, %v6827, %v6170
      %v6860 = vsel %vm3091, %v6828, %v6172
      %v6861 = vsel %vm3091, %v6829, %v6174
      %v6862 = vsel %vm3091, %v6830, %v6176
      %v6863 = vsel %vm3091, %v6831, %v6178
      %v6864 = vsel %vm3091, %v6832, %v6180
      %v6865 = vsel %vm3091, %v6833, %v6182
      %v6866 = vsel %vm3091, %v6834, %v6184
      %v6867 = vsel %vm3091, %v6835, %v6186
      %v6868 = vsel %vm3091, %v6836, %v6188
      %v6869 = vsel %vm3091, %v6837, %v6190
      %v6870 = vsel %vm3091, %v6838, %v6192
      %v6871 = vsel %vm3091, %v6839, %v6194
      %v6872 = vsel %vm3091, %v6840, %v6196
      %v6873 = vsel %vm3091, %v6841, %v6198
      %v6874 = vsel %vm3091, %v6842, %v6200
      %v6875 = vsel %vm3091, %v6843, %v6202
      %v6876 = vsel %vm3091, %v6844, %v6204
      %v6877 = vsel %vm3124, %v6845, %v6270
      %v6878 = vsel %vm3124, %v6846, %v6272
      %v6879 = vsel %vm3124, %v6847, %v6274
      %v6880 = vsel %vm3124, %v6848, %v6276
      %v6881 = vsel %vm3124, %v6849, %v6278
      %v6882 = vsel %vm3124, %v6850, %v6280
      %v6883 = vsel %vm3124, %v6851, %v6282
      %v6884 = vsel %vm3124, %v6852, %v6284
      %v6885 = vsel %vm3124, %v6853, %v6286
      %v6886 = vsel %vm3124, %v6854, %v6288
      %v6887 = vsel %vm3124, %v6855, %v6290
      %v6888 = vsel %vm3124, %v6856, %v6292
      %v6889 = vsel %vm3124, %v6857, %v6294
      %v6890 = vsel %vm3124, %v6858, %v6296
      %v6891 = vsel %vm3124, %v6859, %v6298
      %v6892 = vsel %vm3124, %v6860, %v6300
      %v6893 = vsel %vm3124, %v6861, %v6302
      %v6894 = vsel %vm3124, %v6862, %v6304
      %v6895 = vsel %vm3124, %v6863, %v6306
      %v6896 = vsel %vm3124, %v6864, %v6308
      %v6897 = vsel %vm3124, %v6865, %v6310
      %v6898 = vsel %vm3124, %v6866, %v6312
      %v6899 = vsel %vm3124, %v6867, %v6314
      %v6900 = vsel %vm3124, %v6868, %v6316
      %v6901 = vsel %vm3124, %v6869, %v6318
      %v6902 = vsel %vm3124, %v6870, %v6320
      %v6903 = vsel %vm3124, %v6871, %v6322
      %v6904 = vsel %vm3124, %v6872, %v6324
      %v6905 = vsel %vm3124, %v6873, %v6326
      %v6906 = vsel %vm3124, %v6874, %v6328
      %v6907 = vsel %vm3124, %v6875, %v6330
      %v6908 = vsel %vm3124, %v6876, %v6332
      %v6909 = vsel %vm3157, %v6877, %v6398
      %v6910 = vsel %vm3157, %v6878, %v6400
      %v6911 = vsel %vm3157, %v6879, %v6402
      %v6912 = vsel %vm3157, %v6880, %v6404
      %v6913 = vsel %vm3157, %v6881, %v6406
      %v6914 = vsel %vm3157, %v6882, %v6408
      %v6915 = vsel %vm3157, %v6883, %v6410
      %v6916 = vsel %vm3157, %v6884, %v6412
      %v6917 = vsel %vm3157, %v6885, %v6414
      %v6918 = vsel %vm3157, %v6886, %v6416
      %v6919 = vsel %vm3157, %v6887, %v6418
      %v6920 = vsel %vm3157, %v6888, %v6420
      %v6921 = vsel %vm3157, %v6889, %v6422
      %v6922 = vsel %vm3157, %v6890, %v6424
      %v6923 = vsel %vm3157, %v6891, %v6426
      %v6924 = vsel %vm3157, %v6892, %v6428
      %v6925 = vsel %vm3157, %v6893, %v6430
      %v6926 = vsel %vm3157, %v6894, %v6432
      %v6927 = vsel %vm3157, %v6895, %v6434
      %v6928 = vsel %vm3157, %v6896, %v6436
      %v6929 = vsel %vm3157, %v6897, %v6438
      %v6930 = vsel %vm3157, %v6898, %v6440
      %v6931 = vsel %vm3157, %v6899, %v6442
      %v6932 = vsel %vm3157, %v6900, %v6444
      %v6933 = vsel %vm3157, %v6901, %v6446
      %v6934 = vsel %vm3157, %v6902, %v6448
      %v6935 = vsel %vm3157, %v6903, %v6450
      %v6936 = vsel %vm3157, %v6904, %v6452
      %v6937 = vsel %vm3157, %v6905, %v6454
      %v6938 = vsel %vm3157, %v6906, %v6456
      %v6939 = vsel %vm3157, %v6907, %v6458
      %v6940 = vsel %vm3157, %v6908, %v6460
      %v6941 = vsel %vm3190, %v6909, %v6526
      %v6942 = vsel %vm3190, %v6910, %v6528
      %v6943 = vsel %vm3190, %v6911, %v6530
      %v6944 = vsel %vm3190, %v6912, %v6532
      %v6945 = vsel %vm3190, %v6913, %v6534
      %v6946 = vsel %vm3190, %v6914, %v6536
      %v6947 = vsel %vm3190, %v6915, %v6538
      %v6948 = vsel %vm3190, %v6916, %v6540
      %v6949 = vsel %vm3190, %v6917, %v6542
      %v6950 = vsel %vm3190, %v6918, %v6544
      %v6951 = vsel %vm3190, %v6919, %v6546
      %v6952 = vsel %vm3190, %v6920, %v6548
      %v6953 = vsel %vm3190, %v6921, %v6550
      %v6954 = vsel %vm3190, %v6922, %v6552
      %v6955 = vsel %vm3190, %v6923, %v6554
      %v6956 = vsel %vm3190, %v6924, %v6556
      %v6957 = vsel %vm3190, %v6925, %v6558
      %v6958 = vsel %vm3190, %v6926, %v6560
      %v6959 = vsel %vm3190, %v6927, %v6562
      %v6960 = vsel %vm3190, %v6928, %v6564
      %v6961 = vsel %vm3190, %v6929, %v6566
      %v6962 = vsel %vm3190, %v6930, %v6568
      %v6963 = vsel %vm3190, %v6931, %v6570
      %v6964 = vsel %vm3190, %v6932, %v6572
      %v6965 = vsel %vm3190, %v6933, %v6574
      %v6966 = vsel %vm3190, %v6934, %v6576
      %v6967 = vsel %vm3190, %v6935, %v6578
      %v6968 = vsel %vm3190, %v6936, %v6580
      %v6969 = vsel %vm3190, %v6937, %v6582
      %v6970 = vsel %vm3190, %v6938, %v6584
      %v6971 = vsel %vm3190, %v6939, %v6586
      %v6972 = vsel %vm3190, %v6940, %v6588
      %v6973 = vsel %vm3223, %v6941, %v6654
      %v6974 = vsel %vm3223, %v6942, %v6656
      %v6975 = vsel %vm3223, %v6943, %v6658
      %v6976 = vsel %vm3223, %v6944, %v6660
      %v6977 = vsel %vm3223, %v6945, %v6662
      %v6978 = vsel %vm3223, %v6946, %v6664
      %v6979 = vsel %vm3223, %v6947, %v6666
      %v6980 = vsel %vm3223, %v6948, %v6668
      %v6981 = vsel %vm3223, %v6949, %v6670
      %v6982 = vsel %vm3223, %v6950, %v6672
      %v6983 = vsel %vm3223, %v6951, %v6674
      %v6984 = vsel %vm3223, %v6952, %v6676
      %v6985 = vsel %vm3223, %v6953, %v6678
      %v6986 = vsel %vm3223, %v6954, %v6680
      %v6987 = vsel %vm3223, %v6955, %v6682
      %v6988 = vsel %vm3223, %v6956, %v6684
      %v6989 = vsel %vm3223, %v6957, %v6686
      %v6990 = vsel %vm3223, %v6958, %v6688
      %v6991 = vsel %vm3223, %v6959, %v6690
      %v6992 = vsel %vm3223, %v6960, %v6692
      %v6993 = vsel %vm3223, %v6961, %v6694
      %v6994 = vsel %vm3223, %v6962, %v6696
      %v6995 = vsel %vm3223, %v6963, %v6698
      %v6996 = vsel %vm3223, %v6964, %v6700
      %v6997 = vsel %vm3223, %v6965, %v6702
      %v6998 = vsel %vm3223, %v6966, %v6704
      %v6999 = vsel %vm3223, %v6967, %v6706
      %v7000 = vsel %vm3223, %v6968, %v6708
      %v7001 = vsel %vm3223, %v6969, %v6710
      %v7002 = vsel %vm3223, %v6970, %v6712
      %v7003 = vsel %vm3223, %v6971, %v6714
      %v7004 = vsel %vm3223, %v6972, %v6716
      %v7005 = vld [vmem:[%s9] sm:$0xff]
      %v7006 = vld [vmem:[%s9 + $0x8] sm:$0xff]
      %v7007 = vld [vmem:[%s9 + $0x10] sm:$0xff]
      %v7008 = vld [vmem:[%s9 + $0x18] sm:$0xff]
      %v7009 = vld [vmem:[%s9 + $0x20] sm:$0xf]
      %v7010 = vld [vmem:[%s10] sm:$0x1]
      %v7012 = vperm.slane %v7010, 0
      %v7015 = vsel %vm4839, %v6973, 0
      %v7018 = vsel %vm4839, %v6974, 0
      %v7021 = vsel %vm4839, %v6975, 0
      %v7024 = vsel %vm4839, %v6976, 0
      %v7027 = vsel %vm4839, %v6977, 0
      %v7030 = vsel %vm4839, %v6978, 0
      %v7033 = vsel %vm4839, %v6979, 0
      %v7036 = vsel %vm4839, %v6980, 0
      %v7039 = vsel %vm4839, %v6981, 0
      %v7042 = vsel %vm4839, %v6982, 0
      %v7045 = vsel %vm4839, %v6983, 0
      %v7048 = vsel %vm4839, %v6984, 0
      %v7051 = vsel %vm4839, %v6985, 0
      %v7054 = vsel %vm4839, %v6986, 0
      %v7057 = vsel %vm4839, %v6987, 0
      %v7060 = vsel %vm4839, %v6988, 0
      %v7063 = vsel %vm4839, %v6989, 0
      %v7066 = vsel %vm4839, %v6990, 0
      %v7069 = vsel %vm4839, %v6991, 0
      %v7072 = vsel %vm4839, %v6992, 0
      %v7075 = vsel %vm4839, %v6993, 0
      %v7078 = vsel %vm4839, %v6994, 0
      %v7081 = vsel %vm4839, %v6995, 0
      %v7084 = vsel %vm4839, %v6996, 0
      %v7087 = vsel %vm4839, %v6997, 0
      %v7090 = vsel %vm4839, %v6998, 0
      %v7093 = vsel %vm4839, %v6999, 0
      %v7096 = vsel %vm4839, %v7000, 0
      %v7099 = vsel %vm4839, %v7001, 0
      %v7102 = vsel %vm4839, %v7002, 0
      %v7105 = vsel %vm4839, %v7003, 0
      %v7108 = vsel %vm4839, %v7004, 0
      %v7111 = vsel %vm4936, %v7009, 0
      %7113 = vmatpush.msra.mxu0 0.0
      %7114 = vmatpush.msra.mxu0 0.0
      %7115 = vmatpush.msra.mxu0 0.0
      %7116 = vmatpush.msra.mxu0 0.0
      %7117 = vmatpush.msra.mxu0 0.0
      %7118 = vmatpush.msra.mxu0 0.0
      %7119 = vmatpush.msra.mxu0 0.0
      %7120 = vmatpush.msra.mxu0 0.0
      %7121 = vmatpush.msra.mxu0 0.0
      %7122 = vmatpush.msra.mxu0 0.0
      %7123 = vmatpush.msra.mxu0 0.0
      %7124 = vmatpush.msra.mxu0 %v7111
      %7125 = vmatpush.msra.mxu0 %v7008
      %7126 = vmatpush.msra.mxu0 %v7007
      %7127 = vmatpush.msra.mxu0 %v7006
      %7128 = vmatpush.msra.mxu0 %v7005
      %7129 = vmatmul.f32.gmra.mxu0 %v7015
      %v7130 = vpop.f32.mrf.mxu0
      %v7131 = vadd.f32 %v7012, %v7130
      %7132 = vmatmul.f32.gmra.mxu0 %v7018
      %v7133 = vpop.f32.mrf.mxu0
      %v7134 = vadd.f32 %v7012, %v7133
      %7135 = vmatmul.f32.gmra.mxu0 %v7021
      %v7136 = vpop.f32.mrf.mxu0
      %v7137 = vadd.f32 %v7012, %v7136
      %7138 = vmatmul.f32.gmra.mxu0 %v7024
      %v7139 = vpop.f32.mrf.mxu0
      %v7140 = vadd.f32 %v7012, %v7139
      %7141 = vmatmul.f32.gmra.mxu0 %v7027
      %v7142 = vpop.f32.mrf.mxu0
      %v7143 = vadd.f32 %v7012, %v7142
      %7144 = vmatmul.f32.gmra.mxu0 %v7030
      %v7145 = vpop.f32.mrf.mxu0
      %v7146 = vadd.f32 %v7012, %v7145
      %7147 = vmatmul.f32.gmra.mxu0 %v7033
      %v7148 = vpop.f32.mrf.mxu0
      %v7149 = vadd.f32 %v7012, %v7148
      %7150 = vmatmul.f32.gmra.mxu0 %v7036
      %v7151 = vpop.f32.mrf.mxu0
      %v7152 = vadd.f32 %v7012, %v7151
      %7153 = vmatmul.f32.gmra.mxu0 %v7039
      %v7154 = vpop.f32.mrf.mxu0
      %v7155 = vadd.f32 %v7012, %v7154
      %7156 = vmatmul.f32.gmra.mxu0 %v7042
      %v7157 = vpop.f32.mrf.mxu0
      %v7158 = vadd.f32 %v7012, %v7157
      %7159 = vmatmul.f32.gmra.mxu0 %v7045
      %v7160 = vpop.f32.mrf.mxu0
      %v7161 = vadd.f32 %v7012, %v7160
      %7162 = vmatmul.f32.gmra.mxu0 %v7048
      %v7163 = vpop.f32.mrf.mxu0
      %v7164 = vadd.f32 %v7012, %v7163
      %7165 = vmatmul.f32.gmra.mxu0 %v7051
      %v7166 = vpop.f32.mrf.mxu0
      %v7167 = vadd.f32 %v7012, %v7166
      %7168 = vmatmul.f32.gmra.mxu0 %v7054
      %v7169 = vpop.f32.mrf.mxu0
      %v7170 = vadd.f32 %v7012, %v7169
      %7171 = vmatmul.f32.gmra.mxu0 %v7057
      %v7172 = vpop.f32.mrf.mxu0
      %v7173 = vadd.f32 %v7012, %v7172
      %7174 = vmatmul.f32.gmra.mxu0 %v7060
      %v7175 = vpop.f32.mrf.mxu0
      %v7176 = vadd.f32 %v7012, %v7175
      %7177 = vmatmul.f32.gmra.mxu0 %v7063
      %v7178 = vpop.f32.mrf.mxu0
      %v7179 = vadd.f32 %v7012, %v7178
      %7180 = vmatmul.f32.gmra.mxu0 %v7066
      %v7181 = vpop.f32.mrf.mxu0
      %v7182 = vadd.f32 %v7012, %v7181
      %7183 = vmatmul.f32.gmra.mxu0 %v7069
      %v7184 = vpop.f32.mrf.mxu0
      %v7185 = vadd.f32 %v7012, %v7184
      %7186 = vmatmul.f32.gmra.mxu0 %v7072
      %v7187 = vpop.f32.mrf.mxu0
      %v7188 = vadd.f32 %v7012, %v7187
      %7189 = vmatmul.f32.gmra.mxu0 %v7075
      %v7190 = vpop.f32.mrf.mxu0
      %v7191 = vadd.f32 %v7012, %v7190
      %7192 = vmatmul.f32.gmra.mxu0 %v7078
      %v7193 = vpop.f32.mrf.mxu0
      %v7194 = vadd.f32 %v7012, %v7193
      %7195 = vmatmul.f32.gmra.mxu0 %v7081
      %v7196 = vpop.f32.mrf.mxu0
      %v7197 = vadd.f32 %v7012, %v7196
      %7198 = vmatmul.f32.gmra.mxu0 %v7084
      %v7199 = vpop.f32.mrf.mxu0
      %v7200 = vadd.f32 %v7012, %v7199
      %7201 = vmatmul.f32.gmra.mxu0 %v7087
      %v7202 = vpop.f32.mrf.mxu0
      %v7203 = vadd.f32 %v7012, %v7202
      %7204 = vmatmul.f32.gmra.mxu0 %v7090
      %v7205 = vpop.f32.mrf.mxu0
      %v7206 = vadd.f32 %v7012, %v7205
      %7207 = vmatmul.f32.gmra.mxu0 %v7093
      %v7208 = vpop.f32.mrf.mxu0
      %v7209 = vadd.f32 %v7012, %v7208
      %7210 = vmatmul.f32.gmra.mxu0 %v7096
      %v7211 = vpop.f32.mrf.mxu0
      %v7212 = vadd.f32 %v7012, %v7211
      %7213 = vmatmul.f32.gmra.mxu0 %v7099
      %v7214 = vpop.f32.mrf.mxu0
      %v7215 = vadd.f32 %v7012, %v7214
      %7216 = vmatmul.f32.gmra.mxu0 %v7102
      %v7217 = vpop.f32.mrf.mxu0
      %v7218 = vadd.f32 %v7012, %v7217
      %7219 = vmatmul.f32.gmra.mxu0 %v7105
      %v7220 = vpop.f32.mrf.mxu0
      %v7221 = vadd.f32 %v7012, %v7220
      %7222 = vmatmul.f32.gmra.mxu0 %v7108
      %v7223 = vpop.f32.mrf.mxu0
      %v7224 = vadd.f32 %v7012, %v7223
      %7225 = vdwg.mxu0
      %v7226 = vmax.f32 %v7131, 0.0
      %v7227 = vmax.f32 %v7134, 0.0
      %v7228 = vmax.f32 %v7137, 0.0
      %v7229 = vmax.f32 %v7140, 0.0
      %v7230 = vmax.f32 %v7143, 0.0
      %v7231 = vmax.f32 %v7146, 0.0
      %v7232 = vmax.f32 %v7149, 0.0
      %v7233 = vmax.f32 %v7152, 0.0
      %v7234 = vmax.f32 %v7155, 0.0
      %v7235 = vmax.f32 %v7158, 0.0
      %v7236 = vmax.f32 %v7161, 0.0
      %v7237 = vmax.f32 %v7164, 0.0
      %v7238 = vmax.f32 %v7167, 0.0
      %v7239 = vmax.f32 %v7170, 0.0
      %v7240 = vmax.f32 %v7173, 0.0
      %v7241 = vmax.f32 %v7176, 0.0
      %v7242 = vmax.f32 %v7179, 0.0
      %v7243 = vmax.f32 %v7182, 0.0
      %v7244 = vmax.f32 %v7185, 0.0
      %v7245 = vmax.f32 %v7188, 0.0
      %v7246 = vmax.f32 %v7191, 0.0
      %v7247 = vmax.f32 %v7194, 0.0
      %v7248 = vmax.f32 %v7197, 0.0
      %v7249 = vmax.f32 %v7200, 0.0
      %v7250 = vmax.f32 %v7203, 0.0
      %v7251 = vmax.f32 %v7206, 0.0
      %v7252 = vmax.f32 %v7209, 0.0
      %v7253 = vmax.f32 %v7212, 0.0
      %v7254 = vmax.f32 %v7215, 0.0
      %v7255 = vmax.f32 %v7218, 0.0
      %v7256 = vmax.f32 %v7221, 0.0
      %v7257 = vmax.f32 %v7224, 0.0
      %7258 = vst.msk [vmem:[%s1446 + $0x1] sm:$0xff] %vm461, %v7226
      %7259 = vst.msk [vmem:[%s1446 + $0x9] sm:$0xff] %vm461, %v7227
      %7260 = vst.msk [vmem:[%s1446 + $0x19] sm:$0xff] %vm461, %v7228
      %7261 = vst.msk [vmem:[%s1446 + $0x21] sm:$0xff] %vm461, %v7229
      %7262 = vst.msk [vmem:[%s1446 + $0x31] sm:$0xff] %vm461, %v7230
      %7263 = vst.msk [vmem:[%s1446 + $0x39] sm:$0xff] %vm461, %v7231
      %7264 = vst.msk [vmem:[%s1446 + $0x49] sm:$0xff] %vm461, %v7232
      %7265 = vst.msk [vmem:[%s1446 + $0x51] sm:$0xff] %vm461, %v7233
      %7266 = vst.msk [vmem:[%s1446 + $0x61] sm:$0xff] %vm461, %v7234
      %7267 = vst.msk [vmem:[%s1446 + $0x69] sm:$0xff] %vm461, %v7235
      %7268 = vst.msk [vmem:[%s1446 + $0x79] sm:$0xff] %vm461, %v7236
      %7269 = vst.msk [vmem:[%s1446 + $0x81] sm:$0xff] %vm461, %v7237
      %7270 = vst.msk [vmem:[%s1446 + $0x91] sm:$0xff] %vm461, %v7238
      %7271 = vst.msk [vmem:[%s1446 + $0x99] sm:$0xff] %vm461, %v7239
      %7272 = vst.msk [vmem:[%s1446 + $0xa9] sm:$0xff] %vm461, %v7240
      %7273 = vst.msk [vmem:[%s1446 + $0xb1] sm:$0xff] %vm461, %v7241
      %7274 = vst.msk [vmem:[%s1446 + $0xc1] sm:$0xff] %vm461, %v7242
      %7275 = vst.msk [vmem:[%s1446 + $0xc9] sm:$0xff] %vm461, %v7243
      %7276 = vst.msk [vmem:[%s1446 + $0xd9] sm:$0xff] %vm461, %v7244
      %7277 = vst.msk [vmem:[%s1446 + $0xe1] sm:$0xff] %vm461, %v7245
      %7278 = vst.msk [vmem:[%s1446 + $0xf1] sm:$0xff] %vm461, %v7246
      %7279 = vst.msk [vmem:[%s1446 + $0xf9] sm:$0xff] %vm461, %v7247
      %7280 = vst.msk [vmem:[%s1446 + $0x109] sm:$0xff] %vm461, %v7248
      %7281 = vst.msk [vmem:[%s1446 + $0x111] sm:$0xff] %vm461, %v7249
      %7282 = vst.msk [vmem:[%s1446 + $0x121] sm:$0xff] %vm461, %v7250
      %7283 = vst.msk [vmem:[%s1446 + $0x129] sm:$0xff] %vm461, %v7251
      %7284 = vst.msk [vmem:[%s1446 + $0x139] sm:$0xff] %vm461, %v7252
      %7285 = vst.msk [vmem:[%s1446 + $0x141] sm:$0xff] %vm461, %v7253
      %7286 = vst.msk [vmem:[%s1446 + $0x151] sm:$0xff] %vm461, %v7254
      %7287 = vst.msk [vmem:[%s1446 + $0x159] sm:$0xff] %vm461, %v7255
      %7288 = vst.msk [vmem:[%s1446 + $0x169] sm:$0xff] %vm461, %v7256
      %7289 = vst.msk [vmem:[%s1446 + $0x171] sm:$0xff] %vm461, %v7257
      %7290 = vst.msk [vmem:[%s1479] sm:$0xff] %vm461, %v7226
      %7291 = vst.msk [vmem:[%s1479 + $0x8] sm:$0xff] %vm461, %v7227
      %7292 = vst.msk [vmem:[%s1479 + $0x18] sm:$0xff] %vm461, %v7228
      %7293 = vst.msk [vmem:[%s1479 + $0x20] sm:$0xff] %vm461, %v7229
      %7294 = vst.msk [vmem:[%s1479 + $0x30] sm:$0xff] %vm461, %v7230
      %7295 = vst.msk [vmem:[%s1479 + $0x38] sm:$0xff] %vm461, %v7231
      %7296 = vst.msk [vmem:[%s1479 + $0x48] sm:$0xff] %vm461, %v7232
      %7297 = vst.msk [vmem:[%s1479 + $0x50] sm:$0xff] %vm461, %v7233
      %7298 = vst.msk [vmem:[%s1479 + $0x60] sm:$0xff] %vm461, %v7234
      %7299 = vst.msk [vmem:[%s1479 + $0x68] sm:$0xff] %vm461, %v7235
      %7300 = vst.msk [vmem:[%s1479 + $0x78] sm:$0xff] %vm461, %v7236
      %7301 = vst.msk [vmem:[%s1479 + $0x80] sm:$0xff] %vm461, %v7237
      %7302 = vst.msk [vmem:[%s1479 + $0x90] sm:$0xff] %vm461, %v7238
      %7303 = vst.msk [vmem:[%s1479 + $0x98] sm:$0xff] %vm461, %v7239
      %7304 = vst.msk [vmem:[%s1479 + $0xa8] sm:$0xff] %vm461, %v7240
      %7305 = vst.msk [vmem:[%s1479 + $0xb0] sm:$0xff] %vm461, %v7241
      %7306 = vst.msk [vmem:[%s1479 + $0xc0] sm:$0xff] %vm461, %v7242
      %7307 = vst.msk [vmem:[%s1479 + $0xc8] sm:$0xff] %vm461, %v7243
      %7308 = vst.msk [vmem:[%s1479 + $0xd8] sm:$0xff] %vm461, %v7244
      %7309 = vst.msk [vmem:[%s1479 + $0xe0] sm:$0xff] %vm461, %v7245
      %7310 = vst.msk [vmem:[%s1479 + $0xf0] sm:$0xff] %vm461, %v7246
      %7311 = vst.msk [vmem:[%s1479 + $0xf8] sm:$0xff] %vm461, %v7247
      %7312 = vst.msk [vmem:[%s1479 + $0x108] sm:$0xff] %vm461, %v7248
      %7313 = vst.msk [vmem:[%s1479 + $0x110] sm:$0xff] %vm461, %v7249
      %7314 = vst.msk [vmem:[%s1479 + $0x120] sm:$0xff] %vm461, %v7250
      %7315 = vst.msk [vmem:[%s1479 + $0x128] sm:$0xff] %vm461, %v7251
      %7316 = vst.msk [vmem:[%s1479 + $0x138] sm:$0xff] %vm461, %v7252
      %7317 = vst.msk [vmem:[%s1479 + $0x140] sm:$0xff] %vm461, %v7253
      %7318 = vst.msk [vmem:[%s1479 + $0x150] sm:$0xff] %vm461, %v7254
      %7319 = vst.msk [vmem:[%s1479 + $0x158] sm:$0xff] %vm461, %v7255
      %7320 = vst.msk [vmem:[%s1479 + $0x168] sm:$0xff] %vm461, %v7256
      %7321 = vst.msk [vmem:[%s1479 + $0x170] sm:$0xff] %vm461, %v7257
      %7322 = vst.msk [vmem:[%s1512 - $0x1] sm:$0xfe] %vm1513, %v7226
      %7323 = vst.msk [vmem:[%s1512 + $0x7] sm:$0xff] %vm461, %v7227
      %7324 = vst.msk [vmem:[%s1512 + $0x17] sm:$0xfe] %vm1513, %v7228
      %7325 = vst.msk [vmem:[%s1512 + $0x1f] sm:$0xff] %vm461, %v7229
      %7326 = vst.msk [vmem:[%s1512 + $0x2f] sm:$0xfe] %vm1513, %v7230
      %7327 = vst.msk [vmem:[%s1512 + $0x37] sm:$0xff] %vm461, %v7231
      %7328 = vst.msk [vmem:[%s1512 + $0x47] sm:$0xfe] %vm1513, %v7232
      %7329 = vst.msk [vmem:[%s1512 + $0x4f] sm:$0xff] %vm461, %v7233
      %7330 = vst.msk [vmem:[%s1512 + $0x5f] sm:$0xfe] %vm1513, %v7234
      %7331 = vst.msk [vmem:[%s1512 + $0x67] sm:$0xff] %vm461, %v7235
      %7332 = vst.msk [vmem:[%s1512 + $0x77] sm:$0xfe] %vm1513, %v7236
      %7333 = vst.msk [vmem:[%s1512 + $0x7f] sm:$0xff] %vm461, %v7237
      %7334 = vst.msk [vmem:[%s1512 + $0x8f] sm:$0xfe] %vm1513, %v7238
      %7335 = vst.msk [vmem:[%s1512 + $0x97] sm:$0xff] %vm461, %v7239
      %7336 = vst.msk [vmem:[%s1512 + $0xa7] sm:$0xfe] %vm1513, %v7240
      %7337 = vst.msk [vmem:[%s1512 + $0xaf] sm:$0xff] %vm461, %v7241
      %7338 = vst.msk [vmem:[%s1512 + $0xbf] sm:$0xfe] %vm1513, %v7242
      %7339 = vst.msk [vmem:[%s1512 + $0xc7] sm:$0xff] %vm461, %v7243
      %7340 = vst.msk [vmem:[%s1512 + $0xd7] sm:$0xfe] %vm1513, %v7244
      %7341 = vst.msk [vmem:[%s1512 + $0xdf] sm:$0xff] %vm461, %v7245
      %7342 = vst.msk [vmem:[%s1512 + $0xef] sm:$0xfe] %vm1513, %v7246
      %7343 = vst.msk [vmem:[%s1512 + $0xf7] sm:$0xff] %vm461, %v7247
      %7344 = vst.msk [vmem:[%s1512 + $0x107] sm:$0xfe] %vm1513, %v7248
      %7345 = vst.msk [vmem:[%s1512 + $0x10f] sm:$0xff] %vm461, %v7249
      %7346 = vst.msk [vmem:[%s1512 + $0x11f] sm:$0xfe] %vm1513, %v7250
      %7347 = vst.msk [vmem:[%s1512 + $0x127] sm:$0xff] %vm461, %v7251
      %7348 = vst.msk [vmem:[%s1512 + $0x137] sm:$0xfe] %vm1513, %v7252
      %7349 = vst.msk [vmem:[%s1512 + $0x13f] sm:$0xff] %vm461, %v7253
      %7350 = vst.msk [vmem:[%s1512 + $0x14f] sm:$0xfe] %vm1513, %v7254
      %7351 = vst.msk [vmem:[%s1512 + $0x157] sm:$0xff] %vm461, %v7255
      %7352 = vst.msk [vmem:[%s1512 + $0x167] sm:$0xfe] %vm1513, %v7256
      %7353 = vst.msk [vmem:[%s1512 + $0x16f] sm:$0xff] %vm461, %v7257
      %v7354 = vld [vmem:[#allocation2] sm:$0xff]
      %v7355 = vld [vmem:[#allocation2 + $0x8] sm:$0xff]
      %v7356 = vld [vmem:[#allocation2 + $0x18] sm:$0xff]
      %v7357 = vld [vmem:[#allocation2 + $0x20] sm:$0xff]
      %v7358 = vld [vmem:[#allocation2 + $0x30] sm:$0xff]
      %v7359 = vld [vmem:[#allocation2 + $0x38] sm:$0xff]
      %v7360 = vld [vmem:[#allocation2 + $0x48] sm:$0xff]
      %v7361 = vld [vmem:[#allocation2 + $0x50] sm:$0xff]
      %v7362 = vld [vmem:[#allocation2 + $0x60] sm:$0xff]
      %v7363 = vld [vmem:[#allocation2 + $0x68] sm:$0xff]
      %v7364 = vld [vmem:[#allocation2 + $0x78] sm:$0xff]
      %v7365 = vld [vmem:[#allocation2 + $0x80] sm:$0xff]
      %v7366 = vld [vmem:[#allocation2 + $0x90] sm:$0xff]
      %v7367 = vld [vmem:[#allocation2 + $0x98] sm:$0xff]
      %v7368 = vld [vmem:[#allocation2 + $0xa8] sm:$0xff]
      %v7369 = vld [vmem:[#allocation2 + $0xb0] sm:$0xff]
      %v7370 = vld [vmem:[#allocation2 + $0xc0] sm:$0xff]
      %v7371 = vld [vmem:[#allocation2 + $0xc8] sm:$0xff]
      %v7372 = vld [vmem:[#allocation2 + $0xd8] sm:$0xff]
      %v7373 = vld [vmem:[#allocation2 + $0xe0] sm:$0xff]
      %v7374 = vld [vmem:[#allocation2 + $0xf0] sm:$0xff]
      %v7375 = vld [vmem:[#allocation2 + $0xf8] sm:$0xff]
      %v7376 = vld [vmem:[#allocation2 + $0x108] sm:$0xff]
      %v7377 = vld [vmem:[#allocation2 + $0x110] sm:$0xff]
      %v7378 = vld [vmem:[#allocation2 + $0x120] sm:$0xff]
      %v7379 = vld [vmem:[#allocation2 + $0x128] sm:$0xff]
      %v7380 = vld [vmem:[#allocation2 + $0x138] sm:$0xff]
      %v7381 = vld [vmem:[#allocation2 + $0x140] sm:$0xff]
      %v7382 = vld [vmem:[#allocation2 + $0x150] sm:$0xff]
      %v7383 = vld [vmem:[#allocation2 + $0x158] sm:$0xff]
      %v7384 = vld [vmem:[#allocation2 + $0x168] sm:$0xff]
      %v7385 = vld [vmem:[#allocation2 + $0x170] sm:$0xff]
      %v7386 = vld [vmem:[%s1709] sm:$0xff]
      %v7387 = vld [vmem:[%s1709 + $0x8] sm:$0xff]
      %v7388 = vld [vmem:[%s1709 + $0x18] sm:$0xff]
      %v7389 = vld [vmem:[%s1709 + $0x20] sm:$0xff]
      %v7390 = vld [vmem:[%s1709 + $0x30] sm:$0xff]
      %v7391 = vld [vmem:[%s1709 + $0x38] sm:$0xff]
      %v7392 = vld [vmem:[%s1709 + $0x48] sm:$0xff]
      %v7393 = vld [vmem:[%s1709 + $0x50] sm:$0xff]
      %v7394 = vld [vmem:[%s1709 + $0x60] sm:$0xff]
      %v7395 = vld [vmem:[%s1709 + $0x68] sm:$0xff]
      %v7396 = vld [vmem:[%s1709 + $0x78] sm:$0xff]
      %v7397 = vld [vmem:[%s1709 + $0x80] sm:$0xff]
      %v7398 = vld [vmem:[%s1709 + $0x90] sm:$0xff]
      %v7399 = vld [vmem:[%s1709 + $0x98] sm:$0xff]
      %v7400 = vld [vmem:[%s1709 + $0xa8] sm:$0xff]
      %v7401 = vld [vmem:[%s1709 + $0xb0] sm:$0xff]
      %v7402 = vld [vmem:[%s1709 + $0xc0] sm:$0xff]
      %v7403 = vld [vmem:[%s1709 + $0xc8] sm:$0xff]
      %v7404 = vld [vmem:[%s1709 + $0xd8] sm:$0xff]
      %v7405 = vld [vmem:[%s1709 + $0xe0] sm:$0xff]
      %v7406 = vld [vmem:[%s1709 + $0xf0] sm:$0xff]
      %v7407 = vld [vmem:[%s1709 + $0xf8] sm:$0xff]
      %v7408 = vld [vmem:[%s1709 + $0x108] sm:$0xff]
      %v7409 = vld [vmem:[%s1709 + $0x110] sm:$0xff]
      %v7410 = vld [vmem:[%s1709 + $0x120] sm:$0xff]
      %v7411 = vld [vmem:[%s1709 + $0x128] sm:$0xff]
      %v7412 = vld [vmem:[%s1709 + $0x138] sm:$0xff]
      %v7413 = vld [vmem:[%s1709 + $0x140] sm:$0xff]
      %v7414 = vld [vmem:[%s1709 + $0x150] sm:$0xff]
      %v7415 = vld [vmem:[%s1709 + $0x158] sm:$0xff]
      %v7416 = vld [vmem:[%s1709 + $0x168] sm:$0xff]
      %v7417 = vld [vmem:[%s1709 + $0x170] sm:$0xff]
      %v7418 = vld [vmem:[%s1742] sm:$0xff]
      %v7419 = vld [vmem:[%s1742 + $0x8] sm:$0xff]
      %v7420 = vld [vmem:[%s1742 + $0x18] sm:$0xff]
      %v7421 = vld [vmem:[%s1742 + $0x20] sm:$0xff]
      %v7422 = vld [vmem:[%s1742 + $0x30] sm:$0xff]
      %v7423 = vld [vmem:[%s1742 + $0x38] sm:$0xff]
      %v7424 = vld [vmem:[%s1742 + $0x48] sm:$0xff]
      %v7425 = vld [vmem:[%s1742 + $0x50] sm:$0xff]
      %v7426 = vld [vmem:[%s1742 + $0x60] sm:$0xff]
      %v7427 = vld [vmem:[%s1742 + $0x68] sm:$0xff]
      %v7428 = vld [vmem:[%s1742 + $0x78] sm:$0xff]
      %v7429 = vld [vmem:[%s1742 + $0x80] sm:$0xff]
      %v7430 = vld [vmem:[%s1742 + $0x90] sm:$0xff]
      %v7431 = vld [vmem:[%s1742 + $0x98] sm:$0xff]
      %v7432 = vld [vmem:[%s1742 + $0xa8] sm:$0xff]
      %v7433 = vld [vmem:[%s1742 + $0xb0] sm:$0xff]
      %v7434 = vld [vmem:[%s1742 + $0xc0] sm:$0xff]
      %v7435 = vld [vmem:[%s1742 + $0xc8] sm:$0xff]
      %v7436 = vld [vmem:[%s1742 + $0xd8] sm:$0xff]
      %v7437 = vld [vmem:[%s1742 + $0xe0] sm:$0xff]
      %v7438 = vld [vmem:[%s1742 + $0xf0] sm:$0xff]
      %v7439 = vld [vmem:[%s1742 + $0xf8] sm:$0xff]
      %v7440 = vld [vmem:[%s1742 + $0x108] sm:$0xff]
      %v7441 = vld [vmem:[%s1742 + $0x110] sm:$0xff]
      %v7442 = vld [vmem:[%s1742 + $0x120] sm:$0xff]
      %v7443 = vld [vmem:[%s1742 + $0x128] sm:$0xff]
      %v7444 = vld [vmem:[%s1742 + $0x138] sm:$0xff]
      %v7445 = vld [vmem:[%s1742 + $0x140] sm:$0xff]
      %v7446 = vld [vmem:[%s1742 + $0x150] sm:$0xff]
      %v7447 = vld [vmem:[%s1742 + $0x158] sm:$0xff]
      %v7448 = vld [vmem:[%s1742 + $0x168] sm:$0xff]
      %v7449 = vld [vmem:[%s1742 + $0x170] sm:$0xff]
      %v7450 = vld [vmem:[%s1446] sm:$0xff]
      %v7451 = vld [vmem:[%s1446 + $0x8] sm:$0xff]
      %v7452 = vld [vmem:[%s1446 + $0x18] sm:$0xff]
      %v7453 = vld [vmem:[%s1446 + $0x20] sm:$0xff]
      %v7454 = vld [vmem:[%s1446 + $0x30] sm:$0xff]
      %v7455 = vld [vmem:[%s1446 + $0x38] sm:$0xff]
      %v7456 = vld [vmem:[%s1446 + $0x48] sm:$0xff]
      %v7457 = vld [vmem:[%s1446 + $0x50] sm:$0xff]
      %v7458 = vld [vmem:[%s1446 + $0x60] sm:$0xff]
      %v7459 = vld [vmem:[%s1446 + $0x68] sm:$0xff]
      %v7460 = vld [vmem:[%s1446 + $0x78] sm:$0xff]
      %v7461 = vld [vmem:[%s1446 + $0x80] sm:$0xff]
      %v7462 = vld [vmem:[%s1446 + $0x90] sm:$0xff]
      %v7463 = vld [vmem:[%s1446 + $0x98] sm:$0xff]
      %v7464 = vld [vmem:[%s1446 + $0xa8] sm:$0xff]
      %v7465 = vld [vmem:[%s1446 + $0xb0] sm:$0xff]
      %v7466 = vld [vmem:[%s1446 + $0xc0] sm:$0xff]
      %v7467 = vld [vmem:[%s1446 + $0xc8] sm:$0xff]
      %v7468 = vld [vmem:[%s1446 + $0xd8] sm:$0xff]
      %v7469 = vld [vmem:[%s1446 + $0xe0] sm:$0xff]
      %v7470 = vld [vmem:[%s1446 + $0xf0] sm:$0xff]
      %v7471 = vld [vmem:[%s1446 + $0xf8] sm:$0xff]
      %v7472 = vld [vmem:[%s1446 + $0x108] sm:$0xff]
      %v7473 = vld [vmem:[%s1446 + $0x110] sm:$0xff]
      %v7474 = vld [vmem:[%s1446 + $0x120] sm:$0xff]
      %v7475 = vld [vmem:[%s1446 + $0x128] sm:$0xff]
      %v7476 = vld [vmem:[%s1446 + $0x138] sm:$0xff]
      %v7477 = vld [vmem:[%s1446 + $0x140] sm:$0xff]
      %v7478 = vld [vmem:[%s1446 + $0x150] sm:$0xff]
      %v7479 = vld [vmem:[%s1446 + $0x158] sm:$0xff]
      %v7480 = vld [vmem:[%s1446 + $0x168] sm:$0xff]
      %v7481 = vld [vmem:[%s1446 + $0x170] sm:$0xff]
      %v7482 = vld [vmem:[%s1479] sm:$0xff]
      %v7483 = vld [vmem:[%s1479 + $0x8] sm:$0xff]
      %v7484 = vld [vmem:[%s1479 + $0x18] sm:$0xff]
      %v7485 = vld [vmem:[%s1479 + $0x20] sm:$0xff]
      %v7486 = vld [vmem:[%s1479 + $0x30] sm:$0xff]
      %v7487 = vld [vmem:[%s1479 + $0x38] sm:$0xff]
      %v7488 = vld [vmem:[%s1479 + $0x48] sm:$0xff]
      %v7489 = vld [vmem:[%s1479 + $0x50] sm:$0xff]
      %v7490 = vld [vmem:[%s1479 + $0x60] sm:$0xff]
      %v7491 = vld [vmem:[%s1479 + $0x68] sm:$0xff]
      %v7492 = vld [vmem:[%s1479 + $0x78] sm:$0xff]
      %v7493 = vld [vmem:[%s1479 + $0x80] sm:$0xff]
      %v7494 = vld [vmem:[%s1479 + $0x90] sm:$0xff]
      %v7495 = vld [vmem:[%s1479 + $0x98] sm:$0xff]
      %v7496 = vld [vmem:[%s1479 + $0xa8] sm:$0xff]
      %v7497 = vld [vmem:[%s1479 + $0xb0] sm:$0xff]
      %v7498 = vld [vmem:[%s1479 + $0xc0] sm:$0xff]
      %v7499 = vld [vmem:[%s1479 + $0xc8] sm:$0xff]
      %v7500 = vld [vmem:[%s1479 + $0xd8] sm:$0xff]
      %v7501 = vld [vmem:[%s1479 + $0xe0] sm:$0xff]
      %v7502 = vld [vmem:[%s1479 + $0xf0] sm:$0xff]
      %v7503 = vld [vmem:[%s1479 + $0xf8] sm:$0xff]
      %v7504 = vld [vmem:[%s1479 + $0x108] sm:$0xff]
      %v7505 = vld [vmem:[%s1479 + $0x110] sm:$0xff]
      %v7506 = vld [vmem:[%s1479 + $0x120] sm:$0xff]
      %v7507 = vld [vmem:[%s1479 + $0x128] sm:$0xff]
      %v7508 = vld [vmem:[%s1479 + $0x138] sm:$0xff]
      %v7509 = vld [vmem:[%s1479 + $0x140] sm:$0xff]
      %v7510 = vld [vmem:[%s1479 + $0x150] sm:$0xff]
      %v7511 = vld [vmem:[%s1479 + $0x158] sm:$0xff]
      %v7512 = vld [vmem:[%s1479 + $0x168] sm:$0xff]
      %v7513 = vld [vmem:[%s1479 + $0x170] sm:$0xff]
      %v7514 = vld [vmem:[%s1512] sm:$0xff]
      %v7515 = vld [vmem:[%s1512 + $0x8] sm:$0xff]
      %v7516 = vld [vmem:[%s1512 + $0x18] sm:$0xff]
      %v7517 = vld [vmem:[%s1512 + $0x20] sm:$0xff]
      %v7518 = vld [vmem:[%s1512 + $0x30] sm:$0xff]
      %v7519 = vld [vmem:[%s1512 + $0x38] sm:$0xff]
      %v7520 = vld [vmem:[%s1512 + $0x48] sm:$0xff]
      %v7521 = vld [vmem:[%s1512 + $0x50] sm:$0xff]
      %v7522 = vld [vmem:[%s1512 + $0x60] sm:$0xff]
      %v7523 = vld [vmem:[%s1512 + $0x68] sm:$0xff]
      %v7524 = vld [vmem:[%s1512 + $0x78] sm:$0xff]
      %v7525 = vld [vmem:[%s1512 + $0x80] sm:$0xff]
      %v7526 = vld [vmem:[%s1512 + $0x90] sm:$0xff]
      %v7527 = vld [vmem:[%s1512 + $0x98] sm:$0xff]
      %v7528 = vld [vmem:[%s1512 + $0xa8] sm:$0xff]
      %v7529 = vld [vmem:[%s1512 + $0xb0] sm:$0xff]
      %v7530 = vld [vmem:[%s1512 + $0xc0] sm:$0xff]
      %v7531 = vld [vmem:[%s1512 + $0xc8] sm:$0xff]
      %v7532 = vld [vmem:[%s1512 + $0xd8] sm:$0xff]
      %v7533 = vld [vmem:[%s1512 + $0xe0] sm:$0xff]
      %v7534 = vld [vmem:[%s1512 + $0xf0] sm:$0xff]
      %v7535 = vld [vmem:[%s1512 + $0xf8] sm:$0xff]
      %v7536 = vld [vmem:[%s1512 + $0x108] sm:$0xff]
      %v7537 = vld [vmem:[%s1512 + $0x110] sm:$0xff]
      %v7538 = vld [vmem:[%s1512 + $0x120] sm:$0xff]
      %v7539 = vld [vmem:[%s1512 + $0x128] sm:$0xff]
      %v7540 = vld [vmem:[%s1512 + $0x138] sm:$0xff]
      %v7541 = vld [vmem:[%s1512 + $0x140] sm:$0xff]
      %v7542 = vld [vmem:[%s1512 + $0x150] sm:$0xff]
      %v7543 = vld [vmem:[%s1512 + $0x158] sm:$0xff]
      %v7544 = vld [vmem:[%s1512 + $0x168] sm:$0xff]
      %v7545 = vld [vmem:[%s1512 + $0x170] sm:$0xff]
      %v7546 = vld [vmem:[%s1871] sm:$0xff]
      %v7547 = vld [vmem:[%s1871 + $0x8] sm:$0xff]
      %v7548 = vld [vmem:[%s1871 + $0x18] sm:$0xff]
      %v7549 = vld [vmem:[%s1871 + $0x20] sm:$0xff]
      %v7550 = vld [vmem:[%s1871 + $0x30] sm:$0xff]
      %v7551 = vld [vmem:[%s1871 + $0x38] sm:$0xff]
      %v7552 = vld [vmem:[%s1871 + $0x48] sm:$0xff]
      %v7553 = vld [vmem:[%s1871 + $0x50] sm:$0xff]
      %v7554 = vld [vmem:[%s1871 + $0x60] sm:$0xff]
      %v7555 = vld [vmem:[%s1871 + $0x68] sm:$0xff]
      %v7556 = vld [vmem:[%s1871 + $0x78] sm:$0xff]
      %v7557 = vld [vmem:[%s1871 + $0x80] sm:$0xff]
      %v7558 = vld [vmem:[%s1871 + $0x90] sm:$0xff]
      %v7559 = vld [vmem:[%s1871 + $0x98] sm:$0xff]
      %v7560 = vld [vmem:[%s1871 + $0xa8] sm:$0xff]
      %v7561 = vld [vmem:[%s1871 + $0xb0] sm:$0xff]
      %v7562 = vld [vmem:[%s1871 + $0xc0] sm:$0xff]
      %v7563 = vld [vmem:[%s1871 + $0xc8] sm:$0xff]
      %v7564 = vld [vmem:[%s1871 + $0xd8] sm:$0xff]
      %v7565 = vld [vmem:[%s1871 + $0xe0] sm:$0xff]
      %v7566 = vld [vmem:[%s1871 + $0xf0] sm:$0xff]
      %v7567 = vld [vmem:[%s1871 + $0xf8] sm:$0xff]
      %v7568 = vld [vmem:[%s1871 + $0x108] sm:$0xff]
      %v7569 = vld [vmem:[%s1871 + $0x110] sm:$0xff]
      %v7570 = vld [vmem:[%s1871 + $0x120] sm:$0xff]
      %v7571 = vld [vmem:[%s1871 + $0x128] sm:$0xff]
      %v7572 = vld [vmem:[%s1871 + $0x138] sm:$0xff]
      %v7573 = vld [vmem:[%s1871 + $0x140] sm:$0xff]
      %v7574 = vld [vmem:[%s1871 + $0x150] sm:$0xff]
      %v7575 = vld [vmem:[%s1871 + $0x158] sm:$0xff]
      %v7576 = vld [vmem:[%s1871 + $0x168] sm:$0xff]
      %v7577 = vld [vmem:[%s1871 + $0x170] sm:$0xff]
      %v7578 = vld [vmem:[%s1904] sm:$0xff]
      %v7579 = vld [vmem:[%s1904 + $0x8] sm:$0xff]
      %v7580 = vld [vmem:[%s1904 + $0x18] sm:$0xff]
      %v7581 = vld [vmem:[%s1904 + $0x20] sm:$0xff]
      %v7582 = vld [vmem:[%s1904 + $0x30] sm:$0xff]
      %v7583 = vld [vmem:[%s1904 + $0x38] sm:$0xff]
      %v7584 = vld [vmem:[%s1904 + $0x48] sm:$0xff]
      %v7585 = vld [vmem:[%s1904 + $0x50] sm:$0xff]
      %v7586 = vld [vmem:[%s1904 + $0x60] sm:$0xff]
      %v7587 = vld [vmem:[%s1904 + $0x68] sm:$0xff]
      %v7588 = vld [vmem:[%s1904 + $0x78] sm:$0xff]
      %v7589 = vld [vmem:[%s1904 + $0x80] sm:$0xff]
      %v7590 = vld [vmem:[%s1904 + $0x90] sm:$0xff]
      %v7591 = vld [vmem:[%s1904 + $0x98] sm:$0xff]
      %v7592 = vld [vmem:[%s1904 + $0xa8] sm:$0xff]
      %v7593 = vld [vmem:[%s1904 + $0xb0] sm:$0xff]
      %v7594 = vld [vmem:[%s1904 + $0xc0] sm:$0xff]
      %v7595 = vld [vmem:[%s1904 + $0xc8] sm:$0xff]
      %v7596 = vld [vmem:[%s1904 + $0xd8] sm:$0xff]
      %v7597 = vld [vmem:[%s1904 + $0xe0] sm:$0xff]
      %v7598 = vld [vmem:[%s1904 + $0xf0] sm:$0xff]
      %v7599 = vld [vmem:[%s1904 + $0xf8] sm:$0xff]
      %v7600 = vld [vmem:[%s1904 + $0x108] sm:$0xff]
      %v7601 = vld [vmem:[%s1904 + $0x110] sm:$0xff]
      %v7602 = vld [vmem:[%s1904 + $0x120] sm:$0xff]
      %v7603 = vld [vmem:[%s1904 + $0x128] sm:$0xff]
      %v7604 = vld [vmem:[%s1904 + $0x138] sm:$0xff]
      %v7605 = vld [vmem:[%s1904 + $0x140] sm:$0xff]
      %v7606 = vld [vmem:[%s1904 + $0x150] sm:$0xff]
      %v7607 = vld [vmem:[%s1904 + $0x158] sm:$0xff]
      %v7608 = vld [vmem:[%s1904 + $0x168] sm:$0xff]
      %v7609 = vld [vmem:[%s1904 + $0x170] sm:$0xff]
      %v7610 = vld [vmem:[%s1937] sm:$0xff]
      %v7611 = vld [vmem:[%s1937 + $0x8] sm:$0xff]
      %v7612 = vld [vmem:[%s1937 + $0x18] sm:$0xff]
      %v7613 = vld [vmem:[%s1937 + $0x20] sm:$0xff]
      %v7614 = vld [vmem:[%s1937 + $0x30] sm:$0xff]
      %v7615 = vld [vmem:[%s1937 + $0x38] sm:$0xff]
      %v7616 = vld [vmem:[%s1937 + $0x48] sm:$0xff]
      %v7617 = vld [vmem:[%s1937 + $0x50] sm:$0xff]
      %v7618 = vld [vmem:[%s1937 + $0x60] sm:$0xff]
      %v7619 = vld [vmem:[%s1937 + $0x68] sm:$0xff]
      %v7620 = vld [vmem:[%s1937 + $0x78] sm:$0xff]
      %v7621 = vld [vmem:[%s1937 + $0x80] sm:$0xff]
      %v7622 = vld [vmem:[%s1937 + $0x90] sm:$0xff]
      %v7623 = vld [vmem:[%s1937 + $0x98] sm:$0xff]
      %v7624 = vld [vmem:[%s1937 + $0xa8] sm:$0xff]
      %v7625 = vld [vmem:[%s1937 + $0xb0] sm:$0xff]
      %v7626 = vld [vmem:[%s1937 + $0xc0] sm:$0xff]
      %v7627 = vld [vmem:[%s1937 + $0xc8] sm:$0xff]
      %v7628 = vld [vmem:[%s1937 + $0xd8] sm:$0xff]
      %v7629 = vld [vmem:[%s1937 + $0xe0] sm:$0xff]
      %v7630 = vld [vmem:[%s1937 + $0xf0] sm:$0xff]
      %v7631 = vld [vmem:[%s1937 + $0xf8] sm:$0xff]
      %v7632 = vld [vmem:[%s1937 + $0x108] sm:$0xff]
      %v7633 = vld [vmem:[%s1937 + $0x110] sm:$0xff]
      %v7634 = vld [vmem:[%s1937 + $0x120] sm:$0xff]
      %v7635 = vld [vmem:[%s1937 + $0x128] sm:$0xff]
      %v7636 = vld [vmem:[%s1937 + $0x138] sm:$0xff]
      %v7637 = vld [vmem:[%s1937 + $0x140] sm:$0xff]
      %v7638 = vld [vmem:[%s1937 + $0x150] sm:$0xff]
      %v7639 = vld [vmem:[%s1937 + $0x158] sm:$0xff]
      %v7640 = vld [vmem:[%s1937 + $0x168] sm:$0xff]
      %v7641 = vld [vmem:[%s1937 + $0x170] sm:$0xff]
      %7674 = vrot.lane.b32.xlu0 %v7386, 4
      %v7675 = vpop.permute.xlu0 %7674
      %7676 = vrot.lane.b32.xlu0 %v7387, 4
      %v7677 = vpop.permute.xlu0 %7676
      %7678 = vrot.lane.b32.xlu0 %v7388, 4
      %v7679 = vpop.permute.xlu0 %7678
      %7680 = vrot.lane.b32.xlu0 %v7389, 4
      %v7681 = vpop.permute.xlu0 %7680
      %7682 = vrot.lane.b32.xlu0 %v7390, 4
      %v7683 = vpop.permute.xlu0 %7682
      %7684 = vrot.lane.b32.xlu0 %v7391, 4
      %v7685 = vpop.permute.xlu0 %7684
      %7686 = vrot.lane.b32.xlu0 %v7392, 4
      %v7687 = vpop.permute.xlu0 %7686
      %7688 = vrot.lane.b32.xlu0 %v7393, 4
      %v7689 = vpop.permute.xlu0 %7688
      %7690 = vrot.lane.b32.xlu0 %v7394, 4
      %v7691 = vpop.permute.xlu0 %7690
      %7692 = vrot.lane.b32.xlu0 %v7395, 4
      %v7693 = vpop.permute.xlu0 %7692
      %7694 = vrot.lane.b32.xlu0 %v7396, 4
      %v7695 = vpop.permute.xlu0 %7694
      %7696 = vrot.lane.b32.xlu0 %v7397, 4
      %v7697 = vpop.permute.xlu0 %7696
      %7698 = vrot.lane.b32.xlu0 %v7398, 4
      %v7699 = vpop.permute.xlu0 %7698
      %7700 = vrot.lane.b32.xlu0 %v7399, 4
      %v7701 = vpop.permute.xlu0 %7700
      %7702 = vrot.lane.b32.xlu0 %v7400, 4
      %v7703 = vpop.permute.xlu0 %7702
      %7704 = vrot.lane.b32.xlu0 %v7401, 4
      %v7705 = vpop.permute.xlu0 %7704
      %7706 = vrot.lane.b32.xlu0 %v7402, 4
      %v7707 = vpop.permute.xlu0 %7706
      %7708 = vrot.lane.b32.xlu0 %v7403, 4
      %v7709 = vpop.permute.xlu0 %7708
      %7710 = vrot.lane.b32.xlu0 %v7404, 4
      %v7711 = vpop.permute.xlu0 %7710
      %7712 = vrot.lane.b32.xlu0 %v7405, 4
      %v7713 = vpop.permute.xlu0 %7712
      %7714 = vrot.lane.b32.xlu0 %v7406, 4
      %v7715 = vpop.permute.xlu0 %7714
      %7716 = vrot.lane.b32.xlu0 %v7407, 4
      %v7717 = vpop.permute.xlu0 %7716
      %7718 = vrot.lane.b32.xlu0 %v7408, 4
      %v7719 = vpop.permute.xlu0 %7718
      %7720 = vrot.lane.b32.xlu0 %v7409, 4
      %v7721 = vpop.permute.xlu0 %7720
      %7722 = vrot.lane.b32.xlu0 %v7410, 4
      %v7723 = vpop.permute.xlu0 %7722
      %7724 = vrot.lane.b32.xlu0 %v7411, 4
      %v7725 = vpop.permute.xlu0 %7724
      %7726 = vrot.lane.b32.xlu0 %v7412, 4
      %v7727 = vpop.permute.xlu0 %7726
      %7728 = vrot.lane.b32.xlu0 %v7413, 4
      %v7729 = vpop.permute.xlu0 %7728
      %7730 = vrot.lane.b32.xlu0 %v7414, 4
      %v7731 = vpop.permute.xlu0 %7730
      %7732 = vrot.lane.b32.xlu0 %v7415, 4
      %v7733 = vpop.permute.xlu0 %7732
      %7734 = vrot.lane.b32.xlu0 %v7416, 4
      %v7735 = vpop.permute.xlu0 %7734
      %7736 = vrot.lane.b32.xlu0 %v7417, 4
      %v7737 = vpop.permute.xlu0 %7736
      %7802 = vrot.lane.b32.xlu0 %v7418, 8
      %v7803 = vpop.permute.xlu0 %7802
      %7804 = vrot.lane.b32.xlu0 %v7419, 8
      %v7805 = vpop.permute.xlu0 %7804
      %7806 = vrot.lane.b32.xlu0 %v7420, 8
      %v7807 = vpop.permute.xlu0 %7806
      %7808 = vrot.lane.b32.xlu0 %v7421, 8
      %v7809 = vpop.permute.xlu0 %7808
      %7810 = vrot.lane.b32.xlu0 %v7422, 8
      %v7811 = vpop.permute.xlu0 %7810
      %7812 = vrot.lane.b32.xlu0 %v7423, 8
      %v7813 = vpop.permute.xlu0 %7812
      %7814 = vrot.lane.b32.xlu0 %v7424, 8
      %v7815 = vpop.permute.xlu0 %7814
      %7816 = vrot.lane.b32.xlu0 %v7425, 8
      %v7817 = vpop.permute.xlu0 %7816
      %7818 = vrot.lane.b32.xlu0 %v7426, 8
      %v7819 = vpop.permute.xlu0 %7818
      %7820 = vrot.lane.b32.xlu0 %v7427, 8
      %v7821 = vpop.permute.xlu0 %7820
      %7822 = vrot.lane.b32.xlu0 %v7428, 8
      %v7823 = vpop.permute.xlu0 %7822
      %7824 = vrot.lane.b32.xlu0 %v7429, 8
      %v7825 = vpop.permute.xlu0 %7824
      %7826 = vrot.lane.b32.xlu0 %v7430, 8
      %v7827 = vpop.permute.xlu0 %7826
      %7828 = vrot.lane.b32.xlu0 %v7431, 8
      %v7829 = vpop.permute.xlu0 %7828
      %7830 = vrot.lane.b32.xlu0 %v7432, 8
      %v7831 = vpop.permute.xlu0 %7830
      %7832 = vrot.lane.b32.xlu0 %v7433, 8
      %v7833 = vpop.permute.xlu0 %7832
      %7834 = vrot.lane.b32.xlu0 %v7434, 8
      %v7835 = vpop.permute.xlu0 %7834
      %7836 = vrot.lane.b32.xlu0 %v7435, 8
      %v7837 = vpop.permute.xlu0 %7836
      %7838 = vrot.lane.b32.xlu0 %v7436, 8
      %v7839 = vpop.permute.xlu0 %7838
      %7840 = vrot.lane.b32.xlu0 %v7437, 8
      %v7841 = vpop.permute.xlu0 %7840
      %7842 = vrot.lane.b32.xlu0 %v7438, 8
      %v7843 = vpop.permute.xlu0 %7842
      %7844 = vrot.lane.b32.xlu0 %v7439, 8
      %v7845 = vpop.permute.xlu0 %7844
      %7846 = vrot.lane.b32.xlu0 %v7440, 8
      %v7847 = vpop.permute.xlu0 %7846
      %7848 = vrot.lane.b32.xlu0 %v7441, 8
      %v7849 = vpop.permute.xlu0 %7848
      %7850 = vrot.lane.b32.xlu0 %v7442, 8
      %v7851 = vpop.permute.xlu0 %7850
      %7852 = vrot.lane.b32.xlu0 %v7443, 8
      %v7853 = vpop.permute.xlu0 %7852
      %7854 = vrot.lane.b32.xlu0 %v7444, 8
      %v7855 = vpop.permute.xlu0 %7854
      %7856 = vrot.lane.b32.xlu0 %v7445, 8
      %v7857 = vpop.permute.xlu0 %7856
      %7858 = vrot.lane.b32.xlu0 %v7446, 8
      %v7859 = vpop.permute.xlu0 %7858
      %7860 = vrot.lane.b32.xlu0 %v7447, 8
      %v7861 = vpop.permute.xlu0 %7860
      %7862 = vrot.lane.b32.xlu0 %v7448, 8
      %v7863 = vpop.permute.xlu0 %7862
      %7864 = vrot.lane.b32.xlu0 %v7449, 8
      %v7865 = vpop.permute.xlu0 %7864
      %7930 = vrot.lane.b32.xlu0 %v7450, 12
      %v7931 = vpop.permute.xlu0 %7930
      %7932 = vrot.lane.b32.xlu0 %v7451, 12
      %v7933 = vpop.permute.xlu0 %7932
      %7934 = vrot.lane.b32.xlu0 %v7452, 12
      %v7935 = vpop.permute.xlu0 %7934
      %7936 = vrot.lane.b32.xlu0 %v7453, 12
      %v7937 = vpop.permute.xlu0 %7936
      %7938 = vrot.lane.b32.xlu0 %v7454, 12
      %v7939 = vpop.permute.xlu0 %7938
      %7940 = vrot.lane.b32.xlu0 %v7455, 12
      %v7941 = vpop.permute.xlu0 %7940
      %7942 = vrot.lane.b32.xlu0 %v7456, 12
      %v7943 = vpop.permute.xlu0 %7942
      %7944 = vrot.lane.b32.xlu0 %v7457, 12
      %v7945 = vpop.permute.xlu0 %7944
      %7946 = vrot.lane.b32.xlu0 %v7458, 12
      %v7947 = vpop.permute.xlu0 %7946
      %7948 = vrot.lane.b32.xlu0 %v7459, 12
      %v7949 = vpop.permute.xlu0 %7948
      %7950 = vrot.lane.b32.xlu0 %v7460, 12
      %v7951 = vpop.permute.xlu0 %7950
      %7952 = vrot.lane.b32.xlu0 %v7461, 12
      %v7953 = vpop.permute.xlu0 %7952
      %7954 = vrot.lane.b32.xlu0 %v7462, 12
      %v7955 = vpop.permute.xlu0 %7954
      %7956 = vrot.lane.b32.xlu0 %v7463, 12
      %v7957 = vpop.permute.xlu0 %7956
      %7958 = vrot.lane.b32.xlu0 %v7464, 12
      %v7959 = vpop.permute.xlu0 %7958
      %7960 = vrot.lane.b32.xlu0 %v7465, 12
      %v7961 = vpop.permute.xlu0 %7960
      %7962 = vrot.lane.b32.xlu0 %v7466, 12
      %v7963 = vpop.permute.xlu0 %7962
      %7964 = vrot.lane.b32.xlu0 %v7467, 12
      %v7965 = vpop.permute.xlu0 %7964
      %7966 = vrot.lane.b32.xlu0 %v7468, 12
      %v7967 = vpop.permute.xlu0 %7966
      %7968 = vrot.lane.b32.xlu0 %v7469, 12
      %v7969 = vpop.permute.xlu0 %7968
      %7970 = vrot.lane.b32.xlu0 %v7470, 12
      %v7971 = vpop.permute.xlu0 %7970
      %7972 = vrot.lane.b32.xlu0 %v7471, 12
      %v7973 = vpop.permute.xlu0 %7972
      %7974 = vrot.lane.b32.xlu0 %v7472, 12
      %v7975 = vpop.permute.xlu0 %7974
      %7976 = vrot.lane.b32.xlu0 %v7473, 12
      %v7977 = vpop.permute.xlu0 %7976
      %7978 = vrot.lane.b32.xlu0 %v7474, 12
      %v7979 = vpop.permute.xlu0 %7978
      %7980 = vrot.lane.b32.xlu0 %v7475, 12
      %v7981 = vpop.permute.xlu0 %7980
      %7982 = vrot.lane.b32.xlu0 %v7476, 12
      %v7983 = vpop.permute.xlu0 %7982
      %7984 = vrot.lane.b32.xlu0 %v7477, 12
      %v7985 = vpop.permute.xlu0 %7984
      %7986 = vrot.lane.b32.xlu0 %v7478, 12
      %v7987 = vpop.permute.xlu0 %7986
      %7988 = vrot.lane.b32.xlu0 %v7479, 12
      %v7989 = vpop.permute.xlu0 %7988
      %7990 = vrot.lane.b32.xlu0 %v7480, 12
      %v7991 = vpop.permute.xlu0 %7990
      %7992 = vrot.lane.b32.xlu0 %v7481, 12
      %v7993 = vpop.permute.xlu0 %7992
      %8058 = vrot.lane.b32.xlu0 %v7482, 16
      %v8059 = vpop.permute.xlu0 %8058
      %8060 = vrot.lane.b32.xlu0 %v7483, 16
      %v8061 = vpop.permute.xlu0 %8060
      %8062 = vrot.lane.b32.xlu0 %v7484, 16
      %v8063 = vpop.permute.xlu0 %8062
      %8064 = vrot.lane.b32.xlu0 %v7485, 16
      %v8065 = vpop.permute.xlu0 %8064
      %8066 = vrot.lane.b32.xlu0 %v7486, 16
      %v8067 = vpop.permute.xlu0 %8066
      %8068 = vrot.lane.b32.xlu0 %v7487, 16
      %v8069 = vpop.permute.xlu0 %8068
      %8070 = vrot.lane.b32.xlu0 %v7488, 16
      %v8071 = vpop.permute.xlu0 %8070
      %8072 = vrot.lane.b32.xlu0 %v7489, 16
      %v8073 = vpop.permute.xlu0 %8072
      %8074 = vrot.lane.b32.xlu0 %v7490, 16
      %v8075 = vpop.permute.xlu0 %8074
      %8076 = vrot.lane.b32.xlu0 %v7491, 16
      %v8077 = vpop.permute.xlu0 %8076
      %8078 = vrot.lane.b32.xlu0 %v7492, 16
      %v8079 = vpop.permute.xlu0 %8078
      %8080 = vrot.lane.b32.xlu0 %v7493, 16
      %v8081 = vpop.permute.xlu0 %8080
      %8082 = vrot.lane.b32.xlu0 %v7494, 16
      %v8083 = vpop.permute.xlu0 %8082
      %8084 = vrot.lane.b32.xlu0 %v7495, 16
      %v8085 = vpop.permute.xlu0 %8084
      %8086 = vrot.lane.b32.xlu0 %v7496, 16
      %v8087 = vpop.permute.xlu0 %8086
      %8088 = vrot.lane.b32.xlu0 %v7497, 16
      %v8089 = vpop.permute.xlu0 %8088
      %8090 = vrot.lane.b32.xlu0 %v7498, 16
      %v8091 = vpop.permute.xlu0 %8090
      %8092 = vrot.lane.b32.xlu0 %v7499, 16
      %v8093 = vpop.permute.xlu0 %8092
      %8094 = vrot.lane.b32.xlu0 %v7500, 16
      %v8095 = vpop.permute.xlu0 %8094
      %8096 = vrot.lane.b32.xlu0 %v7501, 16
      %v8097 = vpop.permute.xlu0 %8096
      %8098 = vrot.lane.b32.xlu0 %v7502, 16
      %v8099 = vpop.permute.xlu0 %8098
      %8100 = vrot.lane.b32.xlu0 %v7503, 16
      %v8101 = vpop.permute.xlu0 %8100
      %8102 = vrot.lane.b32.xlu0 %v7504, 16
      %v8103 = vpop.permute.xlu0 %8102
      %8104 = vrot.lane.b32.xlu0 %v7505, 16
      %v8105 = vpop.permute.xlu0 %8104
      %8106 = vrot.lane.b32.xlu0 %v7506, 16
      %v8107 = vpop.permute.xlu0 %8106
      %8108 = vrot.lane.b32.xlu0 %v7507, 16
      %v8109 = vpop.permute.xlu0 %8108
      %8110 = vrot.lane.b32.xlu0 %v7508, 16
      %v8111 = vpop.permute.xlu0 %8110
      %8112 = vrot.lane.b32.xlu0 %v7509, 16
      %v8113 = vpop.permute.xlu0 %8112
      %8114 = vrot.lane.b32.xlu0 %v7510, 16
      %v8115 = vpop.permute.xlu0 %8114
      %8116 = vrot.lane.b32.xlu0 %v7511, 16
      %v8117 = vpop.permute.xlu0 %8116
      %8118 = vrot.lane.b32.xlu0 %v7512, 16
      %v8119 = vpop.permute.xlu0 %8118
      %8120 = vrot.lane.b32.xlu0 %v7513, 16
      %v8121 = vpop.permute.xlu0 %8120
      %8186 = vrot.lane.b32.xlu0 %v7514, 20
      %v8187 = vpop.permute.xlu0 %8186
      %8188 = vrot.lane.b32.xlu0 %v7515, 20
      %v8189 = vpop.permute.xlu0 %8188
      %8190 = vrot.lane.b32.xlu0 %v7516, 20
      %v8191 = vpop.permute.xlu0 %8190
      %8192 = vrot.lane.b32.xlu0 %v7517, 20
      %v8193 = vpop.permute.xlu0 %8192
      %8194 = vrot.lane.b32.xlu0 %v7518, 20
      %v8195 = vpop.permute.xlu0 %8194
      %8196 = vrot.lane.b32.xlu0 %v7519, 20
      %v8197 = vpop.permute.xlu0 %8196
      %8198 = vrot.lane.b32.xlu0 %v7520, 20
      %v8199 = vpop.permute.xlu0 %8198
      %8200 = vrot.lane.b32.xlu0 %v7521, 20
      %v8201 = vpop.permute.xlu0 %8200
      %8202 = vrot.lane.b32.xlu0 %v7522, 20
      %v8203 = vpop.permute.xlu0 %8202
      %8204 = vrot.lane.b32.xlu0 %v7523, 20
      %v8205 = vpop.permute.xlu0 %8204
      %8206 = vrot.lane.b32.xlu0 %v7524, 20
      %v8207 = vpop.permute.xlu0 %8206
      %8208 = vrot.lane.b32.xlu0 %v7525, 20
      %v8209 = vpop.permute.xlu0 %8208
      %8210 = vrot.lane.b32.xlu0 %v7526, 20
      %v8211 = vpop.permute.xlu0 %8210
      %8212 = vrot.lane.b32.xlu0 %v7527, 20
      %v8213 = vpop.permute.xlu0 %8212
      %8214 = vrot.lane.b32.xlu0 %v7528, 20
      %v8215 = vpop.permute.xlu0 %8214
      %8216 = vrot.lane.b32.xlu0 %v7529, 20
      %v8217 = vpop.permute.xlu0 %8216
      %8218 = vrot.lane.b32.xlu0 %v7530, 20
      %v8219 = vpop.permute.xlu0 %8218
      %8220 = vrot.lane.b32.xlu0 %v7531, 20
      %v8221 = vpop.permute.xlu0 %8220
      %8222 = vrot.lane.b32.xlu0 %v7532, 20
      %v8223 = vpop.permute.xlu0 %8222
      %8224 = vrot.lane.b32.xlu0 %v7533, 20
      %v8225 = vpop.permute.xlu0 %8224
      %8226 = vrot.lane.b32.xlu0 %v7534, 20
      %v8227 = vpop.permute.xlu0 %8226
      %8228 = vrot.lane.b32.xlu0 %v7535, 20
      %v8229 = vpop.permute.xlu0 %8228
      %8230 = vrot.lane.b32.xlu0 %v7536, 20
      %v8231 = vpop.permute.xlu0 %8230
      %8232 = vrot.lane.b32.xlu0 %v7537, 20
      %v8233 = vpop.permute.xlu0 %8232
      %8234 = vrot.lane.b32.xlu0 %v7538, 20
      %v8235 = vpop.permute.xlu0 %8234
      %8236 = vrot.lane.b32.xlu0 %v7539, 20
      %v8237 = vpop.permute.xlu0 %8236
      %8238 = vrot.lane.b32.xlu0 %v7540, 20
      %v8239 = vpop.permute.xlu0 %8238
      %8240 = vrot.lane.b32.xlu0 %v7541, 20
      %v8241 = vpop.permute.xlu0 %8240
      %8242 = vrot.lane.b32.xlu0 %v7542, 20
      %v8243 = vpop.permute.xlu0 %8242
      %8244 = vrot.lane.b32.xlu0 %v7543, 20
      %v8245 = vpop.permute.xlu0 %8244
      %8246 = vrot.lane.b32.xlu0 %v7544, 20
      %v8247 = vpop.permute.xlu0 %8246
      %8248 = vrot.lane.b32.xlu0 %v7545, 20
      %v8249 = vpop.permute.xlu0 %8248
      %8314 = vrot.lane.b32.xlu0 %v7546, 24
      %v8315 = vpop.permute.xlu0 %8314
      %8316 = vrot.lane.b32.xlu0 %v7547, 24
      %v8317 = vpop.permute.xlu0 %8316
      %8318 = vrot.lane.b32.xlu0 %v7548, 24
      %v8319 = vpop.permute.xlu0 %8318
      %8320 = vrot.lane.b32.xlu0 %v7549, 24
      %v8321 = vpop.permute.xlu0 %8320
      %8322 = vrot.lane.b32.xlu0 %v7550, 24
      %v8323 = vpop.permute.xlu0 %8322
      %8324 = vrot.lane.b32.xlu0 %v7551, 24
      %v8325 = vpop.permute.xlu0 %8324
      %8326 = vrot.lane.b32.xlu0 %v7552, 24
      %v8327 = vpop.permute.xlu0 %8326
      %8328 = vrot.lane.b32.xlu0 %v7553, 24
      %v8329 = vpop.permute.xlu0 %8328
      %8330 = vrot.lane.b32.xlu0 %v7554, 24
      %v8331 = vpop.permute.xlu0 %8330
      %8332 = vrot.lane.b32.xlu0 %v7555, 24
      %v8333 = vpop.permute.xlu0 %8332
      %8334 = vrot.lane.b32.xlu0 %v7556, 24
      %v8335 = vpop.permute.xlu0 %8334
      %8336 = vrot.lane.b32.xlu0 %v7557, 24
      %v8337 = vpop.permute.xlu0 %8336
      %8338 = vrot.lane.b32.xlu0 %v7558, 24
      %v8339 = vpop.permute.xlu0 %8338
      %8340 = vrot.lane.b32.xlu0 %v7559, 24
      %v8341 = vpop.permute.xlu0 %8340
      %8342 = vrot.lane.b32.xlu0 %v7560, 24
      %v8343 = vpop.permute.xlu0 %8342
      %8344 = vrot.lane.b32.xlu0 %v7561, 24
      %v8345 = vpop.permute.xlu0 %8344
      %8346 = vrot.lane.b32.xlu0 %v7562, 24
      %v8347 = vpop.permute.xlu0 %8346
      %8348 = vrot.lane.b32.xlu0 %v7563, 24
      %v8349 = vpop.permute.xlu0 %8348
      %8350 = vrot.lane.b32.xlu0 %v7564, 24
      %v8351 = vpop.permute.xlu0 %8350
      %8352 = vrot.lane.b32.xlu0 %v7565, 24
      %v8353 = vpop.permute.xlu0 %8352
      %8354 = vrot.lane.b32.xlu0 %v7566, 24
      %v8355 = vpop.permute.xlu0 %8354
      %8356 = vrot.lane.b32.xlu0 %v7567, 24
      %v8357 = vpop.permute.xlu0 %8356
      %8358 = vrot.lane.b32.xlu0 %v7568, 24
      %v8359 = vpop.permute.xlu0 %8358
      %8360 = vrot.lane.b32.xlu0 %v7569, 24
      %v8361 = vpop.permute.xlu0 %8360
      %8362 = vrot.lane.b32.xlu0 %v7570, 24
      %v8363 = vpop.permute.xlu0 %8362
      %8364 = vrot.lane.b32.xlu0 %v7571, 24
      %v8365 = vpop.permute.xlu0 %8364
      %8366 = vrot.lane.b32.xlu0 %v7572, 24
      %v8367 = vpop.permute.xlu0 %8366
      %8368 = vrot.lane.b32.xlu0 %v7573, 24
      %v8369 = vpop.permute.xlu0 %8368
      %8370 = vrot.lane.b32.xlu0 %v7574, 24
      %v8371 = vpop.permute.xlu0 %8370
      %8372 = vrot.lane.b32.xlu0 %v7575, 24
      %v8373 = vpop.permute.xlu0 %8372
      %8374 = vrot.lane.b32.xlu0 %v7576, 24
      %v8375 = vpop.permute.xlu0 %8374
      %8376 = vrot.lane.b32.xlu0 %v7577, 24
      %v8377 = vpop.permute.xlu0 %8376
      %8442 = vrot.lane.b32.xlu0 %v7578, 28
      %v8443 = vpop.permute.xlu0 %8442
      %8444 = vrot.lane.b32.xlu0 %v7579, 28
      %v8445 = vpop.permute.xlu0 %8444
      %8446 = vrot.lane.b32.xlu0 %v7580, 28
      %v8447 = vpop.permute.xlu0 %8446
      %8448 = vrot.lane.b32.xlu0 %v7581, 28
      %v8449 = vpop.permute.xlu0 %8448
      %8450 = vrot.lane.b32.xlu0 %v7582, 28
      %v8451 = vpop.permute.xlu0 %8450
      %8452 = vrot.lane.b32.xlu0 %v7583, 28
      %v8453 = vpop.permute.xlu0 %8452
      %8454 = vrot.lane.b32.xlu0 %v7584, 28
      %v8455 = vpop.permute.xlu0 %8454
      %8456 = vrot.lane.b32.xlu0 %v7585, 28
      %v8457 = vpop.permute.xlu0 %8456
      %8458 = vrot.lane.b32.xlu0 %v7586, 28
      %v8459 = vpop.permute.xlu0 %8458
      %8460 = vrot.lane.b32.xlu0 %v7587, 28
      %v8461 = vpop.permute.xlu0 %8460
      %8462 = vrot.lane.b32.xlu0 %v7588, 28
      %v8463 = vpop.permute.xlu0 %8462
      %8464 = vrot.lane.b32.xlu0 %v7589, 28
      %v8465 = vpop.permute.xlu0 %8464
      %8466 = vrot.lane.b32.xlu0 %v7590, 28
      %v8467 = vpop.permute.xlu0 %8466
      %8468 = vrot.lane.b32.xlu0 %v7591, 28
      %v8469 = vpop.permute.xlu0 %8468
      %8470 = vrot.lane.b32.xlu0 %v7592, 28
      %v8471 = vpop.permute.xlu0 %8470
      %8472 = vrot.lane.b32.xlu0 %v7593, 28
      %v8473 = vpop.permute.xlu0 %8472
      %8474 = vrot.lane.b32.xlu0 %v7594, 28
      %v8475 = vpop.permute.xlu0 %8474
      %8476 = vrot.lane.b32.xlu0 %v7595, 28
      %v8477 = vpop.permute.xlu0 %8476
      %8478 = vrot.lane.b32.xlu0 %v7596, 28
      %v8479 = vpop.permute.xlu0 %8478
      %8480 = vrot.lane.b32.xlu0 %v7597, 28
      %v8481 = vpop.permute.xlu0 %8480
      %8482 = vrot.lane.b32.xlu0 %v7598, 28
      %v8483 = vpop.permute.xlu0 %8482
      %8484 = vrot.lane.b32.xlu0 %v7599, 28
      %v8485 = vpop.permute.xlu0 %8484
      %8486 = vrot.lane.b32.xlu0 %v7600, 28
      %v8487 = vpop.permute.xlu0 %8486
      %8488 = vrot.lane.b32.xlu0 %v7601, 28
      %v8489 = vpop.permute.xlu0 %8488
      %8490 = vrot.lane.b32.xlu0 %v7602, 28
      %v8491 = vpop.permute.xlu0 %8490
      %8492 = vrot.lane.b32.xlu0 %v7603, 28
      %v8493 = vpop.permute.xlu0 %8492
      %8494 = vrot.lane.b32.xlu0 %v7604, 28
      %v8495 = vpop.permute.xlu0 %8494
      %8496 = vrot.lane.b32.xlu0 %v7605, 28
      %v8497 = vpop.permute.xlu0 %8496
      %8498 = vrot.lane.b32.xlu0 %v7606, 28
      %v8499 = vpop.permute.xlu0 %8498
      %8500 = vrot.lane.b32.xlu0 %v7607, 28
      %v8501 = vpop.permute.xlu0 %8500
      %8502 = vrot.lane.b32.xlu0 %v7608, 28
      %v8503 = vpop.permute.xlu0 %8502
      %8504 = vrot.lane.b32.xlu0 %v7609, 28
      %v8505 = vpop.permute.xlu0 %8504
      %8570 = vrot.lane.b32.xlu0 %v7610, 32
      %v8571 = vpop.permute.xlu0 %8570
      %8572 = vrot.lane.b32.xlu0 %v7611, 32
      %v8573 = vpop.permute.xlu0 %8572
      %8574 = vrot.lane.b32.xlu0 %v7612, 32
      %v8575 = vpop.permute.xlu0 %8574
      %8576 = vrot.lane.b32.xlu0 %v7613, 32
      %v8577 = vpop.permute.xlu0 %8576
      %8578 = vrot.lane.b32.xlu0 %v7614, 32
      %v8579 = vpop.permute.xlu0 %8578
      %8580 = vrot.lane.b32.xlu0 %v7615, 32
      %v8581 = vpop.permute.xlu0 %8580
      %8582 = vrot.lane.b32.xlu0 %v7616, 32
      %v8583 = vpop.permute.xlu0 %8582
      %8584 = vrot.lane.b32.xlu0 %v7617, 32
      %v8585 = vpop.permute.xlu0 %8584
      %8586 = vrot.lane.b32.xlu0 %v7618, 32
      %v8587 = vpop.permute.xlu0 %8586
      %8588 = vrot.lane.b32.xlu0 %v7619, 32
      %v8589 = vpop.permute.xlu0 %8588
      %8590 = vrot.lane.b32.xlu0 %v7620, 32
      %v8591 = vpop.permute.xlu0 %8590
      %8592 = vrot.lane.b32.xlu0 %v7621, 32
      %v8593 = vpop.permute.xlu0 %8592
      %8594 = vrot.lane.b32.xlu0 %v7622, 32
      %v8595 = vpop.permute.xlu0 %8594
      %8596 = vrot.lane.b32.xlu0 %v7623, 32
      %v8597 = vpop.permute.xlu0 %8596
      %8598 = vrot.lane.b32.xlu0 %v7624, 32
      %v8599 = vpop.permute.xlu0 %8598
      %8600 = vrot.lane.b32.xlu0 %v7625, 32
      %v8601 = vpop.permute.xlu0 %8600
      %8602 = vrot.lane.b32.xlu0 %v7626, 32
      %v8603 = vpop.permute.xlu0 %8602
      %8604 = vrot.lane.b32.xlu0 %v7627, 32
      %v8605 = vpop.permute.xlu0 %8604
      %8606 = vrot.lane.b32.xlu0 %v7628, 32
      %v8607 = vpop.permute.xlu0 %8606
      %8608 = vrot.lane.b32.xlu0 %v7629, 32
      %v8609 = vpop.permute.xlu0 %8608
      %8610 = vrot.lane.b32.xlu0 %v7630, 32
      %v8611 = vpop.permute.xlu0 %8610
      %8612 = vrot.lane.b32.xlu0 %v7631, 32
      %v8613 = vpop.permute.xlu0 %8612
      %8614 = vrot.lane.b32.xlu0 %v7632, 32
      %v8615 = vpop.permute.xlu0 %8614
      %8616 = vrot.lane.b32.xlu0 %v7633, 32
      %v8617 = vpop.permute.xlu0 %8616
      %8618 = vrot.lane.b32.xlu0 %v7634, 32
      %v8619 = vpop.permute.xlu0 %8618
      %8620 = vrot.lane.b32.xlu0 %v7635, 32
      %v8621 = vpop.permute.xlu0 %8620
      %8622 = vrot.lane.b32.xlu0 %v7636, 32
      %v8623 = vpop.permute.xlu0 %8622
      %8624 = vrot.lane.b32.xlu0 %v7637, 32
      %v8625 = vpop.permute.xlu0 %8624
      %8626 = vrot.lane.b32.xlu0 %v7638, 32
      %v8627 = vpop.permute.xlu0 %8626
      %8628 = vrot.lane.b32.xlu0 %v7639, 32
      %v8629 = vpop.permute.xlu0 %8628
      %8630 = vrot.lane.b32.xlu0 %v7640, 32
      %v8631 = vpop.permute.xlu0 %8630
      %8632 = vrot.lane.b32.xlu0 %v7641, 32
      %v8633 = vpop.permute.xlu0 %8632
      %v8666 = vsel %vm461, %v7354, %v7675
      %v8667 = vsel %vm461, %v7355, %v7677
      %v8668 = vsel %vm461, %v7356, %v7679
      %v8669 = vsel %vm461, %v7357, %v7681
      %v8670 = vsel %vm461, %v7358, %v7683
      %v8671 = vsel %vm461, %v7359, %v7685
      %v8672 = vsel %vm461, %v7360, %v7687
      %v8673 = vsel %vm461, %v7361, %v7689
      %v8674 = vsel %vm461, %v7362, %v7691
      %v8675 = vsel %vm461, %v7363, %v7693
      %v8676 = vsel %vm461, %v7364, %v7695
      %v8677 = vsel %vm461, %v7365, %v7697
      %v8678 = vsel %vm461, %v7366, %v7699
      %v8679 = vsel %vm461, %v7367, %v7701
      %v8680 = vsel %vm461, %v7368, %v7703
      %v8681 = vsel %vm461, %v7369, %v7705
      %v8682 = vsel %vm461, %v7370, %v7707
      %v8683 = vsel %vm461, %v7371, %v7709
      %v8684 = vsel %vm461, %v7372, %v7711
      %v8685 = vsel %vm461, %v7373, %v7713
      %v8686 = vsel %vm461, %v7374, %v7715
      %v8687 = vsel %vm461, %v7375, %v7717
      %v8688 = vsel %vm461, %v7376, %v7719
      %v8689 = vsel %vm461, %v7377, %v7721
      %v8690 = vsel %vm461, %v7378, %v7723
      %v8691 = vsel %vm461, %v7379, %v7725
      %v8692 = vsel %vm461, %v7380, %v7727
      %v8693 = vsel %vm461, %v7381, %v7729
      %v8694 = vsel %vm461, %v7382, %v7731
      %v8695 = vsel %vm461, %v7383, %v7733
      %v8696 = vsel %vm461, %v7384, %v7735
      %v8697 = vsel %vm461, %v7385, %v7737
      %v8698 = vsel %vm1236, %v8666, %v7803
      %v8699 = vsel %vm1236, %v8667, %v7805
      %v8700 = vsel %vm1236, %v8668, %v7807
      %v8701 = vsel %vm1236, %v8669, %v7809
      %v8702 = vsel %vm1236, %v8670, %v7811
      %v8703 = vsel %vm1236, %v8671, %v7813
      %v8704 = vsel %vm1236, %v8672, %v7815
      %v8705 = vsel %vm1236, %v8673, %v7817
      %v8706 = vsel %vm1236, %v8674, %v7819
      %v8707 = vsel %vm1236, %v8675, %v7821
      %v8708 = vsel %vm1236, %v8676, %v7823
      %v8709 = vsel %vm1236, %v8677, %v7825
      %v8710 = vsel %vm1236, %v8678, %v7827
      %v8711 = vsel %vm1236, %v8679, %v7829
      %v8712 = vsel %vm1236, %v8680, %v7831
      %v8713 = vsel %vm1236, %v8681, %v7833
      %v8714 = vsel %vm1236, %v8682, %v7835
      %v8715 = vsel %vm1236, %v8683, %v7837
      %v8716 = vsel %vm1236, %v8684, %v7839
      %v8717 = vsel %vm1236, %v8685, %v7841
      %v8718 = vsel %vm1236, %v8686, %v7843
      %v8719 = vsel %vm1236, %v8687, %v7845
      %v8720 = vsel %vm1236, %v8688, %v7847
      %v8721 = vsel %vm1236, %v8689, %v7849
      %v8722 = vsel %vm1236, %v8690, %v7851
      %v8723 = vsel %vm1236, %v8691, %v7853
      %v8724 = vsel %vm1236, %v8692, %v7855
      %v8725 = vsel %vm1236, %v8693, %v7857
      %v8726 = vsel %vm1236, %v8694, %v7859
      %v8727 = vsel %vm1236, %v8695, %v7861
      %v8728 = vsel %vm1236, %v8696, %v7863
      %v8729 = vsel %vm1236, %v8697, %v7865
      %v8730 = vsel %vm3058, %v8698, %v7931
      %v8731 = vsel %vm3058, %v8699, %v7933
      %v8732 = vsel %vm3058, %v8700, %v7935
      %v8733 = vsel %vm3058, %v8701, %v7937
      %v8734 = vsel %vm3058, %v8702, %v7939
      %v8735 = vsel %vm3058, %v8703, %v7941
      %v8736 = vsel %vm3058, %v8704, %v7943
      %v8737 = vsel %vm3058, %v8705, %v7945
      %v8738 = vsel %vm3058, %v8706, %v7947
      %v8739 = vsel %vm3058, %v8707, %v7949
      %v8740 = vsel %vm3058, %v8708, %v7951
      %v8741 = vsel %vm3058, %v8709, %v7953
      %v8742 = vsel %vm3058, %v8710, %v7955
      %v8743 = vsel %vm3058, %v8711, %v7957
      %v8744 = vsel %vm3058, %v8712, %v7959
      %v8745 = vsel %vm3058, %v8713, %v7961
      %v8746 = vsel %vm3058, %v8714, %v7963
      %v8747 = vsel %vm3058, %v8715, %v7965
      %v8748 = vsel %vm3058, %v8716, %v7967
      %v8749 = vsel %vm3058, %v8717, %v7969
      %v8750 = vsel %vm3058, %v8718, %v7971
      %v8751 = vsel %vm3058, %v8719, %v7973
      %v8752 = vsel %vm3058, %v8720, %v7975
      %v8753 = vsel %vm3058, %v8721, %v7977
      %v8754 = vsel %vm3058, %v8722, %v7979
      %v8755 = vsel %vm3058, %v8723, %v7981
      %v8756 = vsel %vm3058, %v8724, %v7983
      %v8757 = vsel %vm3058, %v8725, %v7985
      %v8758 = vsel %vm3058, %v8726, %v7987
      %v8759 = vsel %vm3058, %v8727, %v7989
      %v8760 = vsel %vm3058, %v8728, %v7991
      %v8761 = vsel %vm3058, %v8729, %v7993
      %v8762 = vsel %vm3091, %v8730, %v8059
      %v8763 = vsel %vm3091, %v8731, %v8061
      %v8764 = vsel %vm3091, %v8732, %v8063
      %v8765 = vsel %vm3091, %v8733, %v8065
      %v8766 = vsel %vm3091, %v8734, %v8067
      %v8767 = vsel %vm3091, %v8735, %v8069
      %v8768 = vsel %vm3091, %v8736, %v8071
      %v8769 = vsel %vm3091, %v8737, %v8073
      %v8770 = vsel %vm3091, %v8738, %v8075
      %v8771 = vsel %vm3091, %v8739, %v8077
      %v8772 = vsel %vm3091, %v8740, %v8079
      %v8773 = vsel %vm3091, %v8741, %v8081
      %v8774 = vsel %vm3091, %v8742, %v8083
      %v8775 = vsel %vm3091, %v8743, %v8085
      %v8776 = vsel %vm3091, %v8744, %v8087
      %v8777 = vsel %vm3091, %v8745, %v8089
      %v8778 = vsel %vm3091, %v8746, %v8091
      %v8779 = vsel %vm3091, %v8747, %v8093
      %v8780 = vsel %vm3091, %v8748, %v8095
      %v8781 = vsel %vm3091, %v8749, %v8097
      %v8782 = vsel %vm3091, %v8750, %v8099
      %v8783 = vsel %vm3091, %v8751, %v8101
      %v8784 = vsel %vm3091, %v8752, %v8103
      %v8785 = vsel %vm3091, %v8753, %v8105
      %v8786 = vsel %vm3091, %v8754, %v8107
      %v8787 = vsel %vm3091, %v8755, %v8109
      %v8788 = vsel %vm3091, %v8756, %v8111
      %v8789 = vsel %vm3091, %v8757, %v8113
      %v8790 = vsel %vm3091, %v8758, %v8115
      %v8791 = vsel %vm3091, %v8759, %v8117
      %v8792 = vsel %vm3091, %v8760, %v8119
      %v8793 = vsel %vm3091, %v8761, %v8121
      %v8794 = vsel %vm3124, %v8762, %v8187
      %v8795 = vsel %vm3124, %v8763, %v8189
      %v8796 = vsel %vm3124, %v8764, %v8191
      %v8797 = vsel %vm3124, %v8765, %v8193
      %v8798 = vsel %vm3124, %v8766, %v8195
      %v8799 = vsel %vm3124, %v8767, %v8197
      %v8800 = vsel %vm3124, %v8768, %v8199
      %v8801 = vsel %vm3124, %v8769, %v8201
      %v8802 = vsel %vm3124, %v8770, %v8203
      %v8803 = vsel %vm3124, %v8771, %v8205
      %v8804 = vsel %vm3124, %v8772, %v8207
      %v8805 = vsel %vm3124, %v8773, %v8209
      %v8806 = vsel %vm3124, %v8774, %v8211
      %v8807 = vsel %vm3124, %v8775, %v8213
      %v8808 = vsel %vm3124, %v8776, %v8215
      %v8809 = vsel %vm3124, %v8777, %v8217
      %v8810 = vsel %vm3124, %v8778, %v8219
      %v8811 = vsel %vm3124, %v8779, %v8221
      %v8812 = vsel %vm3124, %v8780, %v8223
      %v8813 = vsel %vm3124, %v8781, %v8225
      %v8814 = vsel %vm3124, %v8782, %v8227
      %v8815 = vsel %vm3124, %v8783, %v8229
      %v8816 = vsel %vm3124, %v8784, %v8231
      %v8817 = vsel %vm3124, %v8785, %v8233
      %v8818 = vsel %vm3124, %v8786, %v8235
      %v8819 = vsel %vm3124, %v8787, %v8237
      %v8820 = vsel %vm3124, %v8788, %v8239
      %v8821 = vsel %vm3124, %v8789, %v8241
      %v8822 = vsel %vm3124, %v8790, %v8243
      %v8823 = vsel %vm3124, %v8791, %v8245
      %v8824 = vsel %vm3124, %v8792, %v8247
      %v8825 = vsel %vm3124, %v8793, %v8249
      %v8826 = vsel %vm3157, %v8794, %v8315
      %v8827 = vsel %vm3157, %v8795, %v8317
      %v8828 = vsel %vm3157, %v8796, %v8319
      %v8829 = vsel %vm3157, %v8797, %v8321
      %v8830 = vsel %vm3157, %v8798, %v8323
      %v8831 = vsel %vm3157, %v8799, %v8325
      %v8832 = vsel %vm3157, %v8800, %v8327
      %v8833 = vsel %vm3157, %v8801, %v8329
      %v8834 = vsel %vm3157, %v8802, %v8331
      %v8835 = vsel %vm3157, %v8803, %v8333
      %v8836 = vsel %vm3157, %v8804, %v8335
      %v8837 = vsel %vm3157, %v8805, %v8337
      %v8838 = vsel %vm3157, %v8806, %v8339
      %v8839 = vsel %vm3157, %v8807, %v8341
      %v8840 = vsel %vm3157, %v8808, %v8343
      %v8841 = vsel %vm3157, %v8809, %v8345
      %v8842 = vsel %vm3157, %v8810, %v8347
      %v8843 = vsel %vm3157, %v8811, %v8349
      %v8844 = vsel %vm3157, %v8812, %v8351
      %v8845 = vsel %vm3157, %v8813, %v8353
      %v8846 = vsel %vm3157, %v8814, %v8355
      %v8847 = vsel %vm3157, %v8815, %v8357
      %v8848 = vsel %vm3157, %v8816, %v8359
      %v8849 = vsel %vm3157, %v8817, %v8361
      %v8850 = vsel %vm3157, %v8818, %v8363
      %v8851 = vsel %vm3157, %v8819, %v8365
      %v8852 = vsel %vm3157, %v8820, %v8367
      %v8853 = vsel %vm3157, %v8821, %v8369
      %v8854 = vsel %vm3157, %v8822, %v8371
      %v8855 = vsel %vm3157, %v8823, %v8373
      %v8856 = vsel %vm3157, %v8824, %v8375
      %v8857 = vsel %vm3157, %v8825, %v8377
      %v8858 = vsel %vm3190, %v8826, %v8443
      %v8859 = vsel %vm3190, %v8827, %v8445
      %v8860 = vsel %vm3190, %v8828, %v8447
      %v8861 = vsel %vm3190, %v8829, %v8449
      %v8862 = vsel %vm3190, %v8830, %v8451
      %v8863 = vsel %vm3190, %v8831, %v8453
      %v8864 = vsel %vm3190, %v8832, %v8455
      %v8865 = vsel %vm3190, %v8833, %v8457
      %v8866 = vsel %vm3190, %v8834, %v8459
      %v8867 = vsel %vm3190, %v8835, %v8461
      %v8868 = vsel %vm3190, %v8836, %v8463
      %v8869 = vsel %vm3190, %v8837, %v8465
      %v8870 = vsel %vm3190, %v8838, %v8467
      %v8871 = vsel %vm3190, %v8839, %v8469
      %v8872 = vsel %vm3190, %v8840, %v8471
      %v8873 = vsel %vm3190, %v8841, %v8473
      %v8874 = vsel %vm3190, %v8842, %v8475
      %v8875 = vsel %vm3190, %v8843, %v8477
      %v8876 = vsel %vm3190, %v8844, %v8479
      %v8877 = vsel %vm3190, %v8845, %v8481
      %v8878 = vsel %vm3190, %v8846, %v8483
      %v8879 = vsel %vm3190, %v8847, %v8485
      %v8880 = vsel %vm3190, %v8848, %v8487
      %v8881 = vsel %vm3190, %v8849, %v8489
      %v8882 = vsel %vm3190, %v8850, %v8491
      %v8883 = vsel %vm3190, %v8851, %v8493
      %v8884 = vsel %vm3190, %v8852, %v8495
      %v8885 = vsel %vm3190, %v8853, %v8497
      %v8886 = vsel %vm3190, %v8854, %v8499
      %v8887 = vsel %vm3190, %v8855, %v8501
      %v8888 = vsel %vm3190, %v8856, %v8503
      %v8889 = vsel %vm3190, %v8857, %v8505
      %v8890 = vsel %vm3223, %v8858, %v8571
      %v8891 = vsel %vm3223, %v8859, %v8573
      %v8892 = vsel %vm3223, %v8860, %v8575
      %v8893 = vsel %vm3223, %v8861, %v8577
      %v8894 = vsel %vm3223, %v8862, %v8579
      %v8895 = vsel %vm3223, %v8863, %v8581
      %v8896 = vsel %vm3223, %v8864, %v8583
      %v8897 = vsel %vm3223, %v8865, %v8585
      %v8898 = vsel %vm3223, %v8866, %v8587
      %v8899 = vsel %vm3223, %v8867, %v8589
      %v8900 = vsel %vm3223, %v8868, %v8591
      %v8901 = vsel %vm3223, %v8869, %v8593
      %v8902 = vsel %vm3223, %v8870, %v8595
      %v8903 = vsel %vm3223, %v8871, %v8597
      %v8904 = vsel %vm3223, %v8872, %v8599
      %v8905 = vsel %vm3223, %v8873, %v8601
      %v8906 = vsel %vm3223, %v8874, %v8603
      %v8907 = vsel %vm3223, %v8875, %v8605
      %v8908 = vsel %vm3223, %v8876, %v8607
      %v8909 = vsel %vm3223, %v8877, %v8609
      %v8910 = vsel %vm3223, %v8878, %v8611
      %v8911 = vsel %vm3223, %v8879, %v8613
      %v8912 = vsel %vm3223, %v8880, %v8615
      %v8913 = vsel %vm3223, %v8881, %v8617
      %v8914 = vsel %vm3223, %v8882, %v8619
      %v8915 = vsel %vm3223, %v8883, %v8621
      %v8916 = vsel %vm3223, %v8884, %v8623
      %v8917 = vsel %vm3223, %v8885, %v8625
      %v8918 = vsel %vm3223, %v8886, %v8627
      %v8919 = vsel %vm3223, %v8887, %v8629
      %v8920 = vsel %vm3223, %v8888, %v8631
      %v8921 = vsel %vm3223, %v8889, %v8633
      %v8922 = vld [vmem:[%s11] sm:$0xff]
      %v8923 = vld [vmem:[%s11 + $0x8] sm:$0xff]
      %v8924 = vld [vmem:[%s11 + $0x10] sm:$0xff]
      %v8925 = vld [vmem:[%s11 + $0x18] sm:$0xff]
      %v8926 = vld [vmem:[%s11 + $0x20] sm:$0xf]
      %v8927 = vld [vmem:[%s12] sm:$0x1]
      %v8929 = vperm.slane %v8927, 0
      %v8932 = vsel %vm4839, %v8890, 0
      %v8935 = vsel %vm4839, %v8891, 0
      %v8938 = vsel %vm4839, %v8892, 0
      %v8941 = vsel %vm4839, %v8893, 0
      %v8944 = vsel %vm4839, %v8894, 0
      %v8947 = vsel %vm4839, %v8895, 0
      %v8950 = vsel %vm4839, %v8896, 0
      %v8953 = vsel %vm4839, %v8897, 0
      %v8956 = vsel %vm4839, %v8898, 0
      %v8959 = vsel %vm4839, %v8899, 0
      %v8962 = vsel %vm4839, %v8900, 0
      %v8965 = vsel %vm4839, %v8901, 0
      %v8968 = vsel %vm4839, %v8902, 0
      %v8971 = vsel %vm4839, %v8903, 0
      %v8974 = vsel %vm4839, %v8904, 0
      %v8977 = vsel %vm4839, %v8905, 0
      %v8980 = vsel %vm4839, %v8906, 0
      %v8983 = vsel %vm4839, %v8907, 0
      %v8986 = vsel %vm4839, %v8908, 0
      %v8989 = vsel %vm4839, %v8909, 0
      %v8992 = vsel %vm4839, %v8910, 0
      %v8995 = vsel %vm4839, %v8911, 0
      %v8998 = vsel %vm4839, %v8912, 0
      %v9001 = vsel %vm4839, %v8913, 0
      %v9004 = vsel %vm4839, %v8914, 0
      %v9007 = vsel %vm4839, %v8915, 0
      %v9010 = vsel %vm4839, %v8916, 0
      %v9013 = vsel %vm4839, %v8917, 0
      %v9016 = vsel %vm4839, %v8918, 0
      %v9019 = vsel %vm4839, %v8919, 0
      %v9022 = vsel %vm4839, %v8920, 0
      %v9025 = vsel %vm4839, %v8921, 0
      %v9028 = vsel %vm4936, %v8926, 0
      %9030 = vmatpush.msra.mxu0 0.0
      %9031 = vmatpush.msra.mxu0 0.0
      %9032 = vmatpush.msra.mxu0 0.0
      %9033 = vmatpush.msra.mxu0 0.0
      %9034 = vmatpush.msra.mxu0 0.0
      %9035 = vmatpush.msra.mxu0 0.0
      %9036 = vmatpush.msra.mxu0 0.0
      %9037 = vmatpush.msra.mxu0 0.0
      %9038 = vmatpush.msra.mxu0 0.0
      %9039 = vmatpush.msra.mxu0 0.0
      %9040 = vmatpush.msra.mxu0 0.0
      %9041 = vmatpush.msra.mxu0 %v9028
      %9042 = vmatpush.msra.mxu0 %v8925
      %9043 = vmatpush.msra.mxu0 %v8924
      %9044 = vmatpush.msra.mxu0 %v8923
      %9045 = vmatpush.msra.mxu0 %v8922
      %9046 = vmatmul.f32.gmra.mxu0 %v8932
      %v9047 = vpop.f32.mrf.mxu0
      %v9048 = vadd.f32 %v8929, %v9047
      %9049 = vmatmul.f32.gmra.mxu0 %v8935
      %v9050 = vpop.f32.mrf.mxu0
      %v9051 = vadd.f32 %v8929, %v9050
      %9052 = vmatmul.f32.gmra.mxu0 %v8938
      %v9053 = vpop.f32.mrf.mxu0
      %v9054 = vadd.f32 %v8929, %v9053
      %9055 = vmatmul.f32.gmra.mxu0 %v8941
      %v9056 = vpop.f32.mrf.mxu0
      %v9057 = vadd.f32 %v8929, %v9056
      %9058 = vmatmul.f32.gmra.mxu0 %v8944
      %v9059 = vpop.f32.mrf.mxu0
      %v9060 = vadd.f32 %v8929, %v9059
      %9061 = vmatmul.f32.gmra.mxu0 %v8947
      %v9062 = vpop.f32.mrf.mxu0
      %v9063 = vadd.f32 %v8929, %v9062
      %9064 = vmatmul.f32.gmra.mxu0 %v8950
      %v9065 = vpop.f32.mrf.mxu0
      %v9066 = vadd.f32 %v8929, %v9065
      %9067 = vmatmul.f32.gmra.mxu0 %v8953
      %v9068 = vpop.f32.mrf.mxu0
      %v9069 = vadd.f32 %v8929, %v9068
      %9070 = vmatmul.f32.gmra.mxu0 %v8956
      %v9071 = vpop.f32.mrf.mxu0
      %v9072 = vadd.f32 %v8929, %v9071
      %9073 = vmatmul.f32.gmra.mxu0 %v8959
      %v9074 = vpop.f32.mrf.mxu0
      %v9075 = vadd.f32 %v8929, %v9074
      %9076 = vmatmul.f32.gmra.mxu0 %v8962
      %v9077 = vpop.f32.mrf.mxu0
      %v9078 = vadd.f32 %v8929, %v9077
      %9079 = vmatmul.f32.gmra.mxu0 %v8965
      %v9080 = vpop.f32.mrf.mxu0
      %v9081 = vadd.f32 %v8929, %v9080
      %9082 = vmatmul.f32.gmra.mxu0 %v8968
      %v9083 = vpop.f32.mrf.mxu0
      %v9084 = vadd.f32 %v8929, %v9083
      %9085 = vmatmul.f32.gmra.mxu0 %v8971
      %v9086 = vpop.f32.mrf.mxu0
      %v9087 = vadd.f32 %v8929, %v9086
      %9088 = vmatmul.f32.gmra.mxu0 %v8974
      %v9089 = vpop.f32.mrf.mxu0
      %v9090 = vadd.f32 %v8929, %v9089
      %9091 = vmatmul.f32.gmra.mxu0 %v8977
      %v9092 = vpop.f32.mrf.mxu0
      %v9093 = vadd.f32 %v8929, %v9092
      %9094 = vmatmul.f32.gmra.mxu0 %v8980
      %v9095 = vpop.f32.mrf.mxu0
      %v9096 = vadd.f32 %v8929, %v9095
      %9097 = vmatmul.f32.gmra.mxu0 %v8983
      %v9098 = vpop.f32.mrf.mxu0
      %v9099 = vadd.f32 %v8929, %v9098
      %9100 = vmatmul.f32.gmra.mxu0 %v8986
      %v9101 = vpop.f32.mrf.mxu0
      %v9102 = vadd.f32 %v8929, %v9101
      %9103 = vmatmul.f32.gmra.mxu0 %v8989
      %v9104 = vpop.f32.mrf.mxu0
      %v9105 = vadd.f32 %v8929, %v9104
      %9106 = vmatmul.f32.gmra.mxu0 %v8992
      %v9107 = vpop.f32.mrf.mxu0
      %v9108 = vadd.f32 %v8929, %v9107
      %9109 = vmatmul.f32.gmra.mxu0 %v8995
      %v9110 = vpop.f32.mrf.mxu0
      %v9111 = vadd.f32 %v8929, %v9110
      %9112 = vmatmul.f32.gmra.mxu0 %v8998
      %v9113 = vpop.f32.mrf.mxu0
      %v9114 = vadd.f32 %v8929, %v9113
      %9115 = vmatmul.f32.gmra.mxu0 %v9001
      %v9116 = vpop.f32.mrf.mxu0
      %v9117 = vadd.f32 %v8929, %v9116
      %9118 = vmatmul.f32.gmra.mxu0 %v9004
      %v9119 = vpop.f32.mrf.mxu0
      %v9120 = vadd.f32 %v8929, %v9119
      %9121 = vmatmul.f32.gmra.mxu0 %v9007
      %v9122 = vpop.f32.mrf.mxu0
      %v9123 = vadd.f32 %v8929, %v9122
      %9124 = vmatmul.f32.gmra.mxu0 %v9010
      %v9125 = vpop.f32.mrf.mxu0
      %v9126 = vadd.f32 %v8929, %v9125
      %9127 = vmatmul.f32.gmra.mxu0 %v9013
      %v9128 = vpop.f32.mrf.mxu0
      %v9129 = vadd.f32 %v8929, %v9128
      %9130 = vmatmul.f32.gmra.mxu0 %v9016
      %v9131 = vpop.f32.mrf.mxu0
      %v9132 = vadd.f32 %v8929, %v9131
      %9133 = vmatmul.f32.gmra.mxu0 %v9019
      %v9134 = vpop.f32.mrf.mxu0
      %v9135 = vadd.f32 %v8929, %v9134
      %9136 = vmatmul.f32.gmra.mxu0 %v9022
      %v9137 = vpop.f32.mrf.mxu0
      %v9138 = vadd.f32 %v8929, %v9137
      %9139 = vmatmul.f32.gmra.mxu0 %v9025
      %v9140 = vpop.f32.mrf.mxu0
      %v9141 = vadd.f32 %v8929, %v9140
      %9142 = vdwg.mxu0
      %v9143 = vmax.f32 %v9048, 0.0
      %v9144 = vmax.f32 %v9051, 0.0
      %v9145 = vmax.f32 %v9054, 0.0
      %v9146 = vmax.f32 %v9057, 0.0
      %v9147 = vmax.f32 %v9060, 0.0
      %v9148 = vmax.f32 %v9063, 0.0
      %v9149 = vmax.f32 %v9066, 0.0
      %v9150 = vmax.f32 %v9069, 0.0
      %v9151 = vmax.f32 %v9072, 0.0
      %v9152 = vmax.f32 %v9075, 0.0
      %v9153 = vmax.f32 %v9078, 0.0
      %v9154 = vmax.f32 %v9081, 0.0
      %v9155 = vmax.f32 %v9084, 0.0
      %v9156 = vmax.f32 %v9087, 0.0
      %v9157 = vmax.f32 %v9090, 0.0
      %v9158 = vmax.f32 %v9093, 0.0
      %v9159 = vmax.f32 %v9096, 0.0
      %v9160 = vmax.f32 %v9099, 0.0
      %v9161 = vmax.f32 %v9102, 0.0
      %v9162 = vmax.f32 %v9105, 0.0
      %v9163 = vmax.f32 %v9108, 0.0
      %v9164 = vmax.f32 %v9111, 0.0
      %v9165 = vmax.f32 %v9114, 0.0
      %v9166 = vmax.f32 %v9117, 0.0
      %v9167 = vmax.f32 %v9120, 0.0
      %v9168 = vmax.f32 %v9123, 0.0
      %v9169 = vmax.f32 %v9126, 0.0
      %v9170 = vmax.f32 %v9129, 0.0
      %v9171 = vmax.f32 %v9132, 0.0
      %v9172 = vmax.f32 %v9135, 0.0
      %v9173 = vmax.f32 %v9138, 0.0
      %v9174 = vmax.f32 %v9141, 0.0
      %9175 = vst.msk [vmem:[%s460] sm:$0xff] %vm461, %v9143
      %9176 = vst.msk [vmem:[%s460 + $0x8] sm:$0xff] %vm461, %v9144
      %9177 = vst.msk [vmem:[%s460 + $0x10] sm:$0xff] %vm461, %v9145
      %9178 = vst.msk [vmem:[%s460 + $0x18] sm:$0xff] %vm461, %v9146
      %9179 = vst.msk [vmem:[%s460 + $0x20] sm:$0xff] %vm461, %v9147
      %9180 = vst.msk [vmem:[%s460 + $0x28] sm:$0xff] %vm461, %v9148
      %9181 = vst.msk [vmem:[%s460 + $0x30] sm:$0xff] %vm461, %v9149
      %9182 = vst.msk [vmem:[%s460 + $0x38] sm:$0xff] %vm461, %v9150
      %9183 = vst.msk [vmem:[%s460 + $0x40] sm:$0xff] %vm461, %v9151
      %9184 = vst.msk [vmem:[%s460 + $0x48] sm:$0xff] %vm461, %v9152
      %9185 = vst.msk [vmem:[%s460 + $0x50] sm:$0xff] %vm461, %v9153
      %9186 = vst.msk [vmem:[%s460 + $0x58] sm:$0xff] %vm461, %v9154
      %9187 = vst.msk [vmem:[%s460 + $0x60] sm:$0xff] %vm461, %v9155
      %9188 = vst.msk [vmem:[%s460 + $0x68] sm:$0xff] %vm461, %v9156
      %9189 = vst.msk [vmem:[%s460 + $0x70] sm:$0xff] %vm461, %v9157
      %9190 = vst.msk [vmem:[%s460 + $0x78] sm:$0xff] %vm461, %v9158
      %9191 = vst.msk [vmem:[%s460 + $0x80] sm:$0xff] %vm461, %v9159
      %9192 = vst.msk [vmem:[%s460 + $0x88] sm:$0xff] %vm461, %v9160
      %9193 = vst.msk [vmem:[%s460 + $0x90] sm:$0xff] %vm461, %v9161
      %9194 = vst.msk [vmem:[%s460 + $0x98] sm:$0xff] %vm461, %v9162
      %9195 = vst.msk [vmem:[%s460 + $0xa0] sm:$0xff] %vm461, %v9163
      %9196 = vst.msk [vmem:[%s460 + $0xa8] sm:$0xff] %vm461, %v9164
      %9197 = vst.msk [vmem:[%s460 + $0xb0] sm:$0xff] %vm461, %v9165
      %9198 = vst.msk [vmem:[%s460 + $0xb8] sm:$0xff] %vm461, %v9166
      %9199 = vst.msk [vmem:[%s460 + $0xc0] sm:$0xff] %vm461, %v9167
      %9200 = vst.msk [vmem:[%s460 + $0xc8] sm:$0xff] %vm461, %v9168
      %9201 = vst.msk [vmem:[%s460 + $0xd0] sm:$0xff] %vm461, %v9169
      %9202 = vst.msk [vmem:[%s460 + $0xd8] sm:$0xff] %vm461, %v9170
      %9203 = vst.msk [vmem:[%s460 + $0xe0] sm:$0xff] %vm461, %v9171
      %9204 = vst.msk [vmem:[%s460 + $0xe8] sm:$0xff] %vm461, %v9172
      %9205 = vst.msk [vmem:[%s460 + $0xf0] sm:$0xff] %vm461, %v9173
      %9206 = vst.msk [vmem:[%s460 + $0xf8] sm:$0xff] %vm461, %v9174
      %p9207 = scmp.lt.s32.totalorder %s24, 1
      %s9208 = scalar_select %p9207, %s24, 1
      %s9209 = smul.addr %s9208, 32
      %s9210 = smul.addr %s9209, 8
      %s9211 = scalar_lea.vmem %s13, %s9210
      // Predicated region
      $region73: #{_lambda_.1} parent=71 // pred_check
        %p9212 = pneg %p325
      $region74: #{_lambda_.1} parent=71 // pred_check_branch
        %9214 = sbr.rel (%p9212) target = $region76
      $region75: #{_lambda_.1} parent=71 // pred_region
        _
      $region76: #{_lambda_.1} parent=71 // pred_fallthru
        _
    $region72: #{_lambda_.1} parent=5 // pred_fallthru
      _
    %p9215 = scmp.le.s32.totalorder 2, %s19
    // Predicated region
    $region77: #{_lambda_.1} parent=5 // pred_check
      %p9216 = pneg %p9215
    $region78: #{_lambda_.1} parent=5 // pred_check_branch
      %9218 = sbr.rel (%p9216) target = $region80
    $region79: #{_lambda_.1} parent=5 // pred_region
      %s9219 = ssub.s32 %s19, 2
      // Predicated region
      $region81: #{_lambda_.1} parent=79 // pred_check
        %p9220 = pneg %p331
      $region82: #{_lambda_.1} parent=79 // pred_check_branch
        %9222 = sbr.rel (%p9220) target = $region84
      $region83: #{_lambda_.1} parent=79 // pred_region
        %p9223 = scmp.lt.s32.totalorder %s25, 1
        %s9224 = scalar_select %p9223, %s25, 1
        %s9225 = smul.addr %s9224, 32
        %s9226 = smul.addr %s9225, 8
        %s9227 = scalar_lea.vmem %s13, %s9226
      $region84: #{_lambda_.1} parent=79 // pred_fallthru
        _
    $region80: #{_lambda_.1} parent=5 // pred_fallthru
      _
  $region6: #{_lambda_.1} parent=0 // loop_footer
    %s23 = sadd.s32 1, %s19
  $region7: #{_lambda_.1} parent=0 // loop_footer_branch
    %18 = sbr.rel target = $region3
  $region8: #{_lambda_.1} parent=0 // loop_exit
    _

</llo_original>
